<compile_context>
chip_gen: v6e
topology: v6e:2x2x1
jax: 0.10.0
libtpu: 0.0.40
codegen_flags: <defaults>
</compile_context>

<pallas_src>
import functools
import numpy as np
import jax
import jax.numpy as jnp
from jax import lax
from jax.experimental import pallas as pl
from jax.experimental.pallas import tpu as pltpu

# ----------------------------- model hyper-params ---------------------------
SIZE = 16          # node feature size
DIST_SIZE = 12     # distance feature size
HIDDEN = 32        # MLP hidden size
FW_HEADS, FW_ATT = 8, 128    # DistanceBlock: heads=8, attention=128
RV_HEADS, RV_ATT = 4, 32     # ReverseDistanceBlock constructor args
LANE = 128


def _round_up(x, m):
    return ((x + m - 1) // m) * m


def _vmem_capacity_bytes():
    try:
        return int(pltpu.get_tpu_info().vmem_capacity_bytes)
    except Exception:
        return 64 * 1024 * 1024       # conservative (v7x) fallback


# ------------------------------- fused Pallas kernel -------------------------
def _flash_block_kernel(src_ref, tgt_ref, sgid_ref, tgid_ref,
                        wq_ref, bq_ref, wkv_ref, bkv_ref, wo_ref, bo_ref,
                        w1_ref, b1_ref, w2_ref, b2_ref, w3_ref, b3_ref,
                        out_ref,
                        q_scr, m_scr, l_scr, acc_scr,
                        *, heads, att):
    """Masked MHA (online softmax over source tiles) + residual + MLP + residual.

    src  : [ts, Din]   source tile (keys / values)
    tgt  : [tq, 128]   target tile (queries + residual base, lane-padded)
    sgid : [1,  ts]    int32 subgraph id of each source row in this tile
    tgid : [tq, 1]     int32 subgraph id of each target row in this tile
    out  : [tq, 128]   lane-dense output slab (pad lanes stay zero)
    """
    f32, bf16 = jnp.float32, jnp.bfloat16
    HA = heads * att
    j = pl.program_id(1)

    @pl.when(j == 0)
    def _():
        # query projection once per target tile (scale folded into wq/bq)
        q = jnp.dot(tgt_ref[...].astype(bf16), wq_ref[...],
                    preferred_element_type=f32) + bq_ref[...]
        q_scr[...] = q.astype(bf16)
        # -1e4 floor: >> mask value (-1e30) so fully-masked tiles underflow to 0,
        # << any realistic score so real maxima still dominate.
        m_scr[...] = jnp.full(m_scr.shape, -1e4, m_scr.dtype)
        l_scr[...] = jnp.zeros(l_scr.shape, l_scr.dtype)
        acc_scr[...] = jnp.zeros(acc_scr.shape, acc_scr.dtype)

    # neighbourhood (subgraph-id) additive mask for this source tile
    neighbour = tgid_ref[...] == sgid_ref[...]                 # [tq, ts]
    bias = jnp.where(neighbour, 0.0, -1e30).astype(f32)

    # fused K/V projection for this source tile (one MXU pass over src)
    kv = jnp.dot(src_ref[...].astype(bf16), wkv_ref[...],
                 preferred_element_type=f32) + bkv_ref[...]
    kv = kv.astype(bf16)                                        # [ts, 2*HA]

    for h in range(heads):                                      # static unroll
        lo = h * att
        qh = q_scr[:, lo:lo + att]
        kh = kv[:, lo:lo + att]
        vh = kv[:, HA + lo:HA + lo + att]
        # q @ k^T without an explicit transpose (contract last dims on the MXU)
        s = lax.dot_general(qh, kh, (((1,), (1,)), ((), ())),
                            preferred_element_type=f32) + bias  # [tq, ts]
        m_prev = m_scr[:, h:h + 1]
        m_new = jnp.maximum(m_prev, jnp.max(s, axis=-1, keepdims=True))
        alpha = jnp.exp(m_prev - m_new)
        p = jnp.exp(s - m_new)                                  # un-normalized
        l_scr[:, h:h + 1] = alpha * l_scr[:, h:h + 1] + jnp.sum(
            p, axis=-1, keepdims=True)
        acc_scr[:, lo:lo + att] = alpha * acc_scr[:, lo:lo + att] + jnp.dot(
            p.astype(bf16), vh, preferred_element_type=f32)
        m_scr[:, h:h + 1] = m_new

    @pl.when(j == pl.num_programs(1) - 1)
    def _():
        # deferred softmax normalization + output projection (per-head
        # accumulate: avoids materializing a concatenated ctx)
        att_out = bo_ref[...]
        for h in range(heads):
            lo = h * att
            inv = pl.reciprocal(jnp.maximum(l_scr[:, h:h + 1], 1e-20),
                                approx=True)
            ctx = (acc_scr[:, lo:lo + att] * inv).astype(bf16)
            att_out = att_out + jnp.dot(ctx, wo_ref[lo:lo + att, :],
                                        preferred_element_type=f32)
        valid = l_scr[:, 0:1] > 0.0            # isolated target -> zero attention
        att_out = jnp.where(valid, att_out, 0.0)

        # residual + MLP(depth=3, ReLU) + residual, lane-dense 128-wide store
        x = tgt_ref[...] + att_out
        h1 = jnp.maximum(jnp.dot(x.astype(bf16), w1_ref[...],
                                 preferred_element_type=f32) + b1_ref[...], 0.0)
        h2 = jnp.maximum(jnp.dot(h1.astype(bf16), w2_ref[...],
                                 preferred_element_type=f32) + b2_ref[...], 0.0)
        out_ref[...] = x + jnp.dot(h2.astype(bf16), w3_ref[...],
                                   preferred_element_type=f32) + b3_ref[...]


# ------------------------------- kernel wrapper ------------------------------
def fused_block(src, tgt, src_gid, tgt_gid, p, heads, att, out_size):
    """One pallas_call per sub-block: (target tiles) x (source tiles) grid."""
    ns, din = src.shape
    nt, dq = tgt.shape
    HA = heads * att

    vmem_cap = _vmem_capacity_bytes()
    big_vmem = vmem_cap >= 100 * 1024 * 1024        # v5e / v6e (128 MiB VMEM)
    max_tq = 512 if big_vmem else 256
    max_ts = 1024 if big_vmem else 512
    vmem_limit = int(min(0.75 * vmem_cap, 100 * 1024 * 1024))

    # target (query/residual) tiles
    tq = min(max_tq, _round_up(nt, 8))
    if not big_vmem and nt > 8:
        # v7x has 2 TensorCores: make sure the "parallel" axis has >=2 steps.
        tq = min(tq, _round_up((nt + 1) // 2, 8))
    nt_pad = _round_up(nt, tq)

    # source (key/value) tiles for the online-softmax reduction axis
    ts = min(max_ts, _round_up(ns, 8))
    ns_pad = _round_up(ns, ts)

    # pad rows, lane-pad targets to 128 (pad group ids never match real ones)
    tgt_p = jnp.zeros((nt_pad, LANE), jnp.float32).at[:nt, :dq].set(tgt)
    src_p = jnp.zeros((ns_pad, din), jnp.float32).at[:ns, :].set(src)
    tgid = jnp.full((nt_pad, 1), -1, jnp.int32).at[:nt, 0].set(
        tgt_gid.astype(jnp.int32))
    sgid = jnp.full((1, ns_pad), -2, jnp.int32).at[0, :ns].set(
        src_gid.astype(jnp.int32))

    const = lambda i, j: (0, 0)          # weights stay VMEM-resident
    row = lambda i, j: (i, 0)            # target-tile operands
    src_map = lambda i, j: (j, 0)        # source tiles stream along axis j
    sgid_map = lambda i, j: (0, j)

    kern = functools.partial(_flash_block_kernel, heads=heads, att=att)
    out = pl.pallas_call(
        kern,
        out_shape=jax.ShapeDtypeStruct((nt_pad, LANE), jnp.float32),
        grid=(nt_pad // tq, ns_pad // ts),
        in_specs=[
            pl.BlockSpec((ts, din), src_map),          # src
            pl.BlockSpec((tq, LANE), row),             # tgt (lane-padded)
            pl.BlockSpec((1, ts), sgid_map),           # src group ids
            pl.BlockSpec((tq, 1), row),                # tgt group ids
            pl.BlockSpec(p["wq"].shape, const), pl.BlockSpec(p["bq"].shape, const),
            pl.BlockSpec(p["wkv"].shape, const), pl.BlockSpec(p["bkv"].shape, const),
            pl.BlockSpec(p["wo"].shape, const), pl.BlockSpec(p["bo"].shape, const),
            pl.BlockSpec(p["w1"].shape, const), pl.BlockSpec(p["b1"].shape, const),
            pl.BlockSpec(p["w2"].shape, const), pl.BlockSpec(p["b2"].shape, const),
            pl.BlockSpec(p["w3"].shape, const), pl.BlockSpec(p["b3"].shape, const),
        ],
        out_specs=pl.BlockSpec((tq, LANE), row),
        scratch_shapes=[
            pltpu.VMEM((tq, HA), jnp.bfloat16),        # q (queries, bf16)
            pltpu.VMEM((tq, heads), jnp.float32),      # running max per head
            pltpu.VMEM((tq, heads), jnp.float32),      # running denom per head
            pltpu.VMEM((tq, HA), jnp.float32),         # ctx accumulator
        ],
        compiler_params=pltpu.CompilerParams(
            dimension_semantics=("parallel", "arbitrary"),
            vmem_limit_bytes=vmem_limit),
    )(src_p, tgt_p, sgid, tgid,
      p["wq"], p["bq"], p["wkv"], p["bkv"], p["wo"], p["bo"],
      p["w1"], p["b1"], p["w2"], p["b2"], p["w3"], p["b3"])
    return out[:nt, :out_size]


# ----------------------------- parameter creation ----------------------------
def _linear(key, fan_in, fan_out):
    kw, kb = jax.random.split(key)
    w = jax.random.normal(kw, (fan_in, fan_out), jnp.float32) / np.sqrt(fan_in)
    b = jax.random.normal(kb, (1, fan_out), jnp.float32) * 0.01
    return w, b


def init_attention(key, in_size, query_size, out_size, heads, att_size):
    HA = heads * att_size
    ks = jax.random.split(key, 4)
    wq, bq = _linear(ks[0], query_size, HA)
    wk, bk = _linear(ks[1], in_size, HA)
    wv, bv = _linear(ks[2], in_size, HA)
    wo, bo = _linear(ks[3], HA, out_size)

    scale = 1.0 / float(np.sqrt(att_size))
    wq = wq * scale                     # fold 1/sqrt(att) into the q projection
    bq = bq * scale
    wq = jnp.pad(wq, ((0, LANE - query_size), (0, 0)))   # queries arrive lane-padded
    wkv = jnp.concatenate([wk, wv], axis=1)              # fused K/V projection
    bkv = jnp.concatenate([bk, bv], axis=1)
    wo = jnp.pad(wo, ((0, 0), (0, LANE - out_size)))     # lane-dense output slab
    bo = jnp.pad(bo, ((0, 0), (0, LANE - out_size)))
    return dict(wq=wq.astype(jnp.bfloat16), bq=bq,
                wkv=wkv.astype(jnp.bfloat16), bkv=bkv,
                wo=wo.astype(jnp.bfloat16), bo=bo)


def init_mlp(key, in_size, hidden, out_size):
    ks = jax.random.split(key, 3)
    w1, b1 = _linear(ks[0], in_size, hidden)
    w2, b2 = _linear(ks[1], hidden, hidden)
    w3, b3 = _linear(ks[2], hidden, out_size)
    w1 = jnp.pad(w1, ((0, LANE - in_size), (0, 0)))      # consume lane-padded x
    w3 = jnp.pad(w3, ((0, 0), (0, LANE - out_size)))     # lane-dense output slab
    b3 = jnp.pad(b3, ((0, 0), (0, LANE - out_size)))
    return dict(w1=w1.astype(jnp.bfloat16), b1=b1,
                w2=w2.astype(jnp.bfloat16), b2=b2,
                w3=w3.astype(jnp.bfloat16), b3=b3)


def init_params(key):
    k1, k2, k3, k4 = jax.random.split(key, 4)
    return {
        "fw": {**init_attention(k1, SIZE + 1, DIST_SIZE, DIST_SIZE,
                                FW_HEADS, FW_ATT),
               **init_mlp(k2, DIST_SIZE, HIDDEN, DIST_SIZE)},
        "rv": {**init_attention(k3, DIST_SIZE + 2, SIZE, SIZE,
                                RV_HEADS, RV_ATT),
               **init_mlp(k4, SIZE, HIDDEN, SIZE)},
    }


# ------------------------------ forward (glue) -------------------------------
def _pairs(counts):
    """Upper-triangular (i < j) pairs inside each subgraph (pairwise_no_pad)."""
    pi, pj, off = [], [], 0
    for c in counts:
        c = int(c)
        for a in range(c):
            for b in range(a + 1, c):
                pi.append(off + a)
                pj.append(off + b)
        off += c
    return np.asarray(pi), np.asarray(pj)


def distance_transformer_encoder_block(node_features, distance_features,
                                       subgraph_indices, params, noise_key):
    # --- position features (irange / pairwise_no_pad; static-shape glue) -----
    indices = np.asarray(subgraph_indices)
    counts = np.bincount(indices)
    node_pos_np = np.concatenate(
        [np.arange(c) for c in counts]).astype(np.float32) / 64.0
    pair_i, pair_j = _pairs(counts)
    pair_group = indices[pair_i]

    node_pos = jnp.asarray(node_pos_np)
    # NOTE: matches the torch reference exactly — pairwise positions are the
    # (already /64) node positions divided by 64 again.
    dist_pos_0 = jnp.asarray(node_pos_np[pair_j] / 64.0)    # lambda x, y: y
    dist_pos_1 = jnp.asarray(node_pos_np[pair_i] / 64.0)    # lambda x, y: x

    node_pos_features = jnp.concatenate(
        [node_features, node_pos[:, None]], axis=1)                  # [N, SIZE+1]
    dist_pos_features = jnp.concatenate(
        [distance_features, dist_pos_0[:, None], dist_pos_1[:, None]], axis=1)

    kd, kn = jax.random.split(noise_key)
    d_in = distance_features + 0.1 * jax.random.normal(
        kd, distance_features.shape, jnp.float32)
    n_in = node_features + 0.1 * jax.random.normal(
        kn, node_features.shape, jnp.float32)

    node_gid = jnp.asarray(indices.astype(np.int32))          # [N]
    pair_gid = jnp.asarray(pair_group.astype(np.int32))       # [M]

    # fw: DistanceBlock — distance pairs query node(+pos) features
    distance_out = fused_block(node_pos_features, d_in, node_gid, pair_gid,
                               params["fw"], FW_HEADS, FW_ATT, DIST_SIZE)
    # rv: ReverseDistanceBlock — nodes query distance(+pos) features
    node_out = fused_block(dist_pos_features, n_in, pair_gid, node_gid,
                           params["rv"], RV_HEADS, RV_ATT, SIZE)
    return node_out, distance_out


# ----------------------------------- main ------------------------------------
if __name__ == "__main__":
    key = jax.random.PRNGKey(0)
    k_node, k_dist, k_param, k_noise = jax.random.split(key, 4)

    # two subgraphs of 8 nodes each
    subgraph_indices = np.repeat(np.arange(2), 8)             # [16]
    N = subgraph_indices.shape[0]
    pair_i, pair_j = _pairs(np.bincount(subgraph_indices))
    M = pair_i.shape[0]                                        # 2 * C(8,2) = 56

    node_features = jax.random.normal(k_node, (N, SIZE), jnp.float32)
    distance_features = jax.random.normal(k_dist, (M, DIST_SIZE), jnp.float32)

    params = init_params(k_param)

    node_out, distance_out = distance_transformer_encoder_block(
        node_features, distance_features, subgraph_indices, params, k_noise)

    jax.block_until_ready((node_out, distance_out))
    assert node_out.shape == (N, SIZE)
    assert distance_out.shape == (M, DIST_SIZE)
    assert bool(jnp.all(jnp.isfinite(node_out)))
    assert bool(jnp.all(jnp.isfinite(distance_out)))
    print("KERNEL_OK")
</pallas_src>

<mosaic_0001>
module attributes {stable_mosaic.version = 11 : i64} {
  func.func @_flash_block_kernel(%arg0: i32, %arg1: i32, %arg2: memref<16x17xf32, #tpu.memory_space<vmem>>, %arg3: memref<32x128xf32, #tpu.memory_space<vmem>>, %arg4: memref<1x16xi32, #tpu.memory_space<vmem>>, %arg5: memref<32x1xi32, #tpu.memory_space<vmem>>, %arg6: memref<128x1024xbf16, #tpu.memory_space<vmem>>, %arg7: memref<1x1024xf32, #tpu.memory_space<vmem>>, %arg8: memref<17x2048xbf16, #tpu.memory_space<vmem>>, %arg9: memref<1x2048xf32, #tpu.memory_space<vmem>>, %arg10: memref<1024x128xbf16, #tpu.memory_space<vmem>>, %arg11: memref<1x128xf32, #tpu.memory_space<vmem>>, %arg12: memref<128x32xbf16, #tpu.memory_space<vmem>>, %arg13: memref<1x32xf32, #tpu.memory_space<vmem>>, %arg14: memref<32x32xbf16, #tpu.memory_space<vmem>>, %arg15: memref<1x32xf32, #tpu.memory_space<vmem>>, %arg16: memref<32x128xbf16, #tpu.memory_space<vmem>>, %arg17: memref<1x128xf32, #tpu.memory_space<vmem>>, %arg18: memref<32x128xf32, #tpu.memory_space<vmem>>, %arg19: memref<32x1024xbf16, #tpu.memory_space<vmem>>, %arg20: memref<32x8xf32, #tpu.memory_space<vmem>>, %arg21: memref<32x8xf32, #tpu.memory_space<vmem>>, %arg22: memref<32x1024xf32, #tpu.memory_space<vmem>>) attributes {dimension_semantics = [#tpu.dimension_semantics<parallel>, #tpu.dimension_semantics<arbitrary>], iteration_bounds = array<i64: 2, 1>, scalar_prefetch = 0 : i64, scratch_operands = 4 : i64, tpu.core_type = #tpu.core_type<tc>, window_params = [{transform_indices = @transform_0, window_bounds = array<i64: 16, 17>}, {transform_indices = @transform_1, window_bounds = array<i64: 32, 128>}, {transform_indices = @transform_2, window_bounds = array<i64: 1, 16>}, {transform_indices = @transform_3, window_bounds = array<i64: 32, 1>}, {pipeline_mode = #tpu.pipeline_mode<synchronous>, transform_indices = @transform_4, window_bounds = array<i64: 128, 1024>}, {pipeline_mode = #tpu.pipeline_mode<synchronous>, transform_indices = @transform_5, window_bounds = array<i64: 1, 1024>}, {pipeline_mode = #tpu.pipeline_mode<synchronous>, transform_indices = @transform_6, window_bounds = array<i64: 17, 2048>}, {pipeline_mode = #tpu.pipeline_mode<synchronous>, transform_indices = @transform_7, window_bounds = array<i64: 1, 2048>}, {pipeline_mode = #tpu.pipeline_mode<synchronous>, transform_indices = @transform_8, window_bounds = array<i64: 1024, 128>}, {pipeline_mode = #tpu.pipeline_mode<synchronous>, transform_indices = @transform_9, window_bounds = array<i64: 1, 128>}, {pipeline_mode = #tpu.pipeline_mode<synchronous>, transform_indices = @transform_10, window_bounds = array<i64: 128, 32>}, {pipeline_mode = #tpu.pipeline_mode<synchronous>, transform_indices = @transform_11, window_bounds = array<i64: 1, 32>}, {pipeline_mode = #tpu.pipeline_mode<synchronous>, transform_indices = @transform_12, window_bounds = array<i64: 32, 32>}, {pipeline_mode = #tpu.pipeline_mode<synchronous>, transform_indices = @transform_13, window_bounds = array<i64: 1, 32>}, {pipeline_mode = #tpu.pipeline_mode<synchronous>, transform_indices = @transform_14, window_bounds = array<i64: 32, 128>}, {pipeline_mode = #tpu.pipeline_mode<synchronous>, transform_indices = @transform_15, window_bounds = array<i64: 1, 128>}, {transform_indices = @transform_16, window_bounds = array<i64: 32, 128>}]} {
    %c0_i32 = arith.constant 0 : i32
    %0 = arith.cmpi eq, %arg1, %c0_i32 : i32
    %1 = arith.extui %0 : i1 to i32
    %c0_i32_0 = arith.constant 0 : i32
    %2 = arith.cmpi ne, %1, %c0_i32_0 : i32
    scf.if %2 {
      %c0_144 = arith.constant 0 : index
      %c0_145 = arith.constant 0 : index
      %246 = vector.load %arg3[%c0_144, %c0_145] : memref<32x128xf32, #tpu.memory_space<vmem>>, vector<32x128xf32>
      %247 = arith.truncf %246 : vector<32x128xf32> to vector<32x128xbf16>
      %c0_146 = arith.constant 0 : index
      %c0_147 = arith.constant 0 : index
      %248 = vector.load %arg6[%c0_146, %c0_147] : memref<128x1024xbf16, #tpu.memory_space<vmem>>, vector<128x1024xbf16>
      %cst_148 = arith.constant dense<0.000000e+00> : vector<32x1024xf32>
      %249 = tpu.matmul %247, %248, %cst_148 {dimension_numbers = #tpu.dot_dimension_numbers<[1], [0], [0], [1], [0, 0, 1, 1], [], []>} : vector<32x128xbf16>, vector<128x1024xbf16>, vector<32x1024xf32> -> vector<32x1024xf32>
      %c0_149 = arith.constant 0 : index
      %c0_150 = arith.constant 0 : index
      %250 = vector.load %arg7[%c0_149, %c0_150] : memref<1x1024xf32, #tpu.memory_space<vmem>>, vector<1x1024xf32>
      %251 = vector.broadcast %250 : vector<1x1024xf32> to vector<32x1024xf32>
      %252 = arith.addf %249, %251 : vector<32x1024xf32>
      %253 = arith.truncf %252 : vector<32x1024xf32> to vector<32x1024xbf16>
      %c0_151 = arith.constant 0 : index
      %c0_152 = arith.constant 0 : index
      %254 = vector.load %arg19[%c0_151, %c0_152] : memref<32x1024xbf16, #tpu.memory_space<vmem>>, vector<32x1024xbf16>
      tpu.vector_store %arg19[%c0_151, %c0_152], %253 {strides = array<i32>} : memref<32x1024xbf16, #tpu.memory_space<vmem>>, vector<32x1024xbf16>,
      %cst_153 = arith.constant -1.000000e+04 : f32
      %255 = vector.broadcast %cst_153 : f32 to vector<32x8xf32>
      %c0_154 = arith.constant 0 : index
      %c0_155 = arith.constant 0 : index
      %256 = vector.load %arg20[%c0_154, %c0_155] : memref<32x8xf32, #tpu.memory_space<vmem>>, vector<32x8xf32>
      tpu.vector_store %arg20[%c0_154, %c0_155], %255 {strides = array<i32>} : memref<32x8xf32, #tpu.memory_space<vmem>>, vector<32x8xf32>,
      %cst_156 = arith.constant 0.000000e+00 : f32
      %257 = vector.broadcast %cst_156 : f32 to vector<32x8xf32>
      %c0_157 = arith.constant 0 : index
      %c0_158 = arith.constant 0 : index
      %258 = vector.load %arg21[%c0_157, %c0_158] : memref<32x8xf32, #tpu.memory_space<vmem>>, vector<32x8xf32>
      tpu.vector_store %arg21[%c0_157, %c0_158], %257 {strides = array<i32>} : memref<32x8xf32, #tpu.memory_space<vmem>>, vector<32x8xf32>,
      %cst_159 = arith.constant 0.000000e+00 : f32
      %259 = vector.broadcast %cst_159 : f32 to vector<32x1024xf32>
      %c0_160 = arith.constant 0 : index
      %c0_161 = arith.constant 0 : index
      %260 = vector.load %arg22[%c0_160, %c0_161] : memref<32x1024xf32, #tpu.memory_space<vmem>>, vector<32x1024xf32>
      tpu.vector_store %arg22[%c0_160, %c0_161], %259 {strides = array<i32>} : memref<32x1024xf32, #tpu.memory_space<vmem>>, vector<32x1024xf32>,
    } else {
    }
    %c0 = arith.constant 0 : index
    %c0_1 = arith.constant 0 : index
    %3 = vector.load %arg5[%c0, %c0_1] : memref<32x1xi32, #tpu.memory_space<vmem>>, vector<32x1xi32>
    %c0_2 = arith.constant 0 : index
    %c0_3 = arith.constant 0 : index
    %4 = vector.load %arg4[%c0_2, %c0_3] : memref<1x16xi32, #tpu.memory_space<vmem>>, vector<1x16xi32>
    %5 = vector.broadcast %3 : vector<32x1xi32> to vector<32x16xi32>
    %6 = vector.broadcast %4 : vector<1x16xi32> to vector<32x16xi32>
    %7 = arith.cmpi eq, %5, %6 : vector<32x16xi32>
    %cst = arith.constant 0.000000e+00 : f32
    %cst_4 = arith.constant -1.000000e+30 : f32
    %8 = vector.broadcast %cst : f32 to vector<32x16xf32>
    %9 = vector.broadcast %cst_4 : f32 to vector<32x16xf32>
    %10 = arith.select %7, %8, %9 : vector<32x16xi1>, vector<32x16xf32>
    %c0_5 = arith.constant 0 : index
    %c0_6 = arith.constant 0 : index
    %11 = vector.load %arg2[%c0_5, %c0_6] : memref<16x17xf32, #tpu.memory_space<vmem>>, vector<16x17xf32>
    %12 = arith.truncf %11 : vector<16x17xf32> to vector<16x17xbf16>
    %c0_7 = arith.constant 0 : index
    %c0_8 = arith.constant 0 : index
    %13 = vector.load %arg8[%c0_7, %c0_8] : memref<17x2048xbf16, #tpu.memory_space<vmem>>, vector<17x2048xbf16>
    %cst_9 = arith.constant dense<0.000000e+00> : vector<16x2048xf32>
    %14 = tpu.matmul %12, %13, %cst_9 {dimension_numbers = #tpu.dot_dimension_numbers<[1], [0], [0], [1], [0, 0, 1, 1], [], []>} : vector<16x17xbf16>, vector<17x2048xbf16>, vector<16x2048xf32> -> vector<16x2048xf32>
    %c0_10 = arith.constant 0 : index
    %c0_11 = arith.constant 0 : index
    %15 = vector.load %arg9[%c0_10, %c0_11] : memref<1x2048xf32, #tpu.memory_space<vmem>>, vector<1x2048xf32>
    %16 = vector.broadcast %15 : vector<1x2048xf32> to vector<16x2048xf32>
    %17 = arith.addf %14, %16 : vector<16x2048xf32>
    %18 = arith.truncf %17 : vector<16x2048xf32> to vector<16x2048xbf16>
    %c0_12 = arith.constant 0 : index
    %c0_13 = arith.constant 0 : index
    %19 = vector.load %arg19[%c0_12, %c0_13] : memref<32x1024xbf16, #tpu.memory_space<vmem>>, vector<32x128xbf16>
    %20 = vector.extract_strided_slice %18 {offsets = [0, 0], sizes = [16, 128], strides = [1, 1]} : vector<16x2048xbf16> to vector<16x128xbf16>
    %21 = vector.extract_strided_slice %18 {offsets = [0, 1024], sizes = [16, 128], strides = [1, 1]} : vector<16x2048xbf16> to vector<16x128xbf16>
    %cst_14 = arith.constant dense<0.000000e+00> : vector<32x16xf32>
    %22 = tpu.matmul %19, %20, %cst_14 {dimension_numbers = #tpu.dot_dimension_numbers<[1], [1], [0], [0], [0, 0, 1, 0], [], []>} : vector<32x128xbf16>, vector<16x128xbf16>, vector<32x16xf32> -> vector<32x16xf32>
    %23 = arith.addf %22, %10 : vector<32x16xf32>
    %c0_15 = arith.constant 0 : index
    %c0_16 = arith.constant 0 : index
    %24 = vector.load %arg20[%c0_15, %c0_16] : memref<32x8xf32, #tpu.memory_space<vmem>>, vector<32x1xf32>
    %cst_17 = arith.constant dense<0xFF800000> : vector<32xf32>
    %25 = vector.multi_reduction <maximumf>, %23, %cst_17 [1] : vector<32x16xf32> to vector<32xf32>
    %26 = vector.shape_cast %25 : vector<32xf32> to vector<32x1xf32>
    %27 = arith.maximumf %24, %26 : vector<32x1xf32>
    %28 = arith.subf %24, %27 : vector<32x1xf32>
    %29 = math.exp %28 : vector<32x1xf32>
    %30 = vector.broadcast %27 : vector<32x1xf32> to vector<32x16xf32>
    %31 = arith.subf %23, %30 : vector<32x16xf32>
    %32 = math.exp %31 : vector<32x16xf32>
    %c0_18 = arith.constant 0 : index
    %c0_19 = arith.constant 0 : index
    %33 = vector.load %arg21[%c0_18, %c0_19] : memref<32x8xf32, #tpu.memory_space<vmem>>, vector<32x1xf32>
    %34 = arith.mulf %29, %33 : vector<32x1xf32>
    %cst_20 = arith.constant dense<0.000000e+00> : vector<32xf32>
    %35 = vector.multi_reduction <add>, %32, %cst_20 [1] : vector<32x16xf32> to vector<32xf32>
    %36 = vector.shape_cast %35 : vector<32xf32> to vector<32x1xf32>
    %37 = arith.addf %34, %36 : vector<32x1xf32>
    %c0_21 = arith.constant 0 : index
    %c0_22 = arith.constant 0 : index
    %38 = vector.load %arg21[%c0_21, %c0_22] : memref<32x8xf32, #tpu.memory_space<vmem>>, vector<32x1xf32>
    tpu.vector_store %arg21[%c0_21, %c0_22], %37 {strides = array<i32>} : memref<32x8xf32, #tpu.memory_space<vmem>>, vector<32x1xf32>,
    %c0_23 = arith.constant 0 : index
    %c0_24 = arith.constant 0 : index
    %39 = vector.load %arg22[%c0_23, %c0_24] : memref<32x1024xf32, #tpu.memory_space<vmem>>, vector<32x128xf32>
    %40 = vector.broadcast %29 : vector<32x1xf32> to vector<32x128xf32>
    %41 = arith.mulf %40, %39 : vector<32x128xf32>
    %42 = arith.truncf %32 : vector<32x16xf32> to vector<32x16xbf16>
    %cst_25 = arith.constant dense<0.000000e+00> : vector<32x128xf32>
    %43 = tpu.matmul %42, %21, %cst_25 {dimension_numbers = #tpu.dot_dimension_numbers<[1], [0], [0], [1], [0, 0, 1, 1], [], []>} : vector<32x16xbf16>, vector<16x128xbf16>, vector<32x128xf32> -> vector<32x128xf32>
    %44 = arith.addf %41, %43 : vector<32x128xf32>
    %c0_26 = arith.constant 0 : index
    %c0_27 = arith.constant 0 : index
    %45 = vector.load %arg22[%c0_26, %c0_27] : memref<32x1024xf32, #tpu.memory_space<vmem>>, vector<32x128xf32>
    tpu.vector_store %arg22[%c0_26, %c0_27], %44 {strides = array<i32>} : memref<32x1024xf32, #tpu.memory_space<vmem>>, vector<32x128xf32>,
    %c0_28 = arith.constant 0 : index
    %c0_29 = arith.constant 0 : index
    %46 = vector.load %arg20[%c0_28, %c0_29] : memref<32x8xf32, #tpu.memory_space<vmem>>, vector<32x1xf32>
    tpu.vector_store %arg20[%c0_28, %c0_29], %27 {strides = array<i32>} : memref<32x8xf32, #tpu.memory_space<vmem>>, vector<32x1xf32>,
    %c0_30 = arith.constant 0 : index
    %c128 = arith.constant 128 : index
    %47 = vector.load %arg19[%c0_30, %c128] : memref<32x1024xbf16, #tpu.memory_space<vmem>>, vector<32x128xbf16>
    %48 = vector.extract_strided_slice %18 {offsets = [0, 128], sizes = [16, 128], strides = [1, 1]} : vector<16x2048xbf16> to vector<16x128xbf16>
    %49 = vector.extract_strided_slice %18 {offsets = [0, 1152], sizes = [16, 128], strides = [1, 1]} : vector<16x2048xbf16> to vector<16x128xbf16>
    %cst_31 = arith.constant dense<0.000000e+00> : vector<32x16xf32>
    %50 = tpu.matmul %47, %48, %cst_31 {dimension_numbers = #tpu.dot_dimension_numbers<[1], [1], [0], [0], [0, 0, 1, 0], [], []>} : vector<32x128xbf16>, vector<16x128xbf16>, vector<32x16xf32> -> vector<32x16xf32>
    %51 = arith.addf %50, %10 : vector<32x16xf32>
    %c0_32 = arith.constant 0 : index
    %c1 = arith.constant 1 : index
    %52 = vector.load %arg20[%c0_32, %c1] : memref<32x8xf32, #tpu.memory_space<vmem>>, vector<32x1xf32>
    %cst_33 = arith.constant dense<0xFF800000> : vector<32xf32>
    %53 = vector.multi_reduction <maximumf>, %51, %cst_33 [1] : vector<32x16xf32> to vector<32xf32>
    %54 = vector.shape_cast %53 : vector<32xf32> to vector<32x1xf32>
    %55 = arith.maximumf %52, %54 : vector<32x1xf32>
    %56 = arith.subf %52, %55 : vector<32x1xf32>
    %57 = math.exp %56 : vector<32x1xf32>
    %58 = vector.broadcast %55 : vector<32x1xf32> to vector<32x16xf32>
    %59 = arith.subf %51, %58 : vector<32x16xf32>
    %60 = math.exp %59 : vector<32x16xf32>
    %c0_34 = arith.constant 0 : index
    %c1_35 = arith.constant 1 : index
    %61 = vector.load %arg21[%c0_34, %c1_35] : memref<32x8xf32, #tpu.memory_space<vmem>>, vector<32x1xf32>
    %62 = arith.mulf %57, %61 : vector<32x1xf32>
    %cst_36 = arith.constant dense<0.000000e+00> : vector<32xf32>
    %63 = vector.multi_reduction <add>, %60, %cst_36 [1] : vector<32x16xf32> to vector<32xf32>
    %64 = vector.shape_cast %63 : vector<32xf32> to vector<32x1xf32>
    %65 = arith.addf %62, %64 : vector<32x1xf32>
    %c0_37 = arith.constant 0 : index
    %c1_38 = arith.constant 1 : index
    %66 = vector.load %arg21[%c0_37, %c1_38] : memref<32x8xf32, #tpu.memory_space<vmem>>, vector<32x1xf32>
    tpu.vector_store %arg21[%c0_37, %c1_38], %65 {strides = array<i32>} : memref<32x8xf32, #tpu.memory_space<vmem>>, vector<32x1xf32>,
    %c0_39 = arith.constant 0 : index
    %c128_40 = arith.constant 128 : index
    %67 = vector.load %arg22[%c0_39, %c128_40] : memref<32x1024xf32, #tpu.memory_space<vmem>>, vector<32x128xf32>
    %68 = vector.broadcast %57 : vector<32x1xf32> to vector<32x128xf32>
    %69 = arith.mulf %68, %67 : vector<32x128xf32>
    %70 = arith.truncf %60 : vector<32x16xf32> to vector<32x16xbf16>
    %cst_41 = arith.constant dense<0.000000e+00> : vector<32x128xf32>
    %71 = tpu.matmul %70, %49, %cst_41 {dimension_numbers = #tpu.dot_dimension_numbers<[1], [0], [0], [1], [0, 0, 1, 1], [], []>} : vector<32x16xbf16>, vector<16x128xbf16>, vector<32x128xf32> -> vector<32x128xf32>
    %72 = arith.addf %69, %71 : vector<32x128xf32>
    %c0_42 = arith.constant 0 : index
    %c128_43 = arith.constant 128 : index
    %73 = vector.load %arg22[%c0_42, %c128_43] : memref<32x1024xf32, #tpu.memory_space<vmem>>, vector<32x128xf32>
    tpu.vector_store %arg22[%c0_42, %c128_43], %72 {strides = array<i32>} : memref<32x1024xf32, #tpu.memory_space<vmem>>, vector<32x128xf32>,
    %c0_44 = arith.constant 0 : index
    %c1_45 = arith.constant 1 : index
    %74 = vector.load %arg20[%c0_44, %c1_45] : memref<32x8xf32, #tpu.memory_space<vmem>>, vector<32x1xf32>
    tpu.vector_store %arg20[%c0_44, %c1_45], %55 {strides = array<i32>} : memref<32x8xf32, #tpu.memory_space<vmem>>, vector<32x1xf32>,
    %c0_46 = arith.constant 0 : index
    %c256 = arith.constant 256 : index
    %75 = vector.load %arg19[%c0_46, %c256] : memref<32x1024xbf16, #tpu.memory_space<vmem>>, vector<32x128xbf16>
    %76 = vector.extract_strided_slice %18 {offsets = [0, 256], sizes = [16, 128], strides = [1, 1]} : vector<16x2048xbf16> to vector<16x128xbf16>
    %77 = vector.extract_strided_slice %18 {offsets = [0, 1280], sizes = [16, 128], strides = [1, 1]} : vector<16x2048xbf16> to vector<16x128xbf16>
    %cst_47 = arith.constant dense<0.000000e+00> : vector<32x16xf32>
    %78 = tpu.matmul %75, %76, %cst_47 {dimension_numbers = #tpu.dot_dimension_numbers<[1], [1], [0], [0], [0, 0, 1, 0], [], []>} : vector<32x128xbf16>, vector<16x128xbf16>, vector<32x16xf32> -> vector<32x16xf32>
    %79 = arith.addf %78, %10 : vector<32x16xf32>
    %c0_48 = arith.constant 0 : index
    %c2 = arith.constant 2 : index
    %80 = vector.load %arg20[%c0_48, %c2] : memref<32x8xf32, #tpu.memory_space<vmem>>, vector<32x1xf32>
    %cst_49 = arith.constant dense<0xFF800000> : vector<32xf32>
    %81 = vector.multi_reduction <maximumf>, %79, %cst_49 [1] : vector<32x16xf32> to vector<32xf32>
    %82 = vector.shape_cast %81 : vector<32xf32> to vector<32x1xf32>
    %83 = arith.maximumf %80, %82 : vector<32x1xf32>
    %84 = arith.subf %80, %83 : vector<32x1xf32>
    %85 = math.exp %84 : vector<32x1xf32>
    %86 = vector.broadcast %83 : vector<32x1xf32> to vector<32x16xf32>
    %87 = arith.subf %79, %86 : vector<32x16xf32>
    %88 = math.exp %87 : vector<32x16xf32>
    %c0_50 = arith.constant 0 : index
    %c2_51 = arith.constant 2 : index
    %89 = vector.load %arg21[%c0_50, %c2_51] : memref<32x8xf32, #tpu.memory_space<vmem>>, vector<32x1xf32>
    %90 = arith.mulf %85, %89 : vector<32x1xf32>
    %cst_52 = arith.constant dense<0.000000e+00> : vector<32xf32>
    %91 = vector.multi_reduction <add>, %88, %cst_52 [1] : vector<32x16xf32> to vector<32xf32>
    %92 = vector.shape_cast %91 : vector<32xf32> to vector<32x1xf32>
    %93 = arith.addf %90, %92 : vector<32x1xf32>
    %c0_53 = arith.constant 0 : index
    %c2_54 = arith.constant 2 : index
    %94 = vector.load %arg21[%c0_53, %c2_54] : memref<32x8xf32, #tpu.memory_space<vmem>>, vector<32x1xf32>
    tpu.vector_store %arg21[%c0_53, %c2_54], %93 {strides = array<i32>} : memref<32x8xf32, #tpu.memory_space<vmem>>, vector<32x1xf32>,
    %c0_55 = arith.constant 0 : index
    %c256_56 = arith.constant 256 : index
    %95 = vector.load %arg22[%c0_55, %c256_56] : memref<32x1024xf32, #tpu.memory_space<vmem>>, vector<32x128xf32>
    %96 = vector.broadcast %85 : vector<32x1xf32> to vector<32x128xf32>
    %97 = arith.mulf %96, %95 : vector<32x128xf32>
    %98 = arith.truncf %88 : vector<32x16xf32> to vector<32x16xbf16>
    %cst_57 = arith.constant dense<0.000000e+00> : vector<32x128xf32>
    %99 = tpu.matmul %98, %77, %cst_57 {dimension_numbers = #tpu.dot_dimension_numbers<[1], [0], [0], [1], [0, 0, 1, 1], [], []>} : vector<32x16xbf16>, vector<16x128xbf16>, vector<32x128xf32> -> vector<32x128xf32>
    %100 = arith.addf %97, %99 : vector<32x128xf32>
    %c0_58 = arith.constant 0 : index
    %c256_59 = arith.constant 256 : index
    %101 = vector.load %arg22[%c0_58, %c256_59] : memref<32x1024xf32, #tpu.memory_space<vmem>>, vector<32x128xf32>
    tpu.vector_store %arg22[%c0_58, %c256_59], %100 {strides = array<i32>} : memref<32x1024xf32, #tpu.memory_space<vmem>>, vector<32x128xf32>,
    %c0_60 = arith.constant 0 : index
    %c2_61 = arith.constant 2 : index
    %102 = vector.load %arg20[%c0_60, %c2_61] : memref<32x8xf32, #tpu.memory_space<vmem>>, vector<32x1xf32>
    tpu.vector_store %arg20[%c0_60, %c2_61], %83 {strides = array<i32>} : memref<32x8xf32, #tpu.memory_space<vmem>>, vector<32x1xf32>,
    %c0_62 = arith.constant 0 : index
    %c384 = arith.constant 384 : index
    %103 = vector.load %arg19[%c0_62, %c384] : memref<32x1024xbf16, #tpu.memory_space<vmem>>, vector<32x128xbf16>
    %104 = vector.extract_strided_slice %18 {offsets = [0, 384], sizes = [16, 128], strides = [1, 1]} : vector<16x2048xbf16> to vector<16x128xbf16>
    %105 = vector.extract_strided_slice %18 {offsets = [0, 1408], sizes = [16, 128], strides = [1, 1]} : vector<16x2048xbf16> to vector<16x128xbf16>
    %cst_63 = arith.constant dense<0.000000e+00> : vector<32x16xf32>
    %106 = tpu.matmul %103, %104, %cst_63 {dimension_numbers = #tpu.dot_dimension_numbers<[1], [1], [0], [0], [0, 0, 1, 0], [], []>} : vector<32x128xbf16>, vector<16x128xbf16>, vector<32x16xf32> -> vector<32x16xf32>
    %107 = arith.addf %106, %10 : vector<32x16xf32>
    %c0_64 = arith.constant 0 : index
    %c3 = arith.constant 3 : index
    %108 = vector.load %arg20[%c0_64, %c3] : memref<32x8xf32, #tpu.memory_space<vmem>>, vector<32x1xf32>
    %cst_65 = arith.constant dense<0xFF800000> : vector<32xf32>
    %109 = vector.multi_reduction <maximumf>, %107, %cst_65 [1] : vector<32x16xf32> to vector<32xf32>
    %110 = vector.shape_cast %109 : vector<32xf32> to vector<32x1xf32>
    %111 = arith.maximumf %108, %110 : vector<32x1xf32>
    %112 = arith.subf %108, %111 : vector<32x1xf32>
    %113 = math.exp %112 : vector<32x1xf32>
    %114 = vector.broadcast %111 : vector<32x1xf32> to vector<32x16xf32>
    %115 = arith.subf %107, %114 : vector<32x16xf32>
    %116 = math.exp %115 : vector<32x16xf32>
    %c0_66 = arith.constant 0 : index
    %c3_67 = arith.constant 3 : index
    %117 = vector.load %arg21[%c0_66, %c3_67] : memref<32x8xf32, #tpu.memory_space<vmem>>, vector<32x1xf32>
    %118 = arith.mulf %113, %117 : vector<32x1xf32>
    %cst_68 = arith.constant dense<0.000000e+00> : vector<32xf32>
    %119 = vector.multi_reduction <add>, %116, %cst_68 [1] : vector<32x16xf32> to vector<32xf32>
    %120 = vector.shape_cast %119 : vector<32xf32> to vector<32x1xf32>
    %121 = arith.addf %118, %120 : vector<32x1xf32>
    %c0_69 = arith.constant 0 : index
    %c3_70 = arith.constant 3 : index
    %122 = vector.load %arg21[%c0_69, %c3_70] : memref<32x8xf32, #tpu.memory_space<vmem>>, vector<32x1xf32>
    tpu.vector_store %arg21[%c0_69, %c3_70], %121 {strides = array<i32>} : memref<32x8xf32, #tpu.memory_space<vmem>>, vector<32x1xf32>,
    %c0_71 = arith.constant 0 : index
    %c384_72 = arith.constant 384 : index
    %123 = vector.load %arg22[%c0_71, %c384_72] : memref<32x1024xf32, #tpu.memory_space<vmem>>, vector<32x128xf32>
    %124 = vector.broadcast %113 : vector<32x1xf32> to vector<32x128xf32>
    %125 = arith.mulf %124, %123 : vector<32x128xf32>
    %126 = arith.truncf %116 : vector<32x16xf32> to vector<32x16xbf16>
    %cst_73 = arith.constant dense<0.000000e+00> : vector<32x128xf32>
    %127 = tpu.matmul %126, %105, %cst_73 {dimension_numbers = #tpu.dot_dimension_numbers<[1], [0], [0], [1], [0, 0, 1, 1], [], []>} : vector<32x16xbf16>, vector<16x128xbf16>, vector<32x128xf32> -> vector<32x128xf32>
    %128 = arith.addf %125, %127 : vector<32x128xf32>
    %c0_74 = arith.constant 0 : index
    %c384_75 = arith.constant 384 : index
    %129 = vector.load %arg22[%c0_74, %c384_75] : memref<32x1024xf32, #tpu.memory_space<vmem>>, vector<32x128xf32>
    tpu.vector_store %arg22[%c0_74, %c384_75], %128 {strides = array<i32>} : memref<32x1024xf32, #tpu.memory_space<vmem>>, vector<32x128xf32>,
    %c0_76 = arith.constant 0 : index
    %c3_77 = arith.constant 3 : index
    %130 = vector.load %arg20[%c0_76, %c3_77] : memref<32x8xf32, #tpu.memory_space<vmem>>, vector<32x1xf32>
    tpu.vector_store %arg20[%c0_76, %c3_77], %111 {strides = array<i32>} : memref<32x8xf32, #tpu.memory_space<vmem>>, vector<32x1xf32>,
    %c0_78 = arith.constant 0 : index
    %c512 = arith.constant 512 : index
    %131 = vector.load %arg19[%c0_78, %c512] : memref<32x1024xbf16, #tpu.memory_space<vmem>>, vector<32x128xbf16>
    %132 = vector.extract_strided_slice %18 {offsets = [0, 512], sizes = [16, 128], strides = [1, 1]} : vector<16x2048xbf16> to vector<16x128xbf16>
    %133 = vector.extract_strided_slice %18 {offsets = [0, 1536], sizes = [16, 128], strides = [1, 1]} : vector<16x2048xbf16> to vector<16x128xbf16>
    %cst_79 = arith.constant dense<0.000000e+00> : vector<32x16xf32>
    %134 = tpu.matmul %131, %132, %cst_79 {dimension_numbers = #tpu.dot_dimension_numbers<[1], [1], [0], [0], [0, 0, 1, 0], [], []>} : vector<32x128xbf16>, vector<16x128xbf16>, vector<32x16xf32> -> vector<32x16xf32>
    %135 = arith.addf %134, %10 : vector<32x16xf32>
    %c0_80 = arith.constant 0 : index
    %c4 = arith.constant 4 : index
    %136 = vector.load %arg20[%c0_80, %c4] : memref<32x8xf32, #tpu.memory_space<vmem>>, vector<32x1xf32>
    %cst_81 = arith.constant dense<0xFF800000> : vector<32xf32>
    %137 = vector.multi_reduction <maximumf>, %135, %cst_81 [1] : vector<32x16xf32> to vector<32xf32>
    %138 = vector.shape_cast %137 : vector<32xf32> to vector<32x1xf32>
    %139 = arith.maximumf %136, %138 : vector<32x1xf32>
    %140 = arith.subf %136, %139 : vector<32x1xf32>
    %141 = math.exp %140 : vector<32x1xf32>
    %142 = vector.broadcast %139 : vector<32x1xf32> to vector<32x16xf32>
    %143 = arith.subf %135, %142 : vector<32x16xf32>
    %144 = math.exp %143 : vector<32x16xf32>
    %c0_82 = arith.constant 0 : index
    %c4_83 = arith.constant 4 : index
    %145 = vector.load %arg21[%c0_82, %c4_83] : memref<32x8xf32, #tpu.memory_space<vmem>>, vector<32x1xf32>
    %146 = arith.mulf %141, %145 : vector<32x1xf32>
    %cst_84 = arith.constant dense<0.000000e+00> : vector<32xf32>
    %147 = vector.multi_reduction <add>, %144, %cst_84 [1] : vector<32x16xf32> to vector<32xf32>
    %148 = vector.shape_cast %147 : vector<32xf32> to vector<32x1xf32>
    %149 = arith.addf %146, %148 : vector<32x1xf32>
    %c0_85 = arith.constant 0 : index
    %c4_86 = arith.constant 4 : index
    %150 = vector.load %arg21[%c0_85, %c4_86] : memref<32x8xf32, #tpu.memory_space<vmem>>, vector<32x1xf32>
    tpu.vector_store %arg21[%c0_85, %c4_86], %149 {strides = array<i32>} : memref<32x8xf32, #tpu.memory_space<vmem>>, vector<32x1xf32>,
    %c0_87 = arith.constant 0 : index
    %c512_88 = arith.constant 512 : index
    %151 = vector.load %arg22[%c0_87, %c512_88] : memref<32x1024xf32, #tpu.memory_space<vmem>>, vector<32x128xf32>
    %152 = vector.broadcast %141 : vector<32x1xf32> to vector<32x128xf32>
    %153 = arith.mulf %152, %151 : vector<32x128xf32>
    %154 = arith.truncf %144 : vector<32x16xf32> to vector<32x16xbf16>
    %cst_89 = arith.constant dense<0.000000e+00> : vector<32x128xf32>
    %155 = tpu.matmul %154, %133, %cst_89 {dimension_numbers = #tpu.dot_dimension_numbers<[1], [0], [0], [1], [0, 0, 1, 1], [], []>} : vector<32x16xbf16>, vector<16x128xbf16>, vector<32x128xf32> -> vector<32x128xf32>
    %156 = arith.addf %153, %155 : vector<32x128xf32>
    %c0_90 = arith.constant 0 : index
    %c512_91 = arith.constant 512 : index
    %157 = vector.load %arg22[%c0_90, %c512_91] : memref<32x1024xf32, #tpu.memory_space<vmem>>, vector<32x128xf32>
    tpu.vector_store %arg22[%c0_90, %c512_91], %156 {strides = array<i32>} : memref<32x1024xf32, #tpu.memory_space<vmem>>, vector<32x128xf32>,
    %c0_92 = arith.constant 0 : index
    %c4_93 = arith.constant 4 : index
    %158 = vector.load %arg20[%c0_92, %c4_93] : memref<32x8xf32, #tpu.memory_space<vmem>>, vector<32x1xf32>
    tpu.vector_store %arg20[%c0_92, %c4_93], %139 {strides = array<i32>} : memref<32x8xf32, #tpu.memory_space<vmem>>, vector<32x1xf32>,
    %c0_94 = arith.constant 0 : index
    %c640 = arith.constant 640 : index
    %159 = vector.load %arg19[%c0_94, %c640] : memref<32x1024xbf16, #tpu.memory_space<vmem>>, vector<32x128xbf16>
    %160 = vector.extract_strided_slice %18 {offsets = [0, 640], sizes = [16, 128], strides = [1, 1]} : vector<16x2048xbf16> to vector<16x128xbf16>
    %161 = vector.extract_strided_slice %18 {offsets = [0, 1664], sizes = [16, 128], strides = [1, 1]} : vector<16x2048xbf16> to vector<16x128xbf16>
    %cst_95 = arith.constant dense<0.000000e+00> : vector<32x16xf32>
    %162 = tpu.matmul %159, %160, %cst_95 {dimension_numbers = #tpu.dot_dimension_numbers<[1], [1], [0], [0], [0, 0, 1, 0], [], []>} : vector<32x128xbf16>, vector<16x128xbf16>, vector<32x16xf32> -> vector<32x16xf32>
    %163 = arith.addf %162, %10 : vector<32x16xf32>
    %c0_96 = arith.constant 0 : index
    %c5 = arith.constant 5 : index
    %164 = vector.load %arg20[%c0_96, %c5] : memref<32x8xf32, #tpu.memory_space<vmem>>, vector<32x1xf32>
    %cst_97 = arith.constant dense<0xFF800000> : vector<32xf32>
    %165 = vector.multi_reduction <maximumf>, %163, %cst_97 [1] : vector<32x16xf32> to vector<32xf32>
    %166 = vector.shape_cast %165 : vector<32xf32> to vector<32x1xf32>
    %167 = arith.maximumf %164, %166 : vector<32x1xf32>
    %168 = arith.subf %164, %167 : vector<32x1xf32>
    %169 = math.exp %168 : vector<32x1xf32>
    %170 = vector.broadcast %167 : vector<32x1xf32> to vector<32x16xf32>
    %171 = arith.subf %163, %170 : vector<32x16xf32>
    %172 = math.exp %171 : vector<32x16xf32>
    %c0_98 = arith.constant 0 : index
    %c5_99 = arith.constant 5 : index
    %173 = vector.load %arg21[%c0_98, %c5_99] : memref<32x8xf32, #tpu.memory_space<vmem>>, vector<32x1xf32>
    %174 = arith.mulf %169, %173 : vector<32x1xf32>
    %cst_100 = arith.constant dense<0.000000e+00> : vector<32xf32>
    %175 = vector.multi_reduction <add>, %172, %cst_100 [1] : vector<32x16xf32> to vector<32xf32>
    %176 = vector.shape_cast %175 : vector<32xf32> to vector<32x1xf32>
    %177 = arith.addf %174, %176 : vector<32x1xf32>
    %c0_101 = arith.constant 0 : index
    %c5_102 = arith.constant 5 : index
    %178 = vector.load %arg21[%c0_101, %c5_102] : memref<32x8xf32, #tpu.memory_space<vmem>>, vector<32x1xf32>
    tpu.vector_store %arg21[%c0_101, %c5_102], %177 {strides = array<i32>} : memref<32x8xf32, #tpu.memory_space<vmem>>, vector<32x1xf32>,
    %c0_103 = arith.constant 0 : index
    %c640_104 = arith.constant 640 : index
    %179 = vector.load %arg22[%c0_103, %c640_104] : memref<32x1024xf32, #tpu.memory_space<vmem>>, vector<32x128xf32>
    %180 = vector.broadcast %169 : vector<32x1xf32> to vector<32x128xf32>
    %181 = arith.mulf %180, %179 : vector<32x128xf32>
    %182 = arith.truncf %172 : vector<32x16xf32> to vector<32x16xbf16>
    %cst_105 = arith.constant dense<0.000000e+00> : vector<32x128xf32>
    %183 = tpu.matmul %182, %161, %cst_105 {dimension_numbers = #tpu.dot_dimension_numbers<[1], [0], [0], [1], [0, 0, 1, 1], [], []>} : vector<32x16xbf16>, vector<16x128xbf16>, vector<32x128xf32> -> vector<32x128xf32>
    %184 = arith.addf %181, %183 : vector<32x128xf32>
    %c0_106 = arith.constant 0 : index
    %c640_107 = arith.constant 640 : index
    %185 = vector.load %arg22[%c0_106, %c640_107] : memref<32x1024xf32, #tpu.memory_space<vmem>>, vector<32x128xf32>
    tpu.vector_store %arg22[%c0_106, %c640_107], %184 {strides = array<i32>} : memref<32x1024xf32, #tpu.memory_space<vmem>>, vector<32x128xf32>,
    %c0_108 = arith.constant 0 : index
    %c5_109 = arith.constant 5 : index
    %186 = vector.load %arg20[%c0_108, %c5_109] : memref<32x8xf32, #tpu.memory_space<vmem>>, vector<32x1xf32>
    tpu.vector_store %arg20[%c0_108, %c5_109], %167 {strides = array<i32>} : memref<32x8xf32, #tpu.memory_space<vmem>>, vector<32x1xf32>,
    %c0_110 = arith.constant 0 : index
    %c768 = arith.constant 768 : index
    %187 = vector.load %arg19[%c0_110, %c768] : memref<32x1024xbf16, #tpu.memory_space<vmem>>, vector<32x128xbf16>
    %188 = vector.extract_strided_slice %18 {offsets = [0, 768], sizes = [16, 128], strides = [1, 1]} : vector<16x2048xbf16> to vector<16x128xbf16>
    %189 = vector.extract_strided_slice %18 {offsets = [0, 1792], sizes = [16, 128], strides = [1, 1]} : vector<16x2048xbf16> to vector<16x128xbf16>
    %cst_111 = arith.constant dense<0.000000e+00> : vector<32x16xf32>
    %190 = tpu.matmul %187, %188, %cst_111 {dimension_numbers = #tpu.dot_dimension_numbers<[1], [1], [0], [0], [0, 0, 1, 0], [], []>} : vector<32x128xbf16>, vector<16x128xbf16>, vector<32x16xf32> -> vector<32x16xf32>
    %191 = arith.addf %190, %10 : vector<32x16xf32>
    %c0_112 = arith.constant 0 : index
    %c6 = arith.constant 6 : index
    %192 = vector.load %arg20[%c0_112, %c6] : memref<32x8xf32, #tpu.memory_space<vmem>>, vector<32x1xf32>
    %cst_113 = arith.constant dense<0xFF800000> : vector<32xf32>
    %193 = vector.multi_reduction <maximumf>, %191, %cst_113 [1] : vector<32x16xf32> to vector<32xf32>
    %194 = vector.shape_cast %193 : vector<32xf32> to vector<32x1xf32>
    %195 = arith.maximumf %192, %194 : vector<32x1xf32>
    %196 = arith.subf %192, %195 : vector<32x1xf32>
    %197 = math.exp %196 : vector<32x1xf32>
    %198 = vector.broadcast %195 : vector<32x1xf32> to vector<32x16xf32>
    %199 = arith.subf %191, %198 : vector<32x16xf32>
    %200 = math.exp %199 : vector<32x16xf32>
    %c0_114 = arith.constant 0 : index
    %c6_115 = arith.constant 6 : index
    %201 = vector.load %arg21[%c0_114, %c6_115] : memref<32x8xf32, #tpu.memory_space<vmem>>, vector<32x1xf32>
    %202 = arith.mulf %197, %201 : vector<32x1xf32>
    %cst_116 = arith.constant dense<0.000000e+00> : vector<32xf32>
    %203 = vector.multi_reduction <add>, %200, %cst_116 [1] : vector<32x16xf32> to vector<32xf32>
    %204 = vector.shape_cast %203 : vector<32xf32> to vector<32x1xf32>
    %205 = arith.addf %202, %204 : vector<32x1xf32>
    %c0_117 = arith.constant 0 : index
    %c6_118 = arith.constant 6 : index
    %206 = vector.load %arg21[%c0_117, %c6_118] : memref<32x8xf32, #tpu.memory_space<vmem>>, vector<32x1xf32>
    tpu.vector_store %arg21[%c0_117, %c6_118], %205 {strides = array<i32>} : memref<32x8xf32, #tpu.memory_space<vmem>>, vector<32x1xf32>,
    %c0_119 = arith.constant 0 : index
    %c768_120 = arith.constant 768 : index
    %207 = vector.load %arg22[%c0_119, %c768_120] : memref<32x1024xf32, #tpu.memory_space<vmem>>, vector<32x128xf32>
    %208 = vector.broadcast %197 : vector<32x1xf32> to vector<32x128xf32>
    %209 = arith.mulf %208, %207 : vector<32x128xf32>
    %210 = arith.truncf %200 : vector<32x16xf32> to vector<32x16xbf16>
    %cst_121 = arith.constant dense<0.000000e+00> : vector<32x128xf32>
    %211 = tpu.matmul %210, %189, %cst_121 {dimension_numbers = #tpu.dot_dimension_numbers<[1], [0], [0], [1], [0, 0, 1, 1], [], []>} : vector<32x16xbf16>, vector<16x128xbf16>, vector<32x128xf32> -> vector<32x128xf32>
    %212 = arith.addf %209, %211 : vector<32x128xf32>
    %c0_122 = arith.constant 0 : index
    %c768_123 = arith.constant 768 : index
    %213 = vector.load %arg22[%c0_122, %c768_123] : memref<32x1024xf32, #tpu.memory_space<vmem>>, vector<32x128xf32>
    tpu.vector_store %arg22[%c0_122, %c768_123], %212 {strides = array<i32>} : memref<32x1024xf32, #tpu.memory_space<vmem>>, vector<32x128xf32>,
    %c0_124 = arith.constant 0 : index
    %c6_125 = arith.constant 6 : index
    %214 = vector.load %arg20[%c0_124, %c6_125] : memref<32x8xf32, #tpu.memory_space<vmem>>, vector<32x1xf32>
    tpu.vector_store %arg20[%c0_124, %c6_125], %195 {strides = array<i32>} : memref<32x8xf32, #tpu.memory_space<vmem>>, vector<32x1xf32>,
    %c0_126 = arith.constant 0 : index
    %c896 = arith.constant 896 : index
    %215 = vector.load %arg19[%c0_126, %c896] : memref<32x1024xbf16, #tpu.memory_space<vmem>>, vector<32x128xbf16>
    %216 = vector.extract_strided_slice %18 {offsets = [0, 896], sizes = [16, 128], strides = [1, 1]} : vector<16x2048xbf16> to vector<16x128xbf16>
    %217 = vector.extract_strided_slice %18 {offsets = [0, 1920], sizes = [16, 128], strides = [1, 1]} : vector<16x2048xbf16> to vector<16x128xbf16>
    %cst_127 = arith.constant dense<0.000000e+00> : vector<32x16xf32>
    %218 = tpu.matmul %215, %216, %cst_127 {dimension_numbers = #tpu.dot_dimension_numbers<[1], [1], [0], [0], [0, 0, 1, 0], [], []>} : vector<32x128xbf16>, vector<16x128xbf16>, vector<32x16xf32> -> vector<32x16xf32>
    %219 = arith.addf %218, %10 : vector<32x16xf32>
    %c0_128 = arith.constant 0 : index
    %c7 = arith.constant 7 : index
    %220 = vector.load %arg20[%c0_128, %c7] : memref<32x8xf32, #tpu.memory_space<vmem>>, vector<32x1xf32>
    %cst_129 = arith.constant dense<0xFF800000> : vector<32xf32>
    %221 = vector.multi_reduction <maximumf>, %219, %cst_129 [1] : vector<32x16xf32> to vector<32xf32>
    %222 = vector.shape_cast %221 : vector<32xf32> to vector<32x1xf32>
    %223 = arith.maximumf %220, %222 : vector<32x1xf32>
    %224 = arith.subf %220, %223 : vector<32x1xf32>
    %225 = math.exp %224 : vector<32x1xf32>
    %226 = vector.broadcast %223 : vector<32x1xf32> to vector<32x16xf32>
    %227 = arith.subf %219, %226 : vector<32x16xf32>
    %228 = math.exp %227 : vector<32x16xf32>
    %c0_130 = arith.constant 0 : index
    %c7_131 = arith.constant 7 : index
    %229 = vector.load %arg21[%c0_130, %c7_131] : memref<32x8xf32, #tpu.memory_space<vmem>>, vector<32x1xf32>
    %230 = arith.mulf %225, %229 : vector<32x1xf32>
    %cst_132 = arith.constant dense<0.000000e+00> : vector<32xf32>
    %231 = vector.multi_reduction <add>, %228, %cst_132 [1] : vector<32x16xf32> to vector<32xf32>
    %232 = vector.shape_cast %231 : vector<32xf32> to vector<32x1xf32>
    %233 = arith.addf %230, %232 : vector<32x1xf32>
    %c0_133 = arith.constant 0 : index
    %c7_134 = arith.constant 7 : index
    %234 = vector.load %arg21[%c0_133, %c7_134] : memref<32x8xf32, #tpu.memory_space<vmem>>, vector<32x1xf32>
    tpu.vector_store %arg21[%c0_133, %c7_134], %233 {strides = array<i32>} : memref<32x8xf32, #tpu.memory_space<vmem>>, vector<32x1xf32>,
    %c0_135 = arith.constant 0 : index
    %c896_136 = arith.constant 896 : index
    %235 = vector.load %arg22[%c0_135, %c896_136] : memref<32x1024xf32, #tpu.memory_space<vmem>>, vector<32x128xf32>
    %236 = vector.broadcast %225 : vector<32x1xf32> to vector<32x128xf32>
    %237 = arith.mulf %236, %235 : vector<32x128xf32>
    %238 = arith.truncf %228 : vector<32x16xf32> to vector<32x16xbf16>
    %cst_137 = arith.constant dense<0.000000e+00> : vector<32x128xf32>
    %239 = tpu.matmul %238, %217, %cst_137 {dimension_numbers = #tpu.dot_dimension_numbers<[1], [0], [0], [1], [0, 0, 1, 1], [], []>} : vector<32x16xbf16>, vector<16x128xbf16>, vector<32x128xf32> -> vector<32x128xf32>
    %240 = arith.addf %237, %239 : vector<32x128xf32>
    %c0_138 = arith.constant 0 : index
    %c896_139 = arith.constant 896 : index
    %241 = vector.load %arg22[%c0_138, %c896_139] : memref<32x1024xf32, #tpu.memory_space<vmem>>, vector<32x128xf32>
    tpu.vector_store %arg22[%c0_138, %c896_139], %240 {strides = array<i32>} : memref<32x1024xf32, #tpu.memory_space<vmem>>, vector<32x128xf32>,
    %c0_140 = arith.constant 0 : index
    %c7_141 = arith.constant 7 : index
    %242 = vector.load %arg20[%c0_140, %c7_141] : memref<32x8xf32, #tpu.memory_space<vmem>>, vector<32x1xf32>
    tpu.vector_store %arg20[%c0_140, %c7_141], %223 {strides = array<i32>} : memref<32x8xf32, #tpu.memory_space<vmem>>, vector<32x1xf32>,
    %c0_i32_142 = arith.constant 0 : i32
    %243 = arith.cmpi eq, %arg1, %c0_i32_142 : i32
    %244 = arith.extui %243 : i1 to i32
    %c0_i32_143 = arith.constant 0 : i32
    %245 = arith.cmpi ne, %244, %c0_i32_143 : i32
    scf.if %245 {
      %c0_144 = arith.constant 0 : index
      %c0_145 = arith.constant 0 : index
      %246 = vector.load %arg11[%c0_144, %c0_145] : memref<1x128xf32, #tpu.memory_space<vmem>>, vector<1x128xf32>
      %c0_146 = arith.constant 0 : index
      %c0_147 = arith.constant 0 : index
      %247 = vector.load %arg21[%c0_146, %c0_147] : memref<32x8xf32, #tpu.memory_space<vmem>>, vector<32x1xf32>
      %cst_148 = arith.constant 9.99999968E-21 : f32
      %248 = vector.broadcast %cst_148 : f32 to vector<32x1xf32>
      %249 = arith.maximumf %247, %248 : vector<32x1xf32>
      %250 = tpu.reciprocal %249 {approx = true} : vector<32x1xf32> -> vector<32x1xf32>
      %c0_149 = arith.constant 0 : index
      %c0_150 = arith.constant 0 : index
      %251 = vector.load %arg22[%c0_149, %c0_150] : memref<32x1024xf32, #tpu.memory_space<vmem>>, vector<32x128xf32>
      %252 = vector.broadcast %250 : vector<32x1xf32> to vector<32x128xf32>
      %253 = arith.mulf %251, %252 : vector<32x128xf32>
      %254 = arith.truncf %253 : vector<32x128xf32> to vector<32x128xbf16>
      %c0_151 = arith.constant 0 : index
      %c0_152 = arith.constant 0 : index
      %255 = vector.load %arg10[%c0_151, %c0_152] : memref<1024x128xbf16, #tpu.memory_space<vmem>>, vector<128x128xbf16>
      %cst_153 = arith.constant dense<0.000000e+00> : vector<32x128xf32>
      %256 = tpu.matmul %254, %255, %cst_153 {dimension_numbers = #tpu.dot_dimension_numbers<[1], [0], [0], [1], [0, 0, 1, 1], [], []>} : vector<32x128xbf16>, vector<128x128xbf16>, vector<32x128xf32> -> vector<32x128xf32>
      %257 = vector.broadcast %246 : vector<1x128xf32> to vector<32x128xf32>
      %258 = arith.addf %257, %256 : vector<32x128xf32>
      %c0_154 = arith.constant 0 : index
      %c1_155 = arith.constant 1 : index
      %259 = vector.load %arg21[%c0_154, %c1_155] : memref<32x8xf32, #tpu.memory_space<vmem>>, vector<32x1xf32>
      %cst_156 = arith.constant 9.99999968E-21 : f32
      %260 = vector.broadcast %cst_156 : f32 to vector<32x1xf32>
      %261 = arith.maximumf %259, %260 : vector<32x1xf32>
      %262 = tpu.reciprocal %261 {approx = true} : vector<32x1xf32> -> vector<32x1xf32>
      %c0_157 = arith.constant 0 : index
      %c128_158 = arith.constant 128 : index
      %263 = vector.load %arg22[%c0_157, %c128_158] : memref<32x1024xf32, #tpu.memory_space<vmem>>, vector<32x128xf32>
      %264 = vector.broadcast %262 : vector<32x1xf32> to vector<32x128xf32>
      %265 = arith.mulf %263, %264 : vector<32x128xf32>
      %266 = arith.truncf %265 : vector<32x128xf32> to vector<32x128xbf16>
      %c128_159 = arith.constant 128 : index
      %c0_160 = arith.constant 0 : index
      %267 = vector.load %arg10[%c128_159, %c0_160] : memref<1024x128xbf16, #tpu.memory_space<vmem>>, vector<128x128xbf16>
      %cst_161 = arith.constant dense<0.000000e+00> : vector<32x128xf32>
      %268 = tpu.matmul %266, %267, %cst_161 {dimension_numbers = #tpu.dot_dimension_numbers<[1], [0], [0], [1], [0, 0, 1, 1], [], []>} : vector<32x128xbf16>, vector<128x128xbf16>, vector<32x128xf32> -> vector<32x128xf32>
      %269 = arith.addf %258, %268 : vector<32x128xf32>
      %c0_162 = arith.constant 0 : index
      %c2_163 = arith.constant 2 : index
      %270 = vector.load %arg21[%c0_162, %c2_163] : memref<32x8xf32, #tpu.memory_space<vmem>>, vector<32x1xf32>
      %cst_164 = arith.constant 9.99999968E-21 : f32
      %271 = vector.broadcast %cst_164 : f32 to vector<32x1xf32>
      %272 = arith.maximumf %270, %271 : vector<32x1xf32>
      %273 = tpu.reciprocal %272 {approx = true} : vector<32x1xf32> -> vector<32x1xf32>
      %c0_165 = arith.constant 0 : index
      %c256_166 = arith.constant 256 : index
      %274 = vector.load %arg22[%c0_165, %c256_166] : memref<32x1024xf32, #tpu.memory_space<vmem>>, vector<32x128xf32>
      %275 = vector.broadcast %273 : vector<32x1xf32> to vector<32x128xf32>
      %276 = arith.mulf %274, %275 : vector<32x128xf32>
      %277 = arith.truncf %276 : vector<32x128xf32> to vector<32x128xbf16>
      %c256_167 = arith.constant 256 : index
      %c0_168 = arith.constant 0 : index
      %278 = vector.load %arg10[%c256_167, %c0_168] : memref<1024x128xbf16, #tpu.memory_space<vmem>>, vector<128x128xbf16>
      %cst_169 = arith.constant dense<0.000000e+00> : vector<32x128xf32>
      %279 = tpu.matmul %277, %278, %cst_169 {dimension_numbers = #tpu.dot_dimension_numbers<[1], [0], [0], [1], [0, 0, 1, 1], [], []>} : vector<32x128xbf16>, vector<128x128xbf16>, vector<32x128xf32> -> vector<32x128xf32>
      %280 = arith.addf %269, %279 : vector<32x128xf32>
      %c0_170 = arith.constant 0 : index
      %c3_171 = arith.constant 3 : index
      %281 = vector.load %arg21[%c0_170, %c3_171] : memref<32x8xf32, #tpu.memory_space<vmem>>, vector<32x1xf32>
      %cst_172 = arith.constant 9.99999968E-21 : f32
      %282 = vector.broadcast %cst_172 : f32 to vector<32x1xf32>
      %283 = arith.maximumf %281, %282 : vector<32x1xf32>
      %284 = tpu.reciprocal %283 {approx = true} : vector<32x1xf32> -> vector<32x1xf32>
      %c0_173 = arith.constant 0 : index
      %c384_174 = arith.constant 384 : index
      %285 = vector.load %arg22[%c0_173, %c384_174] : memref<32x1024xf32, #tpu.memory_space<vmem>>, vector<32x128xf32>
      %286 = vector.broadcast %284 : vector<32x1xf32> to vector<32x128xf32>
      %287 = arith.mulf %285, %286 : vector<32x128xf32>
      %288 = arith.truncf %287 : vector<32x128xf32> to vector<32x128xbf16>
      %c384_175 = arith.constant 384 : index
      %c0_176 = arith.constant 0 : index
      %289 = vector.load %arg10[%c384_175, %c0_176] : memref<1024x128xbf16, #tpu.memory_space<vmem>>, vector<128x128xbf16>
      %cst_177 = arith.constant dense<0.000000e+00> : vector<32x128xf32>
      %290 = tpu.matmul %288, %289, %cst_177 {dimension_numbers = #tpu.dot_dimension_numbers<[1], [0], [0], [1], [0, 0, 1, 1], [], []>} : vector<32x128xbf16>, vector<128x128xbf16>, vector<32x128xf32> -> vector<32x128xf32>
      %291 = arith.addf %280, %290 : vector<32x128xf32>
      %c0_178 = arith.constant 0 : index
      %c4_179 = arith.constant 4 : index
      %292 = vector.load %arg21[%c0_178, %c4_179] : memref<32x8xf32, #tpu.memory_space<vmem>>, vector<32x1xf32>
      %cst_180 = arith.constant 9.99999968E-21 : f32
      %293 = vector.broadcast %cst_180 : f32 to vector<32x1xf32>
      %294 = arith.maximumf %292, %293 : vector<32x1xf32>
      %295 = tpu.reciprocal %294 {approx = true} : vector<32x1xf32> -> vector<32x1xf32>
      %c0_181 = arith.constant 0 : index
      %c512_182 = arith.constant 512 : index
      %296 = vector.load %arg22[%c0_181, %c512_182] : memref<32x1024xf32, #tpu.memory_space<vmem>>, vector<32x128xf32>
      %297 = vector.broadcast %295 : vector<32x1xf32> to vector<32x128xf32>
      %298 = arith.mulf %296, %297 : vector<32x128xf32>
      %299 = arith.truncf %298 : vector<32x128xf32> to vector<32x128xbf16>
      %c512_183 = arith.constant 512 : index
      %c0_184 = arith.constant 0 : index
      %300 = vector.load %arg10[%c512_183, %c0_184] : memref<1024x128xbf16, #tpu.memory_space<vmem>>, vector<128x128xbf16>
      %cst_185 = arith.constant dense<0.000000e+00> : vector<32x128xf32>
      %301 = tpu.matmul %299, %300, %cst_185 {dimension_numbers = #tpu.dot_dimension_numbers<[1], [0], [0], [1], [0, 0, 1, 1], [], []>} : vector<32x128xbf16>, vector<128x128xbf16>, vector<32x128xf32> -> vector<32x128xf32>
      %302 = arith.addf %291, %301 : vector<32x128xf32>
      %c0_186 = arith.constant 0 : index
      %c5_187 = arith.constant 5 : index
      %303 = vector.load %arg21[%c0_186, %c5_187] : memref<32x8xf32, #tpu.memory_space<vmem>>, vector<32x1xf32>
      %cst_188 = arith.constant 9.99999968E-21 : f32
      %304 = vector.broadcast %cst_188 : f32 to vector<32x1xf32>
      %305 = arith.maximumf %303, %304 : vector<32x1xf32>
      %306 = tpu.reciprocal %305 {approx = true} : vector<32x1xf32> -> vector<32x1xf32>
      %c0_189 = arith.constant 0 : index
      %c640_190 = arith.constant 640 : index
      %307 = vector.load %arg22[%c0_189, %c640_190] : memref<32x1024xf32, #tpu.memory_space<vmem>>, vector<32x128xf32>
      %308 = vector.broadcast %306 : vector<32x1xf32> to vector<32x128xf32>
      %309 = arith.mulf %307, %308 : vector<32x128xf32>
      %310 = arith.truncf %309 : vector<32x128xf32> to vector<32x128xbf16>
      %c640_191 = arith.constant 640 : index
      %c0_192 = arith.constant 0 : index
      %311 = vector.load %arg10[%c640_191, %c0_192] : memref<1024x128xbf16, #tpu.memory_space<vmem>>, vector<128x128xbf16>
      %cst_193 = arith.constant dense<0.000000e+00> : vector<32x128xf32>
      %312 = tpu.matmul %310, %311, %cst_193 {dimension_numbers = #tpu.dot_dimension_numbers<[1], [0], [0], [1], [0, 0, 1, 1], [], []>} : vector<32x128xbf16>, vector<128x128xbf16>, vector<32x128xf32> -> vector<32x128xf32>
      %313 = arith.addf %302, %312 : vector<32x128xf32>
      %c0_194 = arith.constant 0 : index
      %c6_195 = arith.constant 6 : index
      %314 = vector.load %arg21[%c0_194, %c6_195] : memref<32x8xf32, #tpu.memory_space<vmem>>, vector<32x1xf32>
      %cst_196 = arith.constant 9.99999968E-21 : f32
      %315 = vector.broadcast %cst_196 : f32 to vector<32x1xf32>
      %316 = arith.maximumf %314, %315 : vector<32x1xf32>
      %317 = tpu.reciprocal %316 {approx = true} : vector<32x1xf32> -> vector<32x1xf32>
      %c0_197 = arith.constant 0 : index
      %c768_198 = arith.constant 768 : index
      %318 = vector.load %arg22[%c0_197, %c768_198] : memref<32x1024xf32, #tpu.memory_space<vmem>>, vector<32x128xf32>
      %319 = vector.broadcast %317 : vector<32x1xf32> to vector<32x128xf32>
      %320 = arith.mulf %318, %319 : vector<32x128xf32>
      %321 = arith.truncf %320 : vector<32x128xf32> to vector<32x128xbf16>
      %c768_199 = arith.constant 768 : index
      %c0_200 = arith.constant 0 : index
      %322 = vector.load %arg10[%c768_199, %c0_200] : memref<1024x128xbf16, #tpu.memory_space<vmem>>, vector<128x128xbf16>
      %cst_201 = arith.constant dense<0.000000e+00> : vector<32x128xf32>
      %323 = tpu.matmul %321, %322, %cst_201 {dimension_numbers = #tpu.dot_dimension_numbers<[1], [0], [0], [1], [0, 0, 1, 1], [], []>} : vector<32x128xbf16>, vector<128x128xbf16>, vector<32x128xf32> -> vector<32x128xf32>
      %324 = arith.addf %313, %323 : vector<32x128xf32>
      %c0_202 = arith.constant 0 : index
      %c7_203 = arith.constant 7 : index
      %325 = vector.load %arg21[%c0_202, %c7_203] : memref<32x8xf32, #tpu.memory_space<vmem>>, vector<32x1xf32>
      %cst_204 = arith.constant 9.99999968E-21 : f32
      %326 = vector.broadcast %cst_204 : f32 to vector<32x1xf32>
      %327 = arith.maximumf %325, %326 : vector<32x1xf32>
      %328 = tpu.reciprocal %327 {approx = true} : vector<32x1xf32> -> vector<32x1xf32>
      %c0_205 = arith.constant 0 : index
      %c896_206 = arith.constant 896 : index
      %329 = vector.load %arg22[%c0_205, %c896_206] : memref<32x1024xf32, #tpu.memory_space<vmem>>, vector<32x128xf32>
      %330 = vector.broadcast %328 : vector<32x1xf32> to vector<32x128xf32>
      %331 = arith.mulf %329, %330 : vector<32x128xf32>
      %332 = arith.truncf %331 : vector<32x128xf32> to vector<32x128xbf16>
      %c896_207 = arith.constant 896 : index
      %c0_208 = arith.constant 0 : index
      %333 = vector.load %arg10[%c896_207, %c0_208] : memref<1024x128xbf16, #tpu.memory_space<vmem>>, vector<128x128xbf16>
      %cst_209 = arith.constant dense<0.000000e+00> : vector<32x128xf32>
      %334 = tpu.matmul %332, %333, %cst_209 {dimension_numbers = #tpu.dot_dimension_numbers<[1], [0], [0], [1], [0, 0, 1, 1], [], []>} : vector<32x128xbf16>, vector<128x128xbf16>, vector<32x128xf32> -> vector<32x128xf32>
      %335 = arith.addf %324, %334 : vector<32x128xf32>
      %c0_210 = arith.constant 0 : index
      %c0_211 = arith.constant 0 : index
      %336 = vector.load %arg21[%c0_210, %c0_211] : memref<32x8xf32, #tpu.memory_space<vmem>>, vector<32x1xf32>
      %cst_212 = arith.constant 0.000000e+00 : f32
      %337 = vector.broadcast %cst_212 : f32 to vector<32x1xf32>
      %338 = arith.cmpf ogt, %336, %337 : vector<32x1xf32>
      %cst_213 = arith.constant 0.000000e+00 : f32
      %339 = vector.shape_cast %338 : vector<32x1xi1> to vector<32x1xi1>
      %340 = vector.broadcast %339 : vector<32x1xi1> to vector<32x128xi1>
      %341 = vector.broadcast %cst_213 : f32 to vector<32x128xf32>
      %342 = arith.select %340, %335, %341 : vector<32x128xi1>, vector<32x128xf32>
      %c0_214 = arith.constant 0 : index
      %c0_215 = arith.constant 0 : index
      %343 = vector.load %arg3[%c0_214, %c0_215] : memref<32x128xf32, #tpu.memory_space<vmem>>, vector<32x128xf32>
      %344 = arith.addf %343, %342 : vector<32x128xf32>
      %345 = arith.truncf %344 : vector<32x128xf32> to vector<32x128xbf16>
      %c0_216 = arith.constant 0 : index
      %c0_217 = arith.constant 0 : index
      %346 = vector.load %arg12[%c0_216, %c0_217] : memref<128x32xbf16, #tpu.memory_space<vmem>>, vector<128x32xbf16>
      %cst_218 = arith.constant dense<0.000000e+00> : vector<32x32xf32>
      %347 = tpu.matmul %345, %346, %cst_218 {dimension_numbers = #tpu.dot_dimension_numbers<[1], [0], [0], [1], [0, 0, 1, 1], [], []>} : vector<32x128xbf16>, vector<128x32xbf16>, vector<32x32xf32> -> vector<32x32xf32>
      %c0_219 = arith.constant 0 : index
      %c0_220 = arith.constant 0 : index
      %348 = vector.load %arg13[%c0_219, %c0_220] : memref<1x32xf32, #tpu.memory_space<vmem>>, vector<1x32xf32>
      %349 = vector.broadcast %348 : vector<1x32xf32> to vector<32x32xf32>
      %350 = arith.addf %347, %349 : vector<32x32xf32>
      %cst_221 = arith.constant 0.000000e+00 : f32
      %351 = vector.broadcast %cst_221 : f32 to vector<32x32xf32>
      %352 = arith.maximumf %350, %351 : vector<32x32xf32>
      %353 = arith.truncf %352 : vector<32x32xf32> to vector<32x32xbf16>
      %c0_222 = arith.constant 0 : index
      %c0_223 = arith.constant 0 : index
      %354 = vector.load %arg14[%c0_222, %c0_223] : memref<32x32xbf16, #tpu.memory_space<vmem>>, vector<32x32xbf16>
      %cst_224 = arith.constant dense<0.000000e+00> : vector<32x32xf32>
      %355 = tpu.matmul %353, %354, %cst_224 {dimension_numbers = #tpu.dot_dimension_numbers<[1], [0], [0], [1], [0, 0, 1, 1], [], []>} : vector<32x32xbf16>, vector<32x32xbf16>, vector<32x32xf32> -> vector<32x32xf32>
      %c0_225 = arith.constant 0 : index
      %c0_226 = arith.constant 0 : index
      %356 = vector.load %arg15[%c0_225, %c0_226] : memref<1x32xf32, #tpu.memory_space<vmem>>, vector<1x32xf32>
      %357 = vector.broadcast %356 : vector<1x32xf32> to vector<32x32xf32>
      %358 = arith.addf %355, %357 : vector<32x32xf32>
      %cst_227 = arith.constant 0.000000e+00 : f32
      %359 = vector.broadcast %cst_227 : f32 to vector<32x32xf32>
      %360 = arith.maximumf %358, %359 : vector<32x32xf32>
      %361 = arith.truncf %360 : vector<32x32xf32> to vector<32x32xbf16>
      %c0_228 = arith.constant 0 : index
      %c0_229 = arith.constant 0 : index
      %362 = vector.load %arg16[%c0_228, %c0_229] : memref<32x128xbf16, #tpu.memory_space<vmem>>, vector<32x128xbf16>
      %cst_230 = arith.constant dense<0.000000e+00> : vector<32x128xf32>
      %363 = tpu.matmul %361, %362, %cst_230 {dimension_numbers = #tpu.dot_dimension_numbers<[1], [0], [0], [1], [0, 0, 1, 1], [], []>} : vector<32x32xbf16>, vector<32x128xbf16>, vector<32x128xf32> -> vector<32x128xf32>
      %364 = arith.addf %344, %363 : vector<32x128xf32>
      %c0_231 = arith.constant 0 : index
      %c0_232 = arith.constant 0 : index
      %365 = vector.load %arg17[%c0_231, %c0_232] : memref<1x128xf32, #tpu.memory_space<vmem>>, vector<1x128xf32>
      %366 = vector.broadcast %365 : vector<1x128xf32> to vector<32x128xf32>
      %367 = arith.addf %364, %366 : vector<32x128xf32>
      %c0_233 = arith.constant 0 : index
      %c0_234 = arith.constant 0 : index
      %368 = vector.load %arg18[%c0_233, %c0_234] : memref<32x128xf32, #tpu.memory_space<vmem>>, vector<32x128xf32>
      tpu.vector_store %arg18[%c0_233, %c0_234], %367 {strides = array<i32>} : memref<32x128xf32, #tpu.memory_space<vmem>>, vector<32x128xf32>,
    } else {
    }
    return
  }
  func.func @transform_0(%arg0: i32, %arg1: i32) -> (i32, i32) {
    %c0_i32 = arith.constant 0 : i32
    %c0_i32_0 = arith.constant 0 : i32
    return %arg1, %c0_i32 : i32, i32
  }
  func.func @transform_1(%arg0: i32, %arg1: i32) -> (i32, i32) {
    %c0_i32 = arith.constant 0 : i32
    %c0_i32_0 = arith.constant 0 : i32
    return %arg0, %c0_i32 : i32, i32
  }
  func.func @transform_2(%arg0: i32, %arg1: i32) -> (i32, i32) {
    %c0_i32 = arith.constant 0 : i32
    %c0_i32_0 = arith.constant 0 : i32
    return %c0_i32, %arg1 : i32, i32
  }
  func.func @transform_3(%arg0: i32, %arg1: i32) -> (i32, i32) {
    %c0_i32 = arith.constant 0 : i32
    %c0_i32_0 = arith.constant 0 : i32
    return %arg0, %c0_i32 : i32, i32
  }
  func.func @transform_4(%arg0: i32, %arg1: i32) -> (i32, i32) {
    %c0_i32 = arith.constant 0 : i32
    %c0_i32_0 = arith.constant 0 : i32
    %c0_i32_1 = arith.constant 0 : i32
    return %c0_i32, %c0_i32_0 : i32, i32
  }
  func.func @transform_5(%arg0: i32, %arg1: i32) -> (i32, i32) {
    %c0_i32 = arith.constant 0 : i32
    %c0_i32_0 = arith.constant 0 : i32
    %c0_i32_1 = arith.constant 0 : i32
    return %c0_i32, %c0_i32_0 : i32, i32
  }
  func.func @transform_6(%arg0: i32, %arg1: i32) -> (i32, i32) {
    %c0_i32 = arith.constant 0 : i32
    %c0_i32_0 = arith.constant 0 : i32
    %c0_i32_1 = arith.constant 0 : i32
    return %c0_i32, %c0_i32_0 : i32, i32
  }
  func.func @transform_7(%arg0: i32, %arg1: i32) -> (i32, i32) {
    %c0_i32 = arith.constant 0 : i32
    %c0_i32_0 = arith.constant 0 : i32
    %c0_i32_1 = arith.constant 0 : i32
    return %c0_i32, %c0_i32_0 : i32, i32
  }
  func.func @transform_8(%arg0: i32, %arg1: i32) -> (i32, i32) {
    %c0_i32 = arith.constant 0 : i32
    %c0_i32_0 = arith.constant 0 : i32
    %c0_i32_1 = arith.constant 0 : i32
    return %c0_i32, %c0_i32_0 : i32, i32
  }
  func.func @transform_9(%arg0: i32, %arg1: i32) -> (i32, i32) {
    %c0_i32 = arith.constant 0 : i32
    %c0_i32_0 = arith.constant 0 : i32
    %c0_i32_1 = arith.constant 0 : i32
    return %c0_i32, %c0_i32_0 : i32, i32
  }
  func.func @transform_10(%arg0: i32, %arg1: i32) -> (i32, i32) {
    %c0_i32 = arith.constant 0 : i32
    %c0_i32_0 = arith.constant 0 : i32
    %c0_i32_1 = arith.constant 0 : i32
    return %c0_i32, %c0_i32_0 : i32, i32
  }
  func.func @transform_11(%arg0: i32, %arg1: i32) -> (i32, i32) {
    %c0_i32 = arith.constant 0 : i32
    %c0_i32_0 = arith.constant 0 : i32
    %c0_i32_1 = arith.constant 0 : i32
    return %c0_i32, %c0_i32_0 : i32, i32
  }
  func.func @transform_12(%arg0: i32, %arg1: i32) -> (i32, i32) {
    %c0_i32 = arith.constant 0 : i32
    %c0_i32_0 = arith.constant 0 : i32
    %c0_i32_1 = arith.constant 0 : i32
    return %c0_i32, %c0_i32_0 : i32, i32
  }
  func.func @transform_13(%arg0: i32, %arg1: i32) -> (i32, i32) {
    %c0_i32 = arith.constant 0 : i32
    %c0_i32_0 = arith.constant 0 : i32
    %c0_i32_1 = arith.constant 0 : i32
    return %c0_i32, %c0_i32_0 : i32, i32
  }
  func.func @transform_14(%arg0: i32, %arg1: i32) -> (i32, i32) {
    %c0_i32 = arith.constant 0 : i32
    %c0_i32_0 = arith.constant 0 : i32
    %c0_i32_1 = arith.constant 0 : i32
    return %c0_i32, %c0_i32_0 : i32, i32
  }
  func.func @transform_15(%arg0: i32, %arg1: i32) -> (i32, i32) {
    %c0_i32 = arith.constant 0 : i32
    %c0_i32_0 = arith.constant 0 : i32
    %c0_i32_1 = arith.constant 0 : i32
    return %c0_i32, %c0_i32_0 : i32, i32
  }
  func.func @transform_16(%arg0: i32, %arg1: i32) -> (i32, i32) {
    %c0_i32 = arith.constant 0 : i32
    %c0_i32_0 = arith.constant 0 : i32
    return %arg0, %c0_i32 : i32, i32
  }
}

</mosaic_0001>

<llo_original>
// kernel: tpu_custom_call.1
$region0: #{tpu_custom_call.1}
  #allocation0 [shape = 'u32[]', space=smem, size = 0x4, offset = 0x4, fixed_abs, tag = 'smem constant byte address 0x4 - core index']
  #allocation1 [shape = 'u32[144,128]{1,0:T(1,128)}', space=vmem, size = 0x12000, scoped, tag = 'internal scratch']
  #allocation2 [shape = 'bf16[32,1024]{1,0:T(8,128)(2,1)}', space=vmem, size = 0x10000, scoped, tag = 'scratch operand']
  #allocation3 [shape = 'f32[32,8]{1,0:T(8,128)}', space=vmem, size = 0x4000, scoped, tag = 'scratch operand']
  #allocation4 [shape = 'f32[32,8]{1,0:T(8,128)}', space=vmem, size = 0x4000, scoped, tag = 'scratch operand']
  #allocation5 [shape = 'f32[32,1024]{1,0:T(8,128)}', space=vmem, size = 0x20000, scoped, tag = 'scratch operand']
  %s0 = inlined_call_operand.vmem [shape: f32[16,17], index: 0, kind: input, shape index: {}]
  %s1 = inlined_call_operand.vmem [shape: f32[64,128], index: 1, kind: input, shape index: {}]
  %s2 = inlined_call_operand.hbm [shape: s32[1,16], index: 2, kind: input, shape index: {}]
  %s3 = inlined_call_operand.vmem [shape: s32[64,1], index: 3, kind: input, shape index: {}]
  %s4 = inlined_call_operand.hbm [shape: bf16[128,1024], index: 4, kind: input, shape index: {}]
  %s5 = inlined_call_operand.vmem [shape: f32[1,1024], index: 5, kind: input, shape index: {}]
  %s6 = inlined_call_operand.hbm [shape: bf16[17,2048], index: 6, kind: input, shape index: {}]
  %s7 = inlined_call_operand.vmem [shape: f32[1,2048], index: 7, kind: input, shape index: {}]
  %s8 = inlined_call_operand.hbm [shape: bf16[1024,128], index: 8, kind: input, shape index: {}]
  %s9 = inlined_call_operand.vmem [shape: f32[1,128], index: 9, kind: input, shape index: {}]
  %s10 = inlined_call_operand.vmem [shape: bf16[128,32], index: 10, kind: input, shape index: {}]
  %s11 = inlined_call_operand.vmem [shape: f32[1,32], index: 11, kind: input, shape index: {}]
  %s12 = inlined_call_operand.vmem [shape: bf16[32,32], index: 12, kind: input, shape index: {}]
  %s13 = inlined_call_operand.vmem [shape: f32[1,32], index: 13, kind: input, shape index: {}]
  %s14 = inlined_call_operand.vmem [shape: bf16[32,128], index: 14, kind: input, shape index: {}]
  %s15 = inlined_call_operand.vmem [shape: f32[1,128], index: 15, kind: input, shape index: {}]
  %s16 = inlined_call_operand.hbm [shape: f32[64,128], index: 16, kind: output, shape index: {}]
  %s17 = sld [smem:[#allocation0]]
  $region121: #{tpu_custom_call.1} parent=0
    _
  %s19 = ssub.s32 1, %s17
  %s20 = scalar_select 0, %s19, %s17
  $region1: #{tpu_custom_call.1} parent=0
    #allocation6 [shape = 'u8[512]{0}', space=vmem, size = 0x400, scoped, tag = 'input window, operand 2, single buffered']
    #allocation7 [shape = 's32[2]{0}', space=sflag, size = 0x8, scoped, tag = 'scoped memory for tpu_custom_call.1']
    #allocation8 [shape = 's32[2]{0}', space=sflag, size = 0x8, scoped, tag = 'scoped memory for tpu_custom_call.1']
    #allocation9 [shape = 'u8[262144]{0}', space=vmem, size = 0x40000, scoped, tag = 'input window, operand 4, single buffered']
    #allocation10 [shape = 's32[1]{0}', space=sflag, size = 0x4, scoped, tag = 'scoped memory for tpu_custom_call.1']
    #allocation11 [shape = 'u8[98304]{0}', space=vmem, size = 0x18000, scoped, tag = 'input window, operand 6, single buffered']
    #allocation12 [shape = 'u8[262144]{0}', space=vmem, size = 0x40000, scoped, tag = 'input window, operand 8, single buffered']
    #allocation13 [shape = 's32[1]{0}', space=sflag, size = 0x4, scoped, tag = 'scoped memory for tpu_custom_call.1']
    #allocation14 [shape = 'u8[32768]{0}', space=vmem, size = 0x8000, scoped, tag = 'output window, operand 0']
    %21 = vsyncpa [#allocation7], 0
    %22 = vsyncpa [#allocation10], 0
    %23 = vsyncpa [#allocation13], 0
    %24 = vsyncpa [#allocation8], 0
    %s25 = scalar_lea.sflag [#allocation8], 1
    %26 = vsyncpa %s25, 0
    loop: start=0, step=1, limit=4
    $region2: #{tpu_custom_call.1} parent=1 // loop_pre_header
      _
    $region3: #{tpu_custom_call.1} parent=1 // loop_header
      %s28 = sphi 0, %s32
      %p29 = scmp.ge.s32.totalorder %s28, 4
      %s35 = sphi 0, %s47
      %s36 = sphi 0, %s43
      %s37 = sphi 0, %s35
      %s38 = sphi 0, %s36
      %s39 = sphi 0, %s37
      %s40 = sphi 0, %s38
      %s50 = sphi 0, %s52
      %s53 = sphi 0, %s50
      %s54 = sphi 0, %s53
      %s70 = sphi 0, %s54
      %s76 = sphi 0, %s78
      %s79 = sphi 0, %s76
      %s80 = sphi 0, %s79
      %s96 = sphi 0, %s80
      %s102 = sphi 0, %s104
      %s105 = sphi 0, %s102
      %s106 = sphi 0, %s105
      %s122 = sphi 0, %s106
      %s128 = sphi 0, %s130
      %s131 = sphi 0, %s128
      %s132 = sphi 0, %s131
      %s148 = sphi 0, %s132
      %s152 = sphi 0, %s152
      %s154 = sphi 0, %s152
      %s155 = sphi 0, %s154
      %s169 = sphi 0, %s155
      %s173 = sphi 0, %s173
      %s175 = sphi 0, %s173
      %s176 = sphi 0, %s175
      %s190 = sphi 0, %s176
      %s194 = sphi 0, %s194
      %s196 = sphi 0, %s194
      %s197 = sphi 0, %s196
      %s211 = sphi 0, %s197
      %s215 = sphi 0, %s215
      %s217 = sphi 0, %s215
      %s218 = sphi 0, %s217
      %s232 = sphi 0, %s218
      %s236 = sphi 0, %s236
      %s238 = sphi 0, %s236
      %s239 = sphi 0, %s238
      %s253 = sphi 0, %s239
      %s257 = sphi 0, %s257
      %s259 = sphi 0, %s257
      %s260 = sphi 0, %s259
      %s274 = sphi 0, %s260
      %s278 = sphi 0, %s278
      %s280 = sphi 0, %s278
      %s281 = sphi 0, %s280
      %s295 = sphi 0, %s281
      %s299 = sphi 0, %s299
      %s301 = sphi 0, %s299
      %s302 = sphi 0, %s301
      %s316 = sphi 0, %s302
      %s320 = sphi 0, %s320
      %s322 = sphi 0, %s320
      %s323 = sphi 0, %s322
      %s337 = sphi 0, %s323
      %s341 = sphi 0, %s341
      %s343 = sphi 0, %s341
      %s344 = sphi 0, %s343
      %s358 = sphi 0, %s344
      %s362 = sphi 0, %s362
      %s364 = sphi 0, %s362
      %s365 = sphi 0, %s364
      %s379 = sphi 0, %s365
      %s383 = sphi 0, %s383
      %s385 = sphi 0, %s383
      %s386 = sphi 0, %s385
      %s400 = sphi 0, %s386
      %s406 = sphi 0, %s408
      %s409 = sphi 0, %s406
      %s410 = sphi 0, %s409
      %s426 = sphi 0, %s410
    $region4: #{tpu_custom_call.1} parent=1 // loop_header_branch
      %31 = sbr.rel (%p29) target = $region8
    $region5: #{tpu_custom_call.1} parent=1 // loop_body
      %s33 = ssub.s32 %s28, 1
      %s34 = ssub.s32 %s28, 2
      %s41 = sadd.s32 1, %s36
      %p42 = scmp.ge.s32.totalorder %s41, 1
      %s43 = scalar_select %p42, 0, %s41
      %s44 = sadd.s32 1, %s35
      %s45 = scalar_select %p42, %s44, %s35
      %p46 = scmp.ge.s32.totalorder %s45, 2
      %s47 = scalar_select %p46, 0, %s45
      %s48 = ssub.s32 %s36, %s43
      %p49 = scmp.eq.s32.totalorder %s48, 0
      %s51 = sadd.s32 %s50, 1
      %s52 = scalar_select %p49, %s50, %s51
      %p55 = pneg %p49
      %p56 = scmp.eq.s32.totalorder %s28, 1
      %p57 = por %p55, %p56
      %p58 = scmp.ne.s32.totalorder %s50, %s53
      %p59 = scmp.eq.s32.totalorder %s28, 0
      %p60 = por %p58, %p59
      %p61 = scmp.ne.s32.totalorder %s50, %s53
      %p62 = scmp.eq.s32.totalorder %s33, 1
      %p63 = por %p61, %p62
      %p64 = scmp.ne.s32.totalorder %s53, %s54
      %p65 = scmp.eq.s32.totalorder %s33, 0
      %p66 = por %p64, %p65
      %p67 = scmp.ne.s32.totalorder %s53, %s54
      %p68 = scmp.eq.s32.totalorder %s34, 1
      %p69 = por %p67, %p68
      %p71 = scmp.ne.s32.totalorder %s54, %s70
      %p72 = scmp.eq.s32.totalorder %s34, 0
      %p73 = por %p71, %p72
      %s74 = ssub.s32 %s35, %s47
      %p75 = scmp.eq.s32.totalorder %s74, 0
      %s77 = sadd.s32 %s76, 1
      %s78 = scalar_select %p75, %s76, %s77
      %p81 = pneg %p75
      %p82 = scmp.eq.s32.totalorder %s28, 1
      %p83 = por %p81, %p82
      %p84 = scmp.ne.s32.totalorder %s76, %s79
      %p85 = scmp.eq.s32.totalorder %s28, 0
      %p86 = por %p84, %p85
      %p87 = scmp.ne.s32.totalorder %s76, %s79
      %p88 = scmp.eq.s32.totalorder %s33, 1
      %p89 = por %p87, %p88
      %p90 = scmp.ne.s32.totalorder %s79, %s80
      %p91 = scmp.eq.s32.totalorder %s33, 0
      %p92 = por %p90, %p91
      %p93 = scmp.ne.s32.totalorder %s79, %s80
      %p94 = scmp.eq.s32.totalorder %s34, 1
      %p95 = por %p93, %p94
      %p97 = scmp.ne.s32.totalorder %s80, %s96
      %p98 = scmp.eq.s32.totalorder %s34, 0
      %p99 = por %p97, %p98
      %s100 = ssub.s32 %s36, %s43
      %p101 = scmp.eq.s32.totalorder %s100, 0
      %s103 = sadd.s32 %s102, 1
      %s104 = scalar_select %p101, %s102, %s103
      %p107 = pneg %p101
      %p108 = scmp.eq.s32.totalorder %s28, 1
      %p109 = por %p107, %p108
      %p110 = scmp.ne.s32.totalorder %s102, %s105
      %p111 = scmp.eq.s32.totalorder %s28, 0
      %p112 = por %p110, %p111
      %p113 = scmp.ne.s32.totalorder %s102, %s105
      %p114 = scmp.eq.s32.totalorder %s33, 1
      %p115 = por %p113, %p114
      %p116 = scmp.ne.s32.totalorder %s105, %s106
      %p117 = scmp.eq.s32.totalorder %s33, 0
      %p118 = por %p116, %p117
      %p119 = scmp.ne.s32.totalorder %s105, %s106
      %p120 = scmp.eq.s32.totalorder %s34, 1
      %p121 = por %p119, %p120
      %p123 = scmp.ne.s32.totalorder %s106, %s122
      %p124 = scmp.eq.s32.totalorder %s34, 0
      %p125 = por %p123, %p124
      %s126 = ssub.s32 %s35, %s47
      %p127 = scmp.eq.s32.totalorder %s126, 0
      %s129 = sadd.s32 %s128, 1
      %s130 = scalar_select %p127, %s128, %s129
      %p133 = pneg %p127
      %p134 = scmp.eq.s32.totalorder %s28, 1
      %p135 = por %p133, %p134
      %p136 = scmp.ne.s32.totalorder %s128, %s131
      %p137 = scmp.eq.s32.totalorder %s28, 0
      %p138 = por %p136, %p137
      %p139 = scmp.ne.s32.totalorder %s128, %s131
      %p140 = scmp.eq.s32.totalorder %s33, 1
      %p141 = por %p139, %p140
      %p142 = scmp.ne.s32.totalorder %s131, %s132
      %p143 = scmp.eq.s32.totalorder %s33, 0
      %p144 = por %p142, %p143
      %p145 = scmp.ne.s32.totalorder %s131, %s132
      %p146 = scmp.eq.s32.totalorder %s34, 1
      %p147 = por %p145, %p146
      %p149 = scmp.ne.s32.totalorder %s132, %s148
      %p150 = scmp.eq.s32.totalorder %s34, 0
      %p151 = por %p149, %p150
      %s153 = sadd.s32 %s152, 1
      %p156 = scmp.eq.s32.totalorder %s28, 1
      %p157 = scmp.ne.s32.totalorder %s152, %s154
      %p158 = scmp.eq.s32.totalorder %s28, 0
      %p159 = por %p157, %p158
      %p160 = scmp.ne.s32.totalorder %s152, %s154
      %p161 = scmp.eq.s32.totalorder %s33, 1
      %p162 = por %p160, %p161
      %p163 = scmp.ne.s32.totalorder %s154, %s155
      %p164 = scmp.eq.s32.totalorder %s33, 0
      %p165 = por %p163, %p164
      %p166 = scmp.ne.s32.totalorder %s154, %s155
      %p167 = scmp.eq.s32.totalorder %s34, 1
      %p168 = por %p166, %p167
      %p170 = scmp.ne.s32.totalorder %s155, %s169
      %p171 = scmp.eq.s32.totalorder %s34, 0
      %p172 = por %p170, %p171
      %s174 = sadd.s32 %s173, 1
      %p177 = scmp.eq.s32.totalorder %s28, 1
      %p178 = scmp.ne.s32.totalorder %s173, %s175
      %p179 = scmp.eq.s32.totalorder %s28, 0
      %p180 = por %p178, %p179
      %p181 = scmp.ne.s32.totalorder %s173, %s175
      %p182 = scmp.eq.s32.totalorder %s33, 1
      %p183 = por %p181, %p182
      %p184 = scmp.ne.s32.totalorder %s175, %s176
      %p185 = scmp.eq.s32.totalorder %s33, 0
      %p186 = por %p184, %p185
      %p187 = scmp.ne.s32.totalorder %s175, %s176
      %p188 = scmp.eq.s32.totalorder %s34, 1
      %p189 = por %p187, %p188
      %p191 = scmp.ne.s32.totalorder %s176, %s190
      %p192 = scmp.eq.s32.totalorder %s34, 0
      %p193 = por %p191, %p192
      %s195 = sadd.s32 %s194, 1
      %p198 = scmp.eq.s32.totalorder %s28, 1
      %p199 = scmp.ne.s32.totalorder %s194, %s196
      %p200 = scmp.eq.s32.totalorder %s28, 0
      %p201 = por %p199, %p200
      %p202 = scmp.ne.s32.totalorder %s194, %s196
      %p203 = scmp.eq.s32.totalorder %s33, 1
      %p204 = por %p202, %p203
      %p205 = scmp.ne.s32.totalorder %s196, %s197
      %p206 = scmp.eq.s32.totalorder %s33, 0
      %p207 = por %p205, %p206
      %p208 = scmp.ne.s32.totalorder %s196, %s197
      %p209 = scmp.eq.s32.totalorder %s34, 1
      %p210 = por %p208, %p209
      %p212 = scmp.ne.s32.totalorder %s197, %s211
      %p213 = scmp.eq.s32.totalorder %s34, 0
      %p214 = por %p212, %p213
      %s216 = sadd.s32 %s215, 1
      %p219 = scmp.eq.s32.totalorder %s28, 1
      %p220 = scmp.ne.s32.totalorder %s215, %s217
      %p221 = scmp.eq.s32.totalorder %s28, 0
      %p222 = por %p220, %p221
      %p223 = scmp.ne.s32.totalorder %s215, %s217
      %p224 = scmp.eq.s32.totalorder %s33, 1
      %p225 = por %p223, %p224
      %p226 = scmp.ne.s32.totalorder %s217, %s218
      %p227 = scmp.eq.s32.totalorder %s33, 0
      %p228 = por %p226, %p227
      %p229 = scmp.ne.s32.totalorder %s217, %s218
      %p230 = scmp.eq.s32.totalorder %s34, 1
      %p231 = por %p229, %p230
      %p233 = scmp.ne.s32.totalorder %s218, %s232
      %p234 = scmp.eq.s32.totalorder %s34, 0
      %p235 = por %p233, %p234
      %s237 = sadd.s32 %s236, 1
      %p240 = scmp.eq.s32.totalorder %s28, 1
      %p241 = scmp.ne.s32.totalorder %s236, %s238
      %p242 = scmp.eq.s32.totalorder %s28, 0
      %p243 = por %p241, %p242
      %p244 = scmp.ne.s32.totalorder %s236, %s238
      %p245 = scmp.eq.s32.totalorder %s33, 1
      %p246 = por %p244, %p245
      %p247 = scmp.ne.s32.totalorder %s238, %s239
      %p248 = scmp.eq.s32.totalorder %s33, 0
      %p249 = por %p247, %p248
      %p250 = scmp.ne.s32.totalorder %s238, %s239
      %p251 = scmp.eq.s32.totalorder %s34, 1
      %p252 = por %p250, %p251
      %p254 = scmp.ne.s32.totalorder %s239, %s253
      %p255 = scmp.eq.s32.totalorder %s34, 0
      %p256 = por %p254, %p255
      %s258 = sadd.s32 %s257, 1
      %p261 = scmp.eq.s32.totalorder %s28, 1
      %p262 = scmp.ne.s32.totalorder %s257, %s259
      %p263 = scmp.eq.s32.totalorder %s28, 0
      %p264 = por %p262, %p263
      %p265 = scmp.ne.s32.totalorder %s257, %s259
      %p266 = scmp.eq.s32.totalorder %s33, 1
      %p267 = por %p265, %p266
      %p268 = scmp.ne.s32.totalorder %s259, %s260
      %p269 = scmp.eq.s32.totalorder %s33, 0
      %p270 = por %p268, %p269
      %p271 = scmp.ne.s32.totalorder %s259, %s260
      %p272 = scmp.eq.s32.totalorder %s34, 1
      %p273 = por %p271, %p272
      %p275 = scmp.ne.s32.totalorder %s260, %s274
      %p276 = scmp.eq.s32.totalorder %s34, 0
      %p277 = por %p275, %p276
      %s279 = sadd.s32 %s278, 1
      %p282 = scmp.eq.s32.totalorder %s28, 1
      %p283 = scmp.ne.s32.totalorder %s278, %s280
      %p284 = scmp.eq.s32.totalorder %s28, 0
      %p285 = por %p283, %p284
      %p286 = scmp.ne.s32.totalorder %s278, %s280
      %p287 = scmp.eq.s32.totalorder %s33, 1
      %p288 = por %p286, %p287
      %p289 = scmp.ne.s32.totalorder %s280, %s281
      %p290 = scmp.eq.s32.totalorder %s33, 0
      %p291 = por %p289, %p290
      %p292 = scmp.ne.s32.totalorder %s280, %s281
      %p293 = scmp.eq.s32.totalorder %s34, 1
      %p294 = por %p292, %p293
      %p296 = scmp.ne.s32.totalorder %s281, %s295
      %p297 = scmp.eq.s32.totalorder %s34, 0
      %p298 = por %p296, %p297
      %s300 = sadd.s32 %s299, 1
      %p303 = scmp.eq.s32.totalorder %s28, 1
      %p304 = scmp.ne.s32.totalorder %s299, %s301
      %p305 = scmp.eq.s32.totalorder %s28, 0
      %p306 = por %p304, %p305
      %p307 = scmp.ne.s32.totalorder %s299, %s301
      %p308 = scmp.eq.s32.totalorder %s33, 1
      %p309 = por %p307, %p308
      %p310 = scmp.ne.s32.totalorder %s301, %s302
      %p311 = scmp.eq.s32.totalorder %s33, 0
      %p312 = por %p310, %p311
      %p313 = scmp.ne.s32.totalorder %s301, %s302
      %p314 = scmp.eq.s32.totalorder %s34, 1
      %p315 = por %p313, %p314
      %p317 = scmp.ne.s32.totalorder %s302, %s316
      %p318 = scmp.eq.s32.totalorder %s34, 0
      %p319 = por %p317, %p318
      %s321 = sadd.s32 %s320, 1
      %p324 = scmp.eq.s32.totalorder %s28, 1
      %p325 = scmp.ne.s32.totalorder %s320, %s322
      %p326 = scmp.eq.s32.totalorder %s28, 0
      %p327 = por %p325, %p326
      %p328 = scmp.ne.s32.totalorder %s320, %s322
      %p329 = scmp.eq.s32.totalorder %s33, 1
      %p330 = por %p328, %p329
      %p331 = scmp.ne.s32.totalorder %s322, %s323
      %p332 = scmp.eq.s32.totalorder %s33, 0
      %p333 = por %p331, %p332
      %p334 = scmp.ne.s32.totalorder %s322, %s323
      %p335 = scmp.eq.s32.totalorder %s34, 1
      %p336 = por %p334, %p335
      %p338 = scmp.ne.s32.totalorder %s323, %s337
      %p339 = scmp.eq.s32.totalorder %s34, 0
      %p340 = por %p338, %p339
      %s342 = sadd.s32 %s341, 1
      %p345 = scmp.eq.s32.totalorder %s28, 1
      %p346 = scmp.ne.s32.totalorder %s341, %s343
      %p347 = scmp.eq.s32.totalorder %s28, 0
      %p348 = por %p346, %p347
      %p349 = scmp.ne.s32.totalorder %s341, %s343
      %p350 = scmp.eq.s32.totalorder %s33, 1
      %p351 = por %p349, %p350
      %p352 = scmp.ne.s32.totalorder %s343, %s344
      %p353 = scmp.eq.s32.totalorder %s33, 0
      %p354 = por %p352, %p353
      %p355 = scmp.ne.s32.totalorder %s343, %s344
      %p356 = scmp.eq.s32.totalorder %s34, 1
      %p357 = por %p355, %p356
      %p359 = scmp.ne.s32.totalorder %s344, %s358
      %p360 = scmp.eq.s32.totalorder %s34, 0
      %p361 = por %p359, %p360
      %s363 = sadd.s32 %s362, 1
      %p366 = scmp.eq.s32.totalorder %s28, 1
      %p367 = scmp.ne.s32.totalorder %s362, %s364
      %p368 = scmp.eq.s32.totalorder %s28, 0
      %p369 = por %p367, %p368
      %p370 = scmp.ne.s32.totalorder %s362, %s364
      %p371 = scmp.eq.s32.totalorder %s33, 1
      %p372 = por %p370, %p371
      %p373 = scmp.ne.s32.totalorder %s364, %s365
      %p374 = scmp.eq.s32.totalorder %s33, 0
      %p375 = por %p373, %p374
      %p376 = scmp.ne.s32.totalorder %s364, %s365
      %p377 = scmp.eq.s32.totalorder %s34, 1
      %p378 = por %p376, %p377
      %p380 = scmp.ne.s32.totalorder %s365, %s379
      %p381 = scmp.eq.s32.totalorder %s34, 0
      %p382 = por %p380, %p381
      %s384 = sadd.s32 %s383, 1
      %p387 = scmp.eq.s32.totalorder %s28, 1
      %p388 = scmp.ne.s32.totalorder %s383, %s385
      %p389 = scmp.eq.s32.totalorder %s28, 0
      %p390 = por %p388, %p389
      %p391 = scmp.ne.s32.totalorder %s383, %s385
      %p392 = scmp.eq.s32.totalorder %s33, 1
      %p393 = por %p391, %p392
      %p394 = scmp.ne.s32.totalorder %s385, %s386
      %p395 = scmp.eq.s32.totalorder %s33, 0
      %p396 = por %p394, %p395
      %p397 = scmp.ne.s32.totalorder %s385, %s386
      %p398 = scmp.eq.s32.totalorder %s34, 1
      %p399 = por %p397, %p398
      %p401 = scmp.ne.s32.totalorder %s386, %s400
      %p402 = scmp.eq.s32.totalorder %s34, 0
      %p403 = por %p401, %p402
      %s404 = ssub.s32 %s35, %s47
      %p405 = scmp.eq.s32.totalorder %s404, 0
      %s407 = sadd.s32 %s406, 1
      %s408 = scalar_select %p405, %s406, %s407
      %p411 = pneg %p405
      %p412 = scmp.eq.s32.totalorder %s28, 1
      %p413 = por %p411, %p412
      %p414 = scmp.ne.s32.totalorder %s406, %s409
      %p415 = scmp.eq.s32.totalorder %s28, 0
      %p416 = por %p414, %p415
      %p417 = scmp.ne.s32.totalorder %s406, %s409
      %p418 = scmp.eq.s32.totalorder %s33, 1
      %p419 = por %p417, %p418
      %p420 = scmp.ne.s32.totalorder %s409, %s410
      %p421 = scmp.eq.s32.totalorder %s33, 0
      %p422 = por %p420, %p421
      %p423 = scmp.ne.s32.totalorder %s409, %s410
      %p424 = scmp.eq.s32.totalorder %s34, 1
      %p425 = por %p423, %p424
      %p427 = scmp.ne.s32.totalorder %s410, %s426
      %p428 = scmp.eq.s32.totalorder %s34, 0
      %p429 = por %p427, %p428
      %p430 = scmp.le.s32.totalorder 1, %s28
      %p431 = scmp.lt.s32.totalorder %s28, 3
      %p432 = pnand %p430, %p431
      %p433 = pneg %p432
      // Predicated region
      $region9: #{tpu_custom_call.1} parent=5 // pred_check
        _
      $region10: #{tpu_custom_call.1} parent=5 // pred_check_branch
        %435 = sbr.rel (%p432) target = $region12
      $region11: #{tpu_custom_call.1} parent=5 // pred_region
        %s436 = ssub.s32 %s28, 1
        // Predicated region
        $region13: #{tpu_custom_call.1} parent=11 // pred_check
          %p437 = pneg %p66
        $region14: #{tpu_custom_call.1} parent=11 // pred_check_branch
          %439 = sbr.rel (%p437) target = $region16
        $region15: #{tpu_custom_call.1} parent=11 // pred_region
          %s440 = smul.u32 2, %s38
          %p441 = scmp.lt.s32.totalorder %s440, 1
          %s442 = scalar_select %p441, %s440, 1
          %s443 = smul.addr %s442, 8
          %s444 = scalar_lea.vmem %s0, %s443
          %s445 = smul.u32 2, %s38
        $region16: #{tpu_custom_call.1} parent=11 // pred_fallthru
          _
        // Predicated region
        $region17: #{tpu_custom_call.1} parent=11 // pred_check
          %p446 = pneg %p118
        $region18: #{tpu_custom_call.1} parent=11 // pred_check_branch
          %448 = sbr.rel (%p446) target = $region20
        $region19: #{tpu_custom_call.1} parent=11 // pred_region
          %s450 = ssub.s32 16, 16
          %451 = vsyncadd [#allocation7], %s450
          %s452 = smul.addr %s38, 16
          %s453 = scalar_lea.hbm %s2, %s452
          %s455 = sshll.u32 [#allocation6], 4
          %s456 = int_to_ptr.vmem [resolvable:$true] %s455
          %458 = dma.hbm_to_vmem [thread:$0]  %s453, 16, %s456, [#allocation7]
        $region20: #{tpu_custom_call.1} parent=11 // pred_fallthru
          _
        // Predicated region
        $region21: #{tpu_custom_call.1} parent=11 // pred_check
          %p459 = pneg %p165
        $region22: #{tpu_custom_call.1} parent=11 // pred_check_branch
          %461 = sbr.rel (%p459) target = $region24
        $region23: #{tpu_custom_call.1} parent=11 // pred_region
          %s463 = ssub.s32 8192, 8192
          %464 = vsyncadd [#allocation10], %s463
          %s465 = sshll.u32 [#allocation9], 4
          %s466 = int_to_ptr.vmem [resolvable:$true] %s465
          %471 = dma.hbm_to_vmem [thread:$0]  %s4, 8192, %s466, [#allocation10], 512, 512, 32
        $region24: #{tpu_custom_call.1} parent=11 // pred_fallthru
          _
        // Predicated region
        $region25: #{tpu_custom_call.1} parent=11 // pred_check
          %p472 = pneg %p186
        $region26: #{tpu_custom_call.1} parent=11 // pred_check_branch
          %474 = sbr.rel (%p472) target = $region28
        $region27: #{tpu_custom_call.1} parent=11 // pred_region
          _
        $region28: #{tpu_custom_call.1} parent=11 // pred_fallthru
          _
        // Predicated region
        $region29: #{tpu_custom_call.1} parent=11 // pred_check
          %p475 = pneg %p207
        $region30: #{tpu_custom_call.1} parent=11 // pred_check_branch
          %477 = sbr.rel (%p475) target = $region32
        $region31: #{tpu_custom_call.1} parent=11 // pred_region
          %s479 = ssub.s32 3072, 3072
          %480 = vsyncadd [#allocation10], %s479
          %s481 = sshll.u32 [#allocation11], 4
          %s482 = int_to_ptr.vmem [resolvable:$true] %s481
          %487 = dma.hbm_to_vmem [thread:$0]  %s6, 3072, %s482, [#allocation10], 1024, 1024, 64
        $region32: #{tpu_custom_call.1} parent=11 // pred_fallthru
          _
        // Predicated region
        $region33: #{tpu_custom_call.1} parent=11 // pred_check
          %p488 = pneg %p228
        $region34: #{tpu_custom_call.1} parent=11 // pred_check_branch
          %490 = sbr.rel (%p488) target = $region36
        $region35: #{tpu_custom_call.1} parent=11 // pred_region
          _
        $region36: #{tpu_custom_call.1} parent=11 // pred_fallthru
          _
        // Predicated region
        $region37: #{tpu_custom_call.1} parent=11 // pred_check
          %p491 = pneg %p249
        $region38: #{tpu_custom_call.1} parent=11 // pred_check_branch
          %493 = sbr.rel (%p491) target = $region40
        $region39: #{tpu_custom_call.1} parent=11 // pred_region
          %s495 = ssub.s32 8192, 8192
          %496 = vsyncadd [#allocation13], %s495
          %s497 = sshll.u32 [#allocation12], 4
          %s498 = int_to_ptr.vmem [resolvable:$true] %s497
          %503 = dma.hbm_to_vmem [thread:$0]  %s8, 8192, %s498, [#allocation13], 64, 64, 4
        $region40: #{tpu_custom_call.1} parent=11 // pred_fallthru
          _
        // Predicated region
        $region41: #{tpu_custom_call.1} parent=11 // pred_check
          %p504 = pneg %p270
        $region42: #{tpu_custom_call.1} parent=11 // pred_check_branch
          %506 = sbr.rel (%p504) target = $region44
        $region43: #{tpu_custom_call.1} parent=11 // pred_region
          _
        $region44: #{tpu_custom_call.1} parent=11 // pred_fallthru
          _
        // Predicated region
        $region45: #{tpu_custom_call.1} parent=11 // pred_check
          %p507 = pneg %p291
        $region46: #{tpu_custom_call.1} parent=11 // pred_check_branch
          %509 = sbr.rel (%p507) target = $region48
        $region47: #{tpu_custom_call.1} parent=11 // pred_region
          _
        $region48: #{tpu_custom_call.1} parent=11 // pred_fallthru
          _
        // Predicated region
        $region49: #{tpu_custom_call.1} parent=11 // pred_check
          %p510 = pneg %p312
        $region50: #{tpu_custom_call.1} parent=11 // pred_check_branch
          %512 = sbr.rel (%p510) target = $region52
        $region51: #{tpu_custom_call.1} parent=11 // pred_region
          _
        $region52: #{tpu_custom_call.1} parent=11 // pred_fallthru
          _
        // Predicated region
        $region53: #{tpu_custom_call.1} parent=11 // pred_check
          %p513 = pneg %p333
        $region54: #{tpu_custom_call.1} parent=11 // pred_check_branch
          %515 = sbr.rel (%p513) target = $region56
        $region55: #{tpu_custom_call.1} parent=11 // pred_region
          _
        $region56: #{tpu_custom_call.1} parent=11 // pred_fallthru
          _
        // Predicated region
        $region57: #{tpu_custom_call.1} parent=11 // pred_check
          %p516 = pneg %p354
        $region58: #{tpu_custom_call.1} parent=11 // pred_check_branch
          %518 = sbr.rel (%p516) target = $region60
        $region59: #{tpu_custom_call.1} parent=11 // pred_region
          _
        $region60: #{tpu_custom_call.1} parent=11 // pred_fallthru
          _
        // Predicated region
        $region61: #{tpu_custom_call.1} parent=11 // pred_check
          %p519 = pneg %p375
        $region62: #{tpu_custom_call.1} parent=11 // pred_check_branch
          %521 = sbr.rel (%p519) target = $region64
        $region63: #{tpu_custom_call.1} parent=11 // pred_region
          _
        $region64: #{tpu_custom_call.1} parent=11 // pred_fallthru
          _
        // Predicated region
        $region65: #{tpu_custom_call.1} parent=11 // pred_check
          %p522 = pneg %p396
        $region66: #{tpu_custom_call.1} parent=11 // pred_check_branch
          %524 = sbr.rel (%p522) target = $region68
        $region67: #{tpu_custom_call.1} parent=11 // pred_region
          _
        $region68: #{tpu_custom_call.1} parent=11 // pred_fallthru
          _
      $region12: #{tpu_custom_call.1} parent=5 // pred_fallthru
        _
      %p525 = scmp.lt.s32.totalorder %s28, 2
      // Predicated region
      $region69: #{tpu_custom_call.1} parent=5 // pred_check
        %p526 = pneg %p525
      $region70: #{tpu_custom_call.1} parent=5 // pred_check_branch
        %528 = sbr.rel (%p526) target = $region72
      $region71: #{tpu_custom_call.1} parent=5 // pred_region
        // Predicated region
        $region73: #{tpu_custom_call.1} parent=71 // pred_check
          %p529 = pneg %p86
        $region74: #{tpu_custom_call.1} parent=71 // pred_check_branch
          %531 = sbr.rel (%p529) target = $region76
        $region75: #{tpu_custom_call.1} parent=71 // pred_region
          %s532 = smul.u32 4, %s35
          %p533 = scmp.lt.s32.totalorder %s532, 7
          %s534 = scalar_select %p533, %s532, 7
          %s535 = smul.addr %s534, 8
          %s536 = scalar_lea.vmem %s1, %s535
          %s537 = smul.u32 4, %s35
        $region76: #{tpu_custom_call.1} parent=71 // pred_fallthru
          _
        // Predicated region
        $region77: #{tpu_custom_call.1} parent=71 // pred_check
          %p538 = pneg %p138
        $region78: #{tpu_custom_call.1} parent=71 // pred_check_branch
          %540 = sbr.rel (%p538) target = $region80
        $region79: #{tpu_custom_call.1} parent=71 // pred_region
          %s541 = smul.u32 4, %s35
          %p542 = scmp.lt.s32.totalorder %s541, 7
          %s543 = scalar_select %p542, %s541, 7
          %s544 = smul.addr %s543, 8
          %s545 = scalar_lea.vmem %s3, %s544
          %s546 = smul.u32 4, %s35
        $region80: #{tpu_custom_call.1} parent=71 // pred_fallthru
          _
      $region72: #{tpu_custom_call.1} parent=5 // pred_fallthru
        _
      %p547 = scmp.le.s32.totalorder 1, %s28
      %p548 = scmp.lt.s32.totalorder %s28, 3
      %p549 = pnand %p547, %p548
      %p550 = pneg %p549
      // Predicated region
      $region81: #{tpu_custom_call.1} parent=5 // pred_check
        _
      $region82: #{tpu_custom_call.1} parent=5 // pred_check_branch
        %552 = sbr.rel (%p549) target = $region84
      $region83: #{tpu_custom_call.1} parent=5 // pred_region
        %s553 = ssub.s32 %s28, 1
        // Predicated region
        $region85: #{tpu_custom_call.1} parent=83 // pred_check
          %p554 = pneg %p118
        $region86: #{tpu_custom_call.1} parent=83 // pred_check_branch
          %556 = sbr.rel (%p554) target = $region88
        $region87: #{tpu_custom_call.1} parent=83 // pred_region
          %557 = dma.done [#allocation7], 16
        $region88: #{tpu_custom_call.1} parent=83 // pred_fallthru
          _
        // Predicated region
        $region89: #{tpu_custom_call.1} parent=83 // pred_check
          %p558 = pneg %p165
        $region90: #{tpu_custom_call.1} parent=83 // pred_check_branch
          %560 = sbr.rel (%p558) target = $region92
        $region91: #{tpu_custom_call.1} parent=83 // pred_region
          %561 = dma.done [#allocation10], 8192
        $region92: #{tpu_custom_call.1} parent=83 // pred_fallthru
          _
        // Predicated region
        $region93: #{tpu_custom_call.1} parent=83 // pred_check
          %p562 = pneg %p207
        $region94: #{tpu_custom_call.1} parent=83 // pred_check_branch
          %564 = sbr.rel (%p562) target = $region96
        $region95: #{tpu_custom_call.1} parent=83 // pred_region
          %565 = dma.done [#allocation10], 3072
        $region96: #{tpu_custom_call.1} parent=83 // pred_fallthru
          _
        // Predicated region
        $region97: #{tpu_custom_call.1} parent=83 // pred_check
          %p566 = pneg %p249
        $region98: #{tpu_custom_call.1} parent=83 // pred_check_branch
          %568 = sbr.rel (%p566) target = $region100
        $region99: #{tpu_custom_call.1} parent=83 // pred_region
          %569 = dma.done [#allocation13], 8192
        $region100: #{tpu_custom_call.1} parent=83 // pred_fallthru
          _
        %s570 = smul.u32 2, %s38
        %p571 = scmp.lt.s32.totalorder %s570, 1
        %s572 = scalar_select %p571, %s570, 1
        %s573 = smul.addr %s572, 8
        %s574 = scalar_lea.vmem %s0, %s573
        %p575 = pneg %p66
        %p576 = pneg %p63
        %s577 = smul.u32 4, %s37
        %p578 = scmp.lt.s32.totalorder %s577, 7
        %s579 = scalar_select %p578, %s577, 7
        %s580 = smul.addr %s579, 8
        %s581 = scalar_lea.vmem %s1, %s580
        %p582 = pneg %p92
        %p583 = pneg %p89
        %p584 = pneg %p118
        %p585 = pneg %p115
        %s586 = smul.u32 4, %s37
        %p587 = scmp.lt.s32.totalorder %s586, 7
        %s588 = scalar_select %p587, %s586, 7
        %s589 = smul.addr %s588, 8
        %s590 = scalar_lea.vmem %s3, %s589
        %p591 = pneg %p144
        %p592 = pneg %p141
        %p593 = pneg %p165
        %p594 = pneg %p162
        %p595 = pneg %p186
        %p596 = pneg %p183
        %p597 = pneg %p207
        %p598 = pneg %p204
        %p599 = pneg %p228
        %p600 = pneg %p225
        %p601 = pneg %p249
        %p602 = pneg %p246
        %p603 = pneg %p270
        %p604 = pneg %p267
        %p605 = pneg %p291
        %p606 = pneg %p288
        %p607 = pneg %p312
        %p608 = pneg %p309
        %p609 = pneg %p333
        %p610 = pneg %p330
        %p611 = pneg %p354
        %p612 = pneg %p351
        %p613 = pneg %p375
        %p614 = pneg %p372
        %p615 = pneg %p396
        %p616 = pneg %p393
        %p617 = pneg %p422
        %p618 = pneg %p419
        %s619 = sand.u32 %s409, 1
        %s620 = scalar_lea.sflag [#allocation8], %s619
        %s621 = sand.u32 %s409, 1
        %s622 = smul.addr %s621, 32
        %s623 = scalar_lea.vmem [#allocation14], %s622
        %s624 = smul.u32 2, %s38
        %p625 = scmp.lt.s32.totalorder %s624, 1
        %s626 = scalar_select %p625, %s624, 1
        %s627 = smul.addr %s626, 8
        %s628 = scalar_lea.vmem %s0, %s627
        %s629 = smul.u32 2, %s38
        %s630 = smul.u32 4, %s37
        %p631 = scmp.lt.s32.totalorder %s630, 7
        %s632 = scalar_select %p631, %s630, 7
        %s633 = smul.addr %s632, 8
        %s634 = scalar_lea.vmem %s1, %s633
        %s635 = smul.u32 4, %s37
        %s636 = smul.u32 4, %s37
        %p637 = scmp.lt.s32.totalorder %s636, 7
        %s638 = scalar_select %p637, %s636, 7
        %s639 = smul.addr %s638, 8
        %s640 = scalar_lea.vmem %s3, %s639
        %s641 = smul.u32 4, %s37
        %s642 = smul.u32 4, %s37
        %p644 = scmp.eq.s32.totalorder %s38, 0
        // Predicated region
        $region101: #{tpu_custom_call.1} parent=83 // pred_check
          %p645 = pneg %p644
        $region102: #{tpu_custom_call.1} parent=83 // pred_check_branch
          %647 = sbr.rel (%p645) target = $region104
        $region103: #{tpu_custom_call.1} parent=83 // pred_region
          %v648 = vld [vmem:[%s634] sm:$0xff]
          %v649 = vld [vmem:[%s634 + $0x8] sm:$0xff]
          %v650 = vld [vmem:[%s634 + $0x10] sm:$0xff]
          %v651 = vld [vmem:[%s634 + $0x18] sm:$0xff]
          %v652 = vpack.c.bf16 %v649, %v648
          %v653 = vpack.c.bf16 %v651, %v650
          %v654 = vld [vmem:[#allocation9] sm:$0xff]
          %v655 = vld [vmem:[#allocation9 + $0x8] sm:$0xff]
          %v656 = vld [vmem:[#allocation9 + $0x10] sm:$0xff]
          %v657 = vld [vmem:[#allocation9 + $0x18] sm:$0xff]
          %v658 = vld [vmem:[#allocation9 + $0x20] sm:$0xff]
          %v659 = vld [vmem:[#allocation9 + $0x28] sm:$0xff]
          %v660 = vld [vmem:[#allocation9 + $0x30] sm:$0xff]
          %v661 = vld [vmem:[#allocation9 + $0x38] sm:$0xff]
          %v662 = vld [vmem:[#allocation9 + $0x40] sm:$0xff]
          %v663 = vld [vmem:[#allocation9 + $0x48] sm:$0xff]
          %v664 = vld [vmem:[#allocation9 + $0x50] sm:$0xff]
          %v665 = vld [vmem:[#allocation9 + $0x58] sm:$0xff]
          %v666 = vld [vmem:[#allocation9 + $0x60] sm:$0xff]
          %v667 = vld [vmem:[#allocation9 + $0x68] sm:$0xff]
          %v668 = vld [vmem:[#allocation9 + $0x70] sm:$0xff]
          %v669 = vld [vmem:[#allocation9 + $0x78] sm:$0xff]
          %v670 = vld [vmem:[#allocation9 + $0x80] sm:$0xff]
          %v671 = vld [vmem:[#allocation9 + $0x88] sm:$0xff]
          %v672 = vld [vmem:[#allocation9 + $0x90] sm:$0xff]
          %v673 = vld [vmem:[#allocation9 + $0x98] sm:$0xff]
          %v674 = vld [vmem:[#allocation9 + $0xa0] sm:$0xff]
          %v675 = vld [vmem:[#allocation9 + $0xa8] sm:$0xff]
          %v676 = vld [vmem:[#allocation9 + $0xb0] sm:$0xff]
          %v677 = vld [vmem:[#allocation9 + $0xb8] sm:$0xff]
          %v678 = vld [vmem:[#allocation9 + $0xc0] sm:$0xff]
          %v679 = vld [vmem:[#allocation9 + $0xc8] sm:$0xff]
          %v680 = vld [vmem:[#allocation9 + $0xd0] sm:$0xff]
          %v681 = vld [vmem:[#allocation9 + $0xd8] sm:$0xff]
          %v682 = vld [vmem:[#allocation9 + $0xe0] sm:$0xff]
          %v683 = vld [vmem:[#allocation9 + $0xe8] sm:$0xff]
          %v684 = vld [vmem:[#allocation9 + $0xf0] sm:$0xff]
          %v685 = vld [vmem:[#allocation9 + $0xf8] sm:$0xff]
          %v686 = vld [vmem:[#allocation9 + $0x100] sm:$0xff]
          %v687 = vld [vmem:[#allocation9 + $0x108] sm:$0xff]
          %v688 = vld [vmem:[#allocation9 + $0x110] sm:$0xff]
          %v689 = vld [vmem:[#allocation9 + $0x118] sm:$0xff]
          %v690 = vld [vmem:[#allocation9 + $0x120] sm:$0xff]
          %v691 = vld [vmem:[#allocation9 + $0x128] sm:$0xff]
          %v692 = vld [vmem:[#allocation9 + $0x130] sm:$0xff]
          %v693 = vld [vmem:[#allocation9 + $0x138] sm:$0xff]
          %v694 = vld [vmem:[#allocation9 + $0x140] sm:$0xff]
          %v695 = vld [vmem:[#allocation9 + $0x148] sm:$0xff]
          %v696 = vld [vmem:[#allocation9 + $0x150] sm:$0xff]
          %v697 = vld [vmem:[#allocation9 + $0x158] sm:$0xff]
          %v698 = vld [vmem:[#allocation9 + $0x160] sm:$0xff]
          %v699 = vld [vmem:[#allocation9 + $0x168] sm:$0xff]
          %v700 = vld [vmem:[#allocation9 + $0x170] sm:$0xff]
          %v701 = vld [vmem:[#allocation9 + $0x178] sm:$0xff]
          %v702 = vld [vmem:[#allocation9 + $0x180] sm:$0xff]
          %v703 = vld [vmem:[#allocation9 + $0x188] sm:$0xff]
          %v704 = vld [vmem:[#allocation9 + $0x190] sm:$0xff]
          %v705 = vld [vmem:[#allocation9 + $0x198] sm:$0xff]
          %v706 = vld [vmem:[#allocation9 + $0x1a0] sm:$0xff]
          %v707 = vld [vmem:[#allocation9 + $0x1a8] sm:$0xff]
          %v708 = vld [vmem:[#allocation9 + $0x1b0] sm:$0xff]
          %v709 = vld [vmem:[#allocation9 + $0x1b8] sm:$0xff]
          %v710 = vld [vmem:[#allocation9 + $0x1c0] sm:$0xff]
          %v711 = vld [vmem:[#allocation9 + $0x1c8] sm:$0xff]
          %v712 = vld [vmem:[#allocation9 + $0x1d0] sm:$0xff]
          %v713 = vld [vmem:[#allocation9 + $0x1d8] sm:$0xff]
          %v714 = vld [vmem:[#allocation9 + $0x1e0] sm:$0xff]
          %v715 = vld [vmem:[#allocation9 + $0x1e8] sm:$0xff]
          %v716 = vld [vmem:[#allocation9 + $0x1f0] sm:$0xff]
          %v717 = vld [vmem:[#allocation9 + $0x1f8] sm:$0xff]
          %v718 = vld [vmem:[%s5] sm:$0xff]
          %v720 = vlaneseq
          %v721 = vshrl.u32 %v720, 7
          %v722 = vsub.s32 0, %v721
          %v723 = vrot.slane %v718, %v722
          %v724 = vlaneseq
          %v725 = vshrl.u32 %v724, 7
          %v726 = vsub.s32 1, %v725
          %v727 = vrot.slane %v718, %v726
          %v728 = vlaneseq
          %v729 = vshrl.u32 %v728, 7
          %v730 = vsub.s32 2, %v729
          %v731 = vrot.slane %v718, %v730
          %v732 = vlaneseq
          %v733 = vshrl.u32 %v732, 7
          %v734 = vsub.s32 3, %v733
          %v735 = vrot.slane %v718, %v734
          %v736 = vlaneseq
          %v737 = vshrl.u32 %v736, 7
          %v738 = vsub.s32 4, %v737
          %v739 = vrot.slane %v718, %v738
          %v740 = vlaneseq
          %v741 = vshrl.u32 %v740, 7
          %v742 = vsub.s32 5, %v741
          %v743 = vrot.slane %v718, %v742
          %v744 = vlaneseq
          %v745 = vshrl.u32 %v744, 7
          %v746 = vsub.s32 6, %v745
          %v747 = vrot.slane %v718, %v746
          %v748 = vlaneseq
          %v749 = vshrl.u32 %v748, 7
          %v750 = vsub.s32 7, %v749
          %v751 = vrot.slane %v718, %v750
          %v824 = vunpack.c.l.b16 %v654
          %v825 = vunpack.c.h.b16 %v654
          %v826 = vunpack.c.l.b16 %v655
          %v827 = vunpack.c.h.b16 %v655
          %v828 = vunpack.c.l.b16 %v656
          %v829 = vunpack.c.h.b16 %v656
          %v830 = vunpack.c.l.b16 %v657
          %v831 = vunpack.c.h.b16 %v657
          %v832 = vunpack.c.l.b16 %v658
          %v833 = vunpack.c.h.b16 %v658
          %v834 = vunpack.c.l.b16 %v659
          %v835 = vunpack.c.h.b16 %v659
          %v836 = vunpack.c.l.b16 %v660
          %v837 = vunpack.c.h.b16 %v660
          %v838 = vunpack.c.l.b16 %v661
          %v839 = vunpack.c.h.b16 %v661
          %v840 = vunpack.c.l.b16 %v662
          %v841 = vunpack.c.h.b16 %v662
          %v842 = vunpack.c.l.b16 %v663
          %v843 = vunpack.c.h.b16 %v663
          %v844 = vunpack.c.l.b16 %v664
          %v845 = vunpack.c.h.b16 %v664
          %v846 = vunpack.c.l.b16 %v665
          %v847 = vunpack.c.h.b16 %v665
          %v848 = vunpack.c.l.b16 %v666
          %v849 = vunpack.c.h.b16 %v666
          %v850 = vunpack.c.l.b16 %v667
          %v851 = vunpack.c.h.b16 %v667
          %v852 = vunpack.c.l.b16 %v668
          %v853 = vunpack.c.h.b16 %v668
          %v854 = vunpack.c.l.b16 %v669
          %v855 = vunpack.c.h.b16 %v669
          %v856 = vunpack.c.l.b16 %v670
          %v857 = vunpack.c.h.b16 %v670
          %v858 = vunpack.c.l.b16 %v671
          %v859 = vunpack.c.h.b16 %v671
          %v860 = vunpack.c.l.b16 %v672
          %v861 = vunpack.c.h.b16 %v672
          %v862 = vunpack.c.l.b16 %v673
          %v863 = vunpack.c.h.b16 %v673
          %v864 = vunpack.c.l.b16 %v674
          %v865 = vunpack.c.h.b16 %v674
          %v866 = vunpack.c.l.b16 %v675
          %v867 = vunpack.c.h.b16 %v675
          %v868 = vunpack.c.l.b16 %v676
          %v869 = vunpack.c.h.b16 %v676
          %v870 = vunpack.c.l.b16 %v677
          %v871 = vunpack.c.h.b16 %v677
          %v872 = vunpack.c.l.b16 %v678
          %v873 = vunpack.c.h.b16 %v678
          %v874 = vunpack.c.l.b16 %v679
          %v875 = vunpack.c.h.b16 %v679
          %v876 = vunpack.c.l.b16 %v680
          %v877 = vunpack.c.h.b16 %v680
          %v878 = vunpack.c.l.b16 %v681
          %v879 = vunpack.c.h.b16 %v681
          %v880 = vunpack.c.l.b16 %v682
          %v881 = vunpack.c.h.b16 %v682
          %v882 = vunpack.c.l.b16 %v683
          %v883 = vunpack.c.h.b16 %v683
          %v884 = vunpack.c.l.b16 %v684
          %v885 = vunpack.c.h.b16 %v684
          %v886 = vunpack.c.l.b16 %v685
          %v887 = vunpack.c.h.b16 %v685
          %v888 = vunpack.c.l.b16 %v686
          %v889 = vunpack.c.h.b16 %v686
          %v890 = vunpack.c.l.b16 %v687
          %v891 = vunpack.c.h.b16 %v687
          %v892 = vunpack.c.l.b16 %v688
          %v893 = vunpack.c.h.b16 %v688
          %v894 = vunpack.c.l.b16 %v689
          %v895 = vunpack.c.h.b16 %v689
          %v896 = vunpack.c.l.b16 %v690
          %v897 = vunpack.c.h.b16 %v690
          %v898 = vunpack.c.l.b16 %v691
          %v899 = vunpack.c.h.b16 %v691
          %v900 = vunpack.c.l.b16 %v692
          %v901 = vunpack.c.h.b16 %v692
          %v902 = vunpack.c.l.b16 %v693
          %v903 = vunpack.c.h.b16 %v693
          %v904 = vunpack.c.l.b16 %v694
          %v905 = vunpack.c.h.b16 %v694
          %v906 = vunpack.c.l.b16 %v695
          %v907 = vunpack.c.h.b16 %v695
          %v908 = vunpack.c.l.b16 %v696
          %v909 = vunpack.c.h.b16 %v696
          %v910 = vunpack.c.l.b16 %v697
          %v911 = vunpack.c.h.b16 %v697
          %v912 = vunpack.c.l.b16 %v698
          %v913 = vunpack.c.h.b16 %v698
          %v914 = vunpack.c.l.b16 %v699
          %v915 = vunpack.c.h.b16 %v699
          %v916 = vunpack.c.l.b16 %v700
          %v917 = vunpack.c.h.b16 %v700
          %v918 = vunpack.c.l.b16 %v701
          %v919 = vunpack.c.h.b16 %v701
          %v920 = vunpack.c.l.b16 %v702
          %v921 = vunpack.c.h.b16 %v702
          %v922 = vunpack.c.l.b16 %v703
          %v923 = vunpack.c.h.b16 %v703
          %v924 = vunpack.c.l.b16 %v704
          %v925 = vunpack.c.h.b16 %v704
          %v926 = vunpack.c.l.b16 %v705
          %v927 = vunpack.c.h.b16 %v705
          %v928 = vunpack.c.l.b16 %v706
          %v929 = vunpack.c.h.b16 %v706
          %v930 = vunpack.c.l.b16 %v707
          %v931 = vunpack.c.h.b16 %v707
          %v932 = vunpack.c.l.b16 %v708
          %v933 = vunpack.c.h.b16 %v708
          %v934 = vunpack.c.l.b16 %v709
          %v935 = vunpack.c.h.b16 %v709
          %v936 = vunpack.c.l.b16 %v710
          %v937 = vunpack.c.h.b16 %v710
          %v938 = vunpack.c.l.b16 %v711
          %v939 = vunpack.c.h.b16 %v711
          %v940 = vunpack.c.l.b16 %v712
          %v941 = vunpack.c.h.b16 %v712
          %v942 = vunpack.c.l.b16 %v713
          %v943 = vunpack.c.h.b16 %v713
          %v944 = vunpack.c.l.b16 %v714
          %v945 = vunpack.c.h.b16 %v714
          %v946 = vunpack.c.l.b16 %v715
          %v947 = vunpack.c.h.b16 %v715
          %v948 = vunpack.c.l.b16 %v716
          %v949 = vunpack.c.h.b16 %v716
          %v950 = vunpack.c.l.b16 %v717
          %v951 = vunpack.c.h.b16 %v717
          %v952 = vpack.c.b16 %v832, %v824
          %v953 = vpack.c.b16 %v833, %v825
          %v954 = vpack.c.b16 %v834, %v826
          %v955 = vpack.c.b16 %v835, %v827
          %v956 = vpack.c.b16 %v836, %v828
          %v957 = vpack.c.b16 %v837, %v829
          %v958 = vpack.c.b16 %v838, %v830
          %v959 = vpack.c.b16 %v839, %v831
          %v960 = vpack.c.b16 %v848, %v840
          %v961 = vpack.c.b16 %v849, %v841
          %v962 = vpack.c.b16 %v850, %v842
          %v963 = vpack.c.b16 %v851, %v843
          %v964 = vpack.c.b16 %v852, %v844
          %v965 = vpack.c.b16 %v853, %v845
          %v966 = vpack.c.b16 %v854, %v846
          %v967 = vpack.c.b16 %v855, %v847
          %v968 = vpack.c.b16 %v864, %v856
          %v969 = vpack.c.b16 %v865, %v857
          %v970 = vpack.c.b16 %v866, %v858
          %v971 = vpack.c.b16 %v867, %v859
          %v972 = vpack.c.b16 %v868, %v860
          %v973 = vpack.c.b16 %v869, %v861
          %v974 = vpack.c.b16 %v870, %v862
          %v975 = vpack.c.b16 %v871, %v863
          %v976 = vpack.c.b16 %v880, %v872
          %v977 = vpack.c.b16 %v881, %v873
          %v978 = vpack.c.b16 %v882, %v874
          %v979 = vpack.c.b16 %v883, %v875
          %v980 = vpack.c.b16 %v884, %v876
          %v981 = vpack.c.b16 %v885, %v877
          %v982 = vpack.c.b16 %v886, %v878
          %v983 = vpack.c.b16 %v887, %v879
          %v984 = vpack.c.b16 %v896, %v888
          %v985 = vpack.c.b16 %v897, %v889
          %v986 = vpack.c.b16 %v898, %v890
          %v987 = vpack.c.b16 %v899, %v891
          %v988 = vpack.c.b16 %v900, %v892
          %v989 = vpack.c.b16 %v901, %v893
          %v990 = vpack.c.b16 %v902, %v894
          %v991 = vpack.c.b16 %v903, %v895
          %v992 = vpack.c.b16 %v912, %v904
          %v993 = vpack.c.b16 %v913, %v905
          %v994 = vpack.c.b16 %v914, %v906
          %v995 = vpack.c.b16 %v915, %v907
          %v996 = vpack.c.b16 %v916, %v908
          %v997 = vpack.c.b16 %v917, %v909
          %v998 = vpack.c.b16 %v918, %v910
          %v999 = vpack.c.b16 %v919, %v911
          %v1000 = vpack.c.b16 %v928, %v920
          %v1001 = vpack.c.b16 %v929, %v921
          %v1002 = vpack.c.b16 %v930, %v922
          %v1003 = vpack.c.b16 %v931, %v923
          %v1004 = vpack.c.b16 %v932, %v924
          %v1005 = vpack.c.b16 %v933, %v925
          %v1006 = vpack.c.b16 %v934, %v926
          %v1007 = vpack.c.b16 %v935, %v927
          %v1008 = vpack.c.b16 %v944, %v936
          %v1009 = vpack.c.b16 %v945, %v937
          %v1010 = vpack.c.b16 %v946, %v938
          %v1011 = vpack.c.b16 %v947, %v939
          %v1012 = vpack.c.b16 %v948, %v940
          %v1013 = vpack.c.b16 %v949, %v941
          %v1014 = vpack.c.b16 %v950, %v942
          %v1015 = vpack.c.b16 %v951, %v943
          %1080 = vmatprep.subr.bf16.mxu0 %v1009
          %1081 = vmatpush1.bf16.msra.mxu0 %v1008
          %1082 = vmatprep.subr.bf16.mxu0 %v1001
          %1083 = vmatpush1.bf16.msra.mxu0 %v1000
          %1084 = vmatprep.subr.bf16.mxu0 %v993
          %1085 = vmatpush1.bf16.msra.mxu0 %v992
          %1086 = vmatprep.subr.bf16.mxu0 %v985
          %1087 = vmatpush1.bf16.msra.mxu0 %v984
          %1088 = vmatprep.subr.bf16.mxu0 %v977
          %1089 = vmatpush1.bf16.msra.mxu0 %v976
          %1090 = vmatprep.subr.bf16.mxu0 %v969
          %1091 = vmatpush1.bf16.msra.mxu0 %v968
          %1092 = vmatprep.subr.bf16.mxu0 %v961
          %1093 = vmatpush1.bf16.msra.mxu0 %v960
          %1094 = vmatprep.subr.bf16.mxu0 %v953
          %1095 = vmatpush1.bf16.msra.mxu0 %v952
          %1096 = vmatprep.subr.bf16.mxu0 0
          %1097 = vmatpush2.bf16.msra.mxu0 0
          %1098 = vmatprep.subr.bf16.mxu0 0
          %1099 = vmatpush2.bf16.msra.mxu0 0
          %1100 = vmatprep.subr.bf16.mxu0 0
          %1101 = vmatpush2.bf16.msra.mxu0 0
          %1102 = vmatprep.subr.bf16.mxu0 0
          %1103 = vmatpush2.bf16.msra.mxu0 0
          %1104 = vmatprep.subr.bf16.mxu0 0
          %1105 = vmatpush2.bf16.msra.mxu0 0
          %1106 = vmatprep.subr.bf16.mxu0 0
          %1107 = vmatpush2.bf16.msra.mxu0 0
          %1108 = vmatprep.subr.bf16.mxu0 0
          %1109 = vmatpush2.bf16.msra.mxu0 0
          %1110 = vmatprep.subr.bf16.mxu0 0
          %1111 = vmatpush2.bf16.msra.mxu0 0
          %1112 = vmatprep.mubr.bf16.mxu0 0
          %1113 = vmatmul.mubr.bf16.gmra.mxu0 %v652
          %v1114 = vpop.f32.mrf.mxu0
          %v1115 = vadd.f32 %v723, %v1114
          %v1116 = vpop.f32.mrf.mxu0
          %v1117 = vadd.f32 %v727, %v1116
          %v1118 = vpop.f32.mrf.mxu0
          %v1119 = vadd.f32 %v723, %v1118
          %v1120 = vpop.f32.mrf.mxu0
          %v1121 = vadd.f32 %v727, %v1120
          %1122 = vmatprep.mubr.bf16.mxu0 0
          %1123 = vmatmul.mubr.bf16.gmra.mxu0 %v653
          %v1124 = vpop.f32.mrf.mxu0
          %v1125 = vadd.f32 %v723, %v1124
          %v1126 = vpop.f32.mrf.mxu0
          %v1127 = vadd.f32 %v727, %v1126
          %v1128 = vpop.f32.mrf.mxu0
          %v1129 = vadd.f32 %v723, %v1128
          %v1130 = vpop.f32.mrf.mxu0
          %v1131 = vadd.f32 %v727, %v1130
          %1132 = vdwg.mxu0
          %1133 = vmatprep.subr.bf16.mxu0 %v1011
          %1134 = vmatpush1.bf16.msra.mxu0 %v1010
          %1135 = vmatprep.subr.bf16.mxu0 %v1003
          %1136 = vmatpush1.bf16.msra.mxu0 %v1002
          %1137 = vmatprep.subr.bf16.mxu0 %v995
          %1138 = vmatpush1.bf16.msra.mxu0 %v994
          %1139 = vmatprep.subr.bf16.mxu0 %v987
          %1140 = vmatpush1.bf16.msra.mxu0 %v986
          %1141 = vmatprep.subr.bf16.mxu0 %v979
          %1142 = vmatpush1.bf16.msra.mxu0 %v978
          %1143 = vmatprep.subr.bf16.mxu0 %v971
          %1144 = vmatpush1.bf16.msra.mxu0 %v970
          %1145 = vmatprep.subr.bf16.mxu0 %v963
          %1146 = vmatpush1.bf16.msra.mxu0 %v962
          %1147 = vmatprep.subr.bf16.mxu0 %v955
          %1148 = vmatpush1.bf16.msra.mxu0 %v954
          %1149 = vmatprep.subr.bf16.mxu0 0
          %1150 = vmatpush2.bf16.msra.mxu0 0
          %1151 = vmatprep.subr.bf16.mxu0 0
          %1152 = vmatpush2.bf16.msra.mxu0 0
          %1153 = vmatprep.subr.bf16.mxu0 0
          %1154 = vmatpush2.bf16.msra.mxu0 0
          %1155 = vmatprep.subr.bf16.mxu0 0
          %1156 = vmatpush2.bf16.msra.mxu0 0
          %1157 = vmatprep.subr.bf16.mxu0 0
          %1158 = vmatpush2.bf16.msra.mxu0 0
          %1159 = vmatprep.subr.bf16.mxu0 0
          %1160 = vmatpush2.bf16.msra.mxu0 0
          %1161 = vmatprep.subr.bf16.mxu0 0
          %1162 = vmatpush2.bf16.msra.mxu0 0
          %1163 = vmatprep.subr.bf16.mxu0 0
          %1164 = vmatpush2.bf16.msra.mxu0 0
          %1165 = vmatprep.mubr.bf16.mxu0 0
          %1166 = vmatmul.mubr.bf16.gmra.mxu0 %v652
          %v1167 = vpop.f32.mrf.mxu0
          %v1168 = vadd.f32 %v731, %v1167
          %v1169 = vpop.f32.mrf.mxu0
          %v1170 = vadd.f32 %v735, %v1169
          %v1171 = vpop.f32.mrf.mxu0
          %v1172 = vadd.f32 %v731, %v1171
          %v1173 = vpop.f32.mrf.mxu0
          %v1174 = vadd.f32 %v735, %v1173
          %1175 = vmatprep.mubr.bf16.mxu0 0
          %1176 = vmatmul.mubr.bf16.gmra.mxu0 %v653
          %v1177 = vpop.f32.mrf.mxu0
          %v1178 = vadd.f32 %v731, %v1177
          %v1179 = vpop.f32.mrf.mxu0
          %v1180 = vadd.f32 %v735, %v1179
          %v1181 = vpop.f32.mrf.mxu0
          %v1182 = vadd.f32 %v731, %v1181
          %v1183 = vpop.f32.mrf.mxu0
          %v1184 = vadd.f32 %v735, %v1183
          %1185 = vdwg.mxu0
          %1186 = vmatprep.subr.bf16.mxu0 %v1013
          %1187 = vmatpush1.bf16.msra.mxu0 %v1012
          %1188 = vmatprep.subr.bf16.mxu0 %v1005
          %1189 = vmatpush1.bf16.msra.mxu0 %v1004
          %1190 = vmatprep.subr.bf16.mxu0 %v997
          %1191 = vmatpush1.bf16.msra.mxu0 %v996
          %1192 = vmatprep.subr.bf16.mxu0 %v989
          %1193 = vmatpush1.bf16.msra.mxu0 %v988
          %1194 = vmatprep.subr.bf16.mxu0 %v981
          %1195 = vmatpush1.bf16.msra.mxu0 %v980
          %1196 = vmatprep.subr.bf16.mxu0 %v973
          %1197 = vmatpush1.bf16.msra.mxu0 %v972
          %1198 = vmatprep.subr.bf16.mxu0 %v965
          %1199 = vmatpush1.bf16.msra.mxu0 %v964
          %1200 = vmatprep.subr.bf16.mxu0 %v957
          %1201 = vmatpush1.bf16.msra.mxu0 %v956
          %1202 = vmatprep.subr.bf16.mxu0 0
          %1203 = vmatpush2.bf16.msra.mxu0 0
          %1204 = vmatprep.subr.bf16.mxu0 0
          %1205 = vmatpush2.bf16.msra.mxu0 0
          %1206 = vmatprep.subr.bf16.mxu0 0
          %1207 = vmatpush2.bf16.msra.mxu0 0
          %1208 = vmatprep.subr.bf16.mxu0 0
          %1209 = vmatpush2.bf16.msra.mxu0 0
          %1210 = vmatprep.subr.bf16.mxu0 0
          %1211 = vmatpush2.bf16.msra.mxu0 0
          %1212 = vmatprep.subr.bf16.mxu0 0
          %1213 = vmatpush2.bf16.msra.mxu0 0
          %1214 = vmatprep.subr.bf16.mxu0 0
          %1215 = vmatpush2.bf16.msra.mxu0 0
          %1216 = vmatprep.subr.bf16.mxu0 0
          %1217 = vmatpush2.bf16.msra.mxu0 0
          %1218 = vmatprep.mubr.bf16.mxu0 0
          %1219 = vmatmul.mubr.bf16.gmra.mxu0 %v652
          %v1220 = vpop.f32.mrf.mxu0
          %v1221 = vadd.f32 %v739, %v1220
          %v1222 = vpop.f32.mrf.mxu0
          %v1223 = vadd.f32 %v743, %v1222
          %v1224 = vpop.f32.mrf.mxu0
          %v1225 = vadd.f32 %v739, %v1224
          %v1226 = vpop.f32.mrf.mxu0
          %v1227 = vadd.f32 %v743, %v1226
          %1228 = vmatprep.mubr.bf16.mxu0 0
          %1229 = vmatmul.mubr.bf16.gmra.mxu0 %v653
          %v1230 = vpop.f32.mrf.mxu0
          %v1231 = vadd.f32 %v739, %v1230
          %v1232 = vpop.f32.mrf.mxu0
          %v1233 = vadd.f32 %v743, %v1232
          %v1234 = vpop.f32.mrf.mxu0
          %v1235 = vadd.f32 %v739, %v1234
          %v1236 = vpop.f32.mrf.mxu0
          %v1237 = vadd.f32 %v743, %v1236
          %1238 = vdwg.mxu0
          %1239 = vmatprep.subr.bf16.mxu0 %v1015
          %1240 = vmatpush1.bf16.msra.mxu0 %v1014
          %1241 = vmatprep.subr.bf16.mxu0 %v1007
          %1242 = vmatpush1.bf16.msra.mxu0 %v1006
          %1243 = vmatprep.subr.bf16.mxu0 %v999
          %1244 = vmatpush1.bf16.msra.mxu0 %v998
          %1245 = vmatprep.subr.bf16.mxu0 %v991
          %1246 = vmatpush1.bf16.msra.mxu0 %v990
          %1247 = vmatprep.subr.bf16.mxu0 %v983
          %1248 = vmatpush1.bf16.msra.mxu0 %v982
          %1249 = vmatprep.subr.bf16.mxu0 %v975
          %1250 = vmatpush1.bf16.msra.mxu0 %v974
          %1251 = vmatprep.subr.bf16.mxu0 %v967
          %1252 = vmatpush1.bf16.msra.mxu0 %v966
          %1253 = vmatprep.subr.bf16.mxu0 %v959
          %1254 = vmatpush1.bf16.msra.mxu0 %v958
          %1255 = vmatprep.subr.bf16.mxu0 0
          %1256 = vmatpush2.bf16.msra.mxu0 0
          %1257 = vmatprep.subr.bf16.mxu0 0
          %1258 = vmatpush2.bf16.msra.mxu0 0
          %1259 = vmatprep.subr.bf16.mxu0 0
          %1260 = vmatpush2.bf16.msra.mxu0 0
          %1261 = vmatprep.subr.bf16.mxu0 0
          %1262 = vmatpush2.bf16.msra.mxu0 0
          %1263 = vmatprep.subr.bf16.mxu0 0
          %1264 = vmatpush2.bf16.msra.mxu0 0
          %1265 = vmatprep.subr.bf16.mxu0 0
          %1266 = vmatpush2.bf16.msra.mxu0 0
          %1267 = vmatprep.subr.bf16.mxu0 0
          %1268 = vmatpush2.bf16.msra.mxu0 0
          %1269 = vmatprep.subr.bf16.mxu0 0
          %1270 = vmatpush2.bf16.msra.mxu0 0
          %1271 = vmatprep.mubr.bf16.mxu0 0
          %1272 = vmatmul.mubr.bf16.gmra.mxu0 %v652
          %v1273 = vpop.f32.mrf.mxu0
          %v1274 = vadd.f32 %v747, %v1273
          %v1275 = vpop.f32.mrf.mxu0
          %v1276 = vadd.f32 %v751, %v1275
          %v1277 = vpop.f32.mrf.mxu0
          %v1278 = vadd.f32 %v747, %v1277
          %v1279 = vpop.f32.mrf.mxu0
          %v1280 = vadd.f32 %v751, %v1279
          %1281 = vmatprep.mubr.bf16.mxu0 0
          %1282 = vmatmul.mubr.bf16.gmra.mxu0 %v653
          %v1283 = vpop.f32.mrf.mxu0
          %v1284 = vadd.f32 %v747, %v1283
          %v1285 = vpop.f32.mrf.mxu0
          %v1286 = vadd.f32 %v751, %v1285
          %v1287 = vpop.f32.mrf.mxu0
          %v1288 = vadd.f32 %v747, %v1287
          %v1289 = vpop.f32.mrf.mxu0
          %v1290 = vadd.f32 %v751, %v1289
          %1291 = vdwg.mxu0
          %v1292 = vpack.c.bf16 %v1119, %v1115
          %v1293 = vpack.c.bf16 %v1121, %v1117
          %v1294 = vpack.c.bf16 %v1172, %v1168
          %v1295 = vpack.c.bf16 %v1174, %v1170
          %v1296 = vpack.c.bf16 %v1225, %v1221
          %v1297 = vpack.c.bf16 %v1227, %v1223
          %v1298 = vpack.c.bf16 %v1278, %v1274
          %v1299 = vpack.c.bf16 %v1280, %v1276
          %v1300 = vpack.c.bf16 %v1129, %v1125
          %v1301 = vpack.c.bf16 %v1131, %v1127
          %v1302 = vpack.c.bf16 %v1182, %v1178
          %v1303 = vpack.c.bf16 %v1184, %v1180
          %v1304 = vpack.c.bf16 %v1235, %v1231
          %v1305 = vpack.c.bf16 %v1237, %v1233
          %v1306 = vpack.c.bf16 %v1288, %v1284
          %v1307 = vpack.c.bf16 %v1290, %v1286
          %v1324 = vunpack.c.l.b16 %v1292
          %v1325 = vunpack.c.l.b16 %v1293
          %v1326 = vunpack.c.l.b16 %v1294
          %v1327 = vunpack.c.l.b16 %v1295
          %v1328 = vunpack.c.l.b16 %v1296
          %v1329 = vunpack.c.l.b16 %v1297
          %v1330 = vunpack.c.l.b16 %v1298
          %v1331 = vunpack.c.l.b16 %v1299
          %v1332 = vunpack.c.h.b16 %v1292
          %v1333 = vunpack.c.h.b16 %v1293
          %v1334 = vunpack.c.h.b16 %v1294
          %v1335 = vunpack.c.h.b16 %v1295
          %v1336 = vunpack.c.h.b16 %v1296
          %v1337 = vunpack.c.h.b16 %v1297
          %v1338 = vunpack.c.h.b16 %v1298
          %v1339 = vunpack.c.h.b16 %v1299
          %v1340 = vunpack.c.l.b16 %v1300
          %v1341 = vunpack.c.l.b16 %v1301
          %v1342 = vunpack.c.l.b16 %v1302
          %v1343 = vunpack.c.l.b16 %v1303
          %v1344 = vunpack.c.l.b16 %v1304
          %v1345 = vunpack.c.l.b16 %v1305
          %v1346 = vunpack.c.l.b16 %v1306
          %v1347 = vunpack.c.l.b16 %v1307
          %v1348 = vunpack.c.h.b16 %v1300
          %v1349 = vunpack.c.h.b16 %v1301
          %v1350 = vunpack.c.h.b16 %v1302
          %v1351 = vunpack.c.h.b16 %v1303
          %v1352 = vunpack.c.h.b16 %v1304
          %v1353 = vunpack.c.h.b16 %v1305
          %v1354 = vunpack.c.h.b16 %v1306
          %v1355 = vunpack.c.h.b16 %v1307
          %v1356 = vpack.c.b16 %v1325, %v1324
          %v1357 = vpack.c.b16 %v1327, %v1326
          %v1358 = vpack.c.b16 %v1329, %v1328
          %v1359 = vpack.c.b16 %v1331, %v1330
          %v1360 = vpack.c.b16 %v1333, %v1332
          %v1361 = vpack.c.b16 %v1335, %v1334
          %v1362 = vpack.c.b16 %v1337, %v1336
          %v1363 = vpack.c.b16 %v1339, %v1338
          %v1364 = vpack.c.b16 %v1341, %v1340
          %v1365 = vpack.c.b16 %v1343, %v1342
          %v1366 = vpack.c.b16 %v1345, %v1344
          %v1367 = vpack.c.b16 %v1347, %v1346
          %v1368 = vpack.c.b16 %v1349, %v1348
          %v1369 = vpack.c.b16 %v1351, %v1350
          %v1370 = vpack.c.b16 %v1353, %v1352
          %v1371 = vpack.c.b16 %v1355, %v1354
          %1388 = vst [vmem:[#allocation2] sm:$0xff] %v1356
          %1389 = vst [vmem:[#allocation2 + $0x8] sm:$0xff] %v1357
          %1390 = vst [vmem:[#allocation2 + $0x10] sm:$0xff] %v1358
          %1391 = vst [vmem:[#allocation2 + $0x18] sm:$0xff] %v1359
          %1392 = vst [vmem:[#allocation2 + $0x20] sm:$0xff] %v1360
          %1393 = vst [vmem:[#allocation2 + $0x28] sm:$0xff] %v1361
          %1394 = vst [vmem:[#allocation2 + $0x30] sm:$0xff] %v1362
          %1395 = vst [vmem:[#allocation2 + $0x38] sm:$0xff] %v1363
          %1396 = vst [vmem:[#allocation2 + $0x40] sm:$0xff] %v1364
          %1397 = vst [vmem:[#allocation2 + $0x48] sm:$0xff] %v1365
          %1398 = vst [vmem:[#allocation2 + $0x50] sm:$0xff] %v1366
          %1399 = vst [vmem:[#allocation2 + $0x58] sm:$0xff] %v1367
          %1400 = vst [vmem:[#allocation2 + $0x60] sm:$0xff] %v1368
          %1401 = vst [vmem:[#allocation2 + $0x68] sm:$0xff] %v1369
          %1402 = vst [vmem:[#allocation2 + $0x70] sm:$0xff] %v1370
          %1403 = vst [vmem:[#allocation2 + $0x78] sm:$0xff] %v1371
          %vm1404 = vcmask 64512
          %1405 = vst.msk [vmem:[#allocation3] sm:$0xff] %vm1404, -10000.0
          %1406 = vst.msk [vmem:[#allocation3 + $0x8] sm:$0xff] %vm1404, -10000.0
          %1407 = vst.msk [vmem:[#allocation3 + $0x10] sm:$0xff] %vm1404, -10000.0
          %1408 = vst.msk [vmem:[#allocation3 + $0x18] sm:$0xff] %vm1404, -10000.0
          %1409 = vst.msk [vmem:[#allocation4] sm:$0xff] %vm1404, 0.0
          %1410 = vst.msk [vmem:[#allocation4 + $0x8] sm:$0xff] %vm1404, 0.0
          %1411 = vst.msk [vmem:[#allocation4 + $0x10] sm:$0xff] %vm1404, 0.0
          %1412 = vst.msk [vmem:[#allocation4 + $0x18] sm:$0xff] %vm1404, 0.0
          %1413 = vst [vmem:[#allocation5] sm:$0xff] 0.0
          %1414 = vst [vmem:[#allocation5 + $0x8] sm:$0xff] 0.0
          %1415 = vst [vmem:[#allocation5 + $0x10] sm:$0xff] 0.0
          %1416 = vst [vmem:[#allocation5 + $0x18] sm:$0xff] 0.0
          %1417 = vst [vmem:[#allocation5 + $0x20] sm:$0xff] 0.0
          %1418 = vst [vmem:[#allocation5 + $0x28] sm:$0xff] 0.0
          %1419 = vst [vmem:[#allocation5 + $0x30] sm:$0xff] 0.0
          %1420 = vst [vmem:[#allocation5 + $0x38] sm:$0xff] 0.0
          %1421 = vst [vmem:[#allocation5 + $0x40] sm:$0xff] 0.0
          %1422 = vst [vmem:[#allocation5 + $0x48] sm:$0xff] 0.0
          %1423 = vst [vmem:[#allocation5 + $0x50] sm:$0xff] 0.0
          %1424 = vst [vmem:[#allocation5 + $0x58] sm:$0xff] 0.0
          %1425 = vst [vmem:[#allocation5 + $0x60] sm:$0xff] 0.0
          %1426 = vst [vmem:[#allocation5 + $0x68] sm:$0xff] 0.0
          %1427 = vst [vmem:[#allocation5 + $0x70] sm:$0xff] 0.0
          %1428 = vst [vmem:[#allocation5 + $0x78] sm:$0xff] 0.0
          %1429 = vst [vmem:[#allocation5 + $0x80] sm:$0xff] 0.0
          %1430 = vst [vmem:[#allocation5 + $0x88] sm:$0xff] 0.0
          %1431 = vst [vmem:[#allocation5 + $0x90] sm:$0xff] 0.0
          %1432 = vst [vmem:[#allocation5 + $0x98] sm:$0xff] 0.0
          %1433 = vst [vmem:[#allocation5 + $0xa0] sm:$0xff] 0.0
          %1434 = vst [vmem:[#allocation5 + $0xa8] sm:$0xff] 0.0
          %1435 = vst [vmem:[#allocation5 + $0xb0] sm:$0xff] 0.0
          %1436 = vst [vmem:[#allocation5 + $0xb8] sm:$0xff] 0.0
          %1437 = vst [vmem:[#allocation5 + $0xc0] sm:$0xff] 0.0
          %1438 = vst [vmem:[#allocation5 + $0xc8] sm:$0xff] 0.0
          %1439 = vst [vmem:[#allocation5 + $0xd0] sm:$0xff] 0.0
          %1440 = vst [vmem:[#allocation5 + $0xd8] sm:$0xff] 0.0
          %1441 = vst [vmem:[#allocation5 + $0xe0] sm:$0xff] 0.0
          %1442 = vst [vmem:[#allocation5 + $0xe8] sm:$0xff] 0.0
          %1443 = vst [vmem:[#allocation5 + $0xf0] sm:$0xff] 0.0
          %1444 = vst [vmem:[#allocation5 + $0xf8] sm:$0xff] 0.0
        $region104: #{tpu_custom_call.1} parent=83 // pred_fallthru
          _
        %v1445 = vld [vmem:[%s640] sm:$0xff]
        %v1446 = vld [vmem:[%s640 + $0x8] sm:$0xff]
        %v1447 = vld [vmem:[%s640 + $0x10] sm:$0xff]
        %v1448 = vld [vmem:[%s640 + $0x18] sm:$0xff]
        %v1449 = vld [vmem:[#allocation6] sm:$0x1]
        %1450 = vset.pattern.permute.xlu0 0
        %1451 = vperm.xlu0 %1450, %v1445
        %v1452 = vpop.permute.xlu0 %1451
        %1453 = vset.pattern.permute.xlu0 0
        %1454 = vperm.xlu0 %1453, %v1446
        %v1455 = vpop.permute.xlu0 %1454
        %1456 = vset.pattern.permute.xlu0 0
        %1457 = vperm.xlu0 %1456, %v1447
        %v1458 = vpop.permute.xlu0 %1457
        %1459 = vset.pattern.permute.xlu0 0
        %1460 = vperm.xlu0 %1459, %v1448
        %v1461 = vpop.permute.xlu0 %1460
        %v1462 = vlaneseq
        %v1463 = vshrl.u32 %v1462, 7
        %v1464 = vsub.s32 0, %v1463
        %v1465 = vrot.slane %v1449, %v1464
        %vm1466 = vcmp.eq.s32.totalorder %v1452, %v1465
        %vm1467 = vcmp.eq.s32.totalorder %v1455, %v1465
        %vm1468 = vcmp.eq.s32.totalorder %v1458, %v1465
        %vm1469 = vcmp.eq.s32.totalorder %v1461, %v1465
        %v1470 = vsel %vm1466, 0.0, -1e+30
        %v1471 = vsel %vm1467, 0.0, -1e+30
        %v1472 = vsel %vm1468, 0.0, -1e+30
        %v1473 = vsel %vm1469, 0.0, -1e+30
        %v1474 = vld [vmem:[%s628] sm:$0xff]
        %v1475 = vld [vmem:[%s628 + $0x8] sm:$0xff]
        %v1476 = vpack.c.bf16 %v1475, %v1474
        %v1477 = vld [vmem:[#allocation11] sm:$0xff]
        %v1478 = vld [vmem:[#allocation11 + $0x8] sm:$0xff]
        %v1479 = vld [vmem:[#allocation11 + $0x10] sm:$0xff]
        %v1480 = vld [vmem:[#allocation11 + $0x18] sm:$0xff]
        %v1481 = vld [vmem:[#allocation11 + $0x20] sm:$0xff]
        %v1482 = vld [vmem:[#allocation11 + $0x28] sm:$0xff]
        %v1483 = vld [vmem:[#allocation11 + $0x30] sm:$0xff]
        %v1484 = vld [vmem:[#allocation11 + $0x38] sm:$0xff]
        %v1485 = vld [vmem:[#allocation11 + $0x40] sm:$0xff]
        %v1486 = vld [vmem:[#allocation11 + $0x48] sm:$0xff]
        %v1487 = vld [vmem:[#allocation11 + $0x50] sm:$0xff]
        %v1488 = vld [vmem:[#allocation11 + $0x58] sm:$0xff]
        %v1489 = vld [vmem:[#allocation11 + $0x60] sm:$0xff]
        %v1490 = vld [vmem:[#allocation11 + $0x68] sm:$0xff]
        %v1491 = vld [vmem:[#allocation11 + $0x70] sm:$0xff]
        %v1492 = vld [vmem:[#allocation11 + $0x78] sm:$0xff]
        %v1493 = vld [vmem:[#allocation11 + $0x80] sm:$0x11]
        %v1494 = vld [vmem:[#allocation11 + $0x88] sm:$0x11]
        %v1495 = vld [vmem:[#allocation11 + $0x90] sm:$0x11]
        %v1496 = vld [vmem:[#allocation11 + $0x98] sm:$0x11]
        %v1497 = vld [vmem:[#allocation11 + $0xa0] sm:$0x11]
        %v1498 = vld [vmem:[#allocation11 + $0xa8] sm:$0x11]
        %v1499 = vld [vmem:[#allocation11 + $0xb0] sm:$0x11]
        %v1500 = vld [vmem:[#allocation11 + $0xb8] sm:$0x11]
        %v1501 = vld [vmem:[%s7] sm:$0xff]
        %v1502 = vld [vmem:[%s7 + $0x8] sm:$0xff]
        %v1505 = vlaneseq
        %v1506 = vshrl.u32 %v1505, 7
        %v1507 = vsub.s32 0, %v1506
        %v1508 = vrot.slane %v1501, %v1507
        %v1509 = vlaneseq
        %v1510 = vshrl.u32 %v1509, 7
        %v1511 = vsub.s32 1, %v1510
        %v1512 = vrot.slane %v1501, %v1511
        %v1513 = vlaneseq
        %v1514 = vshrl.u32 %v1513, 7
        %v1515 = vsub.s32 2, %v1514
        %v1516 = vrot.slane %v1501, %v1515
        %v1517 = vlaneseq
        %v1518 = vshrl.u32 %v1517, 7
        %v1519 = vsub.s32 3, %v1518
        %v1520 = vrot.slane %v1501, %v1519
        %v1521 = vlaneseq
        %v1522 = vshrl.u32 %v1521, 7
        %v1523 = vsub.s32 4, %v1522
        %v1524 = vrot.slane %v1501, %v1523
        %v1525 = vlaneseq
        %v1526 = vshrl.u32 %v1525, 7
        %v1527 = vsub.s32 5, %v1526
        %v1528 = vrot.slane %v1501, %v1527
        %v1529 = vlaneseq
        %v1530 = vshrl.u32 %v1529, 7
        %v1531 = vsub.s32 6, %v1530
        %v1532 = vrot.slane %v1501, %v1531
        %v1533 = vlaneseq
        %v1534 = vshrl.u32 %v1533, 7
        %v1535 = vsub.s32 7, %v1534
        %v1536 = vrot.slane %v1501, %v1535
        %v1537 = vlaneseq
        %v1538 = vshrl.u32 %v1537, 7
        %v1539 = vsub.s32 0, %v1538
        %v1540 = vrot.slane %v1502, %v1539
        %v1541 = vlaneseq
        %v1542 = vshrl.u32 %v1541, 7
        %v1543 = vsub.s32 1, %v1542
        %v1544 = vrot.slane %v1502, %v1543
        %v1545 = vlaneseq
        %v1546 = vshrl.u32 %v1545, 7
        %v1547 = vsub.s32 2, %v1546
        %v1548 = vrot.slane %v1502, %v1547
        %v1549 = vlaneseq
        %v1550 = vshrl.u32 %v1549, 7
        %v1551 = vsub.s32 3, %v1550
        %v1552 = vrot.slane %v1502, %v1551
        %v1553 = vlaneseq
        %v1554 = vshrl.u32 %v1553, 7
        %v1555 = vsub.s32 4, %v1554
        %v1556 = vrot.slane %v1502, %v1555
        %v1557 = vlaneseq
        %v1558 = vshrl.u32 %v1557, 7
        %v1559 = vsub.s32 5, %v1558
        %v1560 = vrot.slane %v1502, %v1559
        %v1561 = vlaneseq
        %v1562 = vshrl.u32 %v1561, 7
        %v1563 = vsub.s32 6, %v1562
        %v1564 = vrot.slane %v1502, %v1563
        %v1565 = vlaneseq
        %v1566 = vshrl.u32 %v1565, 7
        %v1567 = vsub.s32 7, %v1566
        %v1568 = vrot.slane %v1502, %v1567
        %v1609 = vunpack.c.l.b16 %v1477
        %v1610 = vunpack.c.h.b16 %v1477
        %v1611 = vunpack.c.l.b16 %v1478
        %v1612 = vunpack.c.h.b16 %v1478
        %v1613 = vunpack.c.l.b16 %v1479
        %v1614 = vunpack.c.h.b16 %v1479
        %v1615 = vunpack.c.l.b16 %v1480
        %v1616 = vunpack.c.h.b16 %v1480
        %v1617 = vunpack.c.l.b16 %v1481
        %v1618 = vunpack.c.h.b16 %v1481
        %v1619 = vunpack.c.l.b16 %v1482
        %v1620 = vunpack.c.h.b16 %v1482
        %v1621 = vunpack.c.l.b16 %v1483
        %v1622 = vunpack.c.h.b16 %v1483
        %v1623 = vunpack.c.l.b16 %v1484
        %v1624 = vunpack.c.h.b16 %v1484
        %v1625 = vunpack.c.l.b16 %v1485
        %v1626 = vunpack.c.h.b16 %v1485
        %v1627 = vunpack.c.l.b16 %v1486
        %v1628 = vunpack.c.h.b16 %v1486
        %v1629 = vunpack.c.l.b16 %v1487
        %v1630 = vunpack.c.h.b16 %v1487
        %v1631 = vunpack.c.l.b16 %v1488
        %v1632 = vunpack.c.h.b16 %v1488
        %v1633 = vunpack.c.l.b16 %v1489
        %v1634 = vunpack.c.h.b16 %v1489
        %v1635 = vunpack.c.l.b16 %v1490
        %v1636 = vunpack.c.h.b16 %v1490
        %v1637 = vunpack.c.l.b16 %v1491
        %v1638 = vunpack.c.h.b16 %v1491
        %v1639 = vunpack.c.l.b16 %v1492
        %v1640 = vunpack.c.h.b16 %v1492
        %v1641 = vunpack.c.l.b16 %v1493
        %v1642 = vunpack.c.h.b16 %v1493
        %v1643 = vunpack.c.l.b16 %v1494
        %v1644 = vunpack.c.h.b16 %v1494
        %v1645 = vunpack.c.l.b16 %v1495
        %v1646 = vunpack.c.h.b16 %v1495
        %v1647 = vunpack.c.l.b16 %v1496
        %v1648 = vunpack.c.h.b16 %v1496
        %v1649 = vunpack.c.l.b16 %v1497
        %v1650 = vunpack.c.h.b16 %v1497
        %v1651 = vunpack.c.l.b16 %v1498
        %v1652 = vunpack.c.h.b16 %v1498
        %v1653 = vunpack.c.l.b16 %v1499
        %v1654 = vunpack.c.h.b16 %v1499
        %v1655 = vunpack.c.l.b16 %v1500
        %v1656 = vunpack.c.h.b16 %v1500
        %v1657 = vpack.c.b16 %v1625, %v1609
        %v1658 = vpack.c.b16 %v1626, %v1610
        %v1659 = vpack.c.b16 %v1627, %v1611
        %v1660 = vpack.c.b16 %v1628, %v1612
        %v1661 = vpack.c.b16 %v1629, %v1613
        %v1662 = vpack.c.b16 %v1630, %v1614
        %v1663 = vpack.c.b16 %v1631, %v1615
        %v1664 = vpack.c.b16 %v1632, %v1616
        %v1665 = vpack.c.b16 %v1633, %v1617
        %v1666 = vpack.c.b16 %v1634, %v1618
        %v1667 = vpack.c.b16 %v1635, %v1619
        %v1668 = vpack.c.b16 %v1636, %v1620
        %v1669 = vpack.c.b16 %v1637, %v1621
        %v1670 = vpack.c.b16 %v1638, %v1622
        %v1671 = vpack.c.b16 %v1639, %v1623
        %v1672 = vpack.c.b16 %v1640, %v1624
        %v1673 = vpack.c.b16 %v1641, %v1641
        %v1674 = vpack.c.b16 %v1642, %v1642
        %v1675 = vpack.c.b16 %v1643, %v1643
        %v1676 = vpack.c.b16 %v1644, %v1644
        %v1677 = vpack.c.b16 %v1645, %v1645
        %v1678 = vpack.c.b16 %v1646, %v1646
        %v1679 = vpack.c.b16 %v1647, %v1647
        %v1680 = vpack.c.b16 %v1648, %v1648
        %v1681 = vpack.c.b16 %v1649, %v1649
        %v1682 = vpack.c.b16 %v1650, %v1650
        %v1683 = vpack.c.b16 %v1651, %v1651
        %v1684 = vpack.c.b16 %v1652, %v1652
        %v1685 = vpack.c.b16 %v1653, %v1653
        %v1686 = vpack.c.b16 %v1654, %v1654
        %v1687 = vpack.c.b16 %v1655, %v1655
        %v1688 = vpack.c.b16 %v1656, %v1656
        %vm1705 = vcmask 138240
        %v1707 = vsel %vm1705, %v1476, 0
        %vm1709 = vcmask 1040384
        %v1710 = vsel 0, 4294967295, 65535
        %v1711 = vsel %vm1709, %v1710, 0
        %v1713 = vand.u32 %v1673, %v1711
        %v1716 = vand.u32 %v1674, %v1711
        %v1719 = vand.u32 %v1675, %v1711
        %v1722 = vand.u32 %v1676, %v1711
        %v1725 = vand.u32 %v1677, %v1711
        %v1728 = vand.u32 %v1678, %v1711
        %v1731 = vand.u32 %v1679, %v1711
        %v1734 = vand.u32 %v1680, %v1711
        %v1737 = vand.u32 %v1681, %v1711
        %v1740 = vand.u32 %v1682, %v1711
        %v1743 = vand.u32 %v1683, %v1711
        %v1746 = vand.u32 %v1684, %v1711
        %v1749 = vand.u32 %v1685, %v1711
        %v1752 = vand.u32 %v1686, %v1711
        %v1755 = vand.u32 %v1687, %v1711
        %v1758 = vand.u32 %v1688, %v1711
        %1760 = vmatprep.subr.bf16.mxu0 0
        %1761 = vmatpush1.bf16.msra.mxu0 0
        %1762 = vmatprep.subr.bf16.mxu0 0
        %1763 = vmatpush1.bf16.msra.mxu0 0
        %1764 = vmatprep.subr.bf16.mxu0 0
        %1765 = vmatpush1.bf16.msra.mxu0 0
        %1766 = vmatprep.subr.bf16.mxu0 0
        %1767 = vmatpush1.bf16.msra.mxu0 0
        %1768 = vmatprep.subr.bf16.mxu0 0
        %1769 = vmatpush1.bf16.msra.mxu0 0
        %1770 = vmatprep.subr.bf16.mxu0 0
        %1771 = vmatpush1.bf16.msra.mxu0 0
        %1772 = vmatprep.subr.bf16.mxu0 %v1716
        %1773 = vmatpush1.bf16.msra.mxu0 %v1713
        %1774 = vmatprep.subr.bf16.mxu0 %v1658
        %1775 = vmatpush1.bf16.msra.mxu0 %v1657
        %1776 = vmatprep.subr.bf16.mxu0 0
        %1777 = vmatpush2.bf16.msra.mxu0 0
        %1778 = vmatprep.subr.bf16.mxu0 0
        %1779 = vmatpush2.bf16.msra.mxu0 0
        %1780 = vmatprep.subr.bf16.mxu0 0
        %1781 = vmatpush2.bf16.msra.mxu0 0
        %1782 = vmatprep.subr.bf16.mxu0 0
        %1783 = vmatpush2.bf16.msra.mxu0 0
        %1784 = vmatprep.subr.bf16.mxu0 0
        %1785 = vmatpush2.bf16.msra.mxu0 0
        %1786 = vmatprep.subr.bf16.mxu0 0
        %1787 = vmatpush2.bf16.msra.mxu0 0
        %1788 = vmatprep.subr.bf16.mxu0 0
        %1789 = vmatpush2.bf16.msra.mxu0 0
        %1790 = vmatprep.subr.bf16.mxu0 0
        %1791 = vmatpush2.bf16.msra.mxu0 0
        %1792 = vmatprep.mubr.bf16.mxu0 0
        %1793 = vmatmul.mubr.bf16.gmra.mxu0 %v1707
        %v1794 = vpop.f32.mrf.mxu0
        %v1795 = vadd.f32 %v1508, %v1794
        %v1796 = vpop.f32.mrf.mxu0
        %v1797 = vadd.f32 %v1512, %v1796
        %v1798 = vpop.f32.mrf.mxu0
        %v1799 = vadd.f32 %v1508, %v1798
        %v1800 = vpop.f32.mrf.mxu0
        %v1801 = vadd.f32 %v1512, %v1800
        %1802 = vdwg.mxu0
        %1803 = vmatprep.subr.bf16.mxu0 0
        %1804 = vmatpush1.bf16.msra.mxu0 0
        %1805 = vmatprep.subr.bf16.mxu0 0
        %1806 = vmatpush1.bf16.msra.mxu0 0
        %1807 = vmatprep.subr.bf16.mxu0 0
        %1808 = vmatpush1.bf16.msra.mxu0 0
        %1809 = vmatprep.subr.bf16.mxu0 0
        %1810 = vmatpush1.bf16.msra.mxu0 0
        %1811 = vmatprep.subr.bf16.mxu0 0
        %1812 = vmatpush1.bf16.msra.mxu0 0
        %1813 = vmatprep.subr.bf16.mxu0 0
        %1814 = vmatpush1.bf16.msra.mxu0 0
        %1815 = vmatprep.subr.bf16.mxu0 %v1722
        %1816 = vmatpush1.bf16.msra.mxu0 %v1719
        %1817 = vmatprep.subr.bf16.mxu0 %v1660
        %1818 = vmatpush1.bf16.msra.mxu0 %v1659
        %1819 = vmatprep.subr.bf16.mxu0 0
        %1820 = vmatpush2.bf16.msra.mxu0 0
        %1821 = vmatprep.subr.bf16.mxu0 0
        %1822 = vmatpush2.bf16.msra.mxu0 0
        %1823 = vmatprep.subr.bf16.mxu0 0
        %1824 = vmatpush2.bf16.msra.mxu0 0
        %1825 = vmatprep.subr.bf16.mxu0 0
        %1826 = vmatpush2.bf16.msra.mxu0 0
        %1827 = vmatprep.subr.bf16.mxu0 0
        %1828 = vmatpush2.bf16.msra.mxu0 0
        %1829 = vmatprep.subr.bf16.mxu0 0
        %1830 = vmatpush2.bf16.msra.mxu0 0
        %1831 = vmatprep.subr.bf16.mxu0 0
        %1832 = vmatpush2.bf16.msra.mxu0 0
        %1833 = vmatprep.subr.bf16.mxu0 0
        %1834 = vmatpush2.bf16.msra.mxu0 0
        %1835 = vmatprep.mubr.bf16.mxu0 0
        %1836 = vmatmul.mubr.bf16.gmra.mxu0 %v1707
        %v1837 = vpop.f32.mrf.mxu0
        %v1838 = vadd.f32 %v1516, %v1837
        %v1839 = vpop.f32.mrf.mxu0
        %v1840 = vadd.f32 %v1520, %v1839
        %v1841 = vpop.f32.mrf.mxu0
        %v1842 = vadd.f32 %v1516, %v1841
        %v1843 = vpop.f32.mrf.mxu0
        %v1844 = vadd.f32 %v1520, %v1843
        %1845 = vdwg.mxu0
        %1846 = vmatprep.subr.bf16.mxu0 0
        %1847 = vmatpush1.bf16.msra.mxu0 0
        %1848 = vmatprep.subr.bf16.mxu0 0
        %1849 = vmatpush1.bf16.msra.mxu0 0
        %1850 = vmatprep.subr.bf16.mxu0 0
        %1851 = vmatpush1.bf16.msra.mxu0 0
        %1852 = vmatprep.subr.bf16.mxu0 0
        %1853 = vmatpush1.bf16.msra.mxu0 0
        %1854 = vmatprep.subr.bf16.mxu0 0
        %1855 = vmatpush1.bf16.msra.mxu0 0
        %1856 = vmatprep.subr.bf16.mxu0 0
        %1857 = vmatpush1.bf16.msra.mxu0 0
        %1858 = vmatprep.subr.bf16.mxu0 %v1728
        %1859 = vmatpush1.bf16.msra.mxu0 %v1725
        %1860 = vmatprep.subr.bf16.mxu0 %v1662
        %1861 = vmatpush1.bf16.msra.mxu0 %v1661
        %1862 = vmatprep.subr.bf16.mxu0 0
        %1863 = vmatpush2.bf16.msra.mxu0 0
        %1864 = vmatprep.subr.bf16.mxu0 0
        %1865 = vmatpush2.bf16.msra.mxu0 0
        %1866 = vmatprep.subr.bf16.mxu0 0
        %1867 = vmatpush2.bf16.msra.mxu0 0
        %1868 = vmatprep.subr.bf16.mxu0 0
        %1869 = vmatpush2.bf16.msra.mxu0 0
        %1870 = vmatprep.subr.bf16.mxu0 0
        %1871 = vmatpush2.bf16.msra.mxu0 0
        %1872 = vmatprep.subr.bf16.mxu0 0
        %1873 = vmatpush2.bf16.msra.mxu0 0
        %1874 = vmatprep.subr.bf16.mxu0 0
        %1875 = vmatpush2.bf16.msra.mxu0 0
        %1876 = vmatprep.subr.bf16.mxu0 0
        %1877 = vmatpush2.bf16.msra.mxu0 0
        %1878 = vmatprep.mubr.bf16.mxu0 0
        %1879 = vmatmul.mubr.bf16.gmra.mxu0 %v1707
        %v1880 = vpop.f32.mrf.mxu0
        %v1881 = vadd.f32 %v1524, %v1880
        %v1882 = vpop.f32.mrf.mxu0
        %v1883 = vadd.f32 %v1528, %v1882
        %v1884 = vpop.f32.mrf.mxu0
        %v1885 = vadd.f32 %v1524, %v1884
        %v1886 = vpop.f32.mrf.mxu0
        %v1887 = vadd.f32 %v1528, %v1886
        %1888 = vdwg.mxu0
        %1889 = vmatprep.subr.bf16.mxu0 0
        %1890 = vmatpush1.bf16.msra.mxu0 0
        %1891 = vmatprep.subr.bf16.mxu0 0
        %1892 = vmatpush1.bf16.msra.mxu0 0
        %1893 = vmatprep.subr.bf16.mxu0 0
        %1894 = vmatpush1.bf16.msra.mxu0 0
        %1895 = vmatprep.subr.bf16.mxu0 0
        %1896 = vmatpush1.bf16.msra.mxu0 0
        %1897 = vmatprep.subr.bf16.mxu0 0
        %1898 = vmatpush1.bf16.msra.mxu0 0
        %1899 = vmatprep.subr.bf16.mxu0 0
        %1900 = vmatpush1.bf16.msra.mxu0 0
        %1901 = vmatprep.subr.bf16.mxu0 %v1734
        %1902 = vmatpush1.bf16.msra.mxu0 %v1731
        %1903 = vmatprep.subr.bf16.mxu0 %v1664
        %1904 = vmatpush1.bf16.msra.mxu0 %v1663
        %1905 = vmatprep.subr.bf16.mxu0 0
        %1906 = vmatpush2.bf16.msra.mxu0 0
        %1907 = vmatprep.subr.bf16.mxu0 0
        %1908 = vmatpush2.bf16.msra.mxu0 0
        %1909 = vmatprep.subr.bf16.mxu0 0
        %1910 = vmatpush2.bf16.msra.mxu0 0
        %1911 = vmatprep.subr.bf16.mxu0 0
        %1912 = vmatpush2.bf16.msra.mxu0 0
        %1913 = vmatprep.subr.bf16.mxu0 0
        %1914 = vmatpush2.bf16.msra.mxu0 0
        %1915 = vmatprep.subr.bf16.mxu0 0
        %1916 = vmatpush2.bf16.msra.mxu0 0
        %1917 = vmatprep.subr.bf16.mxu0 0
        %1918 = vmatpush2.bf16.msra.mxu0 0
        %1919 = vmatprep.subr.bf16.mxu0 0
        %1920 = vmatpush2.bf16.msra.mxu0 0
        %1921 = vmatprep.mubr.bf16.mxu0 0
        %1922 = vmatmul.mubr.bf16.gmra.mxu0 %v1707
        %v1923 = vpop.f32.mrf.mxu0
        %v1924 = vadd.f32 %v1532, %v1923
        %v1925 = vpop.f32.mrf.mxu0
        %v1926 = vadd.f32 %v1536, %v1925
        %v1927 = vpop.f32.mrf.mxu0
        %v1928 = vadd.f32 %v1532, %v1927
        %v1929 = vpop.f32.mrf.mxu0
        %v1930 = vadd.f32 %v1536, %v1929
        %1931 = vdwg.mxu0
        %1932 = vmatprep.subr.bf16.mxu0 0
        %1933 = vmatpush1.bf16.msra.mxu0 0
        %1934 = vmatprep.subr.bf16.mxu0 0
        %1935 = vmatpush1.bf16.msra.mxu0 0
        %1936 = vmatprep.subr.bf16.mxu0 0
        %1937 = vmatpush1.bf16.msra.mxu0 0
        %1938 = vmatprep.subr.bf16.mxu0 0
        %1939 = vmatpush1.bf16.msra.mxu0 0
        %1940 = vmatprep.subr.bf16.mxu0 0
        %1941 = vmatpush1.bf16.msra.mxu0 0
        %1942 = vmatprep.subr.bf16.mxu0 0
        %1943 = vmatpush1.bf16.msra.mxu0 0
        %1944 = vmatprep.subr.bf16.mxu0 %v1740
        %1945 = vmatpush1.bf16.msra.mxu0 %v1737
        %1946 = vmatprep.subr.bf16.mxu0 %v1666
        %1947 = vmatpush1.bf16.msra.mxu0 %v1665
        %1948 = vmatprep.subr.bf16.mxu0 0
        %1949 = vmatpush2.bf16.msra.mxu0 0
        %1950 = vmatprep.subr.bf16.mxu0 0
        %1951 = vmatpush2.bf16.msra.mxu0 0
        %1952 = vmatprep.subr.bf16.mxu0 0
        %1953 = vmatpush2.bf16.msra.mxu0 0
        %1954 = vmatprep.subr.bf16.mxu0 0
        %1955 = vmatpush2.bf16.msra.mxu0 0
        %1956 = vmatprep.subr.bf16.mxu0 0
        %1957 = vmatpush2.bf16.msra.mxu0 0
        %1958 = vmatprep.subr.bf16.mxu0 0
        %1959 = vmatpush2.bf16.msra.mxu0 0
        %1960 = vmatprep.subr.bf16.mxu0 0
        %1961 = vmatpush2.bf16.msra.mxu0 0
        %1962 = vmatprep.subr.bf16.mxu0 0
        %1963 = vmatpush2.bf16.msra.mxu0 0
        %1964 = vmatprep.mubr.bf16.mxu0 0
        %1965 = vmatmul.mubr.bf16.gmra.mxu0 %v1707
        %v1966 = vpop.f32.mrf.mxu0
        %v1967 = vadd.f32 %v1540, %v1966
        %v1968 = vpop.f32.mrf.mxu0
        %v1969 = vadd.f32 %v1544, %v1968
        %v1970 = vpop.f32.mrf.mxu0
        %v1971 = vadd.f32 %v1540, %v1970
        %v1972 = vpop.f32.mrf.mxu0
        %v1973 = vadd.f32 %v1544, %v1972
        %1974 = vdwg.mxu0
        %1975 = vmatprep.subr.bf16.mxu0 0
        %1976 = vmatpush1.bf16.msra.mxu0 0
        %1977 = vmatprep.subr.bf16.mxu0 0
        %1978 = vmatpush1.bf16.msra.mxu0 0
        %1979 = vmatprep.subr.bf16.mxu0 0
        %1980 = vmatpush1.bf16.msra.mxu0 0
        %1981 = vmatprep.subr.bf16.mxu0 0
        %1982 = vmatpush1.bf16.msra.mxu0 0
        %1983 = vmatprep.subr.bf16.mxu0 0
        %1984 = vmatpush1.bf16.msra.mxu0 0
        %1985 = vmatprep.subr.bf16.mxu0 0
        %1986 = vmatpush1.bf16.msra.mxu0 0
        %1987 = vmatprep.subr.bf16.mxu0 %v1746
        %1988 = vmatpush1.bf16.msra.mxu0 %v1743
        %1989 = vmatprep.subr.bf16.mxu0 %v1668
        %1990 = vmatpush1.bf16.msra.mxu0 %v1667
        %1991 = vmatprep.subr.bf16.mxu0 0
        %1992 = vmatpush2.bf16.msra.mxu0 0
        %1993 = vmatprep.subr.bf16.mxu0 0
        %1994 = vmatpush2.bf16.msra.mxu0 0
        %1995 = vmatprep.subr.bf16.mxu0 0
        %1996 = vmatpush2.bf16.msra.mxu0 0
        %1997 = vmatprep.subr.bf16.mxu0 0
        %1998 = vmatpush2.bf16.msra.mxu0 0
        %1999 = vmatprep.subr.bf16.mxu0 0
        %2000 = vmatpush2.bf16.msra.mxu0 0
        %2001 = vmatprep.subr.bf16.mxu0 0
        %2002 = vmatpush2.bf16.msra.mxu0 0
        %2003 = vmatprep.subr.bf16.mxu0 0
        %2004 = vmatpush2.bf16.msra.mxu0 0
        %2005 = vmatprep.subr.bf16.mxu0 0
        %2006 = vmatpush2.bf16.msra.mxu0 0
        %2007 = vmatprep.mubr.bf16.mxu0 0
        %2008 = vmatmul.mubr.bf16.gmra.mxu0 %v1707
        %v2009 = vpop.f32.mrf.mxu0
        %v2010 = vadd.f32 %v1548, %v2009
        %v2011 = vpop.f32.mrf.mxu0
        %v2012 = vadd.f32 %v1552, %v2011
        %v2013 = vpop.f32.mrf.mxu0
        %v2014 = vadd.f32 %v1548, %v2013
        %v2015 = vpop.f32.mrf.mxu0
        %v2016 = vadd.f32 %v1552, %v2015
        %2017 = vdwg.mxu0
        %2018 = vmatprep.subr.bf16.mxu0 0
        %2019 = vmatpush1.bf16.msra.mxu0 0
        %2020 = vmatprep.subr.bf16.mxu0 0
        %2021 = vmatpush1.bf16.msra.mxu0 0
        %2022 = vmatprep.subr.bf16.mxu0 0
        %2023 = vmatpush1.bf16.msra.mxu0 0
        %2024 = vmatprep.subr.bf16.mxu0 0
        %2025 = vmatpush1.bf16.msra.mxu0 0
        %2026 = vmatprep.subr.bf16.mxu0 0
        %2027 = vmatpush1.bf16.msra.mxu0 0
        %2028 = vmatprep.subr.bf16.mxu0 0
        %2029 = vmatpush1.bf16.msra.mxu0 0
        %2030 = vmatprep.subr.bf16.mxu0 %v1752
        %2031 = vmatpush1.bf16.msra.mxu0 %v1749
        %2032 = vmatprep.subr.bf16.mxu0 %v1670
        %2033 = vmatpush1.bf16.msra.mxu0 %v1669
        %2034 = vmatprep.subr.bf16.mxu0 0
        %2035 = vmatpush2.bf16.msra.mxu0 0
        %2036 = vmatprep.subr.bf16.mxu0 0
        %2037 = vmatpush2.bf16.msra.mxu0 0
        %2038 = vmatprep.subr.bf16.mxu0 0
        %2039 = vmatpush2.bf16.msra.mxu0 0
        %2040 = vmatprep.subr.bf16.mxu0 0
        %2041 = vmatpush2.bf16.msra.mxu0 0
        %2042 = vmatprep.subr.bf16.mxu0 0
        %2043 = vmatpush2.bf16.msra.mxu0 0
        %2044 = vmatprep.subr.bf16.mxu0 0
        %2045 = vmatpush2.bf16.msra.mxu0 0
        %2046 = vmatprep.subr.bf16.mxu0 0
        %2047 = vmatpush2.bf16.msra.mxu0 0
        %2048 = vmatprep.subr.bf16.mxu0 0
        %2049 = vmatpush2.bf16.msra.mxu0 0
        %2050 = vmatprep.mubr.bf16.mxu0 0
        %2051 = vmatmul.mubr.bf16.gmra.mxu0 %v1707
        %v2052 = vpop.f32.mrf.mxu0
        %v2053 = vadd.f32 %v1556, %v2052
        %v2054 = vpop.f32.mrf.mxu0
        %v2055 = vadd.f32 %v1560, %v2054
        %v2056 = vpop.f32.mrf.mxu0
        %v2057 = vadd.f32 %v1556, %v2056
        %v2058 = vpop.f32.mrf.mxu0
        %v2059 = vadd.f32 %v1560, %v2058
        %2060 = vdwg.mxu0
        %2061 = vmatprep.subr.bf16.mxu0 0
        %2062 = vmatpush1.bf16.msra.mxu0 0
        %2063 = vmatprep.subr.bf16.mxu0 0
        %2064 = vmatpush1.bf16.msra.mxu0 0
        %2065 = vmatprep.subr.bf16.mxu0 0
        %2066 = vmatpush1.bf16.msra.mxu0 0
        %2067 = vmatprep.subr.bf16.mxu0 0
        %2068 = vmatpush1.bf16.msra.mxu0 0
        %2069 = vmatprep.subr.bf16.mxu0 0
        %2070 = vmatpush1.bf16.msra.mxu0 0
        %2071 = vmatprep.subr.bf16.mxu0 0
        %2072 = vmatpush1.bf16.msra.mxu0 0
        %2073 = vmatprep.subr.bf16.mxu0 %v1758
        %2074 = vmatpush1.bf16.msra.mxu0 %v1755
        %2075 = vmatprep.subr.bf16.mxu0 %v1672
        %2076 = vmatpush1.bf16.msra.mxu0 %v1671
        %2077 = vmatprep.subr.bf16.mxu0 0
        %2078 = vmatpush2.bf16.msra.mxu0 0
        %2079 = vmatprep.subr.bf16.mxu0 0
        %2080 = vmatpush2.bf16.msra.mxu0 0
        %2081 = vmatprep.subr.bf16.mxu0 0
        %2082 = vmatpush2.bf16.msra.mxu0 0
        %2083 = vmatprep.subr.bf16.mxu0 0
        %2084 = vmatpush2.bf16.msra.mxu0 0
        %2085 = vmatprep.subr.bf16.mxu0 0
        %2086 = vmatpush2.bf16.msra.mxu0 0
        %2087 = vmatprep.subr.bf16.mxu0 0
        %2088 = vmatpush2.bf16.msra.mxu0 0
        %2089 = vmatprep.subr.bf16.mxu0 0
        %2090 = vmatpush2.bf16.msra.mxu0 0
        %2091 = vmatprep.subr.bf16.mxu0 0
        %2092 = vmatpush2.bf16.msra.mxu0 0
        %2093 = vmatprep.mubr.bf16.mxu0 0
        %2094 = vmatmul.mubr.bf16.gmra.mxu0 %v1707
        %v2095 = vpop.f32.mrf.mxu0
        %v2096 = vadd.f32 %v1564, %v2095
        %v2097 = vpop.f32.mrf.mxu0
        %v2098 = vadd.f32 %v1568, %v2097
        %v2099 = vpop.f32.mrf.mxu0
        %v2100 = vadd.f32 %v1564, %v2099
        %v2101 = vpop.f32.mrf.mxu0
        %v2102 = vadd.f32 %v1568, %v2101
        %2103 = vdwg.mxu0
        %v2104 = vpack.c.bf16 %v1799, %v1795
        %v2105 = vpack.c.bf16 %v1801, %v1797
        %v2106 = vpack.c.bf16 %v1842, %v1838
        %v2107 = vpack.c.bf16 %v1844, %v1840
        %v2108 = vpack.c.bf16 %v1885, %v1881
        %v2109 = vpack.c.bf16 %v1887, %v1883
        %v2110 = vpack.c.bf16 %v1928, %v1924
        %v2111 = vpack.c.bf16 %v1930, %v1926
        %v2112 = vpack.c.bf16 %v1971, %v1967
        %v2113 = vpack.c.bf16 %v1973, %v1969
        %v2114 = vpack.c.bf16 %v2014, %v2010
        %v2115 = vpack.c.bf16 %v2016, %v2012
        %v2116 = vpack.c.bf16 %v2057, %v2053
        %v2117 = vpack.c.bf16 %v2059, %v2055
        %v2118 = vpack.c.bf16 %v2100, %v2096
        %v2119 = vpack.c.bf16 %v2102, %v2098
        %v2120 = vld [vmem:[#allocation2] sm:$0xf]
        %v2121 = vld [vmem:[#allocation2 + $0x20] sm:$0xf]
        %v2122 = vld [vmem:[#allocation2 + $0x40] sm:$0xf]
        %v2123 = vld [vmem:[#allocation2 + $0x60] sm:$0xf]
        %v2128 = vunpack.c.l.b16 %v2120
        %v2129 = vunpack.c.l.b16 %v2121
        %v2130 = vunpack.c.l.b16 %v2122
        %v2131 = vunpack.c.l.b16 %v2123
        %v2132 = vpack.c.b16 %v2129, %v2128
        %v2133 = vpack.c.b16 %v2131, %v2130
        %2136 = vmatprep.subr.bf16.mxu0 0
        %2137 = vmatpush1.bf16.xpose.msra.mxu0 0
        %2138 = vmatprep.subr.bf16.mxu0 0
        %2139 = vmatpush1.bf16.xpose.msra.mxu0 0
        %2140 = vmatprep.subr.bf16.mxu0 0
        %2141 = vmatpush1.bf16.xpose.msra.mxu0 0
        %2142 = vmatprep.subr.bf16.mxu0 0
        %2143 = vmatpush1.bf16.xpose.msra.mxu0 0
        %2144 = vmatprep.subr.bf16.mxu0 0
        %2145 = vmatpush1.bf16.xpose.msra.mxu0 0
        %2146 = vmatprep.subr.bf16.mxu0 0
        %2147 = vmatpush1.bf16.xpose.msra.mxu0 0
        %2148 = vmatprep.subr.bf16.mxu0 0
        %2149 = vmatpush1.bf16.xpose.msra.mxu0 0
        %2150 = vmatprep.subr.bf16.mxu0 0
        %2151 = vmatpush1.bf16.xpose.msra.mxu0 %v2104
        %2152 = vmatprep.subr.bf16.mxu0 0
        %2153 = vmatpush2.bf16.xpose.msra.mxu0 0
        %2154 = vmatprep.subr.bf16.mxu0 0
        %2155 = vmatpush2.bf16.xpose.msra.mxu0 0
        %2156 = vmatprep.subr.bf16.mxu0 0
        %2157 = vmatpush2.bf16.xpose.msra.mxu0 0
        %2158 = vmatprep.subr.bf16.mxu0 0
        %2159 = vmatpush2.bf16.xpose.msra.mxu0 0
        %2160 = vmatprep.subr.bf16.mxu0 0
        %2161 = vmatpush2.bf16.xpose.msra.mxu0 0
        %2162 = vmatprep.subr.bf16.mxu0 0
        %2163 = vmatpush2.bf16.xpose.msra.mxu0 0
        %2164 = vmatprep.subr.bf16.mxu0 0
        %2165 = vmatpush2.bf16.xpose.msra.mxu0 0
        %2166 = vmatprep.subr.bf16.mxu0 0
        %2167 = vmatpush2.bf16.xpose.msra.mxu0 0
        %2168 = vmatprep.mubr.bf16.mxu0 0
        %2169 = vmatmul.mubr.bf16.gmra.mxu0 %v2132
        %v2170 = vpop.f32.mrf.mxu0
        %v2171 = vadd.f32 %v1470, %v2170
        %v2172 = vpop.f32.mrf.mxu0
        %v2173 = vpop.f32.mrf.mxu0
        %v2174 = vadd.f32 %v1471, %v2173
        %v2175 = vpop.f32.mrf.mxu0
        %2176 = vmatprep.mubr.bf16.mxu0 0
        %2177 = vmatmul.mubr.bf16.gmra.mxu0 %v2133
        %v2178 = vpop.f32.mrf.mxu0
        %v2179 = vadd.f32 %v1472, %v2178
        %v2180 = vpop.f32.mrf.mxu0
        %v2181 = vpop.f32.mrf.mxu0
        %v2182 = vadd.f32 %v1473, %v2181
        %v2183 = vpop.f32.mrf.mxu0
        %2184 = vdwg.mxu0
        %v2185 = vld [vmem:[#allocation3] sm:$0xff]
        %v2186 = vld [vmem:[#allocation3 + $0x8] sm:$0xff]
        %v2187 = vld [vmem:[#allocation3 + $0x10] sm:$0xff]
        %v2188 = vld [vmem:[#allocation3 + $0x18] sm:$0xff]
        %vm2189 = vcmask 130048
        %v2190 = vsel %vm2189, %v2171, -inf
        %2191 = vmax.xlane.f32.xlu0 %v2190
        %v2192 = vpop.xlane.xlu0 %2191
        %v2193 = vsel %vm2189, %v2174, -inf
        %2194 = vmax.xlane.f32.xlu0 %v2193
        %v2195 = vpop.xlane.xlu0 %2194
        %v2196 = vsel %vm2189, %v2179, -inf
        %2197 = vmax.xlane.f32.xlu0 %v2196
        %v2198 = vpop.xlane.xlu0 %2197
        %v2199 = vsel %vm2189, %v2182, -inf
        %2200 = vmax.xlane.f32.xlu0 %v2199
        %v2201 = vpop.xlane.xlu0 %2200
        %v2202 = vmax.f32 %v2185, %v2192
        %v2203 = vmax.f32 %v2186, %v2195
        %v2204 = vmax.f32 %v2187, %v2198
        %v2205 = vmax.f32 %v2188, %v2201
        %v2206 = vsub.f32 %v2185, %v2202
        %v2207 = vsub.f32 %v2186, %v2203
        %v2208 = vsub.f32 %v2187, %v2204
        %v2209 = vsub.f32 %v2188, %v2205
        %v2210 = vmul.f32 %v2206, 1.442695
        %v2211 = vpow.pop %v2210
        %v2212 = vmul.f32 %v2207, 1.442695
        %v2213 = vpow.pop %v2212
        %v2214 = vmul.f32 %v2208, 1.442695
        %v2215 = vpow.pop %v2214
        %v2216 = vmul.f32 %v2209, 1.442695
        %v2217 = vpow.pop %v2216
        %2219 = vset.pattern.permute.xlu0 0
        %2220 = vperm.xlu0 %2219, %v2202
        %v2221 = vpop.permute.xlu0 %2220
        %2224 = vset.pattern.permute.xlu0 0
        %2225 = vperm.xlu0 %2224, %v2203
        %v2226 = vpop.permute.xlu0 %2225
        %2229 = vset.pattern.permute.xlu0 0
        %2230 = vperm.xlu0 %2229, %v2204
        %v2231 = vpop.permute.xlu0 %2230
        %2234 = vset.pattern.permute.xlu0 0
        %2235 = vperm.xlu0 %2234, %v2205
        %v2236 = vpop.permute.xlu0 %2235
        %v2238 = vsub.f32 %v2171, %v2221
        %v2239 = vsub.f32 %v2174, %v2226
        %v2240 = vsub.f32 %v2179, %v2231
        %v2241 = vsub.f32 %v2182, %v2236
        %v2242 = vmul.f32 %v2238, 1.442695
        %v2243 = vpow.pop %v2242
        %v2244 = vmul.f32 %v2239, 1.442695
        %v2245 = vpow.pop %v2244
        %v2246 = vmul.f32 %v2240, 1.442695
        %v2247 = vpow.pop %v2246
        %v2248 = vmul.f32 %v2241, 1.442695
        %v2249 = vpow.pop %v2248
        %v2250 = vld [vmem:[#allocation4] sm:$0xff]
        %v2251 = vld [vmem:[#allocation4 + $0x8] sm:$0xff]
        %v2252 = vld [vmem:[#allocation4 + $0x10] sm:$0xff]
        %v2253 = vld [vmem:[#allocation4 + $0x18] sm:$0xff]
        %v2254 = vmul.f32 %v2211, %v2250
        %v2255 = vmul.f32 %v2213, %v2251
        %v2256 = vmul.f32 %v2215, %v2252
        %v2257 = vmul.f32 %v2217, %v2253
        %v2258 = vsel %vm2189, %v2243, 0.0
        %2259 = vadd.xlane.f32.xlu0 %v2258
        %v2260 = vpop.xlane.xlu0 %2259
        %v2261 = vsel %vm2189, %v2245, 0.0
        %2262 = vadd.xlane.f32.xlu0 %v2261
        %v2263 = vpop.xlane.xlu0 %2262
        %v2264 = vsel %vm2189, %v2247, 0.0
        %2265 = vadd.xlane.f32.xlu0 %v2264
        %v2266 = vpop.xlane.xlu0 %2265
        %v2267 = vsel %vm2189, %v2249, 0.0
        %2268 = vadd.xlane.f32.xlu0 %v2267
        %v2269 = vpop.xlane.xlu0 %2268
        %v2270 = vadd.f32 %v2254, %v2260
        %v2271 = vadd.f32 %v2255, %v2263
        %v2272 = vadd.f32 %v2256, %v2266
        %v2273 = vadd.f32 %v2257, %v2269
        %vm2274 = vcmask 7168
        %2275 = vst.msk [vmem:[#allocation4] sm:$0xff] %vm2274, %v2270
        %2276 = vst.msk [vmem:[#allocation4 + $0x8] sm:$0xff] %vm2274, %v2271
        %2277 = vst.msk [vmem:[#allocation4 + $0x10] sm:$0xff] %vm2274, %v2272
        %2278 = vst.msk [vmem:[#allocation4 + $0x18] sm:$0xff] %vm2274, %v2273
        %v2279 = vld [vmem:[#allocation5] sm:$0xff]
        %v2280 = vld [vmem:[#allocation5 + $0x40] sm:$0xff]
        %v2281 = vld [vmem:[#allocation5 + $0x80] sm:$0xff]
        %v2282 = vld [vmem:[#allocation5 + $0xc0] sm:$0xff]
        %2284 = vset.pattern.permute.xlu0 0
        %2285 = vperm.xlu0 %2284, %v2211
        %v2286 = vpop.permute.xlu0 %2285
        %2289 = vset.pattern.permute.xlu0 0
        %2290 = vperm.xlu0 %2289, %v2213
        %v2291 = vpop.permute.xlu0 %2290
        %2294 = vset.pattern.permute.xlu0 0
        %2295 = vperm.xlu0 %2294, %v2215
        %v2296 = vpop.permute.xlu0 %2295
        %2299 = vset.pattern.permute.xlu0 0
        %2300 = vperm.xlu0 %2299, %v2217
        %v2301 = vpop.permute.xlu0 %2300
        %v2303 = vmul.f32 %v2286, %v2279
        %v2304 = vmul.f32 %v2291, %v2280
        %v2305 = vmul.f32 %v2296, %v2281
        %v2306 = vmul.f32 %v2301, %v2282
        %v2307 = vpack.c.bf16 %v2245, %v2243
        %v2308 = vpack.c.bf16 %v2249, %v2247
        %v2310 = vsel %vm2189, %v2307, 0
        %v2313 = vsel %vm2189, %v2308, 0
        %2315 = vmatprep.subr.bf16.mxu0 0
        %2316 = vmatpush1.bf16.msra.mxu0 0
        %2317 = vmatprep.subr.bf16.mxu0 0
        %2318 = vmatpush1.bf16.msra.mxu0 0
        %2319 = vmatprep.subr.bf16.mxu0 0
        %2320 = vmatpush1.bf16.msra.mxu0 0
        %2321 = vmatprep.subr.bf16.mxu0 0
        %2322 = vmatpush1.bf16.msra.mxu0 0
        %2323 = vmatprep.subr.bf16.mxu0 0
        %2324 = vmatpush1.bf16.msra.mxu0 0
        %2325 = vmatprep.subr.bf16.mxu0 0
        %2326 = vmatpush1.bf16.msra.mxu0 0
        %2327 = vmatprep.subr.bf16.mxu0 0
        %2328 = vmatpush1.bf16.msra.mxu0 0
        %2329 = vmatprep.subr.bf16.mxu0 0
        %2330 = vmatpush1.bf16.msra.mxu0 %v2112
        %2331 = vmatprep.subr.bf16.mxu0 0
        %2332 = vmatpush2.bf16.msra.mxu0 0
        %2333 = vmatprep.subr.bf16.mxu0 0
        %2334 = vmatpush2.bf16.msra.mxu0 0
        %2335 = vmatprep.subr.bf16.mxu0 0
        %2336 = vmatpush2.bf16.msra.mxu0 0
        %2337 = vmatprep.subr.bf16.mxu0 0
        %2338 = vmatpush2.bf16.msra.mxu0 0
        %2339 = vmatprep.subr.bf16.mxu0 0
        %2340 = vmatpush2.bf16.msra.mxu0 0
        %2341 = vmatprep.subr.bf16.mxu0 0
        %2342 = vmatpush2.bf16.msra.mxu0 0
        %2343 = vmatprep.subr.bf16.mxu0 0
        %2344 = vmatpush2.bf16.msra.mxu0 0
        %2345 = vmatprep.subr.bf16.mxu0 0
        %2346 = vmatpush2.bf16.msra.mxu0 0
        %2347 = vmatprep.mubr.bf16.mxu0 0
        %2348 = vmatmul.mubr.bf16.gmra.mxu0 %v2310
        %v2349 = vpop.f32.mrf.mxu0
        %v2350 = vadd.f32 0.0, %v2349
        %v2351 = vpop.f32.mrf.mxu0
        %v2352 = vpop.f32.mrf.mxu0
        %v2353 = vadd.f32 0.0, %v2352
        %v2354 = vpop.f32.mrf.mxu0
        %2355 = vmatprep.mubr.bf16.mxu0 0
        %2356 = vmatmul.mubr.bf16.gmra.mxu0 %v2313
        %v2357 = vpop.f32.mrf.mxu0
        %v2358 = vadd.f32 0.0, %v2357
        %v2359 = vpop.f32.mrf.mxu0
        %v2360 = vpop.f32.mrf.mxu0
        %v2361 = vadd.f32 0.0, %v2360
        %v2362 = vpop.f32.mrf.mxu0
        %2363 = vdwg.mxu0
        %v2364 = vadd.f32 %v2303, %v2350
        %v2365 = vadd.f32 %v2304, %v2353
        %v2366 = vadd.f32 %v2305, %v2358
        %v2367 = vadd.f32 %v2306, %v2361
        %2368 = vst [vmem:[#allocation5] sm:$0xff] %v2364
        %2369 = vst [vmem:[#allocation5 + $0x40] sm:$0xff] %v2365
        %2370 = vst [vmem:[#allocation5 + $0x80] sm:$0xff] %v2366
        %2371 = vst [vmem:[#allocation5 + $0xc0] sm:$0xff] %v2367
        %2372 = vst.msk [vmem:[#allocation3] sm:$0xff] %vm2274, %v2202
        %2373 = vst.msk [vmem:[#allocation3 + $0x8] sm:$0xff] %vm2274, %v2203
        %2374 = vst.msk [vmem:[#allocation3 + $0x10] sm:$0xff] %vm2274, %v2204
        %2375 = vst.msk [vmem:[#allocation3 + $0x18] sm:$0xff] %vm2274, %v2205
        %v2376 = vld [vmem:[#allocation2 + $0x4] sm:$0xf]
        %v2377 = vld [vmem:[#allocation2 + $0x24] sm:$0xf]
        %v2378 = vld [vmem:[#allocation2 + $0x44] sm:$0xf]
        %v2379 = vld [vmem:[#allocation2 + $0x64] sm:$0xf]
        %v2384 = vunpack.c.l.b16 %v2376
        %v2385 = vunpack.c.l.b16 %v2377
        %v2386 = vunpack.c.l.b16 %v2378
        %v2387 = vunpack.c.l.b16 %v2379
        %v2388 = vpack.c.b16 %v2385, %v2384
        %v2389 = vpack.c.b16 %v2387, %v2386
        %2392 = vmatprep.subr.bf16.mxu0 0
        %2393 = vmatpush1.bf16.xpose.msra.mxu0 0
        %2394 = vmatprep.subr.bf16.mxu0 0
        %2395 = vmatpush1.bf16.xpose.msra.mxu0 0
        %2396 = vmatprep.subr.bf16.mxu0 0
        %2397 = vmatpush1.bf16.xpose.msra.mxu0 0
        %2398 = vmatprep.subr.bf16.mxu0 0
        %2399 = vmatpush1.bf16.xpose.msra.mxu0 0
        %2400 = vmatprep.subr.bf16.mxu0 0
        %2401 = vmatpush1.bf16.xpose.msra.mxu0 0
        %2402 = vmatprep.subr.bf16.mxu0 0
        %2403 = vmatpush1.bf16.xpose.msra.mxu0 0
        %2404 = vmatprep.subr.bf16.mxu0 0
        %2405 = vmatpush1.bf16.xpose.msra.mxu0 0
        %2406 = vmatprep.subr.bf16.mxu0 0
        %2407 = vmatpush1.bf16.xpose.msra.mxu0 %v2105
        %2408 = vmatprep.subr.bf16.mxu0 0
        %2409 = vmatpush2.bf16.xpose.msra.mxu0 0
        %2410 = vmatprep.subr.bf16.mxu0 0
        %2411 = vmatpush2.bf16.xpose.msra.mxu0 0
        %2412 = vmatprep.subr.bf16.mxu0 0
        %2413 = vmatpush2.bf16.xpose.msra.mxu0 0
        %2414 = vmatprep.subr.bf16.mxu0 0
        %2415 = vmatpush2.bf16.xpose.msra.mxu0 0
        %2416 = vmatprep.subr.bf16.mxu0 0
        %2417 = vmatpush2.bf16.xpose.msra.mxu0 0
        %2418 = vmatprep.subr.bf16.mxu0 0
        %2419 = vmatpush2.bf16.xpose.msra.mxu0 0
        %2420 = vmatprep.subr.bf16.mxu0 0
        %2421 = vmatpush2.bf16.xpose.msra.mxu0 0
        %2422 = vmatprep.subr.bf16.mxu0 0
        %2423 = vmatpush2.bf16.xpose.msra.mxu0 0
        %2424 = vmatprep.mubr.bf16.mxu0 0
        %2425 = vmatmul.mubr.bf16.gmra.mxu0 %v2388
        %v2426 = vpop.f32.mrf.mxu0
        %v2427 = vadd.f32 %v1470, %v2426
        %v2428 = vpop.f32.mrf.mxu0
        %v2429 = vpop.f32.mrf.mxu0
        %v2430 = vadd.f32 %v1471, %v2429
        %v2431 = vpop.f32.mrf.mxu0
        %2432 = vmatprep.mubr.bf16.mxu0 0
        %2433 = vmatmul.mubr.bf16.gmra.mxu0 %v2389
        %v2434 = vpop.f32.mrf.mxu0
        %v2435 = vadd.f32 %v1472, %v2434
        %v2436 = vpop.f32.mrf.mxu0
        %v2437 = vpop.f32.mrf.mxu0
        %v2438 = vadd.f32 %v1473, %v2437
        %v2439 = vpop.f32.mrf.mxu0
        %2440 = vdwg.mxu0
        %v2441 = vld [vmem:[#allocation3] sm:$0xff]
        %v2442 = vld [vmem:[#allocation3 + $0x8] sm:$0xff]
        %v2443 = vld [vmem:[#allocation3 + $0x10] sm:$0xff]
        %v2444 = vld [vmem:[#allocation3 + $0x18] sm:$0xff]
        %v2445 = vsel %vm2189, %v2427, -inf
        %2446 = vmax.xlane.f32.xlu0 %v2445
        %v2447 = vpop.xlane.xlu0 %2446
        %v2448 = vsel %vm2189, %v2430, -inf
        %2449 = vmax.xlane.f32.xlu0 %v2448
        %v2450 = vpop.xlane.xlu0 %2449
        %v2451 = vsel %vm2189, %v2435, -inf
        %2452 = vmax.xlane.f32.xlu0 %v2451
        %v2453 = vpop.xlane.xlu0 %2452
        %v2454 = vsel %vm2189, %v2438, -inf
        %2455 = vmax.xlane.f32.xlu0 %v2454
        %v2456 = vpop.xlane.xlu0 %2455
        %v2457 = vmax.f32 %v2441, %v2447
        %v2458 = vmax.f32 %v2442, %v2450
        %v2459 = vmax.f32 %v2443, %v2453
        %v2460 = vmax.f32 %v2444, %v2456
        %v2461 = vsub.f32 %v2441, %v2457
        %v2462 = vsub.f32 %v2442, %v2458
        %v2463 = vsub.f32 %v2443, %v2459
        %v2464 = vsub.f32 %v2444, %v2460
        %v2465 = vmul.f32 %v2461, 1.442695
        %v2466 = vpow.pop %v2465
        %v2467 = vmul.f32 %v2462, 1.442695
        %v2468 = vpow.pop %v2467
        %v2469 = vmul.f32 %v2463, 1.442695
        %v2470 = vpow.pop %v2469
        %v2471 = vmul.f32 %v2464, 1.442695
        %v2472 = vpow.pop %v2471
        %2474 = vset.pattern.permute.xlu0 1
        %2475 = vperm.xlu0 %2474, %v2457
        %v2476 = vpop.permute.xlu0 %2475
        %2479 = vset.pattern.permute.xlu0 1
        %2480 = vperm.xlu0 %2479, %v2458
        %v2481 = vpop.permute.xlu0 %2480
        %2484 = vset.pattern.permute.xlu0 1
        %2485 = vperm.xlu0 %2484, %v2459
        %v2486 = vpop.permute.xlu0 %2485
        %2489 = vset.pattern.permute.xlu0 1
        %2490 = vperm.xlu0 %2489, %v2460
        %v2491 = vpop.permute.xlu0 %2490
        %v2493 = vsub.f32 %v2427, %v2476
        %v2494 = vsub.f32 %v2430, %v2481
        %v2495 = vsub.f32 %v2435, %v2486
        %v2496 = vsub.f32 %v2438, %v2491
        %v2497 = vmul.f32 %v2493, 1.442695
        %v2498 = vpow.pop %v2497
        %v2499 = vmul.f32 %v2494, 1.442695
        %v2500 = vpow.pop %v2499
        %v2501 = vmul.f32 %v2495, 1.442695
        %v2502 = vpow.pop %v2501
        %v2503 = vmul.f32 %v2496, 1.442695
        %v2504 = vpow.pop %v2503
        %v2505 = vld [vmem:[#allocation4] sm:$0xff]
        %v2506 = vld [vmem:[#allocation4 + $0x8] sm:$0xff]
        %v2507 = vld [vmem:[#allocation4 + $0x10] sm:$0xff]
        %v2508 = vld [vmem:[#allocation4 + $0x18] sm:$0xff]
        %v2509 = vmul.f32 %v2466, %v2505
        %v2510 = vmul.f32 %v2468, %v2506
        %v2511 = vmul.f32 %v2470, %v2507
        %v2512 = vmul.f32 %v2472, %v2508
        %v2513 = vsel %vm2189, %v2498, 0.0
        %2514 = vadd.xlane.f32.xlu0 %v2513
        %v2515 = vpop.xlane.xlu0 %2514
        %v2516 = vsel %vm2189, %v2500, 0.0
        %2517 = vadd.xlane.f32.xlu0 %v2516
        %v2518 = vpop.xlane.xlu0 %2517
        %v2519 = vsel %vm2189, %v2502, 0.0
        %2520 = vadd.xlane.f32.xlu0 %v2519
        %v2521 = vpop.xlane.xlu0 %2520
        %v2522 = vsel %vm2189, %v2504, 0.0
        %2523 = vadd.xlane.f32.xlu0 %v2522
        %v2524 = vpop.xlane.xlu0 %2523
        %v2525 = vadd.f32 %v2509, %v2515
        %v2526 = vadd.f32 %v2510, %v2518
        %v2527 = vadd.f32 %v2511, %v2521
        %v2528 = vadd.f32 %v2512, %v2524
        %vm2529 = vcmask 15368
        %2530 = vst.msk [vmem:[#allocation4] sm:$0xff] %vm2529, %v2525
        %2531 = vst.msk [vmem:[#allocation4 + $0x8] sm:$0xff] %vm2529, %v2526
        %2532 = vst.msk [vmem:[#allocation4 + $0x10] sm:$0xff] %vm2529, %v2527
        %2533 = vst.msk [vmem:[#allocation4 + $0x18] sm:$0xff] %vm2529, %v2528
        %v2534 = vld [vmem:[#allocation5 + $0x8] sm:$0xff]
        %v2535 = vld [vmem:[#allocation5 + $0x48] sm:$0xff]
        %v2536 = vld [vmem:[#allocation5 + $0x88] sm:$0xff]
        %v2537 = vld [vmem:[#allocation5 + $0xc8] sm:$0xff]
        %2539 = vset.pattern.permute.xlu0 1
        %2540 = vperm.xlu0 %2539, %v2466
        %v2541 = vpop.permute.xlu0 %2540
        %2544 = vset.pattern.permute.xlu0 1
        %2545 = vperm.xlu0 %2544, %v2468
        %v2546 = vpop.permute.xlu0 %2545
        %2549 = vset.pattern.permute.xlu0 1
        %2550 = vperm.xlu0 %2549, %v2470
        %v2551 = vpop.permute.xlu0 %2550
        %2554 = vset.pattern.permute.xlu0 1
        %2555 = vperm.xlu0 %2554, %v2472
        %v2556 = vpop.permute.xlu0 %2555
        %v2558 = vmul.f32 %v2541, %v2534
        %v2559 = vmul.f32 %v2546, %v2535
        %v2560 = vmul.f32 %v2551, %v2536
        %v2561 = vmul.f32 %v2556, %v2537
        %v2562 = vpack.c.bf16 %v2500, %v2498
        %v2563 = vpack.c.bf16 %v2504, %v2502
        %v2565 = vsel %vm2189, %v2562, 0
        %v2568 = vsel %vm2189, %v2563, 0
        %2570 = vmatprep.subr.bf16.mxu0 0
        %2571 = vmatpush1.bf16.msra.mxu0 0
        %2572 = vmatprep.subr.bf16.mxu0 0
        %2573 = vmatpush1.bf16.msra.mxu0 0
        %2574 = vmatprep.subr.bf16.mxu0 0
        %2575 = vmatpush1.bf16.msra.mxu0 0
        %2576 = vmatprep.subr.bf16.mxu0 0
        %2577 = vmatpush1.bf16.msra.mxu0 0
        %2578 = vmatprep.subr.bf16.mxu0 0
        %2579 = vmatpush1.bf16.msra.mxu0 0
        %2580 = vmatprep.subr.bf16.mxu0 0
        %2581 = vmatpush1.bf16.msra.mxu0 0
        %2582 = vmatprep.subr.bf16.mxu0 0
        %2583 = vmatpush1.bf16.msra.mxu0 0
        %2584 = vmatprep.subr.bf16.mxu0 0
        %2585 = vmatpush1.bf16.msra.mxu0 %v2113
        %2586 = vmatprep.subr.bf16.mxu0 0
        %2587 = vmatpush2.bf16.msra.mxu0 0
        %2588 = vmatprep.subr.bf16.mxu0 0
        %2589 = vmatpush2.bf16.msra.mxu0 0
        %2590 = vmatprep.subr.bf16.mxu0 0
        %2591 = vmatpush2.bf16.msra.mxu0 0
        %2592 = vmatprep.subr.bf16.mxu0 0
        %2593 = vmatpush2.bf16.msra.mxu0 0
        %2594 = vmatprep.subr.bf16.mxu0 0
        %2595 = vmatpush2.bf16.msra.mxu0 0
        %2596 = vmatprep.subr.bf16.mxu0 0
        %2597 = vmatpush2.bf16.msra.mxu0 0
        %2598 = vmatprep.subr.bf16.mxu0 0
        %2599 = vmatpush2.bf16.msra.mxu0 0
        %2600 = vmatprep.subr.bf16.mxu0 0
        %2601 = vmatpush2.bf16.msra.mxu0 0
        %2602 = vmatprep.mubr.bf16.mxu0 0
        %2603 = vmatmul.mubr.bf16.gmra.mxu0 %v2565
        %v2604 = vpop.f32.mrf.mxu0
        %v2605 = vadd.f32 0.0, %v2604
        %v2606 = vpop.f32.mrf.mxu0
        %v2607 = vpop.f32.mrf.mxu0
        %v2608 = vadd.f32 0.0, %v2607
        %v2609 = vpop.f32.mrf.mxu0
        %2610 = vmatprep.mubr.bf16.mxu0 0
        %2611 = vmatmul.mubr.bf16.gmra.mxu0 %v2568
        %v2612 = vpop.f32.mrf.mxu0
        %v2613 = vadd.f32 0.0, %v2612
        %v2614 = vpop.f32.mrf.mxu0
        %v2615 = vpop.f32.mrf.mxu0
        %v2616 = vadd.f32 0.0, %v2615
        %v2617 = vpop.f32.mrf.mxu0
        %2618 = vdwg.mxu0
        %v2619 = vadd.f32 %v2558, %v2605
        %v2620 = vadd.f32 %v2559, %v2608
        %v2621 = vadd.f32 %v2560, %v2613
        %v2622 = vadd.f32 %v2561, %v2616
        %2623 = vst [vmem:[#allocation5 + $0x8] sm:$0xff] %v2619
        %2624 = vst [vmem:[#allocation5 + $0x48] sm:$0xff] %v2620
        %2625 = vst [vmem:[#allocation5 + $0x88] sm:$0xff] %v2621
        %2626 = vst [vmem:[#allocation5 + $0xc8] sm:$0xff] %v2622
        %2627 = vst.msk [vmem:[#allocation3] sm:$0xff] %vm2529, %v2457
        %2628 = vst.msk [vmem:[#allocation3 + $0x8] sm:$0xff] %vm2529, %v2458
        %2629 = vst.msk [vmem:[#allocation3 + $0x10] sm:$0xff] %vm2529, %v2459
        %2630 = vst.msk [vmem:[#allocation3 + $0x18] sm:$0xff] %vm2529, %v2460
        %v2631 = vld [vmem:[#allocation2 + $0x8] sm:$0xf]
        %v2632 = vld [vmem:[#allocation2 + $0x28] sm:$0xf]
        %v2633 = vld [vmem:[#allocation2 + $0x48] sm:$0xf]
        %v2634 = vld [vmem:[#allocation2 + $0x68] sm:$0xf]
        %v2639 = vunpack.c.l.b16 %v2631
        %v2640 = vunpack.c.l.b16 %v2632
        %v2641 = vunpack.c.l.b16 %v2633
        %v2642 = vunpack.c.l.b16 %v2634
        %v2643 = vpack.c.b16 %v2640, %v2639
        %v2644 = vpack.c.b16 %v2642, %v2641
        %2647 = vmatprep.subr.bf16.mxu0 0
        %2648 = vmatpush1.bf16.xpose.msra.mxu0 0
        %2649 = vmatprep.subr.bf16.mxu0 0
        %2650 = vmatpush1.bf16.xpose.msra.mxu0 0
        %2651 = vmatprep.subr.bf16.mxu0 0
        %2652 = vmatpush1.bf16.xpose.msra.mxu0 0
        %2653 = vmatprep.subr.bf16.mxu0 0
        %2654 = vmatpush1.bf16.xpose.msra.mxu0 0
        %2655 = vmatprep.subr.bf16.mxu0 0
        %2656 = vmatpush1.bf16.xpose.msra.mxu0 0
        %2657 = vmatprep.subr.bf16.mxu0 0
        %2658 = vmatpush1.bf16.xpose.msra.mxu0 0
        %2659 = vmatprep.subr.bf16.mxu0 0
        %2660 = vmatpush1.bf16.xpose.msra.mxu0 0
        %2661 = vmatprep.subr.bf16.mxu0 0
        %2662 = vmatpush1.bf16.xpose.msra.mxu0 %v2106
        %2663 = vmatprep.subr.bf16.mxu0 0
        %2664 = vmatpush2.bf16.xpose.msra.mxu0 0
        %2665 = vmatprep.subr.bf16.mxu0 0
        %2666 = vmatpush2.bf16.xpose.msra.mxu0 0
        %2667 = vmatprep.subr.bf16.mxu0 0
        %2668 = vmatpush2.bf16.xpose.msra.mxu0 0
        %2669 = vmatprep.subr.bf16.mxu0 0
        %2670 = vmatpush2.bf16.xpose.msra.mxu0 0
        %2671 = vmatprep.subr.bf16.mxu0 0
        %2672 = vmatpush2.bf16.xpose.msra.mxu0 0
        %2673 = vmatprep.subr.bf16.mxu0 0
        %2674 = vmatpush2.bf16.xpose.msra.mxu0 0
        %2675 = vmatprep.subr.bf16.mxu0 0
        %2676 = vmatpush2.bf16.xpose.msra.mxu0 0
        %2677 = vmatprep.subr.bf16.mxu0 0
        %2678 = vmatpush2.bf16.xpose.msra.mxu0 0
        %2679 = vmatprep.mubr.bf16.mxu0 0
        %2680 = vmatmul.mubr.bf16.gmra.mxu0 %v2643
        %v2681 = vpop.f32.mrf.mxu0
        %v2682 = vadd.f32 %v1470, %v2681
        %v2683 = vpop.f32.mrf.mxu0
        %v2684 = vpop.f32.mrf.mxu0
        %v2685 = vadd.f32 %v1471, %v2684
        %v2686 = vpop.f32.mrf.mxu0
        %2687 = vmatprep.mubr.bf16.mxu0 0
        %2688 = vmatmul.mubr.bf16.gmra.mxu0 %v2644
        %v2689 = vpop.f32.mrf.mxu0
        %v2690 = vadd.f32 %v1472, %v2689
        %v2691 = vpop.f32.mrf.mxu0
        %v2692 = vpop.f32.mrf.mxu0
        %v2693 = vadd.f32 %v1473, %v2692
        %v2694 = vpop.f32.mrf.mxu0
        %2695 = vdwg.mxu0
        %v2696 = vld [vmem:[#allocation3] sm:$0xff]
        %v2697 = vld [vmem:[#allocation3 + $0x8] sm:$0xff]
        %v2698 = vld [vmem:[#allocation3 + $0x10] sm:$0xff]
        %v2699 = vld [vmem:[#allocation3 + $0x18] sm:$0xff]
        %v2700 = vsel %vm2189, %v2682, -inf
        %2701 = vmax.xlane.f32.xlu0 %v2700
        %v2702 = vpop.xlane.xlu0 %2701
        %v2703 = vsel %vm2189, %v2685, -inf
        %2704 = vmax.xlane.f32.xlu0 %v2703
        %v2705 = vpop.xlane.xlu0 %2704
        %v2706 = vsel %vm2189, %v2690, -inf
        %2707 = vmax.xlane.f32.xlu0 %v2706
        %v2708 = vpop.xlane.xlu0 %2707
        %v2709 = vsel %vm2189, %v2693, -inf
        %2710 = vmax.xlane.f32.xlu0 %v2709
        %v2711 = vpop.xlane.xlu0 %2710
        %v2712 = vmax.f32 %v2696, %v2702
        %v2713 = vmax.f32 %v2697, %v2705
        %v2714 = vmax.f32 %v2698, %v2708
        %v2715 = vmax.f32 %v2699, %v2711
        %v2716 = vsub.f32 %v2696, %v2712
        %v2717 = vsub.f32 %v2697, %v2713
        %v2718 = vsub.f32 %v2698, %v2714
        %v2719 = vsub.f32 %v2699, %v2715
        %v2720 = vmul.f32 %v2716, 1.442695
        %v2721 = vpow.pop %v2720
        %v2722 = vmul.f32 %v2717, 1.442695
        %v2723 = vpow.pop %v2722
        %v2724 = vmul.f32 %v2718, 1.442695
        %v2725 = vpow.pop %v2724
        %v2726 = vmul.f32 %v2719, 1.442695
        %v2727 = vpow.pop %v2726
        %2729 = vset.pattern.permute.xlu0 2
        %2730 = vperm.xlu0 %2729, %v2712
        %v2731 = vpop.permute.xlu0 %2730
        %2734 = vset.pattern.permute.xlu0 2
        %2735 = vperm.xlu0 %2734, %v2713
        %v2736 = vpop.permute.xlu0 %2735
        %2739 = vset.pattern.permute.xlu0 2
        %2740 = vperm.xlu0 %2739, %v2714
        %v2741 = vpop.permute.xlu0 %2740
        %2744 = vset.pattern.permute.xlu0 2
        %2745 = vperm.xlu0 %2744, %v2715
        %v2746 = vpop.permute.xlu0 %2745
        %v2748 = vsub.f32 %v2682, %v2731
        %v2749 = vsub.f32 %v2685, %v2736
        %v2750 = vsub.f32 %v2690, %v2741
        %v2751 = vsub.f32 %v2693, %v2746
        %v2752 = vmul.f32 %v2748, 1.442695
        %v2753 = vpow.pop %v2752
        %v2754 = vmul.f32 %v2749, 1.442695
        %v2755 = vpow.pop %v2754
        %v2756 = vmul.f32 %v2750, 1.442695
        %v2757 = vpow.pop %v2756
        %v2758 = vmul.f32 %v2751, 1.442695
        %v2759 = vpow.pop %v2758
        %v2760 = vld [vmem:[#allocation4] sm:$0xff]
        %v2761 = vld [vmem:[#allocation4 + $0x8] sm:$0xff]
        %v2762 = vld [vmem:[#allocation4 + $0x10] sm:$0xff]
        %v2763 = vld [vmem:[#allocation4 + $0x18] sm:$0xff]
        %v2764 = vmul.f32 %v2721, %v2760
        %v2765 = vmul.f32 %v2723, %v2761
        %v2766 = vmul.f32 %v2725, %v2762
        %v2767 = vmul.f32 %v2727, %v2763
        %v2768 = vsel %vm2189, %v2753, 0.0
        %2769 = vadd.xlane.f32.xlu0 %v2768
        %v2770 = vpop.xlane.xlu0 %2769
        %v2771 = vsel %vm2189, %v2755, 0.0
        %2772 = vadd.xlane.f32.xlu0 %v2771
        %v2773 = vpop.xlane.xlu0 %2772
        %v2774 = vsel %vm2189, %v2757, 0.0
        %2775 = vadd.xlane.f32.xlu0 %v2774
        %v2776 = vpop.xlane.xlu0 %2775
        %v2777 = vsel %vm2189, %v2759, 0.0
        %2778 = vadd.xlane.f32.xlu0 %v2777
        %v2779 = vpop.xlane.xlu0 %2778
        %v2780 = vadd.f32 %v2764, %v2770
        %v2781 = vadd.f32 %v2765, %v2773
        %v2782 = vadd.f32 %v2766, %v2776
        %v2783 = vadd.f32 %v2767, %v2779
        %vm2784 = vcmask 23568
        %2785 = vst.msk [vmem:[#allocation4] sm:$0xff] %vm2784, %v2780
        %2786 = vst.msk [vmem:[#allocation4 + $0x8] sm:$0xff] %vm2784, %v2781
        %2787 = vst.msk [vmem:[#allocation4 + $0x10] sm:$0xff] %vm2784, %v2782
        %2788 = vst.msk [vmem:[#allocation4 + $0x18] sm:$0xff] %vm2784, %v2783
        %v2789 = vld [vmem:[#allocation5 + $0x10] sm:$0xff]
        %v2790 = vld [vmem:[#allocation5 + $0x50] sm:$0xff]
        %v2791 = vld [vmem:[#allocation5 + $0x90] sm:$0xff]
        %v2792 = vld [vmem:[#allocation5 + $0xd0] sm:$0xff]
        %2794 = vset.pattern.permute.xlu0 2
        %2795 = vperm.xlu0 %2794, %v2721
        %v2796 = vpop.permute.xlu0 %2795
        %2799 = vset.pattern.permute.xlu0 2
        %2800 = vperm.xlu0 %2799, %v2723
        %v2801 = vpop.permute.xlu0 %2800
        %2804 = vset.pattern.permute.xlu0 2
        %2805 = vperm.xlu0 %2804, %v2725
        %v2806 = vpop.permute.xlu0 %2805
        %2809 = vset.pattern.permute.xlu0 2
        %2810 = vperm.xlu0 %2809, %v2727
        %v2811 = vpop.permute.xlu0 %2810
        %v2813 = vmul.f32 %v2796, %v2789
        %v2814 = vmul.f32 %v2801, %v2790
        %v2815 = vmul.f32 %v2806, %v2791
        %v2816 = vmul.f32 %v2811, %v2792
        %v2817 = vpack.c.bf16 %v2755, %v2753
        %v2818 = vpack.c.bf16 %v2759, %v2757
        %v2820 = vsel %vm2189, %v2817, 0
        %v2823 = vsel %vm2189, %v2818, 0
        %2825 = vmatprep.subr.bf16.mxu0 0
        %2826 = vmatpush1.bf16.msra.mxu0 0
        %2827 = vmatprep.subr.bf16.mxu0 0
        %2828 = vmatpush1.bf16.msra.mxu0 0
        %2829 = vmatprep.subr.bf16.mxu0 0
        %2830 = vmatpush1.bf16.msra.mxu0 0
        %2831 = vmatprep.subr.bf16.mxu0 0
        %2832 = vmatpush1.bf16.msra.mxu0 0
        %2833 = vmatprep.subr.bf16.mxu0 0
        %2834 = vmatpush1.bf16.msra.mxu0 0
        %2835 = vmatprep.subr.bf16.mxu0 0
        %2836 = vmatpush1.bf16.msra.mxu0 0
        %2837 = vmatprep.subr.bf16.mxu0 0
        %2838 = vmatpush1.bf16.msra.mxu0 0
        %2839 = vmatprep.subr.bf16.mxu0 0
        %2840 = vmatpush1.bf16.msra.mxu0 %v2114
        %2841 = vmatprep.subr.bf16.mxu0 0
        %2842 = vmatpush2.bf16.msra.mxu0 0
        %2843 = vmatprep.subr.bf16.mxu0 0
        %2844 = vmatpush2.bf16.msra.mxu0 0
        %2845 = vmatprep.subr.bf16.mxu0 0
        %2846 = vmatpush2.bf16.msra.mxu0 0
        %2847 = vmatprep.subr.bf16.mxu0 0
        %2848 = vmatpush2.bf16.msra.mxu0 0
        %2849 = vmatprep.subr.bf16.mxu0 0
        %2850 = vmatpush2.bf16.msra.mxu0 0
        %2851 = vmatprep.subr.bf16.mxu0 0
        %2852 = vmatpush2.bf16.msra.mxu0 0
        %2853 = vmatprep.subr.bf16.mxu0 0
        %2854 = vmatpush2.bf16.msra.mxu0 0
        %2855 = vmatprep.subr.bf16.mxu0 0
        %2856 = vmatpush2.bf16.msra.mxu0 0
        %2857 = vmatprep.mubr.bf16.mxu0 0
        %2858 = vmatmul.mubr.bf16.gmra.mxu0 %v2820
        %v2859 = vpop.f32.mrf.mxu0
        %v2860 = vadd.f32 0.0, %v2859
        %v2861 = vpop.f32.mrf.mxu0
        %v2862 = vpop.f32.mrf.mxu0
        %v2863 = vadd.f32 0.0, %v2862
        %v2864 = vpop.f32.mrf.mxu0
        %2865 = vmatprep.mubr.bf16.mxu0 0
        %2866 = vmatmul.mubr.bf16.gmra.mxu0 %v2823
        %v2867 = vpop.f32.mrf.mxu0
        %v2868 = vadd.f32 0.0, %v2867
        %v2869 = vpop.f32.mrf.mxu0
        %v2870 = vpop.f32.mrf.mxu0
        %v2871 = vadd.f32 0.0, %v2870
        %v2872 = vpop.f32.mrf.mxu0
        %2873 = vdwg.mxu0
        %v2874 = vadd.f32 %v2813, %v2860
        %v2875 = vadd.f32 %v2814, %v2863
        %v2876 = vadd.f32 %v2815, %v2868
        %v2877 = vadd.f32 %v2816, %v2871
        %2878 = vst [vmem:[#allocation5 + $0x10] sm:$0xff] %v2874
        %2879 = vst [vmem:[#allocation5 + $0x50] sm:$0xff] %v2875
        %2880 = vst [vmem:[#allocation5 + $0x90] sm:$0xff] %v2876
        %2881 = vst [vmem:[#allocation5 + $0xd0] sm:$0xff] %v2877
        %2882 = vst.msk [vmem:[#allocation3] sm:$0xff] %vm2784, %v2712
        %2883 = vst.msk [vmem:[#allocation3 + $0x8] sm:$0xff] %vm2784, %v2713
        %2884 = vst.msk [vmem:[#allocation3 + $0x10] sm:$0xff] %vm2784, %v2714
        %2885 = vst.msk [vmem:[#allocation3 + $0x18] sm:$0xff] %vm2784, %v2715
        %v2886 = vld [vmem:[#allocation2 + $0xc] sm:$0xf]
        %v2887 = vld [vmem:[#allocation2 + $0x2c] sm:$0xf]
        %v2888 = vld [vmem:[#allocation2 + $0x4c] sm:$0xf]
        %v2889 = vld [vmem:[#allocation2 + $0x6c] sm:$0xf]
        %v2894 = vunpack.c.l.b16 %v2886
        %v2895 = vunpack.c.l.b16 %v2887
        %v2896 = vunpack.c.l.b16 %v2888
        %v2897 = vunpack.c.l.b16 %v2889
        %v2898 = vpack.c.b16 %v2895, %v2894
        %v2899 = vpack.c.b16 %v2897, %v2896
        %2902 = vmatprep.subr.bf16.mxu0 0
        %2903 = vmatpush1.bf16.xpose.msra.mxu0 0
        %2904 = vmatprep.subr.bf16.mxu0 0
        %2905 = vmatpush1.bf16.xpose.msra.mxu0 0
        %2906 = vmatprep.subr.bf16.mxu0 0
        %2907 = vmatpush1.bf16.xpose.msra.mxu0 0
        %2908 = vmatprep.subr.bf16.mxu0 0
        %2909 = vmatpush1.bf16.xpose.msra.mxu0 0
        %2910 = vmatprep.subr.bf16.mxu0 0
        %2911 = vmatpush1.bf16.xpose.msra.mxu0 0
        %2912 = vmatprep.subr.bf16.mxu0 0
        %2913 = vmatpush1.bf16.xpose.msra.mxu0 0
        %2914 = vmatprep.subr.bf16.mxu0 0
        %2915 = vmatpush1.bf16.xpose.msra.mxu0 0
        %2916 = vmatprep.subr.bf16.mxu0 0
        %2917 = vmatpush1.bf16.xpose.msra.mxu0 %v2107
        %2918 = vmatprep.subr.bf16.mxu0 0
        %2919 = vmatpush2.bf16.xpose.msra.mxu0 0
        %2920 = vmatprep.subr.bf16.mxu0 0
        %2921 = vmatpush2.bf16.xpose.msra.mxu0 0
        %2922 = vmatprep.subr.bf16.mxu0 0
        %2923 = vmatpush2.bf16.xpose.msra.mxu0 0
        %2924 = vmatprep.subr.bf16.mxu0 0
        %2925 = vmatpush2.bf16.xpose.msra.mxu0 0
        %2926 = vmatprep.subr.bf16.mxu0 0
        %2927 = vmatpush2.bf16.xpose.msra.mxu0 0
        %2928 = vmatprep.subr.bf16.mxu0 0
        %2929 = vmatpush2.bf16.xpose.msra.mxu0 0
        %2930 = vmatprep.subr.bf16.mxu0 0
        %2931 = vmatpush2.bf16.xpose.msra.mxu0 0
        %2932 = vmatprep.subr.bf16.mxu0 0
        %2933 = vmatpush2.bf16.xpose.msra.mxu0 0
        %2934 = vmatprep.mubr.bf16.mxu0 0
        %2935 = vmatmul.mubr.bf16.gmra.mxu0 %v2898
        %v2936 = vpop.f32.mrf.mxu0
        %v2937 = vadd.f32 %v1470, %v2936
        %v2938 = vpop.f32.mrf.mxu0
        %v2939 = vpop.f32.mrf.mxu0
        %v2940 = vadd.f32 %v1471, %v2939
        %v2941 = vpop.f32.mrf.mxu0
        %2942 = vmatprep.mubr.bf16.mxu0 0
        %2943 = vmatmul.mubr.bf16.gmra.mxu0 %v2899
        %v2944 = vpop.f32.mrf.mxu0
        %v2945 = vadd.f32 %v1472, %v2944
        %v2946 = vpop.f32.mrf.mxu0
        %v2947 = vpop.f32.mrf.mxu0
        %v2948 = vadd.f32 %v1473, %v2947
        %v2949 = vpop.f32.mrf.mxu0
        %2950 = vdwg.mxu0
        %v2951 = vld [vmem:[#allocation3] sm:$0xff]
        %v2952 = vld [vmem:[#allocation3 + $0x8] sm:$0xff]
        %v2953 = vld [vmem:[#allocation3 + $0x10] sm:$0xff]
        %v2954 = vld [vmem:[#allocation3 + $0x18] sm:$0xff]
        %v2955 = vsel %vm2189, %v2937, -inf
        %2956 = vmax.xlane.f32.xlu0 %v2955
        %v2957 = vpop.xlane.xlu0 %2956
        %v2958 = vsel %vm2189, %v2940, -inf
        %2959 = vmax.xlane.f32.xlu0 %v2958
        %v2960 = vpop.xlane.xlu0 %2959
        %v2961 = vsel %vm2189, %v2945, -inf
        %2962 = vmax.xlane.f32.xlu0 %v2961
        %v2963 = vpop.xlane.xlu0 %2962
        %v2964 = vsel %vm2189, %v2948, -inf
        %2965 = vmax.xlane.f32.xlu0 %v2964
        %v2966 = vpop.xlane.xlu0 %2965
        %v2967 = vmax.f32 %v2951, %v2957
        %v2968 = vmax.f32 %v2952, %v2960
        %v2969 = vmax.f32 %v2953, %v2963
        %v2970 = vmax.f32 %v2954, %v2966
        %v2971 = vsub.f32 %v2951, %v2967
        %v2972 = vsub.f32 %v2952, %v2968
        %v2973 = vsub.f32 %v2953, %v2969
        %v2974 = vsub.f32 %v2954, %v2970
        %v2975 = vmul.f32 %v2971, 1.442695
        %v2976 = vpow.pop %v2975
        %v2977 = vmul.f32 %v2972, 1.442695
        %v2978 = vpow.pop %v2977
        %v2979 = vmul.f32 %v2973, 1.442695
        %v2980 = vpow.pop %v2979
        %v2981 = vmul.f32 %v2974, 1.442695
        %v2982 = vpow.pop %v2981
        %2984 = vset.pattern.permute.xlu0 3
        %2985 = vperm.xlu0 %2984, %v2967
        %v2986 = vpop.permute.xlu0 %2985
        %2989 = vset.pattern.permute.xlu0 3
        %2990 = vperm.xlu0 %2989, %v2968
        %v2991 = vpop.permute.xlu0 %2990
        %2994 = vset.pattern.permute.xlu0 3
        %2995 = vperm.xlu0 %2994, %v2969
        %v2996 = vpop.permute.xlu0 %2995
        %2999 = vset.pattern.permute.xlu0 3
        %3000 = vperm.xlu0 %2999, %v2970
        %v3001 = vpop.permute.xlu0 %3000
        %v3003 = vsub.f32 %v2937, %v2986
        %v3004 = vsub.f32 %v2940, %v2991
        %v3005 = vsub.f32 %v2945, %v2996
        %v3006 = vsub.f32 %v2948, %v3001
        %v3007 = vmul.f32 %v3003, 1.442695
        %v3008 = vpow.pop %v3007
        %v3009 = vmul.f32 %v3004, 1.442695
        %v3010 = vpow.pop %v3009
        %v3011 = vmul.f32 %v3005, 1.442695
        %v3012 = vpow.pop %v3011
        %v3013 = vmul.f32 %v3006, 1.442695
        %v3014 = vpow.pop %v3013
        %v3015 = vld [vmem:[#allocation4] sm:$0xff]
        %v3016 = vld [vmem:[#allocation4 + $0x8] sm:$0xff]
        %v3017 = vld [vmem:[#allocation4 + $0x10] sm:$0xff]
        %v3018 = vld [vmem:[#allocation4 + $0x18] sm:$0xff]
        %v3019 = vmul.f32 %v2976, %v3015
        %v3020 = vmul.f32 %v2978, %v3016
        %v3021 = vmul.f32 %v2980, %v3017
        %v3022 = vmul.f32 %v2982, %v3018
        %v3023 = vsel %vm2189, %v3008, 0.0
        %3024 = vadd.xlane.f32.xlu0 %v3023
        %v3025 = vpop.xlane.xlu0 %3024
        %v3026 = vsel %vm2189, %v3010, 0.0
        %3027 = vadd.xlane.f32.xlu0 %v3026
        %v3028 = vpop.xlane.xlu0 %3027
        %v3029 = vsel %vm2189, %v3012, 0.0
        %3030 = vadd.xlane.f32.xlu0 %v3029
        %v3031 = vpop.xlane.xlu0 %3030
        %v3032 = vsel %vm2189, %v3014, 0.0
        %3033 = vadd.xlane.f32.xlu0 %v3032
        %v3034 = vpop.xlane.xlu0 %3033
        %v3035 = vadd.f32 %v3019, %v3025
        %v3036 = vadd.f32 %v3020, %v3028
        %v3037 = vadd.f32 %v3021, %v3031
        %v3038 = vadd.f32 %v3022, %v3034
        %vm3039 = vcmask 31768
        %3040 = vst.msk [vmem:[#allocation4] sm:$0xff] %vm3039, %v3035
        %3041 = vst.msk [vmem:[#allocation4 + $0x8] sm:$0xff] %vm3039, %v3036
        %3042 = vst.msk [vmem:[#allocation4 + $0x10] sm:$0xff] %vm3039, %v3037
        %3043 = vst.msk [vmem:[#allocation4 + $0x18] sm:$0xff] %vm3039, %v3038
        %v3044 = vld [vmem:[#allocation5 + $0x18] sm:$0xff]
        %v3045 = vld [vmem:[#allocation5 + $0x58] sm:$0xff]
        %v3046 = vld [vmem:[#allocation5 + $0x98] sm:$0xff]
        %v3047 = vld [vmem:[#allocation5 + $0xd8] sm:$0xff]
        %3049 = vset.pattern.permute.xlu0 3
        %3050 = vperm.xlu0 %3049, %v2976
        %v3051 = vpop.permute.xlu0 %3050
        %3054 = vset.pattern.permute.xlu0 3
        %3055 = vperm.xlu0 %3054, %v2978
        %v3056 = vpop.permute.xlu0 %3055
        %3059 = vset.pattern.permute.xlu0 3
        %3060 = vperm.xlu0 %3059, %v2980
        %v3061 = vpop.permute.xlu0 %3060
        %3064 = vset.pattern.permute.xlu0 3
        %3065 = vperm.xlu0 %3064, %v2982
        %v3066 = vpop.permute.xlu0 %3065
        %v3068 = vmul.f32 %v3051, %v3044
        %v3069 = vmul.f32 %v3056, %v3045
        %v3070 = vmul.f32 %v3061, %v3046
        %v3071 = vmul.f32 %v3066, %v3047
        %v3072 = vpack.c.bf16 %v3010, %v3008
        %v3073 = vpack.c.bf16 %v3014, %v3012
        %v3075 = vsel %vm2189, %v3072, 0
        %v3078 = vsel %vm2189, %v3073, 0
        %3080 = vmatprep.subr.bf16.mxu0 0
        %3081 = vmatpush1.bf16.msra.mxu0 0
        %3082 = vmatprep.subr.bf16.mxu0 0
        %3083 = vmatpush1.bf16.msra.mxu0 0
        %3084 = vmatprep.subr.bf16.mxu0 0
        %3085 = vmatpush1.bf16.msra.mxu0 0
        %3086 = vmatprep.subr.bf16.mxu0 0
        %3087 = vmatpush1.bf16.msra.mxu0 0
        %3088 = vmatprep.subr.bf16.mxu0 0
        %3089 = vmatpush1.bf16.msra.mxu0 0
        %3090 = vmatprep.subr.bf16.mxu0 0
        %3091 = vmatpush1.bf16.msra.mxu0 0
        %3092 = vmatprep.subr.bf16.mxu0 0
        %3093 = vmatpush1.bf16.msra.mxu0 0
        %3094 = vmatprep.subr.bf16.mxu0 0
        %3095 = vmatpush1.bf16.msra.mxu0 %v2115
        %3096 = vmatprep.subr.bf16.mxu0 0
        %3097 = vmatpush2.bf16.msra.mxu0 0
        %3098 = vmatprep.subr.bf16.mxu0 0
        %3099 = vmatpush2.bf16.msra.mxu0 0
        %3100 = vmatprep.subr.bf16.mxu0 0
        %3101 = vmatpush2.bf16.msra.mxu0 0
        %3102 = vmatprep.subr.bf16.mxu0 0
        %3103 = vmatpush2.bf16.msra.mxu0 0
        %3104 = vmatprep.subr.bf16.mxu0 0
        %3105 = vmatpush2.bf16.msra.mxu0 0
        %3106 = vmatprep.subr.bf16.mxu0 0
        %3107 = vmatpush2.bf16.msra.mxu0 0
        %3108 = vmatprep.subr.bf16.mxu0 0
        %3109 = vmatpush2.bf16.msra.mxu0 0
        %3110 = vmatprep.subr.bf16.mxu0 0
        %3111 = vmatpush2.bf16.msra.mxu0 0
        %3112 = vmatprep.mubr.bf16.mxu0 0
        %3113 = vmatmul.mubr.bf16.gmra.mxu0 %v3075
        %v3114 = vpop.f32.mrf.mxu0
        %v3115 = vadd.f32 0.0, %v3114
        %v3116 = vpop.f32.mrf.mxu0
        %v3117 = vpop.f32.mrf.mxu0
        %v3118 = vadd.f32 0.0, %v3117
        %v3119 = vpop.f32.mrf.mxu0
        %3120 = vmatprep.mubr.bf16.mxu0 0
        %3121 = vmatmul.mubr.bf16.gmra.mxu0 %v3078
        %v3122 = vpop.f32.mrf.mxu0
        %v3123 = vadd.f32 0.0, %v3122
        %v3124 = vpop.f32.mrf.mxu0
        %v3125 = vpop.f32.mrf.mxu0
        %v3126 = vadd.f32 0.0, %v3125
        %v3127 = vpop.f32.mrf.mxu0
        %3128 = vdwg.mxu0
        %v3129 = vadd.f32 %v3068, %v3115
        %v3130 = vadd.f32 %v3069, %v3118
        %v3131 = vadd.f32 %v3070, %v3123
        %v3132 = vadd.f32 %v3071, %v3126
        %3133 = vst [vmem:[#allocation5 + $0x18] sm:$0xff] %v3129
        %3134 = vst [vmem:[#allocation5 + $0x58] sm:$0xff] %v3130
        %3135 = vst [vmem:[#allocation5 + $0x98] sm:$0xff] %v3131
        %3136 = vst [vmem:[#allocation5 + $0xd8] sm:$0xff] %v3132
        %3137 = vst.msk [vmem:[#allocation3] sm:$0xff] %vm3039, %v2967
        %3138 = vst.msk [vmem:[#allocation3 + $0x8] sm:$0xff] %vm3039, %v2968
        %3139 = vst.msk [vmem:[#allocation3 + $0x10] sm:$0xff] %vm3039, %v2969
        %3140 = vst.msk [vmem:[#allocation3 + $0x18] sm:$0xff] %vm3039, %v2970
        %v3141 = vld [vmem:[#allocation2 + $0x10] sm:$0xf]
        %v3142 = vld [vmem:[#allocation2 + $0x30] sm:$0xf]
        %v3143 = vld [vmem:[#allocation2 + $0x50] sm:$0xf]
        %v3144 = vld [vmem:[#allocation2 + $0x70] sm:$0xf]
        %v3149 = vunpack.c.l.b16 %v3141
        %v3150 = vunpack.c.l.b16 %v3142
        %v3151 = vunpack.c.l.b16 %v3143
        %v3152 = vunpack.c.l.b16 %v3144
        %v3153 = vpack.c.b16 %v3150, %v3149
        %v3154 = vpack.c.b16 %v3152, %v3151
        %3157 = vmatprep.subr.bf16.mxu0 0
        %3158 = vmatpush1.bf16.xpose.msra.mxu0 0
        %3159 = vmatprep.subr.bf16.mxu0 0
        %3160 = vmatpush1.bf16.xpose.msra.mxu0 0
        %3161 = vmatprep.subr.bf16.mxu0 0
        %3162 = vmatpush1.bf16.xpose.msra.mxu0 0
        %3163 = vmatprep.subr.bf16.mxu0 0
        %3164 = vmatpush1.bf16.xpose.msra.mxu0 0
        %3165 = vmatprep.subr.bf16.mxu0 0
        %3166 = vmatpush1.bf16.xpose.msra.mxu0 0
        %3167 = vmatprep.subr.bf16.mxu0 0
        %3168 = vmatpush1.bf16.xpose.msra.mxu0 0
        %3169 = vmatprep.subr.bf16.mxu0 0
        %3170 = vmatpush1.bf16.xpose.msra.mxu0 0
        %3171 = vmatprep.subr.bf16.mxu0 0
        %3172 = vmatpush1.bf16.xpose.msra.mxu0 %v2108
        %3173 = vmatprep.subr.bf16.mxu0 0
        %3174 = vmatpush2.bf16.xpose.msra.mxu0 0
        %3175 = vmatprep.subr.bf16.mxu0 0
        %3176 = vmatpush2.bf16.xpose.msra.mxu0 0
        %3177 = vmatprep.subr.bf16.mxu0 0
        %3178 = vmatpush2.bf16.xpose.msra.mxu0 0
        %3179 = vmatprep.subr.bf16.mxu0 0
        %3180 = vmatpush2.bf16.xpose.msra.mxu0 0
        %3181 = vmatprep.subr.bf16.mxu0 0
        %3182 = vmatpush2.bf16.xpose.msra.mxu0 0
        %3183 = vmatprep.subr.bf16.mxu0 0
        %3184 = vmatpush2.bf16.xpose.msra.mxu0 0
        %3185 = vmatprep.subr.bf16.mxu0 0
        %3186 = vmatpush2.bf16.xpose.msra.mxu0 0
        %3187 = vmatprep.subr.bf16.mxu0 0
        %3188 = vmatpush2.bf16.xpose.msra.mxu0 0
        %3189 = vmatprep.mubr.bf16.mxu0 0
        %3190 = vmatmul.mubr.bf16.gmra.mxu0 %v3153
        %v3191 = vpop.f32.mrf.mxu0
        %v3192 = vadd.f32 %v1470, %v3191
        %v3193 = vpop.f32.mrf.mxu0
        %v3194 = vpop.f32.mrf.mxu0
        %v3195 = vadd.f32 %v1471, %v3194
        %v3196 = vpop.f32.mrf.mxu0
        %3197 = vmatprep.mubr.bf16.mxu0 0
        %3198 = vmatmul.mubr.bf16.gmra.mxu0 %v3154
        %v3199 = vpop.f32.mrf.mxu0
        %v3200 = vadd.f32 %v1472, %v3199
        %v3201 = vpop.f32.mrf.mxu0
        %v3202 = vpop.f32.mrf.mxu0
        %v3203 = vadd.f32 %v1473, %v3202
        %v3204 = vpop.f32.mrf.mxu0
        %3205 = vdwg.mxu0
        %v3206 = vld [vmem:[#allocation3] sm:$0xff]
        %v3207 = vld [vmem:[#allocation3 + $0x8] sm:$0xff]
        %v3208 = vld [vmem:[#allocation3 + $0x10] sm:$0xff]
        %v3209 = vld [vmem:[#allocation3 + $0x18] sm:$0xff]
        %v3210 = vsel %vm2189, %v3192, -inf
        %3211 = vmax.xlane.f32.xlu0 %v3210
        %v3212 = vpop.xlane.xlu0 %3211
        %v3213 = vsel %vm2189, %v3195, -inf
        %3214 = vmax.xlane.f32.xlu0 %v3213
        %v3215 = vpop.xlane.xlu0 %3214
        %v3216 = vsel %vm2189, %v3200, -inf
        %3217 = vmax.xlane.f32.xlu0 %v3216
        %v3218 = vpop.xlane.xlu0 %3217
        %v3219 = vsel %vm2189, %v3203, -inf
        %3220 = vmax.xlane.f32.xlu0 %v3219
        %v3221 = vpop.xlane.xlu0 %3220
        %v3222 = vmax.f32 %v3206, %v3212
        %v3223 = vmax.f32 %v3207, %v3215
        %v3224 = vmax.f32 %v3208, %v3218
        %v3225 = vmax.f32 %v3209, %v3221
        %v3226 = vsub.f32 %v3206, %v3222
        %v3227 = vsub.f32 %v3207, %v3223
        %v3228 = vsub.f32 %v3208, %v3224
        %v3229 = vsub.f32 %v3209, %v3225
        %v3230 = vmul.f32 %v3226, 1.442695
        %v3231 = vpow.pop %v3230
        %v3232 = vmul.f32 %v3227, 1.442695
        %v3233 = vpow.pop %v3232
        %v3234 = vmul.f32 %v3228, 1.442695
        %v3235 = vpow.pop %v3234
        %v3236 = vmul.f32 %v3229, 1.442695
        %v3237 = vpow.pop %v3236
        %3239 = vset.pattern.permute.xlu0 4
        %3240 = vperm.xlu0 %3239, %v3222
        %v3241 = vpop.permute.xlu0 %3240
        %3244 = vset.pattern.permute.xlu0 4
        %3245 = vperm.xlu0 %3244, %v3223
        %v3246 = vpop.permute.xlu0 %3245
        %3249 = vset.pattern.permute.xlu0 4
        %3250 = vperm.xlu0 %3249, %v3224
        %v3251 = vpop.permute.xlu0 %3250
        %3254 = vset.pattern.permute.xlu0 4
        %3255 = vperm.xlu0 %3254, %v3225
        %v3256 = vpop.permute.xlu0 %3255
        %v3258 = vsub.f32 %v3192, %v3241
        %v3259 = vsub.f32 %v3195, %v3246
        %v3260 = vsub.f32 %v3200, %v3251
        %v3261 = vsub.f32 %v3203, %v3256
        %v3262 = vmul.f32 %v3258, 1.442695
        %v3263 = vpow.pop %v3262
        %v3264 = vmul.f32 %v3259, 1.442695
        %v3265 = vpow.pop %v3264
        %v3266 = vmul.f32 %v3260, 1.442695
        %v3267 = vpow.pop %v3266
        %v3268 = vmul.f32 %v3261, 1.442695
        %v3269 = vpow.pop %v3268
        %v3270 = vld [vmem:[#allocation4] sm:$0xff]
        %v3271 = vld [vmem:[#allocation4 + $0x8] sm:$0xff]
        %v3272 = vld [vmem:[#allocation4 + $0x10] sm:$0xff]
        %v3273 = vld [vmem:[#allocation4 + $0x18] sm:$0xff]
        %v3274 = vmul.f32 %v3231, %v3270
        %v3275 = vmul.f32 %v3233, %v3271
        %v3276 = vmul.f32 %v3235, %v3272
        %v3277 = vmul.f32 %v3237, %v3273
        %v3278 = vsel %vm2189, %v3263, 0.0
        %3279 = vadd.xlane.f32.xlu0 %v3278
        %v3280 = vpop.xlane.xlu0 %3279
        %v3281 = vsel %vm2189, %v3265, 0.0
        %3282 = vadd.xlane.f32.xlu0 %v3281
        %v3283 = vpop.xlane.xlu0 %3282
        %v3284 = vsel %vm2189, %v3267, 0.0
        %3285 = vadd.xlane.f32.xlu0 %v3284
        %v3286 = vpop.xlane.xlu0 %3285
        %v3287 = vsel %vm2189, %v3269, 0.0
        %3288 = vadd.xlane.f32.xlu0 %v3287
        %v3289 = vpop.xlane.xlu0 %3288
        %v3290 = vadd.f32 %v3274, %v3280
        %v3291 = vadd.f32 %v3275, %v3283
        %v3292 = vadd.f32 %v3276, %v3286
        %v3293 = vadd.f32 %v3277, %v3289
        %vm3294 = vcmask 39968
        %3295 = vst.msk [vmem:[#allocation4] sm:$0xff] %vm3294, %v3290
        %3296 = vst.msk [vmem:[#allocation4 + $0x8] sm:$0xff] %vm3294, %v3291
        %3297 = vst.msk [vmem:[#allocation4 + $0x10] sm:$0xff] %vm3294, %v3292
        %3298 = vst.msk [vmem:[#allocation4 + $0x18] sm:$0xff] %vm3294, %v3293
        %v3299 = vld [vmem:[#allocation5 + $0x20] sm:$0xff]
        %v3300 = vld [vmem:[#allocation5 + $0x60] sm:$0xff]
        %v3301 = vld [vmem:[#allocation5 + $0xa0] sm:$0xff]
        %v3302 = vld [vmem:[#allocation5 + $0xe0] sm:$0xff]
        %3304 = vset.pattern.permute.xlu0 4
        %3305 = vperm.xlu0 %3304, %v3231
        %v3306 = vpop.permute.xlu0 %3305
        %3309 = vset.pattern.permute.xlu0 4
        %3310 = vperm.xlu0 %3309, %v3233
        %v3311 = vpop.permute.xlu0 %3310
        %3314 = vset.pattern.permute.xlu0 4
        %3315 = vperm.xlu0 %3314, %v3235
        %v3316 = vpop.permute.xlu0 %3315
        %3319 = vset.pattern.permute.xlu0 4
        %3320 = vperm.xlu0 %3319, %v3237
        %v3321 = vpop.permute.xlu0 %3320
        %v3323 = vmul.f32 %v3306, %v3299
        %v3324 = vmul.f32 %v3311, %v3300
        %v3325 = vmul.f32 %v3316, %v3301
        %v3326 = vmul.f32 %v3321, %v3302
        %v3327 = vpack.c.bf16 %v3265, %v3263
        %v3328 = vpack.c.bf16 %v3269, %v3267
        %v3330 = vsel %vm2189, %v3327, 0
        %v3333 = vsel %vm2189, %v3328, 0
        %3335 = vmatprep.subr.bf16.mxu0 0
        %3336 = vmatpush1.bf16.msra.mxu0 0
        %3337 = vmatprep.subr.bf16.mxu0 0
        %3338 = vmatpush1.bf16.msra.mxu0 0
        %3339 = vmatprep.subr.bf16.mxu0 0
        %3340 = vmatpush1.bf16.msra.mxu0 0
        %3341 = vmatprep.subr.bf16.mxu0 0
        %3342 = vmatpush1.bf16.msra.mxu0 0
        %3343 = vmatprep.subr.bf16.mxu0 0
        %3344 = vmatpush1.bf16.msra.mxu0 0
        %3345 = vmatprep.subr.bf16.mxu0 0
        %3346 = vmatpush1.bf16.msra.mxu0 0
        %3347 = vmatprep.subr.bf16.mxu0 0
        %3348 = vmatpush1.bf16.msra.mxu0 0
        %3349 = vmatprep.subr.bf16.mxu0 0
        %3350 = vmatpush1.bf16.msra.mxu0 %v2116
        %3351 = vmatprep.subr.bf16.mxu0 0
        %3352 = vmatpush2.bf16.msra.mxu0 0
        %3353 = vmatprep.subr.bf16.mxu0 0
        %3354 = vmatpush2.bf16.msra.mxu0 0
        %3355 = vmatprep.subr.bf16.mxu0 0
        %3356 = vmatpush2.bf16.msra.mxu0 0
        %3357 = vmatprep.subr.bf16.mxu0 0
        %3358 = vmatpush2.bf16.msra.mxu0 0
        %3359 = vmatprep.subr.bf16.mxu0 0
        %3360 = vmatpush2.bf16.msra.mxu0 0
        %3361 = vmatprep.subr.bf16.mxu0 0
        %3362 = vmatpush2.bf16.msra.mxu0 0
        %3363 = vmatprep.subr.bf16.mxu0 0
        %3364 = vmatpush2.bf16.msra.mxu0 0
        %3365 = vmatprep.subr.bf16.mxu0 0
        %3366 = vmatpush2.bf16.msra.mxu0 0
        %3367 = vmatprep.mubr.bf16.mxu0 0
        %3368 = vmatmul.mubr.bf16.gmra.mxu0 %v3330
        %v3369 = vpop.f32.mrf.mxu0
        %v3370 = vadd.f32 0.0, %v3369
        %v3371 = vpop.f32.mrf.mxu0
        %v3372 = vpop.f32.mrf.mxu0
        %v3373 = vadd.f32 0.0, %v3372
        %v3374 = vpop.f32.mrf.mxu0
        %3375 = vmatprep.mubr.bf16.mxu0 0
        %3376 = vmatmul.mubr.bf16.gmra.mxu0 %v3333
        %v3377 = vpop.f32.mrf.mxu0
        %v3378 = vadd.f32 0.0, %v3377
        %v3379 = vpop.f32.mrf.mxu0
        %v3380 = vpop.f32.mrf.mxu0
        %v3381 = vadd.f32 0.0, %v3380
        %v3382 = vpop.f32.mrf.mxu0
        %3383 = vdwg.mxu0
        %v3384 = vadd.f32 %v3323, %v3370
        %v3385 = vadd.f32 %v3324, %v3373
        %v3386 = vadd.f32 %v3325, %v3378
        %v3387 = vadd.f32 %v3326, %v3381
        %3388 = vst [vmem:[#allocation5 + $0x20] sm:$0xff] %v3384
        %3389 = vst [vmem:[#allocation5 + $0x60] sm:$0xff] %v3385
        %3390 = vst [vmem:[#allocation5 + $0xa0] sm:$0xff] %v3386
        %3391 = vst [vmem:[#allocation5 + $0xe0] sm:$0xff] %v3387
        %3392 = vst.msk [vmem:[#allocation3] sm:$0xff] %vm3294, %v3222
        %3393 = vst.msk [vmem:[#allocation3 + $0x8] sm:$0xff] %vm3294, %v3223
        %3394 = vst.msk [vmem:[#allocation3 + $0x10] sm:$0xff] %vm3294, %v3224
        %3395 = vst.msk [vmem:[#allocation3 + $0x18] sm:$0xff] %vm3294, %v3225
        %v3396 = vld [vmem:[#allocation2 + $0x14] sm:$0xf]
        %v3397 = vld [vmem:[#allocation2 + $0x34] sm:$0xf]
        %v3398 = vld [vmem:[#allocation2 + $0x54] sm:$0xf]
        %v3399 = vld [vmem:[#allocation2 + $0x74] sm:$0xf]
        %v3404 = vunpack.c.l.b16 %v3396
        %v3405 = vunpack.c.l.b16 %v3397
        %v3406 = vunpack.c.l.b16 %v3398
        %v3407 = vunpack.c.l.b16 %v3399
        %v3408 = vpack.c.b16 %v3405, %v3404
        %v3409 = vpack.c.b16 %v3407, %v3406
        %3412 = vmatprep.subr.bf16.mxu0 0
        %3413 = vmatpush1.bf16.xpose.msra.mxu0 0
        %3414 = vmatprep.subr.bf16.mxu0 0
        %3415 = vmatpush1.bf16.xpose.msra.mxu0 0
        %3416 = vmatprep.subr.bf16.mxu0 0
        %3417 = vmatpush1.bf16.xpose.msra.mxu0 0
        %3418 = vmatprep.subr.bf16.mxu0 0
        %3419 = vmatpush1.bf16.xpose.msra.mxu0 0
        %3420 = vmatprep.subr.bf16.mxu0 0
        %3421 = vmatpush1.bf16.xpose.msra.mxu0 0
        %3422 = vmatprep.subr.bf16.mxu0 0
        %3423 = vmatpush1.bf16.xpose.msra.mxu0 0
        %3424 = vmatprep.subr.bf16.mxu0 0
        %3425 = vmatpush1.bf16.xpose.msra.mxu0 0
        %3426 = vmatprep.subr.bf16.mxu0 0
        %3427 = vmatpush1.bf16.xpose.msra.mxu0 %v2109
        %3428 = vmatprep.subr.bf16.mxu0 0
        %3429 = vmatpush2.bf16.xpose.msra.mxu0 0
        %3430 = vmatprep.subr.bf16.mxu0 0
        %3431 = vmatpush2.bf16.xpose.msra.mxu0 0
        %3432 = vmatprep.subr.bf16.mxu0 0
        %3433 = vmatpush2.bf16.xpose.msra.mxu0 0
        %3434 = vmatprep.subr.bf16.mxu0 0
        %3435 = vmatpush2.bf16.xpose.msra.mxu0 0
        %3436 = vmatprep.subr.bf16.mxu0 0
        %3437 = vmatpush2.bf16.xpose.msra.mxu0 0
        %3438 = vmatprep.subr.bf16.mxu0 0
        %3439 = vmatpush2.bf16.xpose.msra.mxu0 0
        %3440 = vmatprep.subr.bf16.mxu0 0
        %3441 = vmatpush2.bf16.xpose.msra.mxu0 0
        %3442 = vmatprep.subr.bf16.mxu0 0
        %3443 = vmatpush2.bf16.xpose.msra.mxu0 0
        %3444 = vmatprep.mubr.bf16.mxu0 0
        %3445 = vmatmul.mubr.bf16.gmra.mxu0 %v3408
        %v3446 = vpop.f32.mrf.mxu0
        %v3447 = vadd.f32 %v1470, %v3446
        %v3448 = vpop.f32.mrf.mxu0
        %v3449 = vpop.f32.mrf.mxu0
        %v3450 = vadd.f32 %v1471, %v3449
        %v3451 = vpop.f32.mrf.mxu0
        %3452 = vmatprep.mubr.bf16.mxu0 0
        %3453 = vmatmul.mubr.bf16.gmra.mxu0 %v3409
        %v3454 = vpop.f32.mrf.mxu0
        %v3455 = vadd.f32 %v1472, %v3454
        %v3456 = vpop.f32.mrf.mxu0
        %v3457 = vpop.f32.mrf.mxu0
        %v3458 = vadd.f32 %v1473, %v3457
        %v3459 = vpop.f32.mrf.mxu0
        %3460 = vdwg.mxu0
        %v3461 = vld [vmem:[#allocation3] sm:$0xff]
        %v3462 = vld [vmem:[#allocation3 + $0x8] sm:$0xff]
        %v3463 = vld [vmem:[#allocation3 + $0x10] sm:$0xff]
        %v3464 = vld [vmem:[#allocation3 + $0x18] sm:$0xff]
        %v3465 = vsel %vm2189, %v3447, -inf
        %3466 = vmax.xlane.f32.xlu0 %v3465
        %v3467 = vpop.xlane.xlu0 %3466
        %v3468 = vsel %vm2189, %v3450, -inf
        %3469 = vmax.xlane.f32.xlu0 %v3468
        %v3470 = vpop.xlane.xlu0 %3469
        %v3471 = vsel %vm2189, %v3455, -inf
        %3472 = vmax.xlane.f32.xlu0 %v3471
        %v3473 = vpop.xlane.xlu0 %3472
        %v3474 = vsel %vm2189, %v3458, -inf
        %3475 = vmax.xlane.f32.xlu0 %v3474
        %v3476 = vpop.xlane.xlu0 %3475
        %v3477 = vmax.f32 %v3461, %v3467
        %v3478 = vmax.f32 %v3462, %v3470
        %v3479 = vmax.f32 %v3463, %v3473
        %v3480 = vmax.f32 %v3464, %v3476
        %v3481 = vsub.f32 %v3461, %v3477
        %v3482 = vsub.f32 %v3462, %v3478
        %v3483 = vsub.f32 %v3463, %v3479
        %v3484 = vsub.f32 %v3464, %v3480
        %v3485 = vmul.f32 %v3481, 1.442695
        %v3486 = vpow.pop %v3485
        %v3487 = vmul.f32 %v3482, 1.442695
        %v3488 = vpow.pop %v3487
        %v3489 = vmul.f32 %v3483, 1.442695
        %v3490 = vpow.pop %v3489
        %v3491 = vmul.f32 %v3484, 1.442695
        %v3492 = vpow.pop %v3491
        %3494 = vset.pattern.permute.xlu0 5
        %3495 = vperm.xlu0 %3494, %v3477
        %v3496 = vpop.permute.xlu0 %3495
        %3499 = vset.pattern.permute.xlu0 5
        %3500 = vperm.xlu0 %3499, %v3478
        %v3501 = vpop.permute.xlu0 %3500
        %3504 = vset.pattern.permute.xlu0 5
        %3505 = vperm.xlu0 %3504, %v3479
        %v3506 = vpop.permute.xlu0 %3505
        %3509 = vset.pattern.permute.xlu0 5
        %3510 = vperm.xlu0 %3509, %v3480
        %v3511 = vpop.permute.xlu0 %3510
        %v3513 = vsub.f32 %v3447, %v3496
        %v3514 = vsub.f32 %v3450, %v3501
        %v3515 = vsub.f32 %v3455, %v3506
        %v3516 = vsub.f32 %v3458, %v3511
        %v3517 = vmul.f32 %v3513, 1.442695
        %v3518 = vpow.pop %v3517
        %v3519 = vmul.f32 %v3514, 1.442695
        %v3520 = vpow.pop %v3519
        %v3521 = vmul.f32 %v3515, 1.442695
        %v3522 = vpow.pop %v3521
        %v3523 = vmul.f32 %v3516, 1.442695
        %v3524 = vpow.pop %v3523
        %v3525 = vld [vmem:[#allocation4] sm:$0xff]
        %v3526 = vld [vmem:[#allocation4 + $0x8] sm:$0xff]
        %v3527 = vld [vmem:[#allocation4 + $0x10] sm:$0xff]
        %v3528 = vld [vmem:[#allocation4 + $0x18] sm:$0xff]
        %v3529 = vmul.f32 %v3486, %v3525
        %v3530 = vmul.f32 %v3488, %v3526
        %v3531 = vmul.f32 %v3490, %v3527
        %v3532 = vmul.f32 %v3492, %v3528
        %v3533 = vsel %vm2189, %v3518, 0.0
        %3534 = vadd.xlane.f32.xlu0 %v3533
        %v3535 = vpop.xlane.xlu0 %3534
        %v3536 = vsel %vm2189, %v3520, 0.0
        %3537 = vadd.xlane.f32.xlu0 %v3536
        %v3538 = vpop.xlane.xlu0 %3537
        %v3539 = vsel %vm2189, %v3522, 0.0
        %3540 = vadd.xlane.f32.xlu0 %v3539
        %v3541 = vpop.xlane.xlu0 %3540
        %v3542 = vsel %vm2189, %v3524, 0.0
        %3543 = vadd.xlane.f32.xlu0 %v3542
        %v3544 = vpop.xlane.xlu0 %3543
        %v3545 = vadd.f32 %v3529, %v3535
        %v3546 = vadd.f32 %v3530, %v3538
        %v3547 = vadd.f32 %v3531, %v3541
        %v3548 = vadd.f32 %v3532, %v3544
        %vm3549 = vcmask 48168
        %3550 = vst.msk [vmem:[#allocation4] sm:$0xff] %vm3549, %v3545
        %3551 = vst.msk [vmem:[#allocation4 + $0x8] sm:$0xff] %vm3549, %v3546
        %3552 = vst.msk [vmem:[#allocation4 + $0x10] sm:$0xff] %vm3549, %v3547
        %3553 = vst.msk [vmem:[#allocation4 + $0x18] sm:$0xff] %vm3549, %v3548
        %v3554 = vld [vmem:[#allocation5 + $0x28] sm:$0xff]
        %v3555 = vld [vmem:[#allocation5 + $0x68] sm:$0xff]
        %v3556 = vld [vmem:[#allocation5 + $0xa8] sm:$0xff]
        %v3557 = vld [vmem:[#allocation5 + $0xe8] sm:$0xff]
        %3559 = vset.pattern.permute.xlu0 5
        %3560 = vperm.xlu0 %3559, %v3486
        %v3561 = vpop.permute.xlu0 %3560
        %3564 = vset.pattern.permute.xlu0 5
        %3565 = vperm.xlu0 %3564, %v3488
        %v3566 = vpop.permute.xlu0 %3565
        %3569 = vset.pattern.permute.xlu0 5
        %3570 = vperm.xlu0 %3569, %v3490
        %v3571 = vpop.permute.xlu0 %3570
        %3574 = vset.pattern.permute.xlu0 5
        %3575 = vperm.xlu0 %3574, %v3492
        %v3576 = vpop.permute.xlu0 %3575
        %v3578 = vmul.f32 %v3561, %v3554
        %v3579 = vmul.f32 %v3566, %v3555
        %v3580 = vmul.f32 %v3571, %v3556
        %v3581 = vmul.f32 %v3576, %v3557
        %v3582 = vpack.c.bf16 %v3520, %v3518
        %v3583 = vpack.c.bf16 %v3524, %v3522
        %v3585 = vsel %vm2189, %v3582, 0
        %v3588 = vsel %vm2189, %v3583, 0
        %3590 = vmatprep.subr.bf16.mxu0 0
        %3591 = vmatpush1.bf16.msra.mxu0 0
        %3592 = vmatprep.subr.bf16.mxu0 0
        %3593 = vmatpush1.bf16.msra.mxu0 0
        %3594 = vmatprep.subr.bf16.mxu0 0
        %3595 = vmatpush1.bf16.msra.mxu0 0
        %3596 = vmatprep.subr.bf16.mxu0 0
        %3597 = vmatpush1.bf16.msra.mxu0 0
        %3598 = vmatprep.subr.bf16.mxu0 0
        %3599 = vmatpush1.bf16.msra.mxu0 0
        %3600 = vmatprep.subr.bf16.mxu0 0
        %3601 = vmatpush1.bf16.msra.mxu0 0
        %3602 = vmatprep.subr.bf16.mxu0 0
        %3603 = vmatpush1.bf16.msra.mxu0 0
        %3604 = vmatprep.subr.bf16.mxu0 0
        %3605 = vmatpush1.bf16.msra.mxu0 %v2117
        %3606 = vmatprep.subr.bf16.mxu0 0
        %3607 = vmatpush2.bf16.msra.mxu0 0
        %3608 = vmatprep.subr.bf16.mxu0 0
        %3609 = vmatpush2.bf16.msra.mxu0 0
        %3610 = vmatprep.subr.bf16.mxu0 0
        %3611 = vmatpush2.bf16.msra.mxu0 0
        %3612 = vmatprep.subr.bf16.mxu0 0
        %3613 = vmatpush2.bf16.msra.mxu0 0
        %3614 = vmatprep.subr.bf16.mxu0 0
        %3615 = vmatpush2.bf16.msra.mxu0 0
        %3616 = vmatprep.subr.bf16.mxu0 0
        %3617 = vmatpush2.bf16.msra.mxu0 0
        %3618 = vmatprep.subr.bf16.mxu0 0
        %3619 = vmatpush2.bf16.msra.mxu0 0
        %3620 = vmatprep.subr.bf16.mxu0 0
        %3621 = vmatpush2.bf16.msra.mxu0 0
        %3622 = vmatprep.mubr.bf16.mxu0 0
        %3623 = vmatmul.mubr.bf16.gmra.mxu0 %v3585
        %v3624 = vpop.f32.mrf.mxu0
        %v3625 = vadd.f32 0.0, %v3624
        %v3626 = vpop.f32.mrf.mxu0
        %v3627 = vpop.f32.mrf.mxu0
        %v3628 = vadd.f32 0.0, %v3627
        %v3629 = vpop.f32.mrf.mxu0
        %3630 = vmatprep.mubr.bf16.mxu0 0
        %3631 = vmatmul.mubr.bf16.gmra.mxu0 %v3588
        %v3632 = vpop.f32.mrf.mxu0
        %v3633 = vadd.f32 0.0, %v3632
        %v3634 = vpop.f32.mrf.mxu0
        %v3635 = vpop.f32.mrf.mxu0
        %v3636 = vadd.f32 0.0, %v3635
        %v3637 = vpop.f32.mrf.mxu0
        %3638 = vdwg.mxu0
        %v3639 = vadd.f32 %v3578, %v3625
        %v3640 = vadd.f32 %v3579, %v3628
        %v3641 = vadd.f32 %v3580, %v3633
        %v3642 = vadd.f32 %v3581, %v3636
        %3643 = vst [vmem:[#allocation5 + $0x28] sm:$0xff] %v3639
        %3644 = vst [vmem:[#allocation5 + $0x68] sm:$0xff] %v3640
        %3645 = vst [vmem:[#allocation5 + $0xa8] sm:$0xff] %v3641
        %3646 = vst [vmem:[#allocation5 + $0xe8] sm:$0xff] %v3642
        %3647 = vst.msk [vmem:[#allocation3] sm:$0xff] %vm3549, %v3477
        %3648 = vst.msk [vmem:[#allocation3 + $0x8] sm:$0xff] %vm3549, %v3478
        %3649 = vst.msk [vmem:[#allocation3 + $0x10] sm:$0xff] %vm3549, %v3479
        %3650 = vst.msk [vmem:[#allocation3 + $0x18] sm:$0xff] %vm3549, %v3480
        %v3651 = vld [vmem:[#allocation2 + $0x18] sm:$0xf]
        %v3652 = vld [vmem:[#allocation2 + $0x38] sm:$0xf]
        %v3653 = vld [vmem:[#allocation2 + $0x58] sm:$0xf]
        %v3654 = vld [vmem:[#allocation2 + $0x78] sm:$0xf]
        %v3659 = vunpack.c.l.b16 %v3651
        %v3660 = vunpack.c.l.b16 %v3652
        %v3661 = vunpack.c.l.b16 %v3653
        %v3662 = vunpack.c.l.b16 %v3654
        %v3663 = vpack.c.b16 %v3660, %v3659
        %v3664 = vpack.c.b16 %v3662, %v3661
        %3667 = vmatprep.subr.bf16.mxu0 0
        %3668 = vmatpush1.bf16.xpose.msra.mxu0 0
        %3669 = vmatprep.subr.bf16.mxu0 0
        %3670 = vmatpush1.bf16.xpose.msra.mxu0 0
        %3671 = vmatprep.subr.bf16.mxu0 0
        %3672 = vmatpush1.bf16.xpose.msra.mxu0 0
        %3673 = vmatprep.subr.bf16.mxu0 0
        %3674 = vmatpush1.bf16.xpose.msra.mxu0 0
        %3675 = vmatprep.subr.bf16.mxu0 0
        %3676 = vmatpush1.bf16.xpose.msra.mxu0 0
        %3677 = vmatprep.subr.bf16.mxu0 0
        %3678 = vmatpush1.bf16.xpose.msra.mxu0 0
        %3679 = vmatprep.subr.bf16.mxu0 0
        %3680 = vmatpush1.bf16.xpose.msra.mxu0 0
        %3681 = vmatprep.subr.bf16.mxu0 0
        %3682 = vmatpush1.bf16.xpose.msra.mxu0 %v2110
        %3683 = vmatprep.subr.bf16.mxu0 0
        %3684 = vmatpush2.bf16.xpose.msra.mxu0 0
        %3685 = vmatprep.subr.bf16.mxu0 0
        %3686 = vmatpush2.bf16.xpose.msra.mxu0 0
        %3687 = vmatprep.subr.bf16.mxu0 0
        %3688 = vmatpush2.bf16.xpose.msra.mxu0 0
        %3689 = vmatprep.subr.bf16.mxu0 0
        %3690 = vmatpush2.bf16.xpose.msra.mxu0 0
        %3691 = vmatprep.subr.bf16.mxu0 0
        %3692 = vmatpush2.bf16.xpose.msra.mxu0 0
        %3693 = vmatprep.subr.bf16.mxu0 0
        %3694 = vmatpush2.bf16.xpose.msra.mxu0 0
        %3695 = vmatprep.subr.bf16.mxu0 0
        %3696 = vmatpush2.bf16.xpose.msra.mxu0 0
        %3697 = vmatprep.subr.bf16.mxu0 0
        %3698 = vmatpush2.bf16.xpose.msra.mxu0 0
        %3699 = vmatprep.mubr.bf16.mxu0 0
        %3700 = vmatmul.mubr.bf16.gmra.mxu0 %v3663
        %v3701 = vpop.f32.mrf.mxu0
        %v3702 = vadd.f32 %v1470, %v3701
        %v3703 = vpop.f32.mrf.mxu0
        %v3704 = vpop.f32.mrf.mxu0
        %v3705 = vadd.f32 %v1471, %v3704
        %v3706 = vpop.f32.mrf.mxu0
        %3707 = vmatprep.mubr.bf16.mxu0 0
        %3708 = vmatmul.mubr.bf16.gmra.mxu0 %v3664
        %v3709 = vpop.f32.mrf.mxu0
        %v3710 = vadd.f32 %v1472, %v3709
        %v3711 = vpop.f32.mrf.mxu0
        %v3712 = vpop.f32.mrf.mxu0
        %v3713 = vadd.f32 %v1473, %v3712
        %v3714 = vpop.f32.mrf.mxu0
        %3715 = vdwg.mxu0
        %v3716 = vld [vmem:[#allocation3] sm:$0xff]
        %v3717 = vld [vmem:[#allocation3 + $0x8] sm:$0xff]
        %v3718 = vld [vmem:[#allocation3 + $0x10] sm:$0xff]
        %v3719 = vld [vmem:[#allocation3 + $0x18] sm:$0xff]
        %v3720 = vsel %vm2189, %v3702, -inf
        %3721 = vmax.xlane.f32.xlu0 %v3720
        %v3722 = vpop.xlane.xlu0 %3721
        %v3723 = vsel %vm2189, %v3705, -inf
        %3724 = vmax.xlane.f32.xlu0 %v3723
        %v3725 = vpop.xlane.xlu0 %3724
        %v3726 = vsel %vm2189, %v3710, -inf
        %3727 = vmax.xlane.f32.xlu0 %v3726
        %v3728 = vpop.xlane.xlu0 %3727
        %v3729 = vsel %vm2189, %v3713, -inf
        %3730 = vmax.xlane.f32.xlu0 %v3729
        %v3731 = vpop.xlane.xlu0 %3730
        %v3732 = vmax.f32 %v3716, %v3722
        %v3733 = vmax.f32 %v3717, %v3725
        %v3734 = vmax.f32 %v3718, %v3728
        %v3735 = vmax.f32 %v3719, %v3731
        %v3736 = vsub.f32 %v3716, %v3732
        %v3737 = vsub.f32 %v3717, %v3733
        %v3738 = vsub.f32 %v3718, %v3734
        %v3739 = vsub.f32 %v3719, %v3735
        %v3740 = vmul.f32 %v3736, 1.442695
        %v3741 = vpow.pop %v3740
        %v3742 = vmul.f32 %v3737, 1.442695
        %v3743 = vpow.pop %v3742
        %v3744 = vmul.f32 %v3738, 1.442695
        %v3745 = vpow.pop %v3744
        %v3746 = vmul.f32 %v3739, 1.442695
        %v3747 = vpow.pop %v3746
        %3749 = vset.pattern.permute.xlu0 6
        %3750 = vperm.xlu0 %3749, %v3732
        %v3751 = vpop.permute.xlu0 %3750
        %3754 = vset.pattern.permute.xlu0 6
        %3755 = vperm.xlu0 %3754, %v3733
        %v3756 = vpop.permute.xlu0 %3755
        %3759 = vset.pattern.permute.xlu0 6
        %3760 = vperm.xlu0 %3759, %v3734
        %v3761 = vpop.permute.xlu0 %3760
        %3764 = vset.pattern.permute.xlu0 6
        %3765 = vperm.xlu0 %3764, %v3735
        %v3766 = vpop.permute.xlu0 %3765
        %v3768 = vsub.f32 %v3702, %v3751
        %v3769 = vsub.f32 %v3705, %v3756
        %v3770 = vsub.f32 %v3710, %v3761
        %v3771 = vsub.f32 %v3713, %v3766
        %v3772 = vmul.f32 %v3768, 1.442695
        %v3773 = vpow.pop %v3772
        %v3774 = vmul.f32 %v3769, 1.442695
        %v3775 = vpow.pop %v3774
        %v3776 = vmul.f32 %v3770, 1.442695
        %v3777 = vpow.pop %v3776
        %v3778 = vmul.f32 %v3771, 1.442695
        %v3779 = vpow.pop %v3778
        %v3780 = vld [vmem:[#allocation4] sm:$0xff]
        %v3781 = vld [vmem:[#allocation4 + $0x8] sm:$0xff]
        %v3782 = vld [vmem:[#allocation4 + $0x10] sm:$0xff]
        %v3783 = vld [vmem:[#allocation4 + $0x18] sm:$0xff]
        %v3784 = vmul.f32 %v3741, %v3780
        %v3785 = vmul.f32 %v3743, %v3781
        %v3786 = vmul.f32 %v3745, %v3782
        %v3787 = vmul.f32 %v3747, %v3783
        %v3788 = vsel %vm2189, %v3773, 0.0
        %3789 = vadd.xlane.f32.xlu0 %v3788
        %v3790 = vpop.xlane.xlu0 %3789
        %v3791 = vsel %vm2189, %v3775, 0.0
        %3792 = vadd.xlane.f32.xlu0 %v3791
        %v3793 = vpop.xlane.xlu0 %3792
        %v3794 = vsel %vm2189, %v3777, 0.0
        %3795 = vadd.xlane.f32.xlu0 %v3794
        %v3796 = vpop.xlane.xlu0 %3795
        %v3797 = vsel %vm2189, %v3779, 0.0
        %3798 = vadd.xlane.f32.xlu0 %v3797
        %v3799 = vpop.xlane.xlu0 %3798
        %v3800 = vadd.f32 %v3784, %v3790
        %v3801 = vadd.f32 %v3785, %v3793
        %v3802 = vadd.f32 %v3786, %v3796
        %v3803 = vadd.f32 %v3787, %v3799
        %vm3804 = vcmask 56368
        %3805 = vst.msk [vmem:[#allocation4] sm:$0xff] %vm3804, %v3800
        %3806 = vst.msk [vmem:[#allocation4 + $0x8] sm:$0xff] %vm3804, %v3801
        %3807 = vst.msk [vmem:[#allocation4 + $0x10] sm:$0xff] %vm3804, %v3802
        %3808 = vst.msk [vmem:[#allocation4 + $0x18] sm:$0xff] %vm3804, %v3803
        %v3809 = vld [vmem:[#allocation5 + $0x30] sm:$0xff]
        %v3810 = vld [vmem:[#allocation5 + $0x70] sm:$0xff]
        %v3811 = vld [vmem:[#allocation5 + $0xb0] sm:$0xff]
        %v3812 = vld [vmem:[#allocation5 + $0xf0] sm:$0xff]
        %3814 = vset.pattern.permute.xlu0 6
        %3815 = vperm.xlu0 %3814, %v3741
        %v3816 = vpop.permute.xlu0 %3815
        %3819 = vset.pattern.permute.xlu0 6
        %3820 = vperm.xlu0 %3819, %v3743
        %v3821 = vpop.permute.xlu0 %3820
        %3824 = vset.pattern.permute.xlu0 6
        %3825 = vperm.xlu0 %3824, %v3745
        %v3826 = vpop.permute.xlu0 %3825
        %3829 = vset.pattern.permute.xlu0 6
        %3830 = vperm.xlu0 %3829, %v3747
        %v3831 = vpop.permute.xlu0 %3830
        %v3833 = vmul.f32 %v3816, %v3809
        %v3834 = vmul.f32 %v3821, %v3810
        %v3835 = vmul.f32 %v3826, %v3811
        %v3836 = vmul.f32 %v3831, %v3812
        %v3837 = vpack.c.bf16 %v3775, %v3773
        %v3838 = vpack.c.bf16 %v3779, %v3777
        %v3840 = vsel %vm2189, %v3837, 0
        %v3843 = vsel %vm2189, %v3838, 0
        %3845 = vmatprep.subr.bf16.mxu0 0
        %3846 = vmatpush1.bf16.msra.mxu0 0
        %3847 = vmatprep.subr.bf16.mxu0 0
        %3848 = vmatpush1.bf16.msra.mxu0 0
        %3849 = vmatprep.subr.bf16.mxu0 0
        %3850 = vmatpush1.bf16.msra.mxu0 0
        %3851 = vmatprep.subr.bf16.mxu0 0
        %3852 = vmatpush1.bf16.msra.mxu0 0
        %3853 = vmatprep.subr.bf16.mxu0 0
        %3854 = vmatpush1.bf16.msra.mxu0 0
        %3855 = vmatprep.subr.bf16.mxu0 0
        %3856 = vmatpush1.bf16.msra.mxu0 0
        %3857 = vmatprep.subr.bf16.mxu0 0
        %3858 = vmatpush1.bf16.msra.mxu0 0
        %3859 = vmatprep.subr.bf16.mxu0 0
        %3860 = vmatpush1.bf16.msra.mxu0 %v2118
        %3861 = vmatprep.subr.bf16.mxu0 0
        %3862 = vmatpush2.bf16.msra.mxu0 0
        %3863 = vmatprep.subr.bf16.mxu0 0
        %3864 = vmatpush2.bf16.msra.mxu0 0
        %3865 = vmatprep.subr.bf16.mxu0 0
        %3866 = vmatpush2.bf16.msra.mxu0 0
        %3867 = vmatprep.subr.bf16.mxu0 0
        %3868 = vmatpush2.bf16.msra.mxu0 0
        %3869 = vmatprep.subr.bf16.mxu0 0
        %3870 = vmatpush2.bf16.msra.mxu0 0
        %3871 = vmatprep.subr.bf16.mxu0 0
        %3872 = vmatpush2.bf16.msra.mxu0 0
        %3873 = vmatprep.subr.bf16.mxu0 0
        %3874 = vmatpush2.bf16.msra.mxu0 0
        %3875 = vmatprep.subr.bf16.mxu0 0
        %3876 = vmatpush2.bf16.msra.mxu0 0
        %3877 = vmatprep.mubr.bf16.mxu0 0
        %3878 = vmatmul.mubr.bf16.gmra.mxu0 %v3840
        %v3879 = vpop.f32.mrf.mxu0
        %v3880 = vadd.f32 0.0, %v3879
        %v3881 = vpop.f32.mrf.mxu0
        %v3882 = vpop.f32.mrf.mxu0
        %v3883 = vadd.f32 0.0, %v3882
        %v3884 = vpop.f32.mrf.mxu0
        %3885 = vmatprep.mubr.bf16.mxu0 0
        %3886 = vmatmul.mubr.bf16.gmra.mxu0 %v3843
        %v3887 = vpop.f32.mrf.mxu0
        %v3888 = vadd.f32 0.0, %v3887
        %v3889 = vpop.f32.mrf.mxu0
        %v3890 = vpop.f32.mrf.mxu0
        %v3891 = vadd.f32 0.0, %v3890
        %v3892 = vpop.f32.mrf.mxu0
        %3893 = vdwg.mxu0
        %v3894 = vadd.f32 %v3833, %v3880
        %v3895 = vadd.f32 %v3834, %v3883
        %v3896 = vadd.f32 %v3835, %v3888
        %v3897 = vadd.f32 %v3836, %v3891
        %3898 = vst [vmem:[#allocation5 + $0x30] sm:$0xff] %v3894
        %3899 = vst [vmem:[#allocation5 + $0x70] sm:$0xff] %v3895
        %3900 = vst [vmem:[#allocation5 + $0xb0] sm:$0xff] %v3896
        %3901 = vst [vmem:[#allocation5 + $0xf0] sm:$0xff] %v3897
        %3902 = vst.msk [vmem:[#allocation3] sm:$0xff] %vm3804, %v3732
        %3903 = vst.msk [vmem:[#allocation3 + $0x8] sm:$0xff] %vm3804, %v3733
        %3904 = vst.msk [vmem:[#allocation3 + $0x10] sm:$0xff] %vm3804, %v3734
        %3905 = vst.msk [vmem:[#allocation3 + $0x18] sm:$0xff] %vm3804, %v3735
        %v3906 = vld [vmem:[#allocation2 + $0x1c] sm:$0xf]
        %v3907 = vld [vmem:[#allocation2 + $0x3c] sm:$0xf]
        %v3908 = vld [vmem:[#allocation2 + $0x5c] sm:$0xf]
        %v3909 = vld [vmem:[#allocation2 + $0x7c] sm:$0xf]
        %v3914 = vunpack.c.l.b16 %v3906
        %v3915 = vunpack.c.l.b16 %v3907
        %v3916 = vunpack.c.l.b16 %v3908
        %v3917 = vunpack.c.l.b16 %v3909
        %v3918 = vpack.c.b16 %v3915, %v3914
        %v3919 = vpack.c.b16 %v3917, %v3916
        %3922 = vmatprep.subr.bf16.mxu0 0
        %3923 = vmatpush1.bf16.xpose.msra.mxu0 0
        %3924 = vmatprep.subr.bf16.mxu0 0
        %3925 = vmatpush1.bf16.xpose.msra.mxu0 0
        %3926 = vmatprep.subr.bf16.mxu0 0
        %3927 = vmatpush1.bf16.xpose.msra.mxu0 0
        %3928 = vmatprep.subr.bf16.mxu0 0
        %3929 = vmatpush1.bf16.xpose.msra.mxu0 0
        %3930 = vmatprep.subr.bf16.mxu0 0
        %3931 = vmatpush1.bf16.xpose.msra.mxu0 0
        %3932 = vmatprep.subr.bf16.mxu0 0
        %3933 = vmatpush1.bf16.xpose.msra.mxu0 0
        %3934 = vmatprep.subr.bf16.mxu0 0
        %3935 = vmatpush1.bf16.xpose.msra.mxu0 0
        %3936 = vmatprep.subr.bf16.mxu0 0
        %3937 = vmatpush1.bf16.xpose.msra.mxu0 %v2111
        %3938 = vmatprep.subr.bf16.mxu0 0
        %3939 = vmatpush2.bf16.xpose.msra.mxu0 0
        %3940 = vmatprep.subr.bf16.mxu0 0
        %3941 = vmatpush2.bf16.xpose.msra.mxu0 0
        %3942 = vmatprep.subr.bf16.mxu0 0
        %3943 = vmatpush2.bf16.xpose.msra.mxu0 0
        %3944 = vmatprep.subr.bf16.mxu0 0
        %3945 = vmatpush2.bf16.xpose.msra.mxu0 0
        %3946 = vmatprep.subr.bf16.mxu0 0
        %3947 = vmatpush2.bf16.xpose.msra.mxu0 0
        %3948 = vmatprep.subr.bf16.mxu0 0
        %3949 = vmatpush2.bf16.xpose.msra.mxu0 0
        %3950 = vmatprep.subr.bf16.mxu0 0
        %3951 = vmatpush2.bf16.xpose.msra.mxu0 0
        %3952 = vmatprep.subr.bf16.mxu0 0
        %3953 = vmatpush2.bf16.xpose.msra.mxu0 0
        %3954 = vmatprep.mubr.bf16.mxu0 0
        %3955 = vmatmul.mubr.bf16.gmra.mxu0 %v3918
        %v3956 = vpop.f32.mrf.mxu0
        %v3957 = vadd.f32 %v1470, %v3956
        %v3958 = vpop.f32.mrf.mxu0
        %v3959 = vpop.f32.mrf.mxu0
        %v3960 = vadd.f32 %v1471, %v3959
        %v3961 = vpop.f32.mrf.mxu0
        %3962 = vmatprep.mubr.bf16.mxu0 0
        %3963 = vmatmul.mubr.bf16.gmra.mxu0 %v3919
        %v3964 = vpop.f32.mrf.mxu0
        %v3965 = vadd.f32 %v1472, %v3964
        %v3966 = vpop.f32.mrf.mxu0
        %v3967 = vpop.f32.mrf.mxu0
        %v3968 = vadd.f32 %v1473, %v3967
        %v3969 = vpop.f32.mrf.mxu0
        %3970 = vdwg.mxu0
        %v3971 = vld [vmem:[#allocation3] sm:$0xff]
        %v3972 = vld [vmem:[#allocation3 + $0x8] sm:$0xff]
        %v3973 = vld [vmem:[#allocation3 + $0x10] sm:$0xff]
        %v3974 = vld [vmem:[#allocation3 + $0x18] sm:$0xff]
        %v3975 = vsel %vm2189, %v3957, -inf
        %3976 = vmax.xlane.f32.xlu0 %v3975
        %v3977 = vpop.xlane.xlu0 %3976
        %v3978 = vsel %vm2189, %v3960, -inf
        %3979 = vmax.xlane.f32.xlu0 %v3978
        %v3980 = vpop.xlane.xlu0 %3979
        %v3981 = vsel %vm2189, %v3965, -inf
        %3982 = vmax.xlane.f32.xlu0 %v3981
        %v3983 = vpop.xlane.xlu0 %3982
        %v3984 = vsel %vm2189, %v3968, -inf
        %3985 = vmax.xlane.f32.xlu0 %v3984
        %v3986 = vpop.xlane.xlu0 %3985
        %v3987 = vmax.f32 %v3971, %v3977
        %v3988 = vmax.f32 %v3972, %v3980
        %v3989 = vmax.f32 %v3973, %v3983
        %v3990 = vmax.f32 %v3974, %v3986
        %v3991 = vsub.f32 %v3971, %v3987
        %v3992 = vsub.f32 %v3972, %v3988
        %v3993 = vsub.f32 %v3973, %v3989
        %v3994 = vsub.f32 %v3974, %v3990
        %v3995 = vmul.f32 %v3991, 1.442695
        %v3996 = vpow.pop %v3995
        %v3997 = vmul.f32 %v3992, 1.442695
        %v3998 = vpow.pop %v3997
        %v3999 = vmul.f32 %v3993, 1.442695
        %v4000 = vpow.pop %v3999
        %v4001 = vmul.f32 %v3994, 1.442695
        %v4002 = vpow.pop %v4001
        %4004 = vset.pattern.permute.xlu0 7
        %4005 = vperm.xlu0 %4004, %v3987
        %v4006 = vpop.permute.xlu0 %4005
        %4009 = vset.pattern.permute.xlu0 7
        %4010 = vperm.xlu0 %4009, %v3988
        %v4011 = vpop.permute.xlu0 %4010
        %4014 = vset.pattern.permute.xlu0 7
        %4015 = vperm.xlu0 %4014, %v3989
        %v4016 = vpop.permute.xlu0 %4015
        %4019 = vset.pattern.permute.xlu0 7
        %4020 = vperm.xlu0 %4019, %v3990
        %v4021 = vpop.permute.xlu0 %4020
        %v4023 = vsub.f32 %v3957, %v4006
        %v4024 = vsub.f32 %v3960, %v4011
        %v4025 = vsub.f32 %v3965, %v4016
        %v4026 = vsub.f32 %v3968, %v4021
        %v4027 = vmul.f32 %v4023, 1.442695
        %v4028 = vpow.pop %v4027
        %v4029 = vmul.f32 %v4024, 1.442695
        %v4030 = vpow.pop %v4029
        %v4031 = vmul.f32 %v4025, 1.442695
        %v4032 = vpow.pop %v4031
        %v4033 = vmul.f32 %v4026, 1.442695
        %v4034 = vpow.pop %v4033
        %v4035 = vld [vmem:[#allocation4] sm:$0xff]
        %v4036 = vld [vmem:[#allocation4 + $0x8] sm:$0xff]
        %v4037 = vld [vmem:[#allocation4 + $0x10] sm:$0xff]
        %v4038 = vld [vmem:[#allocation4 + $0x18] sm:$0xff]
        %v4039 = vmul.f32 %v3996, %v4035
        %v4040 = vmul.f32 %v3998, %v4036
        %v4041 = vmul.f32 %v4000, %v4037
        %v4042 = vmul.f32 %v4002, %v4038
        %v4043 = vsel %vm2189, %v4028, 0.0
        %4044 = vadd.xlane.f32.xlu0 %v4043
        %v4045 = vpop.xlane.xlu0 %4044
        %v4046 = vsel %vm2189, %v4030, 0.0
        %4047 = vadd.xlane.f32.xlu0 %v4046
        %v4048 = vpop.xlane.xlu0 %4047
        %v4049 = vsel %vm2189, %v4032, 0.0
        %4050 = vadd.xlane.f32.xlu0 %v4049
        %v4051 = vpop.xlane.xlu0 %4050
        %v4052 = vsel %vm2189, %v4034, 0.0
        %4053 = vadd.xlane.f32.xlu0 %v4052
        %v4054 = vpop.xlane.xlu0 %4053
        %v4055 = vadd.f32 %v4039, %v4045
        %v4056 = vadd.f32 %v4040, %v4048
        %v4057 = vadd.f32 %v4041, %v4051
        %v4058 = vadd.f32 %v4042, %v4054
        %vm4059 = vcmask 64568
        %4060 = vst.msk [vmem:[#allocation4] sm:$0xff] %vm4059, %v4055
        %4061 = vst.msk [vmem:[#allocation4 + $0x8] sm:$0xff] %vm4059, %v4056
        %4062 = vst.msk [vmem:[#allocation4 + $0x10] sm:$0xff] %vm4059, %v4057
        %4063 = vst.msk [vmem:[#allocation4 + $0x18] sm:$0xff] %vm4059, %v4058
        %v4064 = vld [vmem:[#allocation5 + $0x38] sm:$0xff]
        %v4065 = vld [vmem:[#allocation5 + $0x78] sm:$0xff]
        %v4066 = vld [vmem:[#allocation5 + $0xb8] sm:$0xff]
        %v4067 = vld [vmem:[#allocation5 + $0xf8] sm:$0xff]
        %4069 = vset.pattern.permute.xlu0 7
        %4070 = vperm.xlu0 %4069, %v3996
        %v4071 = vpop.permute.xlu0 %4070
        %4074 = vset.pattern.permute.xlu0 7
        %4075 = vperm.xlu0 %4074, %v3998
        %v4076 = vpop.permute.xlu0 %4075
        %4079 = vset.pattern.permute.xlu0 7
        %4080 = vperm.xlu0 %4079, %v4000
        %v4081 = vpop.permute.xlu0 %4080
        %4084 = vset.pattern.permute.xlu0 7
        %4085 = vperm.xlu0 %4084, %v4002
        %v4086 = vpop.permute.xlu0 %4085
        %v4088 = vmul.f32 %v4071, %v4064
        %v4089 = vmul.f32 %v4076, %v4065
        %v4090 = vmul.f32 %v4081, %v4066
        %v4091 = vmul.f32 %v4086, %v4067
        %v4092 = vpack.c.bf16 %v4030, %v4028
        %v4093 = vpack.c.bf16 %v4034, %v4032
        %v4095 = vsel %vm2189, %v4092, 0
        %v4098 = vsel %vm2189, %v4093, 0
        %4100 = vmatprep.subr.bf16.mxu0 0
        %4101 = vmatpush1.bf16.msra.mxu0 0
        %4102 = vmatprep.subr.bf16.mxu0 0
        %4103 = vmatpush1.bf16.msra.mxu0 0
        %4104 = vmatprep.subr.bf16.mxu0 0
        %4105 = vmatpush1.bf16.msra.mxu0 0
        %4106 = vmatprep.subr.bf16.mxu0 0
        %4107 = vmatpush1.bf16.msra.mxu0 0
        %4108 = vmatprep.subr.bf16.mxu0 0
        %4109 = vmatpush1.bf16.msra.mxu0 0
        %4110 = vmatprep.subr.bf16.mxu0 0
        %4111 = vmatpush1.bf16.msra.mxu0 0
        %4112 = vmatprep.subr.bf16.mxu0 0
        %4113 = vmatpush1.bf16.msra.mxu0 0
        %4114 = vmatprep.subr.bf16.mxu0 0
        %4115 = vmatpush1.bf16.msra.mxu0 %v2119
        %4116 = vmatprep.subr.bf16.mxu0 0
        %4117 = vmatpush2.bf16.msra.mxu0 0
        %4118 = vmatprep.subr.bf16.mxu0 0
        %4119 = vmatpush2.bf16.msra.mxu0 0
        %4120 = vmatprep.subr.bf16.mxu0 0
        %4121 = vmatpush2.bf16.msra.mxu0 0
        %4122 = vmatprep.subr.bf16.mxu0 0
        %4123 = vmatpush2.bf16.msra.mxu0 0
        %4124 = vmatprep.subr.bf16.mxu0 0
        %4125 = vmatpush2.bf16.msra.mxu0 0
        %4126 = vmatprep.subr.bf16.mxu0 0
        %4127 = vmatpush2.bf16.msra.mxu0 0
        %4128 = vmatprep.subr.bf16.mxu0 0
        %4129 = vmatpush2.bf16.msra.mxu0 0
        %4130 = vmatprep.subr.bf16.mxu0 0
        %4131 = vmatpush2.bf16.msra.mxu0 0
        %4132 = vmatprep.mubr.bf16.mxu0 0
        %4133 = vmatmul.mubr.bf16.gmra.mxu0 %v4095
        %v4134 = vpop.f32.mrf.mxu0
        %v4135 = vadd.f32 0.0, %v4134
        %v4136 = vpop.f32.mrf.mxu0
        %v4137 = vpop.f32.mrf.mxu0
        %v4138 = vadd.f32 0.0, %v4137
        %v4139 = vpop.f32.mrf.mxu0
        %4140 = vmatprep.mubr.bf16.mxu0 0
        %4141 = vmatmul.mubr.bf16.gmra.mxu0 %v4098
        %v4142 = vpop.f32.mrf.mxu0
        %v4143 = vadd.f32 0.0, %v4142
        %v4144 = vpop.f32.mrf.mxu0
        %v4145 = vpop.f32.mrf.mxu0
        %v4146 = vadd.f32 0.0, %v4145
        %v4147 = vpop.f32.mrf.mxu0
        %4148 = vdwg.mxu0
        %v4149 = vadd.f32 %v4088, %v4135
        %v4150 = vadd.f32 %v4089, %v4138
        %v4151 = vadd.f32 %v4090, %v4143
        %v4152 = vadd.f32 %v4091, %v4146
        %4153 = vst [vmem:[#allocation5 + $0x38] sm:$0xff] %v4149
        %4154 = vst [vmem:[#allocation5 + $0x78] sm:$0xff] %v4150
        %4155 = vst [vmem:[#allocation5 + $0xb8] sm:$0xff] %v4151
        %4156 = vst [vmem:[#allocation5 + $0xf8] sm:$0xff] %v4152
        %4157 = vst.msk [vmem:[#allocation3] sm:$0xff] %vm4059, %v3987
        %4158 = vst.msk [vmem:[#allocation3 + $0x8] sm:$0xff] %vm4059, %v3988
        %4159 = vst.msk [vmem:[#allocation3 + $0x10] sm:$0xff] %vm4059, %v3989
        %4160 = vst.msk [vmem:[#allocation3 + $0x18] sm:$0xff] %vm4059, %v3990
        // Predicated region
        $region105: #{tpu_custom_call.1} parent=83 // pred_check
          %p4161 = pneg %p644
        $region106: #{tpu_custom_call.1} parent=83 // pred_check_branch
          %4163 = sbr.rel (%p4161) target = $region108
        $region107: #{tpu_custom_call.1} parent=83 // pred_region
          %v4164 = vld [vmem:[%s9] sm:$0x1]
          %v4165 = vld [vmem:[#allocation4] sm:$0xff]
          %v4166 = vld [vmem:[#allocation4 + $0x8] sm:$0xff]
          %v4167 = vld [vmem:[#allocation4 + $0x10] sm:$0xff]
          %v4168 = vld [vmem:[#allocation4 + $0x18] sm:$0xff]
          %v4169 = vmax.f32 %v4165, 1e-20
          %v4170 = vmax.f32 %v4166, 1e-20
          %v4171 = vmax.f32 %v4167, 1e-20
          %v4172 = vmax.f32 %v4168, 1e-20
          %v4173 = vrcp.pop %v4169
          %v4174 = vrcp.pop %v4170
          %v4175 = vrcp.pop %v4171
          %v4176 = vrcp.pop %v4172
          %v4177 = vld [vmem:[#allocation5] sm:$0xff]
          %v4178 = vld [vmem:[#allocation5 + $0x40] sm:$0xff]
          %v4179 = vld [vmem:[#allocation5 + $0x80] sm:$0xff]
          %v4180 = vld [vmem:[#allocation5 + $0xc0] sm:$0xff]
          %4182 = vset.pattern.permute.xlu0 0
          %4183 = vperm.xlu0 %4182, %v4173
          %v4184 = vpop.permute.xlu0 %4183
          %4187 = vset.pattern.permute.xlu0 0
          %4188 = vperm.xlu0 %4187, %v4174
          %v4189 = vpop.permute.xlu0 %4188
          %4192 = vset.pattern.permute.xlu0 0
          %4193 = vperm.xlu0 %4192, %v4175
          %v4194 = vpop.permute.xlu0 %4193
          %4197 = vset.pattern.permute.xlu0 0
          %4198 = vperm.xlu0 %4197, %v4176
          %v4199 = vpop.permute.xlu0 %4198
          %v4201 = vmul.f32 %v4177, %v4184
          %v4202 = vmul.f32 %v4178, %v4189
          %v4203 = vmul.f32 %v4179, %v4194
          %v4204 = vmul.f32 %v4180, %v4199
          %v4205 = vpack.c.bf16 %v4202, %v4201
          %v4206 = vpack.c.bf16 %v4204, %v4203
          %v4207 = vld [vmem:[#allocation12] sm:$0xf]
          %v4208 = vld [vmem:[#allocation12 + $0x4] sm:$0xf]
          %v4209 = vld [vmem:[#allocation12 + $0x8] sm:$0xf]
          %v4210 = vld [vmem:[#allocation12 + $0xc] sm:$0xf]
          %v4211 = vld [vmem:[#allocation12 + $0x10] sm:$0xf]
          %v4212 = vld [vmem:[#allocation12 + $0x14] sm:$0xf]
          %v4213 = vld [vmem:[#allocation12 + $0x18] sm:$0xf]
          %v4214 = vld [vmem:[#allocation12 + $0x1c] sm:$0xf]
          %v4215 = vld [vmem:[#allocation12 + $0x20] sm:$0xf]
          %v4216 = vld [vmem:[#allocation12 + $0x24] sm:$0xf]
          %v4217 = vld [vmem:[#allocation12 + $0x28] sm:$0xf]
          %v4218 = vld [vmem:[#allocation12 + $0x2c] sm:$0xf]
          %v4219 = vld [vmem:[#allocation12 + $0x30] sm:$0xf]
          %v4220 = vld [vmem:[#allocation12 + $0x34] sm:$0xf]
          %v4221 = vld [vmem:[#allocation12 + $0x38] sm:$0xf]
          %v4222 = vld [vmem:[#allocation12 + $0x3c] sm:$0xf]
          %v4239 = vunpack.c.l.b16 %v4207
          %v4240 = vunpack.c.l.b16 %v4208
          %v4241 = vunpack.c.l.b16 %v4209
          %v4242 = vunpack.c.l.b16 %v4210
          %v4243 = vunpack.c.l.b16 %v4211
          %v4244 = vunpack.c.l.b16 %v4212
          %v4245 = vunpack.c.l.b16 %v4213
          %v4246 = vunpack.c.l.b16 %v4214
          %v4247 = vunpack.c.l.b16 %v4215
          %v4248 = vunpack.c.l.b16 %v4216
          %v4249 = vunpack.c.l.b16 %v4217
          %v4250 = vunpack.c.l.b16 %v4218
          %v4251 = vunpack.c.l.b16 %v4219
          %v4252 = vunpack.c.l.b16 %v4220
          %v4253 = vunpack.c.l.b16 %v4221
          %v4254 = vunpack.c.l.b16 %v4222
          %v4255 = vpack.c.b16 %v4240, %v4239
          %v4256 = vpack.c.b16 %v4242, %v4241
          %v4257 = vpack.c.b16 %v4244, %v4243
          %v4258 = vpack.c.b16 %v4246, %v4245
          %v4259 = vpack.c.b16 %v4248, %v4247
          %v4260 = vpack.c.b16 %v4250, %v4249
          %v4261 = vpack.c.b16 %v4252, %v4251
          %v4262 = vpack.c.b16 %v4254, %v4253
          %4271 = vmatprep.subr.bf16.mxu0 0
          %4272 = vmatpush1.bf16.msra.mxu0 %v4262
          %4273 = vmatprep.subr.bf16.mxu0 0
          %4274 = vmatpush1.bf16.msra.mxu0 %v4261
          %4275 = vmatprep.subr.bf16.mxu0 0
          %4276 = vmatpush1.bf16.msra.mxu0 %v4260
          %4277 = vmatprep.subr.bf16.mxu0 0
          %4278 = vmatpush1.bf16.msra.mxu0 %v4259
          %4279 = vmatprep.subr.bf16.mxu0 0
          %4280 = vmatpush1.bf16.msra.mxu0 %v4258
          %4281 = vmatprep.subr.bf16.mxu0 0
          %4282 = vmatpush1.bf16.msra.mxu0 %v4257
          %4283 = vmatprep.subr.bf16.mxu0 0
          %4284 = vmatpush1.bf16.msra.mxu0 %v4256
          %4285 = vmatprep.subr.bf16.mxu0 0
          %4286 = vmatpush1.bf16.msra.mxu0 %v4255
          %4287 = vmatprep.subr.bf16.mxu0 0
          %4288 = vmatpush2.bf16.msra.mxu0 0
          %4289 = vmatprep.subr.bf16.mxu0 0
          %4290 = vmatpush2.bf16.msra.mxu0 0
          %4291 = vmatprep.subr.bf16.mxu0 0
          %4292 = vmatpush2.bf16.msra.mxu0 0
          %4293 = vmatprep.subr.bf16.mxu0 0
          %4294 = vmatpush2.bf16.msra.mxu0 0
          %4295 = vmatprep.subr.bf16.mxu0 0
          %4296 = vmatpush2.bf16.msra.mxu0 0
          %4297 = vmatprep.subr.bf16.mxu0 0
          %4298 = vmatpush2.bf16.msra.mxu0 0
          %4299 = vmatprep.subr.bf16.mxu0 0
          %4300 = vmatpush2.bf16.msra.mxu0 0
          %4301 = vmatprep.subr.bf16.mxu0 0
          %4302 = vmatpush2.bf16.msra.mxu0 0
          %4303 = vmatprep.mubr.bf16.mxu0 0
          %4304 = vmatmul.mubr.bf16.gmra.mxu0 %v4205
          %v4305 = vpop.f32.mrf.mxu0
          %v4306 = vadd.f32 0.0, %v4305
          %v4307 = vpop.f32.mrf.mxu0
          %v4308 = vpop.f32.mrf.mxu0
          %v4309 = vadd.f32 0.0, %v4308
          %v4310 = vpop.f32.mrf.mxu0
          %4311 = vmatprep.mubr.bf16.mxu0 0
          %4312 = vmatmul.mubr.bf16.gmra.mxu0 %v4206
          %v4313 = vpop.f32.mrf.mxu0
          %v4314 = vadd.f32 0.0, %v4313
          %v4315 = vpop.f32.mrf.mxu0
          %v4316 = vpop.f32.mrf.mxu0
          %v4317 = vadd.f32 0.0, %v4316
          %v4318 = vpop.f32.mrf.mxu0
          %4319 = vdwg.mxu0
          %v4321 = vlaneseq
          %v4322 = vshrl.u32 %v4321, 7
          %v4323 = vsub.s32 0, %v4322
          %v4324 = vrot.slane %v4164, %v4323
          %v4326 = vadd.f32 %v4324, %v4306
          %v4327 = vadd.f32 %v4324, %v4309
          %v4328 = vadd.f32 %v4324, %v4314
          %v4329 = vadd.f32 %v4324, %v4317
          %v4330 = vld [vmem:[#allocation5 + $0x8] sm:$0xff]
          %v4331 = vld [vmem:[#allocation5 + $0x48] sm:$0xff]
          %v4332 = vld [vmem:[#allocation5 + $0x88] sm:$0xff]
          %v4333 = vld [vmem:[#allocation5 + $0xc8] sm:$0xff]
          %4334 = vset.pattern.permute.xlu0 1
          %4335 = vperm.xlu0 %4334, %v4173
          %v4336 = vpop.permute.xlu0 %4335
          %4338 = vset.pattern.permute.xlu0 1
          %4339 = vperm.xlu0 %4338, %v4174
          %v4340 = vpop.permute.xlu0 %4339
          %4342 = vset.pattern.permute.xlu0 1
          %4343 = vperm.xlu0 %4342, %v4175
          %v4344 = vpop.permute.xlu0 %4343
          %4346 = vset.pattern.permute.xlu0 1
          %4347 = vperm.xlu0 %4346, %v4176
          %v4348 = vpop.permute.xlu0 %4347
          %v4350 = vmul.f32 %v4330, %v4336
          %v4351 = vmul.f32 %v4331, %v4340
          %v4352 = vmul.f32 %v4332, %v4344
          %v4353 = vmul.f32 %v4333, %v4348
          %v4354 = vpack.c.bf16 %v4351, %v4350
          %v4355 = vpack.c.bf16 %v4353, %v4352
          %v4356 = vld [vmem:[#allocation12 + $0x40] sm:$0xf]
          %v4357 = vld [vmem:[#allocation12 + $0x44] sm:$0xf]
          %v4358 = vld [vmem:[#allocation12 + $0x48] sm:$0xf]
          %v4359 = vld [vmem:[#allocation12 + $0x4c] sm:$0xf]
          %v4360 = vld [vmem:[#allocation12 + $0x50] sm:$0xf]
          %v4361 = vld [vmem:[#allocation12 + $0x54] sm:$0xf]
          %v4362 = vld [vmem:[#allocation12 + $0x58] sm:$0xf]
          %v4363 = vld [vmem:[#allocation12 + $0x5c] sm:$0xf]
          %v4364 = vld [vmem:[#allocation12 + $0x60] sm:$0xf]
          %v4365 = vld [vmem:[#allocation12 + $0x64] sm:$0xf]
          %v4366 = vld [vmem:[#allocation12 + $0x68] sm:$0xf]
          %v4367 = vld [vmem:[#allocation12 + $0x6c] sm:$0xf]
          %v4368 = vld [vmem:[#allocation12 + $0x70] sm:$0xf]
          %v4369 = vld [vmem:[#allocation12 + $0x74] sm:$0xf]
          %v4370 = vld [vmem:[#allocation12 + $0x78] sm:$0xf]
          %v4371 = vld [vmem:[#allocation12 + $0x7c] sm:$0xf]
          %v4388 = vunpack.c.l.b16 %v4356
          %v4389 = vunpack.c.l.b16 %v4357
          %v4390 = vunpack.c.l.b16 %v4358
          %v4391 = vunpack.c.l.b16 %v4359
          %v4392 = vunpack.c.l.b16 %v4360
          %v4393 = vunpack.c.l.b16 %v4361
          %v4394 = vunpack.c.l.b16 %v4362
          %v4395 = vunpack.c.l.b16 %v4363
          %v4396 = vunpack.c.l.b16 %v4364
          %v4397 = vunpack.c.l.b16 %v4365
          %v4398 = vunpack.c.l.b16 %v4366
          %v4399 = vunpack.c.l.b16 %v4367
          %v4400 = vunpack.c.l.b16 %v4368
          %v4401 = vunpack.c.l.b16 %v4369
          %v4402 = vunpack.c.l.b16 %v4370
          %v4403 = vunpack.c.l.b16 %v4371
          %v4404 = vpack.c.b16 %v4389, %v4388
          %v4405 = vpack.c.b16 %v4391, %v4390
          %v4406 = vpack.c.b16 %v4393, %v4392
          %v4407 = vpack.c.b16 %v4395, %v4394
          %v4408 = vpack.c.b16 %v4397, %v4396
          %v4409 = vpack.c.b16 %v4399, %v4398
          %v4410 = vpack.c.b16 %v4401, %v4400
          %v4411 = vpack.c.b16 %v4403, %v4402
          %4420 = vmatprep.subr.bf16.mxu0 0
          %4421 = vmatpush1.bf16.msra.mxu0 %v4411
          %4422 = vmatprep.subr.bf16.mxu0 0
          %4423 = vmatpush1.bf16.msra.mxu0 %v4410
          %4424 = vmatprep.subr.bf16.mxu0 0
          %4425 = vmatpush1.bf16.msra.mxu0 %v4409
          %4426 = vmatprep.subr.bf16.mxu0 0
          %4427 = vmatpush1.bf16.msra.mxu0 %v4408
          %4428 = vmatprep.subr.bf16.mxu0 0
          %4429 = vmatpush1.bf16.msra.mxu0 %v4407
          %4430 = vmatprep.subr.bf16.mxu0 0
          %4431 = vmatpush1.bf16.msra.mxu0 %v4406
          %4432 = vmatprep.subr.bf16.mxu0 0
          %4433 = vmatpush1.bf16.msra.mxu0 %v4405
          %4434 = vmatprep.subr.bf16.mxu0 0
          %4435 = vmatpush1.bf16.msra.mxu0 %v4404
          %4436 = vmatprep.subr.bf16.mxu0 0
          %4437 = vmatpush2.bf16.msra.mxu0 0
          %4438 = vmatprep.subr.bf16.mxu0 0
          %4439 = vmatpush2.bf16.msra.mxu0 0
          %4440 = vmatprep.subr.bf16.mxu0 0
          %4441 = vmatpush2.bf16.msra.mxu0 0
          %4442 = vmatprep.subr.bf16.mxu0 0
          %4443 = vmatpush2.bf16.msra.mxu0 0
          %4444 = vmatprep.subr.bf16.mxu0 0
          %4445 = vmatpush2.bf16.msra.mxu0 0
          %4446 = vmatprep.subr.bf16.mxu0 0
          %4447 = vmatpush2.bf16.msra.mxu0 0
          %4448 = vmatprep.subr.bf16.mxu0 0
          %4449 = vmatpush2.bf16.msra.mxu0 0
          %4450 = vmatprep.subr.bf16.mxu0 0
          %4451 = vmatpush2.bf16.msra.mxu0 0
          %4452 = vmatprep.mubr.bf16.mxu0 0
          %4453 = vmatmul.mubr.bf16.gmra.mxu0 %v4354
          %v4454 = vpop.f32.mrf.mxu0
          %v4455 = vadd.f32 0.0, %v4454
          %v4456 = vpop.f32.mrf.mxu0
          %v4457 = vpop.f32.mrf.mxu0
          %v4458 = vadd.f32 0.0, %v4457
          %v4459 = vpop.f32.mrf.mxu0
          %4460 = vmatprep.mubr.bf16.mxu0 0
          %4461 = vmatmul.mubr.bf16.gmra.mxu0 %v4355
          %v4462 = vpop.f32.mrf.mxu0
          %v4463 = vadd.f32 0.0, %v4462
          %v4464 = vpop.f32.mrf.mxu0
          %v4465 = vpop.f32.mrf.mxu0
          %v4466 = vadd.f32 0.0, %v4465
          %v4467 = vpop.f32.mrf.mxu0
          %4468 = vdwg.mxu0
          %v4469 = vadd.f32 %v4326, %v4455
          %v4470 = vadd.f32 %v4327, %v4458
          %v4471 = vadd.f32 %v4328, %v4463
          %v4472 = vadd.f32 %v4329, %v4466
          %v4473 = vld [vmem:[#allocation5 + $0x10] sm:$0xff]
          %v4474 = vld [vmem:[#allocation5 + $0x50] sm:$0xff]
          %v4475 = vld [vmem:[#allocation5 + $0x90] sm:$0xff]
          %v4476 = vld [vmem:[#allocation5 + $0xd0] sm:$0xff]
          %4477 = vset.pattern.permute.xlu0 2
          %4478 = vperm.xlu0 %4477, %v4173
          %v4479 = vpop.permute.xlu0 %4478
          %4481 = vset.pattern.permute.xlu0 2
          %4482 = vperm.xlu0 %4481, %v4174
          %v4483 = vpop.permute.xlu0 %4482
          %4485 = vset.pattern.permute.xlu0 2
          %4486 = vperm.xlu0 %4485, %v4175
          %v4487 = vpop.permute.xlu0 %4486
          %4489 = vset.pattern.permute.xlu0 2
          %4490 = vperm.xlu0 %4489, %v4176
          %v4491 = vpop.permute.xlu0 %4490
          %v4493 = vmul.f32 %v4473, %v4479
          %v4494 = vmul.f32 %v4474, %v4483
          %v4495 = vmul.f32 %v4475, %v4487
          %v4496 = vmul.f32 %v4476, %v4491
          %v4497 = vpack.c.bf16 %v4494, %v4493
          %v4498 = vpack.c.bf16 %v4496, %v4495
          %v4499 = vld [vmem:[#allocation12 + $0x80] sm:$0xf]
          %v4500 = vld [vmem:[#allocation12 + $0x84] sm:$0xf]
          %v4501 = vld [vmem:[#allocation12 + $0x88] sm:$0xf]
          %v4502 = vld [vmem:[#allocation12 + $0x8c] sm:$0xf]
          %v4503 = vld [vmem:[#allocation12 + $0x90] sm:$0xf]
          %v4504 = vld [vmem:[#allocation12 + $0x94] sm:$0xf]
          %v4505 = vld [vmem:[#allocation12 + $0x98] sm:$0xf]
          %v4506 = vld [vmem:[#allocation12 + $0x9c] sm:$0xf]
          %v4507 = vld [vmem:[#allocation12 + $0xa0] sm:$0xf]
          %v4508 = vld [vmem:[#allocation12 + $0xa4] sm:$0xf]
          %v4509 = vld [vmem:[#allocation12 + $0xa8] sm:$0xf]
          %v4510 = vld [vmem:[#allocation12 + $0xac] sm:$0xf]
          %v4511 = vld [vmem:[#allocation12 + $0xb0] sm:$0xf]
          %v4512 = vld [vmem:[#allocation12 + $0xb4] sm:$0xf]
          %v4513 = vld [vmem:[#allocation12 + $0xb8] sm:$0xf]
          %v4514 = vld [vmem:[#allocation12 + $0xbc] sm:$0xf]
          %v4531 = vunpack.c.l.b16 %v4499
          %v4532 = vunpack.c.l.b16 %v4500
          %v4533 = vunpack.c.l.b16 %v4501
          %v4534 = vunpack.c.l.b16 %v4502
          %v4535 = vunpack.c.l.b16 %v4503
          %v4536 = vunpack.c.l.b16 %v4504
          %v4537 = vunpack.c.l.b16 %v4505
          %v4538 = vunpack.c.l.b16 %v4506
          %v4539 = vunpack.c.l.b16 %v4507
          %v4540 = vunpack.c.l.b16 %v4508
          %v4541 = vunpack.c.l.b16 %v4509
          %v4542 = vunpack.c.l.b16 %v4510
          %v4543 = vunpack.c.l.b16 %v4511
          %v4544 = vunpack.c.l.b16 %v4512
          %v4545 = vunpack.c.l.b16 %v4513
          %v4546 = vunpack.c.l.b16 %v4514
          %v4547 = vpack.c.b16 %v4532, %v4531
          %v4548 = vpack.c.b16 %v4534, %v4533
          %v4549 = vpack.c.b16 %v4536, %v4535
          %v4550 = vpack.c.b16 %v4538, %v4537
          %v4551 = vpack.c.b16 %v4540, %v4539
          %v4552 = vpack.c.b16 %v4542, %v4541
          %v4553 = vpack.c.b16 %v4544, %v4543
          %v4554 = vpack.c.b16 %v4546, %v4545
          %4563 = vmatprep.subr.bf16.mxu0 0
          %4564 = vmatpush1.bf16.msra.mxu0 %v4554
          %4565 = vmatprep.subr.bf16.mxu0 0
          %4566 = vmatpush1.bf16.msra.mxu0 %v4553
          %4567 = vmatprep.subr.bf16.mxu0 0
          %4568 = vmatpush1.bf16.msra.mxu0 %v4552
          %4569 = vmatprep.subr.bf16.mxu0 0
          %4570 = vmatpush1.bf16.msra.mxu0 %v4551
          %4571 = vmatprep.subr.bf16.mxu0 0
          %4572 = vmatpush1.bf16.msra.mxu0 %v4550
          %4573 = vmatprep.subr.bf16.mxu0 0
          %4574 = vmatpush1.bf16.msra.mxu0 %v4549
          %4575 = vmatprep.subr.bf16.mxu0 0
          %4576 = vmatpush1.bf16.msra.mxu0 %v4548
          %4577 = vmatprep.subr.bf16.mxu0 0
          %4578 = vmatpush1.bf16.msra.mxu0 %v4547
          %4579 = vmatprep.subr.bf16.mxu0 0
          %4580 = vmatpush2.bf16.msra.mxu0 0
          %4581 = vmatprep.subr.bf16.mxu0 0
          %4582 = vmatpush2.bf16.msra.mxu0 0
          %4583 = vmatprep.subr.bf16.mxu0 0
          %4584 = vmatpush2.bf16.msra.mxu0 0
          %4585 = vmatprep.subr.bf16.mxu0 0
          %4586 = vmatpush2.bf16.msra.mxu0 0
          %4587 = vmatprep.subr.bf16.mxu0 0
          %4588 = vmatpush2.bf16.msra.mxu0 0
          %4589 = vmatprep.subr.bf16.mxu0 0
          %4590 = vmatpush2.bf16.msra.mxu0 0
          %4591 = vmatprep.subr.bf16.mxu0 0
          %4592 = vmatpush2.bf16.msra.mxu0 0
          %4593 = vmatprep.subr.bf16.mxu0 0
          %4594 = vmatpush2.bf16.msra.mxu0 0
          %4595 = vmatprep.mubr.bf16.mxu0 0
          %4596 = vmatmul.mubr.bf16.gmra.mxu0 %v4497
          %v4597 = vpop.f32.mrf.mxu0
          %v4598 = vadd.f32 0.0, %v4597
          %v4599 = vpop.f32.mrf.mxu0
          %v4600 = vpop.f32.mrf.mxu0
          %v4601 = vadd.f32 0.0, %v4600
          %v4602 = vpop.f32.mrf.mxu0
          %4603 = vmatprep.mubr.bf16.mxu0 0
          %4604 = vmatmul.mubr.bf16.gmra.mxu0 %v4498
          %v4605 = vpop.f32.mrf.mxu0
          %v4606 = vadd.f32 0.0, %v4605
          %v4607 = vpop.f32.mrf.mxu0
          %v4608 = vpop.f32.mrf.mxu0
          %v4609 = vadd.f32 0.0, %v4608
          %v4610 = vpop.f32.mrf.mxu0
          %4611 = vdwg.mxu0
          %v4612 = vadd.f32 %v4469, %v4598
          %v4613 = vadd.f32 %v4470, %v4601
          %v4614 = vadd.f32 %v4471, %v4606
          %v4615 = vadd.f32 %v4472, %v4609
          %v4616 = vld [vmem:[#allocation5 + $0x18] sm:$0xff]
          %v4617 = vld [vmem:[#allocation5 + $0x58] sm:$0xff]
          %v4618 = vld [vmem:[#allocation5 + $0x98] sm:$0xff]
          %v4619 = vld [vmem:[#allocation5 + $0xd8] sm:$0xff]
          %4620 = vset.pattern.permute.xlu0 3
          %4621 = vperm.xlu0 %4620, %v4173
          %v4622 = vpop.permute.xlu0 %4621
          %4624 = vset.pattern.permute.xlu0 3
          %4625 = vperm.xlu0 %4624, %v4174
          %v4626 = vpop.permute.xlu0 %4625
          %4628 = vset.pattern.permute.xlu0 3
          %4629 = vperm.xlu0 %4628, %v4175
          %v4630 = vpop.permute.xlu0 %4629
          %4632 = vset.pattern.permute.xlu0 3
          %4633 = vperm.xlu0 %4632, %v4176
          %v4634 = vpop.permute.xlu0 %4633
          %v4636 = vmul.f32 %v4616, %v4622
          %v4637 = vmul.f32 %v4617, %v4626
          %v4638 = vmul.f32 %v4618, %v4630
          %v4639 = vmul.f32 %v4619, %v4634
          %v4640 = vpack.c.bf16 %v4637, %v4636
          %v4641 = vpack.c.bf16 %v4639, %v4638
          %v4642 = vld [vmem:[#allocation12 + $0xc0] sm:$0xf]
          %v4643 = vld [vmem:[#allocation12 + $0xc4] sm:$0xf]
          %v4644 = vld [vmem:[#allocation12 + $0xc8] sm:$0xf]
          %v4645 = vld [vmem:[#allocation12 + $0xcc] sm:$0xf]
          %v4646 = vld [vmem:[#allocation12 + $0xd0] sm:$0xf]
          %v4647 = vld [vmem:[#allocation12 + $0xd4] sm:$0xf]
          %v4648 = vld [vmem:[#allocation12 + $0xd8] sm:$0xf]
          %v4649 = vld [vmem:[#allocation12 + $0xdc] sm:$0xf]
          %v4650 = vld [vmem:[#allocation12 + $0xe0] sm:$0xf]
          %v4651 = vld [vmem:[#allocation12 + $0xe4] sm:$0xf]
          %v4652 = vld [vmem:[#allocation12 + $0xe8] sm:$0xf]
          %v4653 = vld [vmem:[#allocation12 + $0xec] sm:$0xf]
          %v4654 = vld [vmem:[#allocation12 + $0xf0] sm:$0xf]
          %v4655 = vld [vmem:[#allocation12 + $0xf4] sm:$0xf]
          %v4656 = vld [vmem:[#allocation12 + $0xf8] sm:$0xf]
          %v4657 = vld [vmem:[#allocation12 + $0xfc] sm:$0xf]
          %v4674 = vunpack.c.l.b16 %v4642
          %v4675 = vunpack.c.l.b16 %v4643
          %v4676 = vunpack.c.l.b16 %v4644
          %v4677 = vunpack.c.l.b16 %v4645
          %v4678 = vunpack.c.l.b16 %v4646
          %v4679 = vunpack.c.l.b16 %v4647
          %v4680 = vunpack.c.l.b16 %v4648
          %v4681 = vunpack.c.l.b16 %v4649
          %v4682 = vunpack.c.l.b16 %v4650
          %v4683 = vunpack.c.l.b16 %v4651
          %v4684 = vunpack.c.l.b16 %v4652
          %v4685 = vunpack.c.l.b16 %v4653
          %v4686 = vunpack.c.l.b16 %v4654
          %v4687 = vunpack.c.l.b16 %v4655
          %v4688 = vunpack.c.l.b16 %v4656
          %v4689 = vunpack.c.l.b16 %v4657
          %v4690 = vpack.c.b16 %v4675, %v4674
          %v4691 = vpack.c.b16 %v4677, %v4676
          %v4692 = vpack.c.b16 %v4679, %v4678
          %v4693 = vpack.c.b16 %v4681, %v4680
          %v4694 = vpack.c.b16 %v4683, %v4682
          %v4695 = vpack.c.b16 %v4685, %v4684
          %v4696 = vpack.c.b16 %v4687, %v4686
          %v4697 = vpack.c.b16 %v4689, %v4688
          %4706 = vmatprep.subr.bf16.mxu0 0
          %4707 = vmatpush1.bf16.msra.mxu0 %v4697
          %4708 = vmatprep.subr.bf16.mxu0 0
          %4709 = vmatpush1.bf16.msra.mxu0 %v4696
          %4710 = vmatprep.subr.bf16.mxu0 0
          %4711 = vmatpush1.bf16.msra.mxu0 %v4695
          %4712 = vmatprep.subr.bf16.mxu0 0
          %4713 = vmatpush1.bf16.msra.mxu0 %v4694
          %4714 = vmatprep.subr.bf16.mxu0 0
          %4715 = vmatpush1.bf16.msra.mxu0 %v4693
          %4716 = vmatprep.subr.bf16.mxu0 0
          %4717 = vmatpush1.bf16.msra.mxu0 %v4692
          %4718 = vmatprep.subr.bf16.mxu0 0
          %4719 = vmatpush1.bf16.msra.mxu0 %v4691
          %4720 = vmatprep.subr.bf16.mxu0 0
          %4721 = vmatpush1.bf16.msra.mxu0 %v4690
          %4722 = vmatprep.subr.bf16.mxu0 0
          %4723 = vmatpush2.bf16.msra.mxu0 0
          %4724 = vmatprep.subr.bf16.mxu0 0
          %4725 = vmatpush2.bf16.msra.mxu0 0
          %4726 = vmatprep.subr.bf16.mxu0 0
          %4727 = vmatpush2.bf16.msra.mxu0 0
          %4728 = vmatprep.subr.bf16.mxu0 0
          %4729 = vmatpush2.bf16.msra.mxu0 0
          %4730 = vmatprep.subr.bf16.mxu0 0
          %4731 = vmatpush2.bf16.msra.mxu0 0
          %4732 = vmatprep.subr.bf16.mxu0 0
          %4733 = vmatpush2.bf16.msra.mxu0 0
          %4734 = vmatprep.subr.bf16.mxu0 0
          %4735 = vmatpush2.bf16.msra.mxu0 0
          %4736 = vmatprep.subr.bf16.mxu0 0
          %4737 = vmatpush2.bf16.msra.mxu0 0
          %4738 = vmatprep.mubr.bf16.mxu0 0
          %4739 = vmatmul.mubr.bf16.gmra.mxu0 %v4640
          %v4740 = vpop.f32.mrf.mxu0
          %v4741 = vadd.f32 0.0, %v4740
          %v4742 = vpop.f32.mrf.mxu0
          %v4743 = vpop.f32.mrf.mxu0
          %v4744 = vadd.f32 0.0, %v4743
          %v4745 = vpop.f32.mrf.mxu0
          %4746 = vmatprep.mubr.bf16.mxu0 0
          %4747 = vmatmul.mubr.bf16.gmra.mxu0 %v4641
          %v4748 = vpop.f32.mrf.mxu0
          %v4749 = vadd.f32 0.0, %v4748
          %v4750 = vpop.f32.mrf.mxu0
          %v4751 = vpop.f32.mrf.mxu0
          %v4752 = vadd.f32 0.0, %v4751
          %v4753 = vpop.f32.mrf.mxu0
          %4754 = vdwg.mxu0
          %v4755 = vadd.f32 %v4612, %v4741
          %v4756 = vadd.f32 %v4613, %v4744
          %v4757 = vadd.f32 %v4614, %v4749
          %v4758 = vadd.f32 %v4615, %v4752
          %v4759 = vld [vmem:[#allocation5 + $0x20] sm:$0xff]
          %v4760 = vld [vmem:[#allocation5 + $0x60] sm:$0xff]
          %v4761 = vld [vmem:[#allocation5 + $0xa0] sm:$0xff]
          %v4762 = vld [vmem:[#allocation5 + $0xe0] sm:$0xff]
          %4763 = vset.pattern.permute.xlu0 4
          %4764 = vperm.xlu0 %4763, %v4173
          %v4765 = vpop.permute.xlu0 %4764
          %4767 = vset.pattern.permute.xlu0 4
          %4768 = vperm.xlu0 %4767, %v4174
          %v4769 = vpop.permute.xlu0 %4768
          %4771 = vset.pattern.permute.xlu0 4
          %4772 = vperm.xlu0 %4771, %v4175
          %v4773 = vpop.permute.xlu0 %4772
          %4775 = vset.pattern.permute.xlu0 4
          %4776 = vperm.xlu0 %4775, %v4176
          %v4777 = vpop.permute.xlu0 %4776
          %v4779 = vmul.f32 %v4759, %v4765
          %v4780 = vmul.f32 %v4760, %v4769
          %v4781 = vmul.f32 %v4761, %v4773
          %v4782 = vmul.f32 %v4762, %v4777
          %v4783 = vpack.c.bf16 %v4780, %v4779
          %v4784 = vpack.c.bf16 %v4782, %v4781
          %v4785 = vld [vmem:[#allocation12 + $0x100] sm:$0xf]
          %v4786 = vld [vmem:[#allocation12 + $0x104] sm:$0xf]
          %v4787 = vld [vmem:[#allocation12 + $0x108] sm:$0xf]
          %v4788 = vld [vmem:[#allocation12 + $0x10c] sm:$0xf]
          %v4789 = vld [vmem:[#allocation12 + $0x110] sm:$0xf]
          %v4790 = vld [vmem:[#allocation12 + $0x114] sm:$0xf]
          %v4791 = vld [vmem:[#allocation12 + $0x118] sm:$0xf]
          %v4792 = vld [vmem:[#allocation12 + $0x11c] sm:$0xf]
          %v4793 = vld [vmem:[#allocation12 + $0x120] sm:$0xf]
          %v4794 = vld [vmem:[#allocation12 + $0x124] sm:$0xf]
          %v4795 = vld [vmem:[#allocation12 + $0x128] sm:$0xf]
          %v4796 = vld [vmem:[#allocation12 + $0x12c] sm:$0xf]
          %v4797 = vld [vmem:[#allocation12 + $0x130] sm:$0xf]
          %v4798 = vld [vmem:[#allocation12 + $0x134] sm:$0xf]
          %v4799 = vld [vmem:[#allocation12 + $0x138] sm:$0xf]
          %v4800 = vld [vmem:[#allocation12 + $0x13c] sm:$0xf]
          %v4817 = vunpack.c.l.b16 %v4785
          %v4818 = vunpack.c.l.b16 %v4786
          %v4819 = vunpack.c.l.b16 %v4787
          %v4820 = vunpack.c.l.b16 %v4788
          %v4821 = vunpack.c.l.b16 %v4789
          %v4822 = vunpack.c.l.b16 %v4790
          %v4823 = vunpack.c.l.b16 %v4791
          %v4824 = vunpack.c.l.b16 %v4792
          %v4825 = vunpack.c.l.b16 %v4793
          %v4826 = vunpack.c.l.b16 %v4794
          %v4827 = vunpack.c.l.b16 %v4795
          %v4828 = vunpack.c.l.b16 %v4796
          %v4829 = vunpack.c.l.b16 %v4797
          %v4830 = vunpack.c.l.b16 %v4798
          %v4831 = vunpack.c.l.b16 %v4799
          %v4832 = vunpack.c.l.b16 %v4800
          %v4833 = vpack.c.b16 %v4818, %v4817
          %v4834 = vpack.c.b16 %v4820, %v4819
          %v4835 = vpack.c.b16 %v4822, %v4821
          %v4836 = vpack.c.b16 %v4824, %v4823
          %v4837 = vpack.c.b16 %v4826, %v4825
          %v4838 = vpack.c.b16 %v4828, %v4827
          %v4839 = vpack.c.b16 %v4830, %v4829
          %v4840 = vpack.c.b16 %v4832, %v4831
          %4849 = vmatprep.subr.bf16.mxu0 0
          %4850 = vmatpush1.bf16.msra.mxu0 %v4840
          %4851 = vmatprep.subr.bf16.mxu0 0
          %4852 = vmatpush1.bf16.msra.mxu0 %v4839
          %4853 = vmatprep.subr.bf16.mxu0 0
          %4854 = vmatpush1.bf16.msra.mxu0 %v4838
          %4855 = vmatprep.subr.bf16.mxu0 0
          %4856 = vmatpush1.bf16.msra.mxu0 %v4837
          %4857 = vmatprep.subr.bf16.mxu0 0
          %4858 = vmatpush1.bf16.msra.mxu0 %v4836
          %4859 = vmatprep.subr.bf16.mxu0 0
          %4860 = vmatpush1.bf16.msra.mxu0 %v4835
          %4861 = vmatprep.subr.bf16.mxu0 0
          %4862 = vmatpush1.bf16.msra.mxu0 %v4834
          %4863 = vmatprep.subr.bf16.mxu0 0
          %4864 = vmatpush1.bf16.msra.mxu0 %v4833
          %4865 = vmatprep.subr.bf16.mxu0 0
          %4866 = vmatpush2.bf16.msra.mxu0 0
          %4867 = vmatprep.subr.bf16.mxu0 0
          %4868 = vmatpush2.bf16.msra.mxu0 0
          %4869 = vmatprep.subr.bf16.mxu0 0
          %4870 = vmatpush2.bf16.msra.mxu0 0
          %4871 = vmatprep.subr.bf16.mxu0 0
          %4872 = vmatpush2.bf16.msra.mxu0 0
          %4873 = vmatprep.subr.bf16.mxu0 0
          %4874 = vmatpush2.bf16.msra.mxu0 0
          %4875 = vmatprep.subr.bf16.mxu0 0
          %4876 = vmatpush2.bf16.msra.mxu0 0
          %4877 = vmatprep.subr.bf16.mxu0 0
          %4878 = vmatpush2.bf16.msra.mxu0 0
          %4879 = vmatprep.subr.bf16.mxu0 0
          %4880 = vmatpush2.bf16.msra.mxu0 0
          %4881 = vmatprep.mubr.bf16.mxu0 0
          %4882 = vmatmul.mubr.bf16.gmra.mxu0 %v4783
          %v4883 = vpop.f32.mrf.mxu0
          %v4884 = vadd.f32 0.0, %v4883
          %v4885 = vpop.f32.mrf.mxu0
          %v4886 = vpop.f32.mrf.mxu0
          %v4887 = vadd.f32 0.0, %v4886
          %v4888 = vpop.f32.mrf.mxu0
          %4889 = vmatprep.mubr.bf16.mxu0 0
          %4890 = vmatmul.mubr.bf16.gmra.mxu0 %v4784
          %v4891 = vpop.f32.mrf.mxu0
          %v4892 = vadd.f32 0.0, %v4891
          %v4893 = vpop.f32.mrf.mxu0
          %v4894 = vpop.f32.mrf.mxu0
          %v4895 = vadd.f32 0.0, %v4894
          %v4896 = vpop.f32.mrf.mxu0
          %4897 = vdwg.mxu0
          %v4898 = vadd.f32 %v4755, %v4884
          %v4899 = vadd.f32 %v4756, %v4887
          %v4900 = vadd.f32 %v4757, %v4892
          %v4901 = vadd.f32 %v4758, %v4895
          %v4902 = vld [vmem:[#allocation5 + $0x28] sm:$0xff]
          %v4903 = vld [vmem:[#allocation5 + $0x68] sm:$0xff]
          %v4904 = vld [vmem:[#allocation5 + $0xa8] sm:$0xff]
          %v4905 = vld [vmem:[#allocation5 + $0xe8] sm:$0xff]
          %4906 = vset.pattern.permute.xlu0 5
          %4907 = vperm.xlu0 %4906, %v4173
          %v4908 = vpop.permute.xlu0 %4907
          %4910 = vset.pattern.permute.xlu0 5
          %4911 = vperm.xlu0 %4910, %v4174
          %v4912 = vpop.permute.xlu0 %4911
          %4914 = vset.pattern.permute.xlu0 5
          %4915 = vperm.xlu0 %4914, %v4175
          %v4916 = vpop.permute.xlu0 %4915
          %4918 = vset.pattern.permute.xlu0 5
          %4919 = vperm.xlu0 %4918, %v4176
          %v4920 = vpop.permute.xlu0 %4919
          %v4922 = vmul.f32 %v4902, %v4908
          %v4923 = vmul.f32 %v4903, %v4912
          %v4924 = vmul.f32 %v4904, %v4916
          %v4925 = vmul.f32 %v4905, %v4920
          %v4926 = vpack.c.bf16 %v4923, %v4922
          %v4927 = vpack.c.bf16 %v4925, %v4924
          %v4928 = vld [vmem:[#allocation12 + $0x140] sm:$0xf]
          %v4929 = vld [vmem:[#allocation12 + $0x144] sm:$0xf]
          %v4930 = vld [vmem:[#allocation12 + $0x148] sm:$0xf]
          %v4931 = vld [vmem:[#allocation12 + $0x14c] sm:$0xf]
          %v4932 = vld [vmem:[#allocation12 + $0x150] sm:$0xf]
          %v4933 = vld [vmem:[#allocation12 + $0x154] sm:$0xf]
          %v4934 = vld [vmem:[#allocation12 + $0x158] sm:$0xf]
          %v4935 = vld [vmem:[#allocation12 + $0x15c] sm:$0xf]
          %v4936 = vld [vmem:[#allocation12 + $0x160] sm:$0xf]
          %v4937 = vld [vmem:[#allocation12 + $0x164] sm:$0xf]
          %v4938 = vld [vmem:[#allocation12 + $0x168] sm:$0xf]
          %v4939 = vld [vmem:[#allocation12 + $0x16c] sm:$0xf]
          %v4940 = vld [vmem:[#allocation12 + $0x170] sm:$0xf]
          %v4941 = vld [vmem:[#allocation12 + $0x174] sm:$0xf]
          %v4942 = vld [vmem:[#allocation12 + $0x178] sm:$0xf]
          %v4943 = vld [vmem:[#allocation12 + $0x17c] sm:$0xf]
          %v4960 = vunpack.c.l.b16 %v4928
          %v4961 = vunpack.c.l.b16 %v4929
          %v4962 = vunpack.c.l.b16 %v4930
          %v4963 = vunpack.c.l.b16 %v4931
          %v4964 = vunpack.c.l.b16 %v4932
          %v4965 = vunpack.c.l.b16 %v4933
          %v4966 = vunpack.c.l.b16 %v4934
          %v4967 = vunpack.c.l.b16 %v4935
          %v4968 = vunpack.c.l.b16 %v4936
          %v4969 = vunpack.c.l.b16 %v4937
          %v4970 = vunpack.c.l.b16 %v4938
          %v4971 = vunpack.c.l.b16 %v4939
          %v4972 = vunpack.c.l.b16 %v4940
          %v4973 = vunpack.c.l.b16 %v4941
          %v4974 = vunpack.c.l.b16 %v4942
          %v4975 = vunpack.c.l.b16 %v4943
          %v4976 = vpack.c.b16 %v4961, %v4960
          %v4977 = vpack.c.b16 %v4963, %v4962
          %v4978 = vpack.c.b16 %v4965, %v4964
          %v4979 = vpack.c.b16 %v4967, %v4966
          %v4980 = vpack.c.b16 %v4969, %v4968
          %v4981 = vpack.c.b16 %v4971, %v4970
          %v4982 = vpack.c.b16 %v4973, %v4972
          %v4983 = vpack.c.b16 %v4975, %v4974
          %4992 = vmatprep.subr.bf16.mxu0 0
          %4993 = vmatpush1.bf16.msra.mxu0 %v4983
          %4994 = vmatprep.subr.bf16.mxu0 0
          %4995 = vmatpush1.bf16.msra.mxu0 %v4982
          %4996 = vmatprep.subr.bf16.mxu0 0
          %4997 = vmatpush1.bf16.msra.mxu0 %v4981
          %4998 = vmatprep.subr.bf16.mxu0 0
          %4999 = vmatpush1.bf16.msra.mxu0 %v4980
          %5000 = vmatprep.subr.bf16.mxu0 0
          %5001 = vmatpush1.bf16.msra.mxu0 %v4979
          %5002 = vmatprep.subr.bf16.mxu0 0
          %5003 = vmatpush1.bf16.msra.mxu0 %v4978
          %5004 = vmatprep.subr.bf16.mxu0 0
          %5005 = vmatpush1.bf16.msra.mxu0 %v4977
          %5006 = vmatprep.subr.bf16.mxu0 0
          %5007 = vmatpush1.bf16.msra.mxu0 %v4976
          %5008 = vmatprep.subr.bf16.mxu0 0
          %5009 = vmatpush2.bf16.msra.mxu0 0
          %5010 = vmatprep.subr.bf16.mxu0 0
          %5011 = vmatpush2.bf16.msra.mxu0 0
          %5012 = vmatprep.subr.bf16.mxu0 0
          %5013 = vmatpush2.bf16.msra.mxu0 0
          %5014 = vmatprep.subr.bf16.mxu0 0
          %5015 = vmatpush2.bf16.msra.mxu0 0
          %5016 = vmatprep.subr.bf16.mxu0 0
          %5017 = vmatpush2.bf16.msra.mxu0 0
          %5018 = vmatprep.subr.bf16.mxu0 0
          %5019 = vmatpush2.bf16.msra.mxu0 0
          %5020 = vmatprep.subr.bf16.mxu0 0
          %5021 = vmatpush2.bf16.msra.mxu0 0
          %5022 = vmatprep.subr.bf16.mxu0 0
          %5023 = vmatpush2.bf16.msra.mxu0 0
          %5024 = vmatprep.mubr.bf16.mxu0 0
          %5025 = vmatmul.mubr.bf16.gmra.mxu0 %v4926
          %v5026 = vpop.f32.mrf.mxu0
          %v5027 = vadd.f32 0.0, %v5026
          %v5028 = vpop.f32.mrf.mxu0
          %v5029 = vpop.f32.mrf.mxu0
          %v5030 = vadd.f32 0.0, %v5029
          %v5031 = vpop.f32.mrf.mxu0
          %5032 = vmatprep.mubr.bf16.mxu0 0
          %5033 = vmatmul.mubr.bf16.gmra.mxu0 %v4927
          %v5034 = vpop.f32.mrf.mxu0
          %v5035 = vadd.f32 0.0, %v5034
          %v5036 = vpop.f32.mrf.mxu0
          %v5037 = vpop.f32.mrf.mxu0
          %v5038 = vadd.f32 0.0, %v5037
          %v5039 = vpop.f32.mrf.mxu0
          %5040 = vdwg.mxu0
          %v5041 = vadd.f32 %v4898, %v5027
          %v5042 = vadd.f32 %v4899, %v5030
          %v5043 = vadd.f32 %v4900, %v5035
          %v5044 = vadd.f32 %v4901, %v5038
          %v5045 = vld [vmem:[#allocation5 + $0x30] sm:$0xff]
          %v5046 = vld [vmem:[#allocation5 + $0x70] sm:$0xff]
          %v5047 = vld [vmem:[#allocation5 + $0xb0] sm:$0xff]
          %v5048 = vld [vmem:[#allocation5 + $0xf0] sm:$0xff]
          %5049 = vset.pattern.permute.xlu0 6
          %5050 = vperm.xlu0 %5049, %v4173
          %v5051 = vpop.permute.xlu0 %5050
          %5053 = vset.pattern.permute.xlu0 6
          %5054 = vperm.xlu0 %5053, %v4174
          %v5055 = vpop.permute.xlu0 %5054
          %5057 = vset.pattern.permute.xlu0 6
          %5058 = vperm.xlu0 %5057, %v4175
          %v5059 = vpop.permute.xlu0 %5058
          %5061 = vset.pattern.permute.xlu0 6
          %5062 = vperm.xlu0 %5061, %v4176
          %v5063 = vpop.permute.xlu0 %5062
          %v5065 = vmul.f32 %v5045, %v5051
          %v5066 = vmul.f32 %v5046, %v5055
          %v5067 = vmul.f32 %v5047, %v5059
          %v5068 = vmul.f32 %v5048, %v5063
          %v5069 = vpack.c.bf16 %v5066, %v5065
          %v5070 = vpack.c.bf16 %v5068, %v5067
          %v5071 = vld [vmem:[#allocation12 + $0x180] sm:$0xf]
          %v5072 = vld [vmem:[#allocation12 + $0x184] sm:$0xf]
          %v5073 = vld [vmem:[#allocation12 + $0x188] sm:$0xf]
          %v5074 = vld [vmem:[#allocation12 + $0x18c] sm:$0xf]
          %v5075 = vld [vmem:[#allocation12 + $0x190] sm:$0xf]
          %v5076 = vld [vmem:[#allocation12 + $0x194] sm:$0xf]
          %v5077 = vld [vmem:[#allocation12 + $0x198] sm:$0xf]
          %v5078 = vld [vmem:[#allocation12 + $0x19c] sm:$0xf]
          %v5079 = vld [vmem:[#allocation12 + $0x1a0] sm:$0xf]
          %v5080 = vld [vmem:[#allocation12 + $0x1a4] sm:$0xf]
          %v5081 = vld [vmem:[#allocation12 + $0x1a8] sm:$0xf]
          %v5082 = vld [vmem:[#allocation12 + $0x1ac] sm:$0xf]
          %v5083 = vld [vmem:[#allocation12 + $0x1b0] sm:$0xf]
          %v5084 = vld [vmem:[#allocation12 + $0x1b4] sm:$0xf]
          %v5085 = vld [vmem:[#allocation12 + $0x1b8] sm:$0xf]
          %v5086 = vld [vmem:[#allocation12 + $0x1bc] sm:$0xf]
          %v5103 = vunpack.c.l.b16 %v5071
          %v5104 = vunpack.c.l.b16 %v5072
          %v5105 = vunpack.c.l.b16 %v5073
          %v5106 = vunpack.c.l.b16 %v5074
          %v5107 = vunpack.c.l.b16 %v5075
          %v5108 = vunpack.c.l.b16 %v5076
          %v5109 = vunpack.c.l.b16 %v5077
          %v5110 = vunpack.c.l.b16 %v5078
          %v5111 = vunpack.c.l.b16 %v5079
          %v5112 = vunpack.c.l.b16 %v5080
          %v5113 = vunpack.c.l.b16 %v5081
          %v5114 = vunpack.c.l.b16 %v5082
          %v5115 = vunpack.c.l.b16 %v5083
          %v5116 = vunpack.c.l.b16 %v5084
          %v5117 = vunpack.c.l.b16 %v5085
          %v5118 = vunpack.c.l.b16 %v5086
          %v5119 = vpack.c.b16 %v5104, %v5103
          %v5120 = vpack.c.b16 %v5106, %v5105
          %v5121 = vpack.c.b16 %v5108, %v5107
          %v5122 = vpack.c.b16 %v5110, %v5109
          %v5123 = vpack.c.b16 %v5112, %v5111
          %v5124 = vpack.c.b16 %v5114, %v5113
          %v5125 = vpack.c.b16 %v5116, %v5115
          %v5126 = vpack.c.b16 %v5118, %v5117
          %5135 = vmatprep.subr.bf16.mxu0 0
          %5136 = vmatpush1.bf16.msra.mxu0 %v5126
          %5137 = vmatprep.subr.bf16.mxu0 0
          %5138 = vmatpush1.bf16.msra.mxu0 %v5125
          %5139 = vmatprep.subr.bf16.mxu0 0
          %5140 = vmatpush1.bf16.msra.mxu0 %v5124
          %5141 = vmatprep.subr.bf16.mxu0 0
          %5142 = vmatpush1.bf16.msra.mxu0 %v5123
          %5143 = vmatprep.subr.bf16.mxu0 0
          %5144 = vmatpush1.bf16.msra.mxu0 %v5122
          %5145 = vmatprep.subr.bf16.mxu0 0
          %5146 = vmatpush1.bf16.msra.mxu0 %v5121
          %5147 = vmatprep.subr.bf16.mxu0 0
          %5148 = vmatpush1.bf16.msra.mxu0 %v5120
          %5149 = vmatprep.subr.bf16.mxu0 0
          %5150 = vmatpush1.bf16.msra.mxu0 %v5119
          %5151 = vmatprep.subr.bf16.mxu0 0
          %5152 = vmatpush2.bf16.msra.mxu0 0
          %5153 = vmatprep.subr.bf16.mxu0 0
          %5154 = vmatpush2.bf16.msra.mxu0 0
          %5155 = vmatprep.subr.bf16.mxu0 0
          %5156 = vmatpush2.bf16.msra.mxu0 0
          %5157 = vmatprep.subr.bf16.mxu0 0
          %5158 = vmatpush2.bf16.msra.mxu0 0
          %5159 = vmatprep.subr.bf16.mxu0 0
          %5160 = vmatpush2.bf16.msra.mxu0 0
          %5161 = vmatprep.subr.bf16.mxu0 0
          %5162 = vmatpush2.bf16.msra.mxu0 0
          %5163 = vmatprep.subr.bf16.mxu0 0
          %5164 = vmatpush2.bf16.msra.mxu0 0
          %5165 = vmatprep.subr.bf16.mxu0 0
          %5166 = vmatpush2.bf16.msra.mxu0 0
          %5167 = vmatprep.mubr.bf16.mxu0 0
          %5168 = vmatmul.mubr.bf16.gmra.mxu0 %v5069
          %v5169 = vpop.f32.mrf.mxu0
          %v5170 = vadd.f32 0.0, %v5169
          %v5171 = vpop.f32.mrf.mxu0
          %v5172 = vpop.f32.mrf.mxu0
          %v5173 = vadd.f32 0.0, %v5172
          %v5174 = vpop.f32.mrf.mxu0
          %5175 = vmatprep.mubr.bf16.mxu0 0
          %5176 = vmatmul.mubr.bf16.gmra.mxu0 %v5070
          %v5177 = vpop.f32.mrf.mxu0
          %v5178 = vadd.f32 0.0, %v5177
          %v5179 = vpop.f32.mrf.mxu0
          %v5180 = vpop.f32.mrf.mxu0
          %v5181 = vadd.f32 0.0, %v5180
          %v5182 = vpop.f32.mrf.mxu0
          %5183 = vdwg.mxu0
          %v5184 = vadd.f32 %v5041, %v5170
          %v5185 = vadd.f32 %v5042, %v5173
          %v5186 = vadd.f32 %v5043, %v5178
          %v5187 = vadd.f32 %v5044, %v5181
          %v5188 = vld [vmem:[#allocation5 + $0x38] sm:$0xff]
          %v5189 = vld [vmem:[#allocation5 + $0x78] sm:$0xff]
          %v5190 = vld [vmem:[#allocation5 + $0xb8] sm:$0xff]
          %v5191 = vld [vmem:[#allocation5 + $0xf8] sm:$0xff]
          %5192 = vset.pattern.permute.xlu0 7
          %5193 = vperm.xlu0 %5192, %v4173
          %v5194 = vpop.permute.xlu0 %5193
          %5196 = vset.pattern.permute.xlu0 7
          %5197 = vperm.xlu0 %5196, %v4174
          %v5198 = vpop.permute.xlu0 %5197
          %5200 = vset.pattern.permute.xlu0 7
          %5201 = vperm.xlu0 %5200, %v4175
          %v5202 = vpop.permute.xlu0 %5201
          %5204 = vset.pattern.permute.xlu0 7
          %5205 = vperm.xlu0 %5204, %v4176
          %v5206 = vpop.permute.xlu0 %5205
          %v5208 = vmul.f32 %v5188, %v5194
          %v5209 = vmul.f32 %v5189, %v5198
          %v5210 = vmul.f32 %v5190, %v5202
          %v5211 = vmul.f32 %v5191, %v5206
          %v5212 = vpack.c.bf16 %v5209, %v5208
          %v5213 = vpack.c.bf16 %v5211, %v5210
          %v5214 = vld [vmem:[#allocation12 + $0x1c0] sm:$0xf]
          %v5215 = vld [vmem:[#allocation12 + $0x1c4] sm:$0xf]
          %v5216 = vld [vmem:[#allocation12 + $0x1c8] sm:$0xf]
          %v5217 = vld [vmem:[#allocation12 + $0x1cc] sm:$0xf]
          %v5218 = vld [vmem:[#allocation12 + $0x1d0] sm:$0xf]
          %v5219 = vld [vmem:[#allocation12 + $0x1d4] sm:$0xf]
          %v5220 = vld [vmem:[#allocation12 + $0x1d8] sm:$0xf]
          %v5221 = vld [vmem:[#allocation12 + $0x1dc] sm:$0xf]
          %v5222 = vld [vmem:[#allocation12 + $0x1e0] sm:$0xf]
          %v5223 = vld [vmem:[#allocation12 + $0x1e4] sm:$0xf]
          %v5224 = vld [vmem:[#allocation12 + $0x1e8] sm:$0xf]
          %v5225 = vld [vmem:[#allocation12 + $0x1ec] sm:$0xf]
          %v5226 = vld [vmem:[#allocation12 + $0x1f0] sm:$0xf]
          %v5227 = vld [vmem:[#allocation12 + $0x1f4] sm:$0xf]
          %v5228 = vld [vmem:[#allocation12 + $0x1f8] sm:$0xf]
          %v5229 = vld [vmem:[#allocation12 + $0x1fc] sm:$0xf]
          %v5246 = vunpack.c.l.b16 %v5214
          %v5247 = vunpack.c.l.b16 %v5215
          %v5248 = vunpack.c.l.b16 %v5216
          %v5249 = vunpack.c.l.b16 %v5217
          %v5250 = vunpack.c.l.b16 %v5218
          %v5251 = vunpack.c.l.b16 %v5219
          %v5252 = vunpack.c.l.b16 %v5220
          %v5253 = vunpack.c.l.b16 %v5221
          %v5254 = vunpack.c.l.b16 %v5222
          %v5255 = vunpack.c.l.b16 %v5223
          %v5256 = vunpack.c.l.b16 %v5224
          %v5257 = vunpack.c.l.b16 %v5225
          %v5258 = vunpack.c.l.b16 %v5226
          %v5259 = vunpack.c.l.b16 %v5227
          %v5260 = vunpack.c.l.b16 %v5228
          %v5261 = vunpack.c.l.b16 %v5229
          %v5262 = vpack.c.b16 %v5247, %v5246
          %v5263 = vpack.c.b16 %v5249, %v5248
          %v5264 = vpack.c.b16 %v5251, %v5250
          %v5265 = vpack.c.b16 %v5253, %v5252
          %v5266 = vpack.c.b16 %v5255, %v5254
          %v5267 = vpack.c.b16 %v5257, %v5256
          %v5268 = vpack.c.b16 %v5259, %v5258
          %v5269 = vpack.c.b16 %v5261, %v5260
          %5278 = vmatprep.subr.bf16.mxu0 0
          %5279 = vmatpush1.bf16.msra.mxu0 %v5269
          %5280 = vmatprep.subr.bf16.mxu0 0
          %5281 = vmatpush1.bf16.msra.mxu0 %v5268
          %5282 = vmatprep.subr.bf16.mxu0 0
          %5283 = vmatpush1.bf16.msra.mxu0 %v5267
          %5284 = vmatprep.subr.bf16.mxu0 0
          %5285 = vmatpush1.bf16.msra.mxu0 %v5266
          %5286 = vmatprep.subr.bf16.mxu0 0
          %5287 = vmatpush1.bf16.msra.mxu0 %v5265
          %5288 = vmatprep.subr.bf16.mxu0 0
          %5289 = vmatpush1.bf16.msra.mxu0 %v5264
          %5290 = vmatprep.subr.bf16.mxu0 0
          %5291 = vmatpush1.bf16.msra.mxu0 %v5263
          %5292 = vmatprep.subr.bf16.mxu0 0
          %5293 = vmatpush1.bf16.msra.mxu0 %v5262
          %5294 = vmatprep.subr.bf16.mxu0 0
          %5295 = vmatpush2.bf16.msra.mxu0 0
          %5296 = vmatprep.subr.bf16.mxu0 0
          %5297 = vmatpush2.bf16.msra.mxu0 0
          %5298 = vmatprep.subr.bf16.mxu0 0
          %5299 = vmatpush2.bf16.msra.mxu0 0
          %5300 = vmatprep.subr.bf16.mxu0 0
          %5301 = vmatpush2.bf16.msra.mxu0 0
          %5302 = vmatprep.subr.bf16.mxu0 0
          %5303 = vmatpush2.bf16.msra.mxu0 0
          %5304 = vmatprep.subr.bf16.mxu0 0
          %5305 = vmatpush2.bf16.msra.mxu0 0
          %5306 = vmatprep.subr.bf16.mxu0 0
          %5307 = vmatpush2.bf16.msra.mxu0 0
          %5308 = vmatprep.subr.bf16.mxu0 0
          %5309 = vmatpush2.bf16.msra.mxu0 0
          %5310 = vmatprep.mubr.bf16.mxu0 0
          %5311 = vmatmul.mubr.bf16.gmra.mxu0 %v5212
          %v5312 = vpop.f32.mrf.mxu0
          %v5313 = vadd.f32 0.0, %v5312
          %v5314 = vpop.f32.mrf.mxu0
          %v5315 = vpop.f32.mrf.mxu0
          %v5316 = vadd.f32 0.0, %v5315
          %v5317 = vpop.f32.mrf.mxu0
          %5318 = vmatprep.mubr.bf16.mxu0 0
          %5319 = vmatmul.mubr.bf16.gmra.mxu0 %v5213
          %v5320 = vpop.f32.mrf.mxu0
          %v5321 = vadd.f32 0.0, %v5320
          %v5322 = vpop.f32.mrf.mxu0
          %v5323 = vpop.f32.mrf.mxu0
          %v5324 = vadd.f32 0.0, %v5323
          %v5325 = vpop.f32.mrf.mxu0
          %5326 = vdwg.mxu0
          %v5327 = vadd.f32 %v5184, %v5313
          %v5328 = vadd.f32 %v5185, %v5316
          %v5329 = vadd.f32 %v5186, %v5321
          %v5330 = vadd.f32 %v5187, %v5324
          %vm5331 = vcmp.gt.f32.partialorder %v4165, 0.0
          %vm5332 = vcmp.gt.f32.partialorder %v4166, 0.0
          %vm5333 = vcmp.gt.f32.partialorder %v4167, 0.0
          %vm5334 = vcmp.gt.f32.partialorder %v4168, 0.0
          %v5335 = vsel %vm5331, 1, 0
          %v5336 = vsel %vm5332, 1, 0
          %v5337 = vsel %vm5333, 1, 0
          %v5338 = vsel %vm5334, 1, 0
          %5339 = vset.pattern.permute.xlu0 0
          %5340 = vperm.xlu0 %5339, %v5335
          %v5341 = vpop.permute.xlu0 %5340
          %5342 = vset.pattern.permute.xlu0 0
          %5343 = vperm.xlu0 %5342, %v5336
          %v5344 = vpop.permute.xlu0 %5343
          %5345 = vset.pattern.permute.xlu0 0
          %5346 = vperm.xlu0 %5345, %v5337
          %v5347 = vpop.permute.xlu0 %5346
          %5348 = vset.pattern.permute.xlu0 0
          %5349 = vperm.xlu0 %5348, %v5338
          %v5350 = vpop.permute.xlu0 %5349
          %vm5351 = vcmp.eq.s32.totalorder %v5341, 1
          %vm5352 = vcmp.eq.s32.totalorder %v5344, 1
          %vm5353 = vcmp.eq.s32.totalorder %v5347, 1
          %vm5354 = vcmp.eq.s32.totalorder %v5350, 1
          %v5355 = vsel %vm5351, %v5327, 0.0
          %v5356 = vsel %vm5352, %v5328, 0.0
          %v5357 = vsel %vm5353, %v5329, 0.0
          %v5358 = vsel %vm5354, %v5330, 0.0
          %v5359 = vld [vmem:[%s634] sm:$0xff]
          %v5360 = vld [vmem:[%s634 + $0x8] sm:$0xff]
          %v5361 = vld [vmem:[%s634 + $0x10] sm:$0xff]
          %v5362 = vld [vmem:[%s634 + $0x18] sm:$0xff]
          %v5363 = vadd.f32 %v5359, %v5355
          %v5364 = vadd.f32 %v5360, %v5356
          %v5365 = vadd.f32 %v5361, %v5357
          %v5366 = vadd.f32 %v5362, %v5358
          %v5367 = vpack.c.bf16 %v5364, %v5363
          %v5368 = vpack.c.bf16 %v5366, %v5365
          %v5369 = vld [vmem:[%s10] sm:$0xf]
          %v5370 = vld [vmem:[%s10 + $0x4] sm:$0xf]
          %v5371 = vld [vmem:[%s10 + $0x8] sm:$0xf]
          %v5372 = vld [vmem:[%s10 + $0xc] sm:$0xf]
          %v5373 = vld [vmem:[%s10 + $0x10] sm:$0xf]
          %v5374 = vld [vmem:[%s10 + $0x14] sm:$0xf]
          %v5375 = vld [vmem:[%s10 + $0x18] sm:$0xf]
          %v5376 = vld [vmem:[%s10 + $0x1c] sm:$0xf]
          %v5377 = vld [vmem:[%s10 + $0x20] sm:$0xf]
          %v5378 = vld [vmem:[%s10 + $0x24] sm:$0xf]
          %v5379 = vld [vmem:[%s10 + $0x28] sm:$0xf]
          %v5380 = vld [vmem:[%s10 + $0x2c] sm:$0xf]
          %v5381 = vld [vmem:[%s10 + $0x30] sm:$0xf]
          %v5382 = vld [vmem:[%s10 + $0x34] sm:$0xf]
          %v5383 = vld [vmem:[%s10 + $0x38] sm:$0xf]
          %v5384 = vld [vmem:[%s10 + $0x3c] sm:$0xf]
          %v5385 = vld [vmem:[%s11] sm:$0x1]
          %v5387 = vlaneseq
          %v5388 = vshrl.u32 %v5387, 7
          %v5389 = vsub.s32 0, %v5388
          %v5390 = vrot.slane %v5385, %v5389
          %v5408 = vunpack.c.l.b16 %v5369
          %v5409 = vunpack.c.l.b16 %v5370
          %v5410 = vunpack.c.l.b16 %v5371
          %v5411 = vunpack.c.l.b16 %v5372
          %v5412 = vunpack.c.l.b16 %v5373
          %v5413 = vunpack.c.l.b16 %v5374
          %v5414 = vunpack.c.l.b16 %v5375
          %v5415 = vunpack.c.l.b16 %v5376
          %v5416 = vunpack.c.l.b16 %v5377
          %v5417 = vunpack.c.l.b16 %v5378
          %v5418 = vunpack.c.l.b16 %v5379
          %v5419 = vunpack.c.l.b16 %v5380
          %v5420 = vunpack.c.l.b16 %v5381
          %v5421 = vunpack.c.l.b16 %v5382
          %v5422 = vunpack.c.l.b16 %v5383
          %v5423 = vunpack.c.l.b16 %v5384
          %v5424 = vpack.c.b16 %v5409, %v5408
          %v5425 = vpack.c.b16 %v5411, %v5410
          %v5426 = vpack.c.b16 %v5413, %v5412
          %v5427 = vpack.c.b16 %v5415, %v5414
          %v5428 = vpack.c.b16 %v5417, %v5416
          %v5429 = vpack.c.b16 %v5419, %v5418
          %v5430 = vpack.c.b16 %v5421, %v5420
          %v5431 = vpack.c.b16 %v5423, %v5422
          %5440 = vmatprep.subr.bf16.mxu0 0
          %5441 = vmatpush1.bf16.msra.mxu0 %v5431
          %5442 = vmatprep.subr.bf16.mxu0 0
          %5443 = vmatpush1.bf16.msra.mxu0 %v5430
          %5444 = vmatprep.subr.bf16.mxu0 0
          %5445 = vmatpush1.bf16.msra.mxu0 %v5429
          %5446 = vmatprep.subr.bf16.mxu0 0
          %5447 = vmatpush1.bf16.msra.mxu0 %v5428
          %5448 = vmatprep.subr.bf16.mxu0 0
          %5449 = vmatpush1.bf16.msra.mxu0 %v5427
          %5450 = vmatprep.subr.bf16.mxu0 0
          %5451 = vmatpush1.bf16.msra.mxu0 %v5426
          %5452 = vmatprep.subr.bf16.mxu0 0
          %5453 = vmatpush1.bf16.msra.mxu0 %v5425
          %5454 = vmatprep.subr.bf16.mxu0 0
          %5455 = vmatpush1.bf16.msra.mxu0 %v5424
          %5456 = vmatprep.subr.bf16.mxu0 0
          %5457 = vmatpush2.bf16.msra.mxu0 0
          %5458 = vmatprep.subr.bf16.mxu0 0
          %5459 = vmatpush2.bf16.msra.mxu0 0
          %5460 = vmatprep.subr.bf16.mxu0 0
          %5461 = vmatpush2.bf16.msra.mxu0 0
          %5462 = vmatprep.subr.bf16.mxu0 0
          %5463 = vmatpush2.bf16.msra.mxu0 0
          %5464 = vmatprep.subr.bf16.mxu0 0
          %5465 = vmatpush2.bf16.msra.mxu0 0
          %5466 = vmatprep.subr.bf16.mxu0 0
          %5467 = vmatpush2.bf16.msra.mxu0 0
          %5468 = vmatprep.subr.bf16.mxu0 0
          %5469 = vmatpush2.bf16.msra.mxu0 0
          %5470 = vmatprep.subr.bf16.mxu0 0
          %5471 = vmatpush2.bf16.msra.mxu0 0
          %5472 = vmatprep.mubr.bf16.mxu0 0
          %5473 = vmatmul.mubr.bf16.gmra.mxu0 %v5367
          %v5474 = vpop.f32.mrf.mxu0
          %v5475 = vadd.f32 %v5390, %v5474
          %v5476 = vpop.f32.mrf.mxu0
          %v5477 = vpop.f32.mrf.mxu0
          %v5478 = vadd.f32 %v5390, %v5477
          %v5479 = vpop.f32.mrf.mxu0
          %5480 = vmatprep.mubr.bf16.mxu0 0
          %5481 = vmatmul.mubr.bf16.gmra.mxu0 %v5368
          %v5482 = vpop.f32.mrf.mxu0
          %v5483 = vadd.f32 %v5390, %v5482
          %v5484 = vpop.f32.mrf.mxu0
          %v5485 = vpop.f32.mrf.mxu0
          %v5486 = vadd.f32 %v5390, %v5485
          %v5487 = vpop.f32.mrf.mxu0
          %5488 = vdwg.mxu0
          %v5489 = vmax.f32 %v5475, 0.0
          %v5490 = vmax.f32 %v5478, 0.0
          %v5491 = vmax.f32 %v5483, 0.0
          %v5492 = vmax.f32 %v5486, 0.0
          %v5493 = vpack.c.bf16 %v5490, %v5489
          %v5494 = vpack.c.bf16 %v5492, %v5491
          %v5495 = vld [vmem:[%s12] sm:$0xf]
          %v5496 = vld [vmem:[%s12 + $0x4] sm:$0xf]
          %v5497 = vld [vmem:[%s12 + $0x8] sm:$0xf]
          %v5498 = vld [vmem:[%s12 + $0xc] sm:$0xf]
          %v5499 = vld [vmem:[%s13] sm:$0x1]
          %v5501 = vlaneseq
          %v5502 = vshrl.u32 %v5501, 7
          %v5503 = vsub.s32 0, %v5502
          %v5504 = vrot.slane %v5499, %v5503
          %v5510 = vunpack.c.l.b16 %v5495
          %v5511 = vunpack.c.l.b16 %v5496
          %v5512 = vunpack.c.l.b16 %v5497
          %v5513 = vunpack.c.l.b16 %v5498
          %v5514 = vpack.c.b16 %v5511, %v5510
          %v5515 = vpack.c.b16 %v5513, %v5512
          %vm5518 = vcmask 261120
          %v5520 = vsel %vm5518, %v5493, 0
          %v5523 = vsel %vm5518, %v5494, 0
          %5525 = vmatprep.subr.bf16.mxu0 0
          %5526 = vmatpush1.bf16.msra.mxu0 0
          %5527 = vmatprep.subr.bf16.mxu0 0
          %5528 = vmatpush1.bf16.msra.mxu0 0
          %5529 = vmatprep.subr.bf16.mxu0 0
          %5530 = vmatpush1.bf16.msra.mxu0 0
          %5531 = vmatprep.subr.bf16.mxu0 0
          %5532 = vmatpush1.bf16.msra.mxu0 0
          %5533 = vmatprep.subr.bf16.mxu0 0
          %5534 = vmatpush1.bf16.msra.mxu0 0
          %5535 = vmatprep.subr.bf16.mxu0 0
          %5536 = vmatpush1.bf16.msra.mxu0 0
          %5537 = vmatprep.subr.bf16.mxu0 0
          %5538 = vmatpush1.bf16.msra.mxu0 %v5515
          %5539 = vmatprep.subr.bf16.mxu0 0
          %5540 = vmatpush1.bf16.msra.mxu0 %v5514
          %5541 = vmatprep.subr.bf16.mxu0 0
          %5542 = vmatpush2.bf16.msra.mxu0 0
          %5543 = vmatprep.subr.bf16.mxu0 0
          %5544 = vmatpush2.bf16.msra.mxu0 0
          %5545 = vmatprep.subr.bf16.mxu0 0
          %5546 = vmatpush2.bf16.msra.mxu0 0
          %5547 = vmatprep.subr.bf16.mxu0 0
          %5548 = vmatpush2.bf16.msra.mxu0 0
          %5549 = vmatprep.subr.bf16.mxu0 0
          %5550 = vmatpush2.bf16.msra.mxu0 0
          %5551 = vmatprep.subr.bf16.mxu0 0
          %5552 = vmatpush2.bf16.msra.mxu0 0
          %5553 = vmatprep.subr.bf16.mxu0 0
          %5554 = vmatpush2.bf16.msra.mxu0 0
          %5555 = vmatprep.subr.bf16.mxu0 0
          %5556 = vmatpush2.bf16.msra.mxu0 0
          %5557 = vmatprep.mubr.bf16.mxu0 0
          %5558 = vmatmul.mubr.bf16.gmra.mxu0 %v5520
          %v5559 = vpop.f32.mrf.mxu0
          %v5560 = vadd.f32 %v5504, %v5559
          %v5561 = vpop.f32.mrf.mxu0
          %v5562 = vpop.f32.mrf.mxu0
          %v5563 = vadd.f32 %v5504, %v5562
          %v5564 = vpop.f32.mrf.mxu0
          %5565 = vmatprep.mubr.bf16.mxu0 0
          %5566 = vmatmul.mubr.bf16.gmra.mxu0 %v5523
          %v5567 = vpop.f32.mrf.mxu0
          %v5568 = vadd.f32 %v5504, %v5567
          %v5569 = vpop.f32.mrf.mxu0
          %v5570 = vpop.f32.mrf.mxu0
          %v5571 = vadd.f32 %v5504, %v5570
          %v5572 = vpop.f32.mrf.mxu0
          %5573 = vdwg.mxu0
          %v5574 = vmax.f32 %v5560, 0.0
          %v5575 = vmax.f32 %v5563, 0.0
          %v5576 = vmax.f32 %v5568, 0.0
          %v5577 = vmax.f32 %v5571, 0.0
          %v5578 = vpack.c.bf16 %v5575, %v5574
          %v5579 = vpack.c.bf16 %v5577, %v5576
          %v5580 = vld [vmem:[%s14] sm:$0xf]
          %v5581 = vld [vmem:[%s14 + $0x4] sm:$0xf]
          %v5582 = vld [vmem:[%s14 + $0x8] sm:$0xf]
          %v5583 = vld [vmem:[%s14 + $0xc] sm:$0xf]
          %v5588 = vunpack.c.l.b16 %v5580
          %v5589 = vunpack.c.l.b16 %v5581
          %v5590 = vunpack.c.l.b16 %v5582
          %v5591 = vunpack.c.l.b16 %v5583
          %v5592 = vpack.c.b16 %v5589, %v5588
          %v5593 = vpack.c.b16 %v5591, %v5590
          %v5597 = vsel %vm5518, %v5578, 0
          %v5600 = vsel %vm5518, %v5579, 0
          %5602 = vmatprep.subr.bf16.mxu0 0
          %5603 = vmatpush1.bf16.msra.mxu0 0
          %5604 = vmatprep.subr.bf16.mxu0 0
          %5605 = vmatpush1.bf16.msra.mxu0 0
          %5606 = vmatprep.subr.bf16.mxu0 0
          %5607 = vmatpush1.bf16.msra.mxu0 0
          %5608 = vmatprep.subr.bf16.mxu0 0
          %5609 = vmatpush1.bf16.msra.mxu0 0
          %5610 = vmatprep.subr.bf16.mxu0 0
          %5611 = vmatpush1.bf16.msra.mxu0 0
          %5612 = vmatprep.subr.bf16.mxu0 0
          %5613 = vmatpush1.bf16.msra.mxu0 0
          %5614 = vmatprep.subr.bf16.mxu0 0
          %5615 = vmatpush1.bf16.msra.mxu0 %v5593
          %5616 = vmatprep.subr.bf16.mxu0 0
          %5617 = vmatpush1.bf16.msra.mxu0 %v5592
          %5618 = vmatprep.subr.bf16.mxu0 0
          %5619 = vmatpush2.bf16.msra.mxu0 0
          %5620 = vmatprep.subr.bf16.mxu0 0
          %5621 = vmatpush2.bf16.msra.mxu0 0
          %5622 = vmatprep.subr.bf16.mxu0 0
          %5623 = vmatpush2.bf16.msra.mxu0 0
          %5624 = vmatprep.subr.bf16.mxu0 0
          %5625 = vmatpush2.bf16.msra.mxu0 0
          %5626 = vmatprep.subr.bf16.mxu0 0
          %5627 = vmatpush2.bf16.msra.mxu0 0
          %5628 = vmatprep.subr.bf16.mxu0 0
          %5629 = vmatpush2.bf16.msra.mxu0 0
          %5630 = vmatprep.subr.bf16.mxu0 0
          %5631 = vmatpush2.bf16.msra.mxu0 0
          %5632 = vmatprep.subr.bf16.mxu0 0
          %5633 = vmatpush2.bf16.msra.mxu0 0
          %5634 = vmatprep.mubr.bf16.mxu0 0
          %5635 = vmatmul.mubr.bf16.gmra.mxu0 %v5597
          %v5636 = vpop.f32.mrf.mxu0
          %v5637 = vadd.f32 0.0, %v5636
          %v5638 = vpop.f32.mrf.mxu0
          %v5639 = vpop.f32.mrf.mxu0
          %v5640 = vadd.f32 0.0, %v5639
          %v5641 = vpop.f32.mrf.mxu0
          %5642 = vmatprep.mubr.bf16.mxu0 0
          %5643 = vmatmul.mubr.bf16.gmra.mxu0 %v5600
          %v5644 = vpop.f32.mrf.mxu0
          %v5645 = vadd.f32 0.0, %v5644
          %v5646 = vpop.f32.mrf.mxu0
          %v5647 = vpop.f32.mrf.mxu0
          %v5648 = vadd.f32 0.0, %v5647
          %v5649 = vpop.f32.mrf.mxu0
          %5650 = vdwg.mxu0
          %v5651 = vadd.f32 %v5363, %v5637
          %v5652 = vadd.f32 %v5364, %v5640
          %v5653 = vadd.f32 %v5365, %v5645
          %v5654 = vadd.f32 %v5366, %v5648
          %v5655 = vld [vmem:[%s15] sm:$0x1]
          %v5657 = vlaneseq
          %v5658 = vshrl.u32 %v5657, 7
          %v5659 = vsub.s32 0, %v5658
          %v5660 = vrot.slane %v5655, %v5659
          %v5662 = vadd.f32 %v5651, %v5660
          %v5663 = vadd.f32 %v5652, %v5660
          %v5664 = vadd.f32 %v5653, %v5660
          %v5665 = vadd.f32 %v5654, %v5660
          %5666 = vst [vmem:[%s623] sm:$0xff] %v5662
          %5667 = vst [vmem:[%s623 + $0x8] sm:$0xff] %v5663
          %5668 = vst [vmem:[%s623 + $0x10] sm:$0xff] %v5664
          %5669 = vst [vmem:[%s623 + $0x18] sm:$0xff] %v5665
        $region108: #{tpu_custom_call.1} parent=83 // pred_fallthru
          _
        %s5670 = sand.u32 %s409, 1
        %s5671 = scalar_lea.sflag [#allocation8], %s5670
        %s5672 = sand.u32 %s409, 1
        %s5673 = smul.addr %s5672, 32
        %s5674 = scalar_lea.vmem [#allocation14], %s5673
        // Predicated region
        $region109: #{tpu_custom_call.1} parent=83 // pred_check
          %p5675 = pneg %p419
        $region110: #{tpu_custom_call.1} parent=83 // pred_check_branch
          %5677 = sbr.rel (%p5675) target = $region112
        $region111: #{tpu_custom_call.1} parent=83 // pred_region
          %s5678 = smul.u32 4, %s37
          %s5680 = ssub.s32 512, 512
          %5681 = vsyncadd %s5671, %s5680
          %s5682 = smul.addr %s5678, 128
          %s5683 = scalar_lea.hbm %s16, %s5682
          %s5684 = sshll.u32 %s5674, 4
          %s5685 = int_to_ptr.vmem [resolvable:$true] %s5684
          %5690 = dma.vmem_to_hbm [thread:$0]  %s5685, 512, %s5683, %s5671, 128, 128, 8
        $region112: #{tpu_custom_call.1} parent=83 // pred_fallthru
          _
      $region84: #{tpu_custom_call.1} parent=5 // pred_fallthru
        _
      %p5691 = scmp.le.s32.totalorder 2, %s28
      // Predicated region
      $region113: #{tpu_custom_call.1} parent=5 // pred_check
        %p5692 = pneg %p5691
      $region114: #{tpu_custom_call.1} parent=5 // pred_check_branch
        %5694 = sbr.rel (%p5692) target = $region116
      $region115: #{tpu_custom_call.1} parent=5 // pred_region
        %s5695 = ssub.s32 %s28, 2
        // Predicated region
        $region117: #{tpu_custom_call.1} parent=115 // pred_check
          %p5696 = pneg %p425
        $region118: #{tpu_custom_call.1} parent=115 // pred_check_branch
          %5698 = sbr.rel (%p5696) target = $region120
        $region119: #{tpu_custom_call.1} parent=115 // pred_region
          %s5699 = sand.u32 %s410, 1
          %s5700 = scalar_lea.sflag [#allocation8], %s5699
          %s5701 = sand.u32 %s410, 1
          %s5702 = smul.addr %s5701, 32
          %s5703 = scalar_lea.vmem [#allocation14], %s5702
          %5704 = dma.done %s5700, 512
        $region120: #{tpu_custom_call.1} parent=115 // pred_fallthru
          _
      $region116: #{tpu_custom_call.1} parent=5 // pred_fallthru
        _
    $region6: #{tpu_custom_call.1} parent=1 // loop_footer
      %s32 = sadd.s32 1, %s28
    $region7: #{tpu_custom_call.1} parent=1 // loop_footer_branch
      %27 = sbr.rel target = $region3
    $region8: #{tpu_custom_call.1} parent=1 // loop_exit
      _
    %5705 = vsyncpa [#allocation7], 1
    %s5706 = scalar_lea.sflag [#allocation7], 1
    %5707 = vsyncpa %s5706, 1
    %5708 = vsyncpa [#allocation10], 1
    %5709 = vsyncpa [#allocation13], 1
    %5710 = vsyncpa [#allocation8], 1
    %s5711 = scalar_lea.sflag [#allocation8], 1
    %5712 = vsyncpa %s5711, 1

</llo_original>
